<compile_context>
chip_gen: v5e
topology: v5e:2x2
jax: 0.10.0
libtpu: 0.0.40
codegen_flags: <defaults>
</compile_context>

<pallas_src>
import functools

import jax
import jax.numpy as jnp
from jax.experimental import pallas as pl
from jax.experimental.pallas import tpu as pltpu

EXPANSION = 4
EPS = 1e-5
# Interior column offset inside the conv2 pad scratch; multiple of 16 so the
# bulk bf16 interior store is sublane-tile aligned ([16,128] bf16 vregs).
_PAD_OFF = 16


def _round_up(x, m):
    return ((x + m - 1) // m) * m


def _budgets():
    """Generation-aware VMEM limit + per-block byte budget."""
    try:
        cap = int(pltpu.get_tpu_info().vmem_capacity_bytes)
    except Exception:
        cap = 64 * 1024 * 1024                      # conservative (v7x-sized) fallback
    vmem_limit = min((cap * 3) // 4, 96 * 1024 * 1024)   # 48 MiB v7x, 96 MiB v5e/v6e
    tile_budget = max(2 << 20, min(12 << 20, vmem_limit // 8))  # ~6 MiB v7x, ~12 MiB v5e/v6e
    return vmem_limit, tile_budget


def _pick_row_tile(m, bytes_per_row, target_bytes):
    """Largest multiple-of-16 divisor of m whose per-block footprint
    (bytes_per_row already includes every row-tiled array x buffer count)
    stays under target_bytes.  Falls back to multiples of 8, then to m."""
    limit = min(max(16, target_bytes // max(bytes_per_row, 1)),
                max(16, m // 2), m)
    for step in (16, 8):
        t = (limit // step) * step
        while t >= step:
            if m % t == 0:
                return t
            t -= step
    return m  # single full block (exempt from the divisibility rule)


# --------------------------- stage 1: conv1 (1x1) ----------------------------
def _conv1x1_stats_kernel(x_ref, w_ref, y_ref, st_ref):
    # 1x1 conv == row-tiled channel matmul; bf16 operands, f32 MXU accumulation.
    y = jnp.dot(x_ref[...].astype(jnp.bfloat16), w_ref[...],
                preferred_element_type=jnp.float32)
    y_ref[...] = y.astype(y_ref.dtype)            # bf16 inter-stage activation
    # lane-dense per-tile stats row: [sum | sumsq]
    st_ref[...] = jnp.concatenate(
        [jnp.sum(y, axis=0, keepdims=True),
         jnp.sum(y * y, axis=0, keepdims=True)], axis=1)[None]


# --------------------- stage 2: bn1+relu + conv2 (3x3) -----------------------
def _conv3x3_kernel(y1_ref, s1_ref, t1_ref, w2_ref, y2_ref, st_ref, pad_ref,
                    *, stride):
    _, H, W, P = y1_ref.shape
    Ho = (H - 1) // stride + 1
    Wo = (W - 1) // stride + 1
    off = _PAD_OFF
    bf16 = jnp.bfloat16

    # bn1 + relu in f32 (scale/shift pre-folded in the wrapper), stored bf16.
    a = jnp.maximum(
        y1_ref[...].astype(jnp.float32) * s1_ref[...] + t1_ref[...],
        0.0).astype(bf16)

    # Zero only the border cells the taps actually read (2-column slabs at
    # even offsets keep bf16 sublane packing aligned); the rest of the pad
    # scratch is never read and may hold garbage.  Re-zeroed every grid step
    # on purpose (per-core scratch under "parallel" semantics on v7x).
    zrow = jnp.zeros((1, W + 4, P), bf16)
    pad_ref[0:1, off - 2:off + W + 2, :] = zrow
    pad_ref[H + 1:H + 2, off - 2:off + W + 2, :] = zrow
    zcol = jnp.zeros((H, 2, P), bf16)
    pad_ref[1:H + 1, off - 2:off, :] = zcol
    pad_ref[1:H + 1, off + W:off + W + 2, :] = zcol
    pad_ref[1:H + 1, off:off + W, :] = a.reshape(H, W, P)

    # im2col in bf16, grouped by kernel row: 3 accumulating matmuls with
    # K = 3P each (fills the 128/256-deep MXU once P >= 64 while keeping the
    # patches buffer 3x smaller than a single 9P-wide one).
    w2 = w2_ref[...]
    acc = jnp.zeros((Ho * Wo, P), jnp.float32)
    for ky in range(3):
        taps = []
        for kx in range(3):
            c0 = off - 1 + kx
            if stride == 1:
                taps.append(pad_ref[ky:ky + Ho, c0:c0 + Wo, :])
            else:
                # TODO(synk): decimate once into parity buffers instead of 9
                # strided sublane reads for stride > 1 (v6e/v7x XLU pressure).
                taps.append(pad_ref[pl.ds(ky, Ho, stride=stride),
                                    pl.ds(c0, Wo, stride=stride), :])
        patch = jnp.concatenate(taps, axis=-1).reshape(Ho * Wo, 3 * P)
        acc = acc + jnp.dot(patch, w2[3 * P * ky:3 * P * (ky + 1), :],
                            preferred_element_type=jnp.float32)

    # Native matmul layout (rows, P): lane-dense store, no (Ho, Wo) relayout.
    y2_ref[...] = acc[None].astype(y2_ref.dtype)
    st_ref[...] = jnp.concatenate(
        [jnp.sum(acc, axis=0, keepdims=True),
         jnp.sum(acc * acc, axis=0, keepdims=True)], axis=1)[None]


# ---------------- stage 3: bn2+relu + conv3 (1x1) [+ projection] -------------
def _conv3_kernel(y2_ref, s2_ref, t2_ref, w3_ref, y3_ref, st_ref):
    # identity-shortcut variant: no projection output, no shortcut stats.
    y2n = jnp.maximum(
        y2_ref[...].astype(jnp.float32) * s2_ref[...] + t2_ref[...], 0.0)
    y3 = jnp.dot(y2n.astype(jnp.bfloat16), w3_ref[...],
                 preferred_element_type=jnp.float32)
    y3_ref[...] = y3.astype(y3_ref.dtype)
    st_ref[...] = jnp.concatenate(
        [jnp.sum(y3, axis=0, keepdims=True),
         jnp.sum(y3 * y3, axis=0, keepdims=True)], axis=1)[None]


def _conv3_proj_kernel(y2_ref, xs_ref, s2_ref, t2_ref, w3_ref, ws_ref,
                       y3_ref, sc_ref, st_ref):
    y2n = jnp.maximum(
        y2_ref[...].astype(jnp.float32) * s2_ref[...] + t2_ref[...], 0.0)
    y3 = jnp.dot(y2n.astype(jnp.bfloat16), w3_ref[...],
                 preferred_element_type=jnp.float32)
    sc = jnp.dot(xs_ref[...].astype(jnp.bfloat16), ws_ref[...],
                 preferred_element_type=jnp.float32)
    y3_ref[...] = y3.astype(y3_ref.dtype)
    sc_ref[...] = sc.astype(sc_ref.dtype)
    st_ref[...] = jnp.concatenate(
        [jnp.sum(y3, axis=0, keepdims=True),
         jnp.sum(y3 * y3, axis=0, keepdims=True),
         jnp.sum(sc, axis=0, keepdims=True),
         jnp.sum(sc * sc, axis=0, keepdims=True)], axis=1)[None]


# ------------------ stage 4: bn3 (+ bn_sc) + add + final relu ----------------
def _residual_finalize_kernel(y3_ref, sc_ref, s3_ref, t3_ref, ss_ref, ts_ref,
                              o_ref):
    o_ref[...] = jnp.maximum(
        y3_ref[...].astype(jnp.float32) * s3_ref[...] + t3_ref[...]
        + sc_ref[...].astype(jnp.float32) * ss_ref[...] + ts_ref[...], 0.0)


# --------------------------------- wrapper -----------------------------------
def _bn_fold(stat_row, count, gamma, beta):
    """Fold batch stats + affine into per-channel (scale, shift), f32.
    stat_row = [sum(C) | sumsq(C)] packed lane-dense (length 2C)."""
    c = stat_row.shape[0] // 2
    mean = stat_row[:c] / count
    var = jnp.maximum(stat_row[c:] / count - mean * mean, 0.0)   # biased var
    scale = gamma.reshape(-1) * jax.lax.rsqrt(var + EPS)
    shift = beta.reshape(-1) - mean * scale
    return (scale.reshape(1, -1).astype(jnp.float32),
            shift.reshape(1, -1).astype(jnp.float32))


def bottleneck_forward(x_nchw, p, stride, has_shortcut):
    """Pallas-backed Bottleneck forward (training-mode BN).  I/O are NCHW."""
    # TODO(synk): drop the NCHW<->NHWC transposes once the surrounding model
    # is NHWC end-to-end; each one is a full-array HBM relayout.
    x = jnp.transpose(x_nchw, (0, 2, 3, 1)).astype(jnp.float32)      # -> NHWC
    B, H, W, Cin = x.shape
    P = p["w1"].shape[1]
    Cout = p["w3"].shape[1]
    Ho = (H - 1) // stride + 1
    Wo = (W - 1) // stride + 1
    M1 = B * H * W
    M3 = B * Ho * Wo
    if not has_shortcut:
        assert stride == 1 and Cin == Cout, "identity shortcut needs same shape"

    bf16 = jnp.bfloat16
    w1 = p["w1"].astype(bf16)                        # (Cin, P)
    w2r = p["w2"].reshape(9 * P, P).astype(bf16)     # HWIO -> (9P, P), tap-major
    w3 = p["w3"].astype(bf16)                        # (P, Cout)

    vmem_limit, tile_budget = _budgets()
    cparams = pltpu.CompilerParams(
        dimension_semantics=("parallel",), vmem_limit_bytes=vmem_limit)

    # ---- stage 1: conv1 (1x1), row-tiled, bf16 output + partial BN1 stats ----
    x2d = x.reshape(M1, Cin)
    tm1 = _pick_row_tile(M1, 2 * (4 * Cin + 2 * P), tile_budget)
    nt1 = M1 // tm1
    y1_2d, st1 = pl.pallas_call(
        _conv1x1_stats_kernel,
        out_shape=(jax.ShapeDtypeStruct((M1, P), bf16),
                   jax.ShapeDtypeStruct((nt1, 1, 2 * P), jnp.float32)),
        grid=(nt1,),
        in_specs=[pl.BlockSpec((tm1, Cin), lambda i: (i, 0)),
                  pl.BlockSpec((Cin, P), lambda i: (0, 0))],
        out_specs=(pl.BlockSpec((tm1, P), lambda i: (i, 0)),
                   pl.BlockSpec((1, 1, 2 * P), lambda i: (i, 0, 0))),
        compiler_params=cparams,
    )(x2d, w1)
    scale1, shift1 = _bn_fold(jnp.sum(st1, axis=(0, 1)), float(M1),
                              p["g1"], p["b1"])

    # ---- stage 2: bn1+relu + conv2 (3x3, stride, pad=1), per image ----
    # TODO(synk): row-strip tile this stage (halo of stride*th+2 y1 rows) so
    # v7x megacore gets a grid longer than B and pad/patches shrink further.
    y1_4d = y1_2d.reshape(B, H, W, P)
    wp = _round_up(_PAD_OFF + W + 2, 16)
    y2_3d, st2 = pl.pallas_call(
        functools.partial(_conv3x3_kernel, stride=stride),
        out_shape=(jax.ShapeDtypeStruct((B, Ho * Wo, P), bf16),
                   jax.ShapeDtypeStruct((B, 1, 2 * P), jnp.float32)),
        grid=(B,),
        in_specs=[pl.BlockSpec((1, H, W, P), lambda b: (b, 0, 0, 0)),
                  pl.BlockSpec((1, P), lambda b: (0, 0)),
                  pl.BlockSpec((1, P), lambda b: (0, 0)),
                  pl.BlockSpec((9 * P, P), lambda b: (0, 0))],
        out_specs=(pl.BlockSpec((1, Ho * Wo, P), lambda b: (b, 0, 0)),
                   pl.BlockSpec((1, 1, 2 * P), lambda b: (b, 0, 0))),
        scratch_shapes=[pltpu.VMEM((H + 2, wp, P), bf16)],
        compiler_params=cparams,
    )(y1_4d, scale1, shift1, w2r)
    scale2, shift2 = _bn_fold(jnp.sum(st2, axis=(0, 1)), float(M3),
                              p["g2"], p["b2"])

    # ---- stage 3: bn2+relu + conv3 (1x1) [+ shortcut projection], row-tiled --
    y2_2d = y2_3d.reshape(M3, P)
    if has_shortcut:
        ws = p["ws"].astype(bf16)                    # (Cin, Cout)
        xs_2d = (x if stride == 1
                 else x[:, ::stride, ::stride, :]).reshape(M3, Cin)
        tm3 = _pick_row_tile(M3, 2 * (2 * P + 4 * Cin + 4 * Cout), tile_budget)
        nt3 = M3 // tm3
        y3_2d, sc_2d, st3 = pl.pallas_call(
            _conv3_proj_kernel,
            out_shape=(jax.ShapeDtypeStruct((M3, Cout), bf16),
                       jax.ShapeDtypeStruct((M3, Cout), bf16),
                       jax.ShapeDtypeStruct((nt3, 1, 4 * Cout), jnp.float32)),
            grid=(nt3,),
            in_specs=[pl.BlockSpec((tm3, P), lambda i: (i, 0)),
                      pl.BlockSpec((tm3, Cin), lambda i: (i, 0)),
                      pl.BlockSpec((1, P), lambda i: (0, 0)),
                      pl.BlockSpec((1, P), lambda i: (0, 0)),
                      pl.BlockSpec((P, Cout), lambda i: (0, 0)),
                      pl.BlockSpec((Cin, Cout), lambda i: (0, 0))],
            out_specs=(pl.BlockSpec((tm3, Cout), lambda i: (i, 0)),
                       pl.BlockSpec((tm3, Cout), lambda i: (i, 0)),
                       pl.BlockSpec((1, 1, 4 * Cout), lambda i: (i, 0, 0))),
            compiler_params=cparams,
        )(y2_2d, xs_2d, scale2, shift2, w3, ws)
        s3 = jnp.sum(st3, axis=(0, 1))
        scale3, shift3 = _bn_fold(s3[:2 * Cout], float(M3), p["g3"], p["b3"])
        scale_s, shift_s = _bn_fold(s3[2 * Cout:], float(M3), p["gs"], p["bs"])
    else:
        # identity shortcut: x feeds stage 4 directly (no HBM round trip,
        # no wasted shortcut stats).
        tm3 = _pick_row_tile(M3, 2 * (2 * P + 2 * Cout), tile_budget)
        nt3 = M3 // tm3
        y3_2d, st3 = pl.pallas_call(
            _conv3_kernel,
            out_shape=(jax.ShapeDtypeStruct((M3, Cout), bf16),
                       jax.ShapeDtypeStruct((nt3, 1, 2 * Cout), jnp.float32)),
            grid=(nt3,),
            in_specs=[pl.BlockSpec((tm3, P), lambda i: (i, 0)),
                      pl.BlockSpec((1, P), lambda i: (0, 0)),
                      pl.BlockSpec((1, P), lambda i: (0, 0)),
                      pl.BlockSpec((P, Cout), lambda i: (0, 0))],
            out_specs=(pl.BlockSpec((tm3, Cout), lambda i: (i, 0)),
                       pl.BlockSpec((1, 1, 2 * Cout), lambda i: (i, 0, 0))),
            compiler_params=cparams,
        )(y2_2d, scale2, shift2, w3)
        scale3, shift3 = _bn_fold(jnp.sum(st3, axis=(0, 1)), float(M3),
                                  p["g3"], p["b3"])
        sc_2d = x.reshape(M3, Cout)                  # f32, read once in stage 4
        scale_s = jnp.ones((1, Cout), jnp.float32)
        shift_s = jnp.zeros((1, Cout), jnp.float32)

    # ---- stage 4: bn3 (+ bn_sc) + residual add + final relu, row-tiled ----
    sc_bytes = 2 if sc_2d.dtype == jnp.bfloat16 else 4
    tm4 = _pick_row_tile(M3, 2 * (2 + sc_bytes + 4) * Cout,
                         max(tile_budget, vmem_limit // 3))
    nt4 = M3 // tm4
    out_2d = pl.pallas_call(
        _residual_finalize_kernel,
        out_shape=jax.ShapeDtypeStruct((M3, Cout), jnp.float32),
        grid=(nt4,),
        in_specs=[pl.BlockSpec((tm4, Cout), lambda i: (i, 0)),
                  pl.BlockSpec((tm4, Cout), lambda i: (i, 0)),
                  pl.BlockSpec((1, Cout), lambda i: (0, 0)),
                  pl.BlockSpec((1, Cout), lambda i: (0, 0)),
                  pl.BlockSpec((1, Cout), lambda i: (0, 0)),
                  pl.BlockSpec((1, Cout), lambda i: (0, 0))],
        out_specs=pl.BlockSpec((tm4, Cout), lambda i: (i, 0)),
        compiler_params=cparams,
    )(y3_2d, sc_2d, scale3, shift3, scale_s, shift_s)

    out = out_2d.reshape(B, Ho, Wo, Cout)
    return jnp.transpose(out, (0, 3, 1, 2))                         # -> NCHW


# ----------------------------- pure-JAX reference ----------------------------
def bottleneck_reference(x_nchw, p, stride, has_shortcut):
    x = jnp.transpose(x_nchw, (0, 2, 3, 1)).astype(jnp.float32)

    def conv(x, w, s, pad):
        return jax.lax.conv_general_dilated(
            x, w, (s, s), [(pad, pad)] * 2,
            dimension_numbers=("NHWC", "HWIO", "NHWC"),
            precision=jax.lax.Precision.HIGHEST)

    def bn(y, g, b):
        m = jnp.mean(y, axis=(0, 1, 2), keepdims=True)
        v = jnp.mean((y - m) ** 2, axis=(0, 1, 2), keepdims=True)
        return (y - m) * jax.lax.rsqrt(v + EPS) * g.reshape(1, 1, 1, -1) \
            + b.reshape(1, 1, 1, -1)

    y = jax.nn.relu(bn(conv(x, p["w1"][None, None], 1, 0), p["g1"], p["b1"]))
    y = jax.nn.relu(bn(conv(y, p["w2"], stride, 1), p["g2"], p["b2"]))
    y = bn(conv(y, p["w3"][None, None], 1, 0), p["g3"], p["b3"])
    if has_shortcut:
        sc = bn(conv(x, p["ws"][None, None], stride, 0), p["gs"], p["bs"])
    else:
        sc = x
    return jnp.transpose(jax.nn.relu(y + sc), (0, 3, 1, 2))


def _make_params(key, cin, planes, has_shortcut):
    cout = EXPANSION * planes
    ks = jax.random.split(key, 14)

    def nrm(k, shape, scale=0.3):
        return (scale * jax.random.normal(k, shape)).astype(jnp.float32)

    p = {
        "w1": nrm(ks[1], (cin, planes)),
        "g1": (1.0 + nrm(ks[2], (1, planes), 0.1)).astype(jnp.float32),
        "b1": nrm(ks[3], (1, planes), 0.1),
        "w2": nrm(ks[4], (3, 3, planes, planes)),
        "g2": (1.0 + nrm(ks[5], (1, planes), 0.1)).astype(jnp.float32),
        "b2": nrm(ks[6], (1, planes), 0.1),
        "w3": nrm(ks[7], (planes, cout)),
        "g3": (1.0 + nrm(ks[8], (1, cout), 0.1)).astype(jnp.float32),
        "b3": nrm(ks[9], (1, cout), 0.1),
    }
    if has_shortcut:
        p["ws"] = nrm(ks[10], (cin, cout))
        p["gs"] = (1.0 + nrm(ks[11], (1, cout), 0.1)).astype(jnp.float32)
        p["bs"] = nrm(ks[12], (1, cout), 0.1)
    return p


if __name__ == "__main__":
    key = jax.random.PRNGKey(0)
    k_cases = jax.random.split(key, 4)

    # (B, Cin, H, W, planes, stride):
    #   case 0: projection shortcut (Cin != expansion*planes)
    #   case 1: identity shortcut   (Cin == expansion*planes, stride 1)
    cases = [
        (2, 4, 16, 16, 4, 1),
        (2, 16, 16, 16, 4, 1),
    ]
    for idx, (B, Cin, H, W, planes, stride) in enumerate(cases):
        Cout = EXPANSION * planes
        has_shortcut = (stride != 1) or (Cin != Cout)
        kx, kp = jax.random.split(k_cases[idx])
        x_nchw = jax.random.normal(kx, (B, Cin, H, W), jnp.float32)
        params = _make_params(kp, Cin, planes, has_shortcut)

        fwd = jax.jit(functools.partial(bottleneck_forward, stride=stride,
                                        has_shortcut=has_shortcut))
        out = jax.block_until_ready(fwd(x_nchw, params))

        ref = bottleneck_reference(x_nchw, params, stride, has_shortcut)
        assert out.shape == ref.shape == (B, Cout, H // stride, W // stride), \
            (idx, out.shape)
        # Tolerance accounts for bf16 MXU operands *and* bf16-stored
        # intermediate activations vs the f32 HIGHEST-precision reference,
        # compounded over 3 conv+BN stages.
        max_err = float(jnp.max(jnp.abs(out - ref)))
        assert jnp.allclose(out, ref, atol=1e-1, rtol=1e-1), \
            f"case {idx}: max_err={max_err}"

    print("KERNEL_OK")
</pallas_src>

<mosaic_0001>
module attributes {stable_mosaic.version = 11 : i64} {
  func.func @_conv3x3_kernel(%arg0: i32, %arg1: memref<1x16x16x4xbf16, #tpu.memory_space<vmem>>, %arg2: memref<1x4xf32, #tpu.memory_space<vmem>>, %arg3: memref<1x4xf32, #tpu.memory_space<vmem>>, %arg4: memref<36x4xbf16, #tpu.memory_space<vmem>>, %arg5: memref<1x256x4xbf16, #tpu.memory_space<vmem>>, %arg6: memref<1x1x8xf32, #tpu.memory_space<vmem>>, %arg7: memref<18x48x4xbf16, #tpu.memory_space<vmem>>) attributes {dimension_semantics = [#tpu.dimension_semantics<parallel>], iteration_bounds = array<i64: 2>, scalar_prefetch = 0 : i64, scratch_operands = 1 : i64, tpu.core_type = #tpu.core_type<tc>, window_params = [{transform_indices = @transform_0, window_bounds = array<i64: 1, 16, 16, 4>}, {pipeline_mode = #tpu.pipeline_mode<synchronous>, transform_indices = @transform_1, window_bounds = array<i64: 1, 4>}, {pipeline_mode = #tpu.pipeline_mode<synchronous>, transform_indices = @transform_2, window_bounds = array<i64: 1, 4>}, {pipeline_mode = #tpu.pipeline_mode<synchronous>, transform_indices = @transform_3, window_bounds = array<i64: 36, 4>}, {transform_indices = @transform_4, window_bounds = array<i64: 1, 256, 4>}, {transform_indices = @transform_5, window_bounds = array<i64: 1, 1, 8>}]} {
    %c0 = arith.constant 0 : index
    %c0_0 = arith.constant 0 : index
    %c0_1 = arith.constant 0 : index
    %c0_2 = arith.constant 0 : index
    %0 = vector.load %arg1[%c0, %c0_0, %c0_1, %c0_2] : memref<1x16x16x4xbf16, #tpu.memory_space<vmem>>, vector<1x16x16x4xbf16>
    %1 = arith.extf %0 : vector<1x16x16x4xbf16> to vector<1x16x16x4xf32>
    %c0_3 = arith.constant 0 : index
    %c0_4 = arith.constant 0 : index
    %2 = vector.load %arg2[%c0_3, %c0_4] : memref<1x4xf32, #tpu.memory_space<vmem>>, vector<1x4xf32>
    %3 = vector.shape_cast %2 : vector<1x4xf32> to vector<1x1x1x4xf32>
    %4 = vector.broadcast %3 : vector<1x1x1x4xf32> to vector<1x16x16x4xf32>
    %5 = arith.mulf %1, %4 : vector<1x16x16x4xf32>
    %c0_5 = arith.constant 0 : index
    %c0_6 = arith.constant 0 : index
    %6 = vector.load %arg3[%c0_5, %c0_6] : memref<1x4xf32, #tpu.memory_space<vmem>>, vector<1x4xf32>
    %7 = vector.shape_cast %6 : vector<1x4xf32> to vector<1x1x1x4xf32>
    %8 = vector.broadcast %7 : vector<1x1x1x4xf32> to vector<1x16x16x4xf32>
    %9 = arith.addf %5, %8 : vector<1x16x16x4xf32>
    %cst = arith.constant 0.000000e+00 : f32
    %10 = vector.broadcast %cst : f32 to vector<1x16x16x4xf32>
    %11 = arith.maximumf %9, %10 : vector<1x16x16x4xf32>
    %12 = arith.truncf %11 : vector<1x16x16x4xf32> to vector<1x16x16x4xbf16>
    %cst_7 = arith.constant 0.000000e+00 : bf16
    %13 = vector.broadcast %cst_7 : bf16 to vector<1x20x4xbf16>
    %c0_8 = arith.constant 0 : index
    %c14 = arith.constant 14 : index
    %c0_9 = arith.constant 0 : index
    %14 = vector.load %arg7[%c0_8, %c14, %c0_9] : memref<18x48x4xbf16, #tpu.memory_space<vmem>>, vector<1x20x4xbf16>
    tpu.vector_store %arg7[%c0_8, %c14, %c0_9], %13 {strides = array<i32>} : memref<18x48x4xbf16, #tpu.memory_space<vmem>>, vector<1x20x4xbf16>,
    %c17 = arith.constant 17 : index
    %c14_10 = arith.constant 14 : index
    %c0_11 = arith.constant 0 : index
    %15 = vector.load %arg7[%c17, %c14_10, %c0_11] : memref<18x48x4xbf16, #tpu.memory_space<vmem>>, vector<1x20x4xbf16>
    tpu.vector_store %arg7[%c17, %c14_10, %c0_11], %13 {strides = array<i32>} : memref<18x48x4xbf16, #tpu.memory_space<vmem>>, vector<1x20x4xbf16>,
    %cst_12 = arith.constant 0.000000e+00 : bf16
    %16 = vector.broadcast %cst_12 : bf16 to vector<16x2x4xbf16>
    %c1 = arith.constant 1 : index
    %c14_13 = arith.constant 14 : index
    %c0_14 = arith.constant 0 : index
    %17 = vector.load %arg7[%c1, %c14_13, %c0_14] : memref<18x48x4xbf16, #tpu.memory_space<vmem>>, vector<16x2x4xbf16>
    tpu.vector_store %arg7[%c1, %c14_13, %c0_14], %16 {strides = array<i32>} : memref<18x48x4xbf16, #tpu.memory_space<vmem>>, vector<16x2x4xbf16>,
    %c1_15 = arith.constant 1 : index
    %c32 = arith.constant 32 : index
    %c0_16 = arith.constant 0 : index
    %18 = vector.load %arg7[%c1_15, %c32, %c0_16] : memref<18x48x4xbf16, #tpu.memory_space<vmem>>, vector<16x2x4xbf16>
    tpu.vector_store %arg7[%c1_15, %c32, %c0_16], %16 {strides = array<i32>} : memref<18x48x4xbf16, #tpu.memory_space<vmem>>, vector<16x2x4xbf16>,
    %19 = vector.shape_cast %12 : vector<1x16x16x4xbf16> to vector<16x16x4xbf16>
    %c1_17 = arith.constant 1 : index
    %c16 = arith.constant 16 : index
    %c0_18 = arith.constant 0 : index
    %20 = vector.load %arg7[%c1_17, %c16, %c0_18] : memref<18x48x4xbf16, #tpu.memory_space<vmem>>, vector<16x16x4xbf16>
    tpu.vector_store %arg7[%c1_17, %c16, %c0_18], %19 {strides = array<i32>} : memref<18x48x4xbf16, #tpu.memory_space<vmem>>, vector<16x16x4xbf16>,
    %c0_19 = arith.constant 0 : index
    %c0_20 = arith.constant 0 : index
    %21 = vector.load %arg4[%c0_19, %c0_20] : memref<36x4xbf16, #tpu.memory_space<vmem>>, vector<36x4xbf16>
    %cst_21 = arith.constant 0.000000e+00 : f32
    %22 = vector.broadcast %cst_21 : f32 to vector<256x4xf32>
    %c0_22 = arith.constant 0 : index
    %c15 = arith.constant 15 : index
    %c0_23 = arith.constant 0 : index
    %23 = vector.load %arg7[%c0_22, %c15, %c0_23] : memref<18x48x4xbf16, #tpu.memory_space<vmem>>, vector<16x16x4xbf16>
    %c0_24 = arith.constant 0 : index
    %c16_25 = arith.constant 16 : index
    %c0_26 = arith.constant 0 : index
    %24 = vector.load %arg7[%c0_24, %c16_25, %c0_26] : memref<18x48x4xbf16, #tpu.memory_space<vmem>>, vector<16x16x4xbf16>
    %c0_27 = arith.constant 0 : index
    %c17_28 = arith.constant 17 : index
    %c0_29 = arith.constant 0 : index
    %25 = vector.load %arg7[%c0_27, %c17_28, %c0_29] : memref<18x48x4xbf16, #tpu.memory_space<vmem>>, vector<16x16x4xbf16>
    %26 = tpu.concatenate %23, %24, %25 in 2 : vector<16x16x4xbf16>, vector<16x16x4xbf16>, vector<16x16x4xbf16> -> vector<16x16x12xbf16>
    %27 = vector.shape_cast %26 : vector<16x16x12xbf16> to vector<256x12xbf16>
    %28 = vector.extract_strided_slice %21 {offsets = [0, 0], sizes = [12, 4], strides = [1, 1]} : vector<36x4xbf16> to vector<12x4xbf16>
    %cst_30 = arith.constant dense<0.000000e+00> : vector<256x4xf32>
    %29 = tpu.matmul %27, %28, %cst_30 {dimension_numbers = #tpu.dot_dimension_numbers<[1], [0], [0], [1], [0, 0, 1, 1], [], []>} : vector<256x12xbf16>, vector<12x4xbf16>, vector<256x4xf32> -> vector<256x4xf32>
    %30 = arith.addf %22, %29 : vector<256x4xf32>
    %c1_31 = arith.constant 1 : index
    %c15_32 = arith.constant 15 : index
    %c0_33 = arith.constant 0 : index
    %31 = vector.load %arg7[%c1_31, %c15_32, %c0_33] : memref<18x48x4xbf16, #tpu.memory_space<vmem>>, vector<16x16x4xbf16>
    %c1_34 = arith.constant 1 : index
    %c16_35 = arith.constant 16 : index
    %c0_36 = arith.constant 0 : index
    %32 = vector.load %arg7[%c1_34, %c16_35, %c0_36] : memref<18x48x4xbf16, #tpu.memory_space<vmem>>, vector<16x16x4xbf16>
    %c1_37 = arith.constant 1 : index
    %c17_38 = arith.constant 17 : index
    %c0_39 = arith.constant 0 : index
    %33 = vector.load %arg7[%c1_37, %c17_38, %c0_39] : memref<18x48x4xbf16, #tpu.memory_space<vmem>>, vector<16x16x4xbf16>
    %34 = tpu.concatenate %31, %32, %33 in 2 : vector<16x16x4xbf16>, vector<16x16x4xbf16>, vector<16x16x4xbf16> -> vector<16x16x12xbf16>
    %35 = vector.shape_cast %34 : vector<16x16x12xbf16> to vector<256x12xbf16>
    %36 = vector.extract_strided_slice %21 {offsets = [12, 0], sizes = [12, 4], strides = [1, 1]} : vector<36x4xbf16> to vector<12x4xbf16>
    %cst_40 = arith.constant dense<0.000000e+00> : vector<256x4xf32>
    %37 = tpu.matmul %35, %36, %cst_40 {dimension_numbers = #tpu.dot_dimension_numbers<[1], [0], [0], [1], [0, 0, 1, 1], [], []>} : vector<256x12xbf16>, vector<12x4xbf16>, vector<256x4xf32> -> vector<256x4xf32>
    %38 = arith.addf %30, %37 : vector<256x4xf32>
    %c2 = arith.constant 2 : index
    %c15_41 = arith.constant 15 : index
    %c0_42 = arith.constant 0 : index
    %39 = vector.load %arg7[%c2, %c15_41, %c0_42] : memref<18x48x4xbf16, #tpu.memory_space<vmem>>, vector<16x16x4xbf16>
    %c2_43 = arith.constant 2 : index
    %c16_44 = arith.constant 16 : index
    %c0_45 = arith.constant 0 : index
    %40 = vector.load %arg7[%c2_43, %c16_44, %c0_45] : memref<18x48x4xbf16, #tpu.memory_space<vmem>>, vector<16x16x4xbf16>
    %c2_46 = arith.constant 2 : index
    %c17_47 = arith.constant 17 : index
    %c0_48 = arith.constant 0 : index
    %41 = vector.load %arg7[%c2_46, %c17_47, %c0_48] : memref<18x48x4xbf16, #tpu.memory_space<vmem>>, vector<16x16x4xbf16>
    %42 = tpu.concatenate %39, %40, %41 in 2 : vector<16x16x4xbf16>, vector<16x16x4xbf16>, vector<16x16x4xbf16> -> vector<16x16x12xbf16>
    %43 = vector.shape_cast %42 : vector<16x16x12xbf16> to vector<256x12xbf16>
    %44 = vector.extract_strided_slice %21 {offsets = [24, 0], sizes = [12, 4], strides = [1, 1]} : vector<36x4xbf16> to vector<12x4xbf16>
    %cst_49 = arith.constant dense<0.000000e+00> : vector<256x4xf32>
    %45 = tpu.matmul %43, %44, %cst_49 {dimension_numbers = #tpu.dot_dimension_numbers<[1], [0], [0], [1], [0, 0, 1, 1], [], []>} : vector<256x12xbf16>, vector<12x4xbf16>, vector<256x4xf32> -> vector<256x4xf32>
    %46 = arith.addf %38, %45 : vector<256x4xf32>
    %47 = vector.shape_cast %46 : vector<256x4xf32> to vector<1x256x4xf32>
    %48 = arith.truncf %47 : vector<1x256x4xf32> to vector<1x256x4xbf16>
    %c0_50 = arith.constant 0 : index
    %c0_51 = arith.constant 0 : index
    %c0_52 = arith.constant 0 : index
    %49 = vector.load %arg5[%c0_50, %c0_51, %c0_52] : memref<1x256x4xbf16, #tpu.memory_space<vmem>>, vector<1x256x4xbf16>
    tpu.vector_store %arg5[%c0_50, %c0_51, %c0_52], %48 {strides = array<i32>} : memref<1x256x4xbf16, #tpu.memory_space<vmem>>, vector<1x256x4xbf16>,
    %cst_53 = arith.constant dense<0.000000e+00> : vector<4xf32>
    %50 = vector.multi_reduction <add>, %46, %cst_53 [0] : vector<256x4xf32> to vector<4xf32>
    %51 = vector.shape_cast %50 : vector<4xf32> to vector<1x4xf32>
    %52 = arith.mulf %46, %46 : vector<256x4xf32>
    %cst_54 = arith.constant dense<0.000000e+00> : vector<4xf32>
    %53 = vector.multi_reduction <add>, %52, %cst_54 [0] : vector<256x4xf32> to vector<4xf32>
    %54 = vector.shape_cast %53 : vector<4xf32> to vector<1x4xf32>
    %55 = tpu.concatenate %51, %54 in 1 : vector<1x4xf32>, vector<1x4xf32> -> vector<1x8xf32>
    %56 = vector.shape_cast %55 : vector<1x8xf32> to vector<1x1x8xf32>
    %c0_55 = arith.constant 0 : index
    %c0_56 = arith.constant 0 : index
    %c0_57 = arith.constant 0 : index
    %57 = vector.load %arg6[%c0_55, %c0_56, %c0_57] : memref<1x1x8xf32, #tpu.memory_space<vmem>>, vector<1x1x8xf32>
    tpu.vector_store %arg6[%c0_55, %c0_56, %c0_57], %56 {strides = array<i32>} : memref<1x1x8xf32, #tpu.memory_space<vmem>>, vector<1x1x8xf32>,
    return
  }
  func.func @transform_0(%arg0: i32) -> (i32, i32, i32, i32) {
    %c0_i32 = arith.constant 0 : i32
    %c0_i32_0 = arith.constant 0 : i32
    %c0_i32_1 = arith.constant 0 : i32
    %c0_i32_2 = arith.constant 0 : i32
    return %arg0, %c0_i32, %c0_i32_0, %c0_i32_1 : i32, i32, i32, i32
  }
  func.func @transform_1(%arg0: i32) -> (i32, i32) {
    %c0_i32 = arith.constant 0 : i32
    %c0_i32_0 = arith.constant 0 : i32
    %c0_i32_1 = arith.constant 0 : i32
    return %c0_i32, %c0_i32_0 : i32, i32
  }
  func.func @transform_2(%arg0: i32) -> (i32, i32) {
    %c0_i32 = arith.constant 0 : i32
    %c0_i32_0 = arith.constant 0 : i32
    %c0_i32_1 = arith.constant 0 : i32
    return %c0_i32, %c0_i32_0 : i32, i32
  }
  func.func @transform_3(%arg0: i32) -> (i32, i32) {
    %c0_i32 = arith.constant 0 : i32
    %c0_i32_0 = arith.constant 0 : i32
    %c0_i32_1 = arith.constant 0 : i32
    return %c0_i32, %c0_i32_0 : i32, i32
  }
  func.func @transform_4(%arg0: i32) -> (i32, i32, i32) {
    %c0_i32 = arith.constant 0 : i32
    %c0_i32_0 = arith.constant 0 : i32
    %c0_i32_1 = arith.constant 0 : i32
    return %arg0, %c0_i32, %c0_i32_0 : i32, i32, i32
  }
  func.func @transform_5(%arg0: i32) -> (i32, i32, i32) {
    %c0_i32 = arith.constant 0 : i32
    %c0_i32_0 = arith.constant 0 : i32
    %c0_i32_1 = arith.constant 0 : i32
    return %arg0, %c0_i32, %c0_i32_0 : i32, i32, i32
  }
}

module attributes {stable_mosaic.version = 11 : i64} {
  func.func @_conv1x1_stats_kernel(%arg0: i32, %arg1: memref<256x4xf32, #tpu.memory_space<vmem>>, %arg2: memref<4x4xbf16, #tpu.memory_space<vmem>>, %arg3: memref<256x4xbf16, #tpu.memory_space<vmem>>, %arg4: memref<1x1x8xf32, #tpu.memory_space<vmem>>) attributes {dimension_semantics = [#tpu.dimension_semantics<parallel>], iteration_bounds = array<i64: 2>, scalar_prefetch = 0 : i64, scratch_operands = 0 : i64, tpu.core_type = #tpu.core_type<tc>, window_params = [{transform_indices = @transform_0, window_bounds = array<i64: 256, 4>}, {pipeline_mode = #tpu.pipeline_mode<synchronous>, transform_indices = @transform_1, window_bounds = array<i64: 4, 4>}, {transform_indices = @transform_2, window_bounds = array<i64: 256, 4>}, {transform_indices = @transform_3, window_bounds = array<i64: 1, 1, 8>}]} {
    %c0 = arith.constant 0 : index
    %c0_0 = arith.constant 0 : index
    %0 = vector.load %arg1[%c0, %c0_0] : memref<256x4xf32, #tpu.memory_space<vmem>>, vector<256x4xf32>
    %1 = arith.truncf %0 : vector<256x4xf32> to vector<256x4xbf16>
    %c0_1 = arith.constant 0 : index
    %c0_2 = arith.constant 0 : index
    %2 = vector.load %arg2[%c0_1, %c0_2] : memref<4x4xbf16, #tpu.memory_space<vmem>>, vector<4x4xbf16>
    %cst = arith.constant dense<0.000000e+00> : vector<256x4xf32>
    %3 = tpu.matmul %1, %2, %cst {dimension_numbers = #tpu.dot_dimension_numbers<[1], [0], [0], [1], [0, 0, 1, 1], [], []>} : vector<256x4xbf16>, vector<4x4xbf16>, vector<256x4xf32> -> vector<256x4xf32>
    %4 = arith.truncf %3 : vector<256x4xf32> to vector<256x4xbf16>
    %c0_3 = arith.constant 0 : index
    %c0_4 = arith.constant 0 : index
    %5 = vector.load %arg3[%c0_3, %c0_4] : memref<256x4xbf16, #tpu.memory_space<vmem>>, vector<256x4xbf16>
    tpu.vector_store %arg3[%c0_3, %c0_4], %4 {strides = array<i32>} : memref<256x4xbf16, #tpu.memory_space<vmem>>, vector<256x4xbf16>,
    %cst_5 = arith.constant dense<0.000000e+00> : vector<4xf32>
    %6 = vector.multi_reduction <add>, %3, %cst_5 [0] : vector<256x4xf32> to vector<4xf32>
    %7 = vector.shape_cast %6 : vector<4xf32> to vector<1x4xf32>
    %8 = arith.mulf %3, %3 : vector<256x4xf32>
    %cst_6 = arith.constant dense<0.000000e+00> : vector<4xf32>
    %9 = vector.multi_reduction <add>, %8, %cst_6 [0] : vector<256x4xf32> to vector<4xf32>
    %10 = vector.shape_cast %9 : vector<4xf32> to vector<1x4xf32>
    %11 = tpu.concatenate %7, %10 in 1 : vector<1x4xf32>, vector<1x4xf32> -> vector<1x8xf32>
    %12 = vector.shape_cast %11 : vector<1x8xf32> to vector<1x1x8xf32>
    %c0_7 = arith.constant 0 : index
    %c0_8 = arith.constant 0 : index
    %c0_9 = arith.constant 0 : index
    %13 = vector.load %arg4[%c0_7, %c0_8, %c0_9] : memref<1x1x8xf32, #tpu.memory_space<vmem>>, vector<1x1x8xf32>
    tpu.vector_store %arg4[%c0_7, %c0_8, %c0_9], %12 {strides = array<i32>} : memref<1x1x8xf32, #tpu.memory_space<vmem>>, vector<1x1x8xf32>,
    return
  }
  func.func @transform_0(%arg0: i32) -> (i32, i32) {
    %c0_i32 = arith.constant 0 : i32
    %c0_i32_0 = arith.constant 0 : i32
    return %arg0, %c0_i32 : i32, i32
  }
  func.func @transform_1(%arg0: i32) -> (i32, i32) {
    %c0_i32 = arith.constant 0 : i32
    %c0_i32_0 = arith.constant 0 : i32
    %c0_i32_1 = arith.constant 0 : i32
    return %c0_i32, %c0_i32_0 : i32, i32
  }
  func.func @transform_2(%arg0: i32) -> (i32, i32) {
    %c0_i32 = arith.constant 0 : i32
    %c0_i32_0 = arith.constant 0 : i32
    return %arg0, %c0_i32 : i32, i32
  }
  func.func @transform_3(%arg0: i32) -> (i32, i32, i32) {
    %c0_i32 = arith.constant 0 : i32
    %c0_i32_0 = arith.constant 0 : i32
    %c0_i32_1 = arith.constant 0 : i32
    return %arg0, %c0_i32, %c0_i32_0 : i32, i32, i32
  }
}

module attributes {stable_mosaic.version = 11 : i64} {
  func.func @_conv3_proj_kernel(%arg0: i32, %arg1: memref<256x4xbf16, #tpu.memory_space<vmem>>, %arg2: memref<256x4xf32, #tpu.memory_space<vmem>>, %arg3: memref<1x4xf32, #tpu.memory_space<vmem>>, %arg4: memref<1x4xf32, #tpu.memory_space<vmem>>, %arg5: memref<4x16xbf16, #tpu.memory_space<vmem>>, %arg6: memref<4x16xbf16, #tpu.memory_space<vmem>>, %arg7: memref<256x16xbf16, #tpu.memory_space<vmem>>, %arg8: memref<256x16xbf16, #tpu.memory_space<vmem>>, %arg9: memref<1x1x64xf32, #tpu.memory_space<vmem>>) attributes {dimension_semantics = [#tpu.dimension_semantics<parallel>], iteration_bounds = array<i64: 2>, scalar_prefetch = 0 : i64, scratch_operands = 0 : i64, tpu.core_type = #tpu.core_type<tc>, window_params = [{transform_indices = @transform_0, window_bounds = array<i64: 256, 4>}, {transform_indices = @transform_1, window_bounds = array<i64: 256, 4>}, {pipeline_mode = #tpu.pipeline_mode<synchronous>, transform_indices = @transform_2, window_bounds = array<i64: 1, 4>}, {pipeline_mode = #tpu.pipeline_mode<synchronous>, transform_indices = @transform_3, window_bounds = array<i64: 1, 4>}, {pipeline_mode = #tpu.pipeline_mode<synchronous>, transform_indices = @transform_4, window_bounds = array<i64: 4, 16>}, {pipeline_mode = #tpu.pipeline_mode<synchronous>, transform_indices = @transform_5, window_bounds = array<i64: 4, 16>}, {transform_indices = @transform_6, window_bounds = array<i64: 256, 16>}, {transform_indices = @transform_7, window_bounds = array<i64: 256, 16>}, {transform_indices = @transform_8, window_bounds = array<i64: 1, 1, 64>}]} {
    %c0 = arith.constant 0 : index
    %c0_0 = arith.constant 0 : index
    %0 = vector.load %arg1[%c0, %c0_0] : memref<256x4xbf16, #tpu.memory_space<vmem>>, vector<256x4xbf16>
    %1 = arith.extf %0 : vector<256x4xbf16> to vector<256x4xf32>
    %c0_1 = arith.constant 0 : index
    %c0_2 = arith.constant 0 : index
    %2 = vector.load %arg3[%c0_1, %c0_2] : memref<1x4xf32, #tpu.memory_space<vmem>>, vector<1x4xf32>
    %3 = vector.broadcast %2 : vector<1x4xf32> to vector<256x4xf32>
    %4 = arith.mulf %1, %3 : vector<256x4xf32>
    %c0_3 = arith.constant 0 : index
    %c0_4 = arith.constant 0 : index
    %5 = vector.load %arg4[%c0_3, %c0_4] : memref<1x4xf32, #tpu.memory_space<vmem>>, vector<1x4xf32>
    %6 = vector.broadcast %5 : vector<1x4xf32> to vector<256x4xf32>
    %7 = arith.addf %4, %6 : vector<256x4xf32>
    %cst = arith.constant 0.000000e+00 : f32
    %8 = vector.broadcast %cst : f32 to vector<256x4xf32>
    %9 = arith.maximumf %7, %8 : vector<256x4xf32>
    %10 = arith.truncf %9 : vector<256x4xf32> to vector<256x4xbf16>
    %c0_5 = arith.constant 0 : index
    %c0_6 = arith.constant 0 : index
    %11 = vector.load %arg5[%c0_5, %c0_6] : memref<4x16xbf16, #tpu.memory_space<vmem>>, vector<4x16xbf16>
    %cst_7 = arith.constant dense<0.000000e+00> : vector<256x16xf32>
    %12 = tpu.matmul %10, %11, %cst_7 {dimension_numbers = #tpu.dot_dimension_numbers<[1], [0], [0], [1], [0, 0, 1, 1], [], []>} : vector<256x4xbf16>, vector<4x16xbf16>, vector<256x16xf32> -> vector<256x16xf32>
    %c0_8 = arith.constant 0 : index
    %c0_9 = arith.constant 0 : index
    %13 = vector.load %arg2[%c0_8, %c0_9] : memref<256x4xf32, #tpu.memory_space<vmem>>, vector<256x4xf32>
    %14 = arith.truncf %13 : vector<256x4xf32> to vector<256x4xbf16>
    %c0_10 = arith.constant 0 : index
    %c0_11 = arith.constant 0 : index
    %15 = vector.load %arg6[%c0_10, %c0_11] : memref<4x16xbf16, #tpu.memory_space<vmem>>, vector<4x16xbf16>
    %cst_12 = arith.constant dense<0.000000e+00> : vector<256x16xf32>
    %16 = tpu.matmul %14, %15, %cst_12 {dimension_numbers = #tpu.dot_dimension_numbers<[1], [0], [0], [1], [0, 0, 1, 1], [], []>} : vector<256x4xbf16>, vector<4x16xbf16>, vector<256x16xf32> -> vector<256x16xf32>
    %17 = arith.truncf %12 : vector<256x16xf32> to vector<256x16xbf16>
    %c0_13 = arith.constant 0 : index
    %c0_14 = arith.constant 0 : index
    %18 = vector.load %arg7[%c0_13, %c0_14] : memref<256x16xbf16, #tpu.memory_space<vmem>>, vector<256x16xbf16>
    tpu.vector_store %arg7[%c0_13, %c0_14], %17 {strides = array<i32>} : memref<256x16xbf16, #tpu.memory_space<vmem>>, vector<256x16xbf16>,
    %19 = arith.truncf %16 : vector<256x16xf32> to vector<256x16xbf16>
    %c0_15 = arith.constant 0 : index
    %c0_16 = arith.constant 0 : index
    %20 = vector.load %arg8[%c0_15, %c0_16] : memref<256x16xbf16, #tpu.memory_space<vmem>>, vector<256x16xbf16>
    tpu.vector_store %arg8[%c0_15, %c0_16], %19 {strides = array<i32>} : memref<256x16xbf16, #tpu.memory_space<vmem>>, vector<256x16xbf16>,
    %cst_17 = arith.constant dense<0.000000e+00> : vector<16xf32>
    %21 = vector.multi_reduction <add>, %12, %cst_17 [0] : vector<256x16xf32> to vector<16xf32>
    %22 = vector.shape_cast %21 : vector<16xf32> to vector<1x16xf32>
    %23 = arith.mulf %12, %12 : vector<256x16xf32>
    %cst_18 = arith.constant dense<0.000000e+00> : vector<16xf32>
    %24 = vector.multi_reduction <add>, %23, %cst_18 [0] : vector<256x16xf32> to vector<16xf32>
    %25 = vector.shape_cast %24 : vector<16xf32> to vector<1x16xf32>
    %cst_19 = arith.constant dense<0.000000e+00> : vector<16xf32>
    %26 = vector.multi_reduction <add>, %16, %cst_19 [0] : vector<256x16xf32> to vector<16xf32>
    %27 = vector.shape_cast %26 : vector<16xf32> to vector<1x16xf32>
    %28 = arith.mulf %16, %16 : vector<256x16xf32>
    %cst_20 = arith.constant dense<0.000000e+00> : vector<16xf32>
    %29 = vector.multi_reduction <add>, %28, %cst_20 [0] : vector<256x16xf32> to vector<16xf32>
    %30 = vector.shape_cast %29 : vector<16xf32> to vector<1x16xf32>
    %31 = tpu.concatenate %22, %25, %27, %30 in 1 : vector<1x16xf32>, vector<1x16xf32>, vector<1x16xf32>, vector<1x16xf32> -> vector<1x64xf32>
    %32 = vector.shape_cast %31 : vector<1x64xf32> to vector<1x1x64xf32>
    %c0_21 = arith.constant 0 : index
    %c0_22 = arith.constant 0 : index
    %c0_23 = arith.constant 0 : index
    %33 = vector.load %arg9[%c0_21, %c0_22, %c0_23] : memref<1x1x64xf32, #tpu.memory_space<vmem>>, vector<1x1x64xf32>
    tpu.vector_store %arg9[%c0_21, %c0_22, %c0_23], %32 {strides = array<i32>} : memref<1x1x64xf32, #tpu.memory_space<vmem>>, vector<1x1x64xf32>,
    return
  }
  func.func @transform_0(%arg0: i32) -> (i32, i32) {
    %c0_i32 = arith.constant 0 : i32
    %c0_i32_0 = arith.constant 0 : i32
    return %arg0, %c0_i32 : i32, i32
  }
  func.func @transform_1(%arg0: i32) -> (i32, i32) {
    %c0_i32 = arith.constant 0 : i32
    %c0_i32_0 = arith.constant 0 : i32
    return %arg0, %c0_i32 : i32, i32
  }
  func.func @transform_2(%arg0: i32) -> (i32, i32) {
    %c0_i32 = arith.constant 0 : i32
    %c0_i32_0 = arith.constant 0 : i32
    %c0_i32_1 = arith.constant 0 : i32
    return %c0_i32, %c0_i32_0 : i32, i32
  }
  func.func @transform_3(%arg0: i32) -> (i32, i32) {
    %c0_i32 = arith.constant 0 : i32
    %c0_i32_0 = arith.constant 0 : i32
    %c0_i32_1 = arith.constant 0 : i32
    return %c0_i32, %c0_i32_0 : i32, i32
  }
  func.func @transform_4(%arg0: i32) -> (i32, i32) {
    %c0_i32 = arith.constant 0 : i32
    %c0_i32_0 = arith.constant 0 : i32
    %c0_i32_1 = arith.constant 0 : i32
    return %c0_i32, %c0_i32_0 : i32, i32
  }
  func.func @transform_5(%arg0: i32) -> (i32, i32) {
    %c0_i32 = arith.constant 0 : i32
    %c0_i32_0 = arith.constant 0 : i32
    %c0_i32_1 = arith.constant 0 : i32
    return %c0_i32, %c0_i32_0 : i32, i32
  }
  func.func @transform_6(%arg0: i32) -> (i32, i32) {
    %c0_i32 = arith.constant 0 : i32
    %c0_i32_0 = arith.constant 0 : i32
    return %arg0, %c0_i32 : i32, i32
  }
  func.func @transform_7(%arg0: i32) -> (i32, i32) {
    %c0_i32 = arith.constant 0 : i32
    %c0_i32_0 = arith.constant 0 : i32
    return %arg0, %c0_i32 : i32, i32
  }
  func.func @transform_8(%arg0: i32) -> (i32, i32, i32) {
    %c0_i32 = arith.constant 0 : i32
    %c0_i32_0 = arith.constant 0 : i32
    %c0_i32_1 = arith.constant 0 : i32
    return %arg0, %c0_i32, %c0_i32_0 : i32, i32, i32
  }
}

module attributes {stable_mosaic.version = 11 : i64} {
  func.func @_residual_finalize_kernel(%arg0: i32, %arg1: memref<256x16xbf16, #tpu.memory_space<vmem>>, %arg2: memref<256x16xbf16, #tpu.memory_space<vmem>>, %arg3: memref<1x16xf32, #tpu.memory_space<vmem>>, %arg4: memref<1x16xf32, #tpu.memory_space<vmem>>, %arg5: memref<1x16xf32, #tpu.memory_space<vmem>>, %arg6: memref<1x16xf32, #tpu.memory_space<vmem>>, %arg7: memref<256x16xf32, #tpu.memory_space<vmem>>) attributes {dimension_semantics = [#tpu.dimension_semantics<parallel>], iteration_bounds = array<i64: 2>, scalar_prefetch = 0 : i64, scratch_operands = 0 : i64, tpu.core_type = #tpu.core_type<tc>, window_params = [{transform_indices = @transform_0, window_bounds = array<i64: 256, 16>}, {transform_indices = @transform_1, window_bounds = array<i64: 256, 16>}, {pipeline_mode = #tpu.pipeline_mode<synchronous>, transform_indices = @transform_2, window_bounds = array<i64: 1, 16>}, {pipeline_mode = #tpu.pipeline_mode<synchronous>, transform_indices = @transform_3, window_bounds = array<i64: 1, 16>}, {pipeline_mode = #tpu.pipeline_mode<synchronous>, transform_indices = @transform_4, window_bounds = array<i64: 1, 16>}, {pipeline_mode = #tpu.pipeline_mode<synchronous>, transform_indices = @transform_5, window_bounds = array<i64: 1, 16>}, {transform_indices = @transform_6, window_bounds = array<i64: 256, 16>}]} {
    %c0 = arith.constant 0 : index
    %c0_0 = arith.constant 0 : index
    %0 = vector.load %arg1[%c0, %c0_0] : memref<256x16xbf16, #tpu.memory_space<vmem>>, vector<256x16xbf16>
    %1 = arith.extf %0 : vector<256x16xbf16> to vector<256x16xf32>
    %c0_1 = arith.constant 0 : index
    %c0_2 = arith.constant 0 : index
    %2 = vector.load %arg3[%c0_1, %c0_2] : memref<1x16xf32, #tpu.memory_space<vmem>>, vector<1x16xf32>
    %3 = vector.broadcast %2 : vector<1x16xf32> to vector<256x16xf32>
    %4 = arith.mulf %1, %3 : vector<256x16xf32>
    %c0_3 = arith.constant 0 : index
    %c0_4 = arith.constant 0 : index
    %5 = vector.load %arg4[%c0_3, %c0_4] : memref<1x16xf32, #tpu.memory_space<vmem>>, vector<1x16xf32>
    %6 = vector.broadcast %5 : vector<1x16xf32> to vector<256x16xf32>
    %7 = arith.addf %4, %6 : vector<256x16xf32>
    %c0_5 = arith.constant 0 : index
    %c0_6 = arith.constant 0 : index
    %8 = vector.load %arg2[%c0_5, %c0_6] : memref<256x16xbf16, #tpu.memory_space<vmem>>, vector<256x16xbf16>
    %9 = arith.extf %8 : vector<256x16xbf16> to vector<256x16xf32>
    %c0_7 = arith.constant 0 : index
    %c0_8 = arith.constant 0 : index
    %10 = vector.load %arg5[%c0_7, %c0_8] : memref<1x16xf32, #tpu.memory_space<vmem>>, vector<1x16xf32>
    %11 = vector.broadcast %10 : vector<1x16xf32> to vector<256x16xf32>
    %12 = arith.mulf %9, %11 : vector<256x16xf32>
    %13 = arith.addf %7, %12 : vector<256x16xf32>
    %c0_9 = arith.constant 0 : index
    %c0_10 = arith.constant 0 : index
    %14 = vector.load %arg6[%c0_9, %c0_10] : memref<1x16xf32, #tpu.memory_space<vmem>>, vector<1x16xf32>
    %15 = vector.broadcast %14 : vector<1x16xf32> to vector<256x16xf32>
    %16 = arith.addf %13, %15 : vector<256x16xf32>
    %cst = arith.constant 0.000000e+00 : f32
    %17 = vector.broadcast %cst : f32 to vector<256x16xf32>
    %18 = arith.maximumf %16, %17 : vector<256x16xf32>
    %c0_11 = arith.constant 0 : index
    %c0_12 = arith.constant 0 : index
    %19 = vector.load %arg7[%c0_11, %c0_12] : memref<256x16xf32, #tpu.memory_space<vmem>>, vector<256x16xf32>
    tpu.vector_store %arg7[%c0_11, %c0_12], %18 {strides = array<i32>} : memref<256x16xf32, #tpu.memory_space<vmem>>, vector<256x16xf32>,
    return
  }
  func.func @transform_0(%arg0: i32) -> (i32, i32) {
    %c0_i32 = arith.constant 0 : i32
    %c0_i32_0 = arith.constant 0 : i32
    return %arg0, %c0_i32 : i32, i32
  }
  func.func @transform_1(%arg0: i32) -> (i32, i32) {
    %c0_i32 = arith.constant 0 : i32
    %c0_i32_0 = arith.constant 0 : i32
    return %arg0, %c0_i32 : i32, i32
  }
  func.func @transform_2(%arg0: i32) -> (i32, i32) {
    %c0_i32 = arith.constant 0 : i32
    %c0_i32_0 = arith.constant 0 : i32
    %c0_i32_1 = arith.constant 0 : i32
    return %c0_i32, %c0_i32_0 : i32, i32
  }
  func.func @transform_3(%arg0: i32) -> (i32, i32) {
    %c0_i32 = arith.constant 0 : i32
    %c0_i32_0 = arith.constant 0 : i32
    %c0_i32_1 = arith.constant 0 : i32
    return %c0_i32, %c0_i32_0 : i32, i32
  }
  func.func @transform_4(%arg0: i32) -> (i32, i32) {
    %c0_i32 = arith.constant 0 : i32
    %c0_i32_0 = arith.constant 0 : i32
    %c0_i32_1 = arith.constant 0 : i32
    return %c0_i32, %c0_i32_0 : i32, i32
  }
  func.func @transform_5(%arg0: i32) -> (i32, i32) {
    %c0_i32 = arith.constant 0 : i32
    %c0_i32_0 = arith.constant 0 : i32
    %c0_i32_1 = arith.constant 0 : i32
    return %c0_i32, %c0_i32_0 : i32, i32
  }
  func.func @transform_6(%arg0: i32) -> (i32, i32) {
    %c0_i32 = arith.constant 0 : i32
    %c0_i32_0 = arith.constant 0 : i32
    return %arg0, %c0_i32 : i32, i32
  }
}

</mosaic_0001>

<llo_original>
// kernel: bottleneck_forward.4
$region0: #{bottleneck_forward.4}
  #allocation0 [shape = 'u32[]', space=smem, size = 0x4, offset = 0x4, fixed_abs, tag = 'smem constant byte address 0x4 - core index']
  #allocation1 [shape = 'u32[72,128]{1,0:T(1,128)}', space=vmem, size = 0x9000, scoped, tag = 'internal scratch']
  %s0 = inlined_call_operand.vmem [shape: f32[512,4], index: 0, kind: input, shape index: {}]
  %s1 = inlined_call_operand.vmem [shape: bf16[4,4], index: 1, kind: input, shape index: {}]
  %s2 = inlined_call_operand.vmem [shape: bf16[512,4], index: 2, kind: output, shape index: {0}]
  %s3 = inlined_call_operand.vmem [shape: f32[2,1,8], index: 3, kind: output, shape index: {1}]
  %4 = xla_tuple %s2, %s3
  %s5 = sld [smem:[#allocation0]]
  $region49: #{bottleneck_forward.4} parent=0
    _
  %s7 = ssub.s32 1, %s5
  %s8 = scalar_select 0, %s7, %s5
  loop: start=0, step=1, limit=4
  $region2: #{bottleneck_forward.4} parent=0 // loop_pre_header
    _
  $region3: #{bottleneck_forward.4} parent=0 // loop_header
    %s10 = sphi 0, %s14
    %p11 = scmp.ge.s32.totalorder %s10, 4
    %s20 = sphi 0, %s22
    %s23 = sphi 0, %s20
    %s24 = sphi 0, %s23
    %s40 = sphi 0, %s24
    %s44 = sphi 0, %s44
    %s46 = sphi 0, %s44
    %s47 = sphi 0, %s46
    %s61 = sphi 0, %s47
    %s67 = sphi 0, %s69
    %s70 = sphi 0, %s67
    %s71 = sphi 0, %s70
    %s87 = sphi 0, %s71
    %s93 = sphi 0, %s95
    %s96 = sphi 0, %s93
    %s97 = sphi 0, %s96
    %s113 = sphi 0, %s97
  $region4: #{bottleneck_forward.4} parent=0 // loop_header_branch
    %13 = sbr.rel (%p11) target = $region8
  $region5: #{bottleneck_forward.4} parent=0 // loop_body
    %s15 = ssub.s32 %s10, 1
    %s16 = ssub.s32 %s10, 2
    %s17 = sadd.s32 %s10, 1
    %s18 = ssub.s32 %s10, %s17
    %p19 = scmp.eq.s32.totalorder %s18, 0
    %s21 = sadd.s32 %s20, 1
    %s22 = scalar_select %p19, %s20, %s21
    %p25 = pneg %p19
    %p26 = scmp.eq.s32.totalorder %s10, 1
    %p27 = por %p25, %p26
    %p28 = scmp.ne.s32.totalorder %s20, %s23
    %p29 = scmp.eq.s32.totalorder %s10, 0
    %p30 = por %p28, %p29
    %p31 = scmp.ne.s32.totalorder %s20, %s23
    %p32 = scmp.eq.s32.totalorder %s15, 1
    %p33 = por %p31, %p32
    %p34 = scmp.ne.s32.totalorder %s23, %s24
    %p35 = scmp.eq.s32.totalorder %s15, 0
    %p36 = por %p34, %p35
    %p37 = scmp.ne.s32.totalorder %s23, %s24
    %p38 = scmp.eq.s32.totalorder %s16, 1
    %p39 = por %p37, %p38
    %p41 = scmp.ne.s32.totalorder %s24, %s40
    %p42 = scmp.eq.s32.totalorder %s16, 0
    %p43 = por %p41, %p42
    %s45 = sadd.s32 %s44, 1
    %p48 = scmp.eq.s32.totalorder %s10, 1
    %p49 = scmp.ne.s32.totalorder %s44, %s46
    %p50 = scmp.eq.s32.totalorder %s10, 0
    %p51 = por %p49, %p50
    %p52 = scmp.ne.s32.totalorder %s44, %s46
    %p53 = scmp.eq.s32.totalorder %s15, 1
    %p54 = por %p52, %p53
    %p55 = scmp.ne.s32.totalorder %s46, %s47
    %p56 = scmp.eq.s32.totalorder %s15, 0
    %p57 = por %p55, %p56
    %p58 = scmp.ne.s32.totalorder %s46, %s47
    %p59 = scmp.eq.s32.totalorder %s16, 1
    %p60 = por %p58, %p59
    %p62 = scmp.ne.s32.totalorder %s47, %s61
    %p63 = scmp.eq.s32.totalorder %s16, 0
    %p64 = por %p62, %p63
    %s65 = ssub.s32 %s10, %s17
    %p66 = scmp.eq.s32.totalorder %s65, 0
    %s68 = sadd.s32 %s67, 1
    %s69 = scalar_select %p66, %s67, %s68
    %p72 = pneg %p66
    %p73 = scmp.eq.s32.totalorder %s10, 1
    %p74 = por %p72, %p73
    %p75 = scmp.ne.s32.totalorder %s67, %s70
    %p76 = scmp.eq.s32.totalorder %s10, 0
    %p77 = por %p75, %p76
    %p78 = scmp.ne.s32.totalorder %s67, %s70
    %p79 = scmp.eq.s32.totalorder %s15, 1
    %p80 = por %p78, %p79
    %p81 = scmp.ne.s32.totalorder %s70, %s71
    %p82 = scmp.eq.s32.totalorder %s15, 0
    %p83 = por %p81, %p82
    %p84 = scmp.ne.s32.totalorder %s70, %s71
    %p85 = scmp.eq.s32.totalorder %s16, 1
    %p86 = por %p84, %p85
    %p88 = scmp.ne.s32.totalorder %s71, %s87
    %p89 = scmp.eq.s32.totalorder %s16, 0
    %p90 = por %p88, %p89
    %s91 = ssub.s32 %s10, %s17
    %p92 = scmp.eq.s32.totalorder %s91, 0
    %s94 = sadd.s32 %s93, 1
    %s95 = scalar_select %p92, %s93, %s94
    %p98 = pneg %p92
    %p99 = scmp.eq.s32.totalorder %s10, 1
    %p100 = por %p98, %p99
    %p101 = scmp.ne.s32.totalorder %s93, %s96
    %p102 = scmp.eq.s32.totalorder %s10, 0
    %p103 = por %p101, %p102
    %p104 = scmp.ne.s32.totalorder %s93, %s96
    %p105 = scmp.eq.s32.totalorder %s15, 1
    %p106 = por %p104, %p105
    %p107 = scmp.ne.s32.totalorder %s96, %s97
    %p108 = scmp.eq.s32.totalorder %s15, 0
    %p109 = por %p107, %p108
    %p110 = scmp.ne.s32.totalorder %s96, %s97
    %p111 = scmp.eq.s32.totalorder %s16, 1
    %p112 = por %p110, %p111
    %p114 = scmp.ne.s32.totalorder %s97, %s113
    %p115 = scmp.eq.s32.totalorder %s16, 0
    %p116 = por %p114, %p115
    %p117 = scmp.le.s32.totalorder 1, %s10
    %p118 = scmp.lt.s32.totalorder %s10, 3
    %p119 = pnand %p117, %p118
    %p120 = pneg %p119
    // Predicated region
    $region9: #{bottleneck_forward.4} parent=5 // pred_check
      _
    $region10: #{bottleneck_forward.4} parent=5 // pred_check_branch
      %122 = sbr.rel (%p119) target = $region12
    $region11: #{bottleneck_forward.4} parent=5 // pred_region
      %s123 = ssub.s32 %s10, 1
      // Predicated region
      $region13: #{bottleneck_forward.4} parent=11 // pred_check
        %p124 = pneg %p57
      $region14: #{bottleneck_forward.4} parent=11 // pred_check_branch
        %126 = sbr.rel (%p124) target = $region16
      $region15: #{bottleneck_forward.4} parent=11 // pred_region
        _
      $region16: #{bottleneck_forward.4} parent=11 // pred_fallthru
        _
    $region12: #{bottleneck_forward.4} parent=5 // pred_fallthru
      _
    %p127 = scmp.lt.s32.totalorder %s10, 2
    // Predicated region
    $region17: #{bottleneck_forward.4} parent=5 // pred_check
      %p128 = pneg %p127
    $region18: #{bottleneck_forward.4} parent=5 // pred_check_branch
      %130 = sbr.rel (%p128) target = $region20
    $region19: #{bottleneck_forward.4} parent=5 // pred_region
      // Predicated region
      $region21: #{bottleneck_forward.4} parent=19 // pred_check
        %p131 = pneg %p30
      $region22: #{bottleneck_forward.4} parent=19 // pred_check_branch
        %133 = sbr.rel (%p131) target = $region24
      $region23: #{bottleneck_forward.4} parent=19 // pred_region
        %s134 = smul.u32 32, %s10
        %p135 = scmp.lt.s32.totalorder %s134, 63
        %s136 = scalar_select %p135, %s134, 63
        %s137 = smul.addr %s136, 8
        %s138 = scalar_lea.vmem %s0, %s137
        %s139 = smul.u32 32, %s10
      $region24: #{bottleneck_forward.4} parent=19 // pred_fallthru
        _
    $region20: #{bottleneck_forward.4} parent=5 // pred_fallthru
      _
    %p140 = scmp.le.s32.totalorder 1, %s10
    %p141 = scmp.lt.s32.totalorder %s10, 3
    %p142 = pnand %p140, %p141
    %p143 = pneg %p142
    // Predicated region
    $region25: #{bottleneck_forward.4} parent=5 // pred_check
      _
    $region26: #{bottleneck_forward.4} parent=5 // pred_check_branch
      %145 = sbr.rel (%p142) target = $region28
    $region27: #{bottleneck_forward.4} parent=5 // pred_region
      %s146 = ssub.s32 %s10, 1
      %s147 = smul.u32 32, %s15
      %p148 = scmp.lt.s32.totalorder %s147, 63
      %s149 = scalar_select %p148, %s147, 63
      %s150 = smul.addr %s149, 8
      %s151 = scalar_lea.vmem %s0, %s150
      %p152 = pneg %p36
      %p153 = pneg %p33
      %p154 = pneg %p57
      %p155 = pneg %p54
      %p156 = pneg %p83
      %p157 = pneg %p80
      %s158 = smul.u32 32, %s15
      %p159 = scmp.lt.s32.totalorder %s158, 63
      %s160 = scalar_select %p159, %s158, 63
      %s161 = smul.addr %s160, 4
      %s162 = scalar_lea.vmem %s2, %s161
      %p163 = pneg %p109
      %p164 = pneg %p106
      %p165 = scmp.lt.s32.totalorder %s15, 1
      %s166 = scalar_select %p165, %s15, 1
      %s167 = scalar_lea.vmem %s3, %s166
      %s168 = smul.u32 32, %s15
      %p169 = scmp.lt.s32.totalorder %s168, 63
      %s170 = scalar_select %p169, %s168, 63
      %s171 = smul.addr %s170, 8
      %s172 = scalar_lea.vmem %s0, %s171
      %s173 = smul.u32 32, %s15
      %s174 = smul.u32 32, %s15
      %p175 = scmp.lt.s32.totalorder %s174, 63
      %s176 = scalar_select %p175, %s174, 63
      %s177 = smul.addr %s176, 4
      %s178 = scalar_lea.vmem %s2, %s177
      %s179 = smul.u32 32, %s15
      %p180 = scmp.lt.s32.totalorder %s15, 1
      %s181 = scalar_select %p180, %s15, 1
      %s182 = scalar_lea.vmem %s3, %s181
      %v184 = vld [vmem:[%s172] sm:$0xff]
      %v185 = vld [vmem:[%s172 + $0x8] sm:$0xff]
      %v186 = vld [vmem:[%s172 + $0x10] sm:$0xff]
      %v187 = vld [vmem:[%s172 + $0x18] sm:$0xff]
      %v188 = vld [vmem:[%s172 + $0x20] sm:$0xff]
      %v189 = vld [vmem:[%s172 + $0x28] sm:$0xff]
      %v190 = vld [vmem:[%s172 + $0x30] sm:$0xff]
      %v191 = vld [vmem:[%s172 + $0x38] sm:$0xff]
      %v192 = vld [vmem:[%s172 + $0x40] sm:$0xff]
      %v193 = vld [vmem:[%s172 + $0x48] sm:$0xff]
      %v194 = vld [vmem:[%s172 + $0x50] sm:$0xff]
      %v195 = vld [vmem:[%s172 + $0x58] sm:$0xff]
      %v196 = vld [vmem:[%s172 + $0x60] sm:$0xff]
      %v197 = vld [vmem:[%s172 + $0x68] sm:$0xff]
      %v198 = vld [vmem:[%s172 + $0x70] sm:$0xff]
      %v199 = vld [vmem:[%s172 + $0x78] sm:$0xff]
      %v200 = vld [vmem:[%s172 + $0x80] sm:$0xff]
      %v201 = vld [vmem:[%s172 + $0x88] sm:$0xff]
      %v202 = vld [vmem:[%s172 + $0x90] sm:$0xff]
      %v203 = vld [vmem:[%s172 + $0x98] sm:$0xff]
      %v204 = vld [vmem:[%s172 + $0xa0] sm:$0xff]
      %v205 = vld [vmem:[%s172 + $0xa8] sm:$0xff]
      %v206 = vld [vmem:[%s172 + $0xb0] sm:$0xff]
      %v207 = vld [vmem:[%s172 + $0xb8] sm:$0xff]
      %v208 = vld [vmem:[%s172 + $0xc0] sm:$0xff]
      %v209 = vld [vmem:[%s172 + $0xc8] sm:$0xff]
      %v210 = vld [vmem:[%s172 + $0xd0] sm:$0xff]
      %v211 = vld [vmem:[%s172 + $0xd8] sm:$0xff]
      %v212 = vld [vmem:[%s172 + $0xe0] sm:$0xff]
      %v213 = vld [vmem:[%s172 + $0xe8] sm:$0xff]
      %v214 = vld [vmem:[%s172 + $0xf0] sm:$0xff]
      %v215 = vld [vmem:[%s172 + $0xf8] sm:$0xff]
      %v216 = vpack.c.bf16 %v185, %v184
      %v217 = vpack.c.bf16 %v187, %v186
      %v218 = vpack.c.bf16 %v189, %v188
      %v219 = vpack.c.bf16 %v191, %v190
      %v220 = vpack.c.bf16 %v193, %v192
      %v221 = vpack.c.bf16 %v195, %v194
      %v222 = vpack.c.bf16 %v197, %v196
      %v223 = vpack.c.bf16 %v199, %v198
      %v224 = vpack.c.bf16 %v201, %v200
      %v225 = vpack.c.bf16 %v203, %v202
      %v226 = vpack.c.bf16 %v205, %v204
      %v227 = vpack.c.bf16 %v207, %v206
      %v228 = vpack.c.bf16 %v209, %v208
      %v229 = vpack.c.bf16 %v211, %v210
      %v230 = vpack.c.bf16 %v213, %v212
      %v231 = vpack.c.bf16 %v215, %v214
      %v232 = vld [vmem:[%s1] sm:$0x3]
      %vm233 = vcmask 31744
      %v235 = vsel %vm233, %v216, 0
      %v238 = vsel %vm233, %v217, 0
      %v241 = vsel %vm233, %v218, 0
      %v244 = vsel %vm233, %v219, 0
      %v247 = vsel %vm233, %v220, 0
      %v250 = vsel %vm233, %v221, 0
      %v253 = vsel %vm233, %v222, 0
      %v256 = vsel %vm233, %v223, 0
      %v259 = vsel %vm233, %v224, 0
      %v262 = vsel %vm233, %v225, 0
      %v265 = vsel %vm233, %v226, 0
      %v268 = vsel %vm233, %v227, 0
      %v271 = vsel %vm233, %v228, 0
      %v274 = vsel %vm233, %v229, 0
      %v277 = vsel %vm233, %v230, 0
      %v280 = vsel %vm233, %v231, 0
      %vm282 = vcmask 1041408
      %v284 = vsel %vm282, %v232, 0
      %286 = vmatpush.bf16.msra.mxu0 0
      %287 = vmatpush.bf16.msra.mxu0 0
      %288 = vmatpush.bf16.msra.mxu0 0
      %289 = vmatpush.bf16.msra.mxu0 0
      %290 = vmatpush.bf16.msra.mxu0 0
      %291 = vmatpush.bf16.msra.mxu0 0
      %292 = vmatpush.bf16.msra.mxu0 0
      %293 = vmatpush.bf16.msra.mxu0 %v284
      %294 = vmatmul.bf16.gmra.mxu0 %v235
      %v295 = vpop.f32.mrf.mxu0
      %v296 = vadd.f32 0.0, %v295
      %v297 = vpop.f32.mrf.mxu0
      %v298 = vadd.f32 0.0, %v297
      %299 = vmatmul.bf16.gmra.mxu0 %v238
      %v300 = vpop.f32.mrf.mxu0
      %v301 = vadd.f32 0.0, %v300
      %v302 = vpop.f32.mrf.mxu0
      %v303 = vadd.f32 0.0, %v302
      %304 = vmatmul.bf16.gmra.mxu0 %v241
      %v305 = vpop.f32.mrf.mxu0
      %v306 = vadd.f32 0.0, %v305
      %v307 = vpop.f32.mrf.mxu0
      %v308 = vadd.f32 0.0, %v307
      %309 = vmatmul.bf16.gmra.mxu0 %v244
      %v310 = vpop.f32.mrf.mxu0
      %v311 = vadd.f32 0.0, %v310
      %v312 = vpop.f32.mrf.mxu0
      %v313 = vadd.f32 0.0, %v312
      %314 = vmatmul.bf16.gmra.mxu0 %v247
      %v315 = vpop.f32.mrf.mxu0
      %v316 = vadd.f32 0.0, %v315
      %v317 = vpop.f32.mrf.mxu0
      %v318 = vadd.f32 0.0, %v317
      %319 = vmatmul.bf16.gmra.mxu0 %v250
      %v320 = vpop.f32.mrf.mxu0
      %v321 = vadd.f32 0.0, %v320
      %v322 = vpop.f32.mrf.mxu0
      %v323 = vadd.f32 0.0, %v322
      %324 = vmatmul.bf16.gmra.mxu0 %v253
      %v325 = vpop.f32.mrf.mxu0
      %v326 = vadd.f32 0.0, %v325
      %v327 = vpop.f32.mrf.mxu0
      %v328 = vadd.f32 0.0, %v327
      %329 = vmatmul.bf16.gmra.mxu0 %v256
      %v330 = vpop.f32.mrf.mxu0
      %v331 = vadd.f32 0.0, %v330
      %v332 = vpop.f32.mrf.mxu0
      %v333 = vadd.f32 0.0, %v332
      %334 = vmatmul.bf16.gmra.mxu0 %v259
      %v335 = vpop.f32.mrf.mxu0
      %v336 = vadd.f32 0.0, %v335
      %v337 = vpop.f32.mrf.mxu0
      %v338 = vadd.f32 0.0, %v337
      %339 = vmatmul.bf16.gmra.mxu0 %v262
      %v340 = vpop.f32.mrf.mxu0
      %v341 = vadd.f32 0.0, %v340
      %v342 = vpop.f32.mrf.mxu0
      %v343 = vadd.f32 0.0, %v342
      %344 = vmatmul.bf16.gmra.mxu0 %v265
      %v345 = vpop.f32.mrf.mxu0
      %v346 = vadd.f32 0.0, %v345
      %v347 = vpop.f32.mrf.mxu0
      %v348 = vadd.f32 0.0, %v347
      %349 = vmatmul.bf16.gmra.mxu0 %v268
      %v350 = vpop.f32.mrf.mxu0
      %v351 = vadd.f32 0.0, %v350
      %v352 = vpop.f32.mrf.mxu0
      %v353 = vadd.f32 0.0, %v352
      %354 = vmatmul.bf16.gmra.mxu0 %v271
      %v355 = vpop.f32.mrf.mxu0
      %v356 = vadd.f32 0.0, %v355
      %v357 = vpop.f32.mrf.mxu0
      %v358 = vadd.f32 0.0, %v357
      %359 = vmatmul.bf16.gmra.mxu0 %v274
      %v360 = vpop.f32.mrf.mxu0
      %v361 = vadd.f32 0.0, %v360
      %v362 = vpop.f32.mrf.mxu0
      %v363 = vadd.f32 0.0, %v362
      %364 = vmatmul.bf16.gmra.mxu0 %v277
      %v365 = vpop.f32.mrf.mxu0
      %v366 = vadd.f32 0.0, %v365
      %v367 = vpop.f32.mrf.mxu0
      %v368 = vadd.f32 0.0, %v367
      %369 = vmatmul.bf16.gmra.mxu0 %v280
      %v370 = vpop.f32.mrf.mxu0
      %v371 = vadd.f32 0.0, %v370
      %v372 = vpop.f32.mrf.mxu0
      %v373 = vadd.f32 0.0, %v372
      %374 = vdwg.mxu0
      %v375 = vpack.c.bf16 %v296, %v296
      %v376 = vpack.c.bf16 %v298, %v298
      %v377 = vpack.c.bf16 %v301, %v301
      %v378 = vpack.c.bf16 %v303, %v303
      %v379 = vpack.c.bf16 %v306, %v306
      %v380 = vpack.c.bf16 %v308, %v308
      %v381 = vpack.c.bf16 %v311, %v311
      %v382 = vpack.c.bf16 %v313, %v313
      %v383 = vpack.c.bf16 %v316, %v316
      %v384 = vpack.c.bf16 %v318, %v318
      %v385 = vpack.c.bf16 %v321, %v321
      %v386 = vpack.c.bf16 %v323, %v323
      %v387 = vpack.c.bf16 %v326, %v326
      %v388 = vpack.c.bf16 %v328, %v328
      %v389 = vpack.c.bf16 %v331, %v331
      %v390 = vpack.c.bf16 %v333, %v333
      %v391 = vpack.c.bf16 %v336, %v336
      %v392 = vpack.c.bf16 %v338, %v338
      %v393 = vpack.c.bf16 %v341, %v341
      %v394 = vpack.c.bf16 %v343, %v343
      %v395 = vpack.c.bf16 %v346, %v346
      %v396 = vpack.c.bf16 %v348, %v348
      %v397 = vpack.c.bf16 %v351, %v351
      %v398 = vpack.c.bf16 %v353, %v353
      %v399 = vpack.c.bf16 %v356, %v356
      %v400 = vpack.c.bf16 %v358, %v358
      %v401 = vpack.c.bf16 %v361, %v361
      %v402 = vpack.c.bf16 %v363, %v363
      %v403 = vpack.c.bf16 %v366, %v366
      %v404 = vpack.c.bf16 %v368, %v368
      %v405 = vpack.c.bf16 %v371, %v371
      %v406 = vpack.c.bf16 %v373, %v373
      %vm407 = vcmask 27648
      %408 = vst.msk [vmem:[%s178] sm:$0xf] %vm407, %v375
      %409 = vst.msk [vmem:[%s178 + $0x4] sm:$0xf] %vm407, %v376
      %410 = vst.msk [vmem:[%s178 + $0x8] sm:$0xf] %vm407, %v377
      %411 = vst.msk [vmem:[%s178 + $0xc] sm:$0xf] %vm407, %v378
      %412 = vst.msk [vmem:[%s178 + $0x10] sm:$0xf] %vm407, %v379
      %413 = vst.msk [vmem:[%s178 + $0x14] sm:$0xf] %vm407, %v380
      %414 = vst.msk [vmem:[%s178 + $0x18] sm:$0xf] %vm407, %v381
      %415 = vst.msk [vmem:[%s178 + $0x1c] sm:$0xf] %vm407, %v382
      %416 = vst.msk [vmem:[%s178 + $0x20] sm:$0xf] %vm407, %v383
      %417 = vst.msk [vmem:[%s178 + $0x24] sm:$0xf] %vm407, %v384
      %418 = vst.msk [vmem:[%s178 + $0x28] sm:$0xf] %vm407, %v385
      %419 = vst.msk [vmem:[%s178 + $0x2c] sm:$0xf] %vm407, %v386
      %420 = vst.msk [vmem:[%s178 + $0x30] sm:$0xf] %vm407, %v387
      %421 = vst.msk [vmem:[%s178 + $0x34] sm:$0xf] %vm407, %v388
      %422 = vst.msk [vmem:[%s178 + $0x38] sm:$0xf] %vm407, %v389
      %423 = vst.msk [vmem:[%s178 + $0x3c] sm:$0xf] %vm407, %v390
      %424 = vst.msk [vmem:[%s178 + $0x40] sm:$0xf] %vm407, %v391
      %425 = vst.msk [vmem:[%s178 + $0x44] sm:$0xf] %vm407, %v392
      %426 = vst.msk [vmem:[%s178 + $0x48] sm:$0xf] %vm407, %v393
      %427 = vst.msk [vmem:[%s178 + $0x4c] sm:$0xf] %vm407, %v394
      %428 = vst.msk [vmem:[%s178 + $0x50] sm:$0xf] %vm407, %v395
      %429 = vst.msk [vmem:[%s178 + $0x54] sm:$0xf] %vm407, %v396
      %430 = vst.msk [vmem:[%s178 + $0x58] sm:$0xf] %vm407, %v397
      %431 = vst.msk [vmem:[%s178 + $0x5c] sm:$0xf] %vm407, %v398
      %432 = vst.msk [vmem:[%s178 + $0x60] sm:$0xf] %vm407, %v399
      %433 = vst.msk [vmem:[%s178 + $0x64] sm:$0xf] %vm407, %v400
      %434 = vst.msk [vmem:[%s178 + $0x68] sm:$0xf] %vm407, %v401
      %435 = vst.msk [vmem:[%s178 + $0x6c] sm:$0xf] %vm407, %v402
      %436 = vst.msk [vmem:[%s178 + $0x70] sm:$0xf] %vm407, %v403
      %437 = vst.msk [vmem:[%s178 + $0x74] sm:$0xf] %vm407, %v404
      %438 = vst.msk [vmem:[%s178 + $0x78] sm:$0xf] %vm407, %v405
      %439 = vst.msk [vmem:[%s178 + $0x7c] sm:$0xf] %vm407, %v406
      %v440 = vsel %vm233, %v296, 0.0
      %v441 = vsel %vm233, %v298, 0.0
      %v442 = vadd.f32 %v440, %v441
      %v443 = vsel %vm233, %v301, 0.0
      %v444 = vadd.f32 %v442, %v443
      %v445 = vsel %vm233, %v303, 0.0
      %v446 = vadd.f32 %v444, %v445
      %v447 = vsel %vm233, %v306, 0.0
      %v448 = vadd.f32 %v446, %v447
      %v449 = vsel %vm233, %v308, 0.0
      %v450 = vadd.f32 %v448, %v449
      %v451 = vsel %vm233, %v311, 0.0
      %v452 = vadd.f32 %v450, %v451
      %v453 = vsel %vm233, %v313, 0.0
      %v454 = vadd.f32 %v452, %v453
      %v455 = vsel %vm233, %v316, 0.0
      %v456 = vadd.f32 %v454, %v455
      %v457 = vsel %vm233, %v318, 0.0
      %v458 = vadd.f32 %v456, %v457
      %v459 = vsel %vm233, %v321, 0.0
      %v460 = vadd.f32 %v458, %v459
      %v461 = vsel %vm233, %v323, 0.0
      %v462 = vadd.f32 %v460, %v461
      %v463 = vsel %vm233, %v326, 0.0
      %v464 = vadd.f32 %v462, %v463
      %v465 = vsel %vm233, %v328, 0.0
      %v466 = vadd.f32 %v464, %v465
      %v467 = vsel %vm233, %v331, 0.0
      %v468 = vadd.f32 %v466, %v467
      %v469 = vsel %vm233, %v333, 0.0
      %v470 = vadd.f32 %v468, %v469
      %v471 = vsel %vm233, %v336, 0.0
      %v472 = vadd.f32 %v470, %v471
      %v473 = vsel %vm233, %v338, 0.0
      %v474 = vadd.f32 %v472, %v473
      %v475 = vsel %vm233, %v341, 0.0
      %v476 = vadd.f32 %v474, %v475
      %v477 = vsel %vm233, %v343, 0.0
      %v478 = vadd.f32 %v476, %v477
      %v479 = vsel %vm233, %v346, 0.0
      %v480 = vadd.f32 %v478, %v479
      %v481 = vsel %vm233, %v348, 0.0
      %v482 = vadd.f32 %v480, %v481
      %v483 = vsel %vm233, %v351, 0.0
      %v484 = vadd.f32 %v482, %v483
      %v485 = vsel %vm233, %v353, 0.0
      %v486 = vadd.f32 %v484, %v485
      %v487 = vsel %vm233, %v356, 0.0
      %v488 = vadd.f32 %v486, %v487
      %v489 = vsel %vm233, %v358, 0.0
      %v490 = vadd.f32 %v488, %v489
      %v491 = vsel %vm233, %v361, 0.0
      %v492 = vadd.f32 %v490, %v491
      %v493 = vsel %vm233, %v363, 0.0
      %v494 = vadd.f32 %v492, %v493
      %v495 = vsel %vm233, %v366, 0.0
      %v496 = vadd.f32 %v494, %v495
      %v497 = vsel %vm233, %v368, 0.0
      %v498 = vadd.f32 %v496, %v497
      %v499 = vsel %vm233, %v371, 0.0
      %v500 = vadd.f32 %v498, %v499
      %v501 = vsel %vm233, %v373, 0.0
      %v502 = vadd.f32 %v500, %v501
      %v503 = vrot.slane %v502, 4
      %v504 = vadd.f32 %v502, %v503
      %v505 = vrot.slane %v504, 2
      %v506 = vadd.f32 %v504, %v505
      %v507 = vrot.slane %v506, 1
      %v508 = vadd.f32 %v506, %v507
      %v509 = vmul.f32 %v296, %v296
      %v510 = vmul.f32 %v298, %v298
      %v511 = vmul.f32 %v301, %v301
      %v512 = vmul.f32 %v303, %v303
      %v513 = vmul.f32 %v306, %v306
      %v514 = vmul.f32 %v308, %v308
      %v515 = vmul.f32 %v311, %v311
      %v516 = vmul.f32 %v313, %v313
      %v517 = vmul.f32 %v316, %v316
      %v518 = vmul.f32 %v318, %v318
      %v519 = vmul.f32 %v321, %v321
      %v520 = vmul.f32 %v323, %v323
      %v521 = vmul.f32 %v326, %v326
      %v522 = vmul.f32 %v328, %v328
      %v523 = vmul.f32 %v331, %v331
      %v524 = vmul.f32 %v333, %v333
      %v525 = vmul.f32 %v336, %v336
      %v526 = vmul.f32 %v338, %v338
      %v527 = vmul.f32 %v341, %v341
      %v528 = vmul.f32 %v343, %v343
      %v529 = vmul.f32 %v346, %v346
      %v530 = vmul.f32 %v348, %v348
      %v531 = vmul.f32 %v351, %v351
      %v532 = vmul.f32 %v353, %v353
      %v533 = vmul.f32 %v356, %v356
      %v534 = vmul.f32 %v358, %v358
      %v535 = vmul.f32 %v361, %v361
      %v536 = vmul.f32 %v363, %v363
      %v537 = vmul.f32 %v366, %v366
      %v538 = vmul.f32 %v368, %v368
      %v539 = vmul.f32 %v371, %v371
      %v540 = vmul.f32 %v373, %v373
      %v541 = vsel %vm233, %v509, 0.0
      %v542 = vsel %vm233, %v510, 0.0
      %v543 = vadd.f32 %v541, %v542
      %v544 = vsel %vm233, %v511, 0.0
      %v545 = vadd.f32 %v543, %v544
      %v546 = vsel %vm233, %v512, 0.0
      %v547 = vadd.f32 %v545, %v546
      %v548 = vsel %vm233, %v513, 0.0
      %v549 = vadd.f32 %v547, %v548
      %v550 = vsel %vm233, %v514, 0.0
      %v551 = vadd.f32 %v549, %v550
      %v552 = vsel %vm233, %v515, 0.0
      %v553 = vadd.f32 %v551, %v552
      %v554 = vsel %vm233, %v516, 0.0
      %v555 = vadd.f32 %v553, %v554
      %v556 = vsel %vm233, %v517, 0.0
      %v557 = vadd.f32 %v555, %v556
      %v558 = vsel %vm233, %v518, 0.0
      %v559 = vadd.f32 %v557, %v558
      %v560 = vsel %vm233, %v519, 0.0
      %v561 = vadd.f32 %v559, %v560
      %v562 = vsel %vm233, %v520, 0.0
      %v563 = vadd.f32 %v561, %v562
      %v564 = vsel %vm233, %v521, 0.0
      %v565 = vadd.f32 %v563, %v564
      %v566 = vsel %vm233, %v522, 0.0
      %v567 = vadd.f32 %v565, %v566
      %v568 = vsel %vm233, %v523, 0.0
      %v569 = vadd.f32 %v567, %v568
      %v570 = vsel %vm233, %v524, 0.0
      %v571 = vadd.f32 %v569, %v570
      %v572 = vsel %vm233, %v525, 0.0
      %v573 = vadd.f32 %v571, %v572
      %v574 = vsel %vm233, %v526, 0.0
      %v575 = vadd.f32 %v573, %v574
      %v576 = vsel %vm233, %v527, 0.0
      %v577 = vadd.f32 %v575, %v576
      %v578 = vsel %vm233, %v528, 0.0
      %v579 = vadd.f32 %v577, %v578
      %v580 = vsel %vm233, %v529, 0.0
      %v581 = vadd.f32 %v579, %v580
      %v582 = vsel %vm233, %v530, 0.0
      %v583 = vadd.f32 %v581, %v582
      %v584 = vsel %vm233, %v531, 0.0
      %v585 = vadd.f32 %v583, %v584
      %v586 = vsel %vm233, %v532, 0.0
      %v587 = vadd.f32 %v585, %v586
      %v588 = vsel %vm233, %v533, 0.0
      %v589 = vadd.f32 %v587, %v588
      %v590 = vsel %vm233, %v534, 0.0
      %v591 = vadd.f32 %v589, %v590
      %v592 = vsel %vm233, %v535, 0.0
      %v593 = vadd.f32 %v591, %v592
      %v594 = vsel %vm233, %v536, 0.0
      %v595 = vadd.f32 %v593, %v594
      %v596 = vsel %vm233, %v537, 0.0
      %v597 = vadd.f32 %v595, %v596
      %v598 = vsel %vm233, %v538, 0.0
      %v599 = vadd.f32 %v597, %v598
      %v600 = vsel %vm233, %v539, 0.0
      %v601 = vadd.f32 %v599, %v600
      %v602 = vsel %vm233, %v540, 0.0
      %v603 = vadd.f32 %v601, %v602
      %v604 = vrot.slane %v603, 4
      %v605 = vadd.f32 %v603, %v604
      %v606 = vrot.slane %v605, 2
      %v607 = vadd.f32 %v605, %v606
      %v608 = vrot.slane %v607, 1
      %v609 = vadd.f32 %v607, %v608
      %611 = vrot.lane.b32.xlu0 %v609, 4
      %v612 = vpop.permute.xlu0 %611
      %v614 = vsel %vm233, %v508, %v612
      %vm615 = vcmask 57344
      %616 = vst.msk [vmem:[%s182] sm:$0x1] %vm615, %v614
      %s617 = smul.u32 32, %s15
      %p618 = scmp.lt.s32.totalorder %s617, 63
      %s619 = scalar_select %p618, %s617, 63
      %s620 = smul.addr %s619, 4
      %s621 = scalar_lea.vmem %s2, %s620
      %p622 = scmp.lt.s32.totalorder %s15, 1
      %s623 = scalar_select %p622, %s15, 1
      %s624 = scalar_lea.vmem %s3, %s623
      // Predicated region
      $region29: #{bottleneck_forward.4} parent=27 // pred_check
        %p625 = pneg %p80
      $region30: #{bottleneck_forward.4} parent=27 // pred_check_branch
        %627 = sbr.rel (%p625) target = $region32
      $region31: #{bottleneck_forward.4} parent=27 // pred_region
        %s628 = smul.u32 32, %s15
      $region32: #{bottleneck_forward.4} parent=27 // pred_fallthru
        _
      // Predicated region
      $region33: #{bottleneck_forward.4} parent=27 // pred_check
        %p629 = pneg %p106
      $region34: #{bottleneck_forward.4} parent=27 // pred_check_branch
        %631 = sbr.rel (%p629) target = $region36
      $region35: #{bottleneck_forward.4} parent=27 // pred_region
        _
      $region36: #{bottleneck_forward.4} parent=27 // pred_fallthru
        _
    $region28: #{bottleneck_forward.4} parent=5 // pred_fallthru
      _
    %p632 = scmp.le.s32.totalorder 2, %s10
    // Predicated region
    $region37: #{bottleneck_forward.4} parent=5 // pred_check
      %p633 = pneg %p632
    $region38: #{bottleneck_forward.4} parent=5 // pred_check_branch
      %635 = sbr.rel (%p633) target = $region40
    $region39: #{bottleneck_forward.4} parent=5 // pred_region
      %s636 = ssub.s32 %s10, 2
      // Predicated region
      $region41: #{bottleneck_forward.4} parent=39 // pred_check
        %p637 = pneg %p86
      $region42: #{bottleneck_forward.4} parent=39 // pred_check_branch
        %639 = sbr.rel (%p637) target = $region44
      $region43: #{bottleneck_forward.4} parent=39 // pred_region
        %s640 = smul.u32 32, %s16
        %p641 = scmp.lt.s32.totalorder %s640, 63
        %s642 = scalar_select %p641, %s640, 63
        %s643 = smul.addr %s642, 4
        %s644 = scalar_lea.vmem %s2, %s643
      $region44: #{bottleneck_forward.4} parent=39 // pred_fallthru
        _
      // Predicated region
      $region45: #{bottleneck_forward.4} parent=39 // pred_check
        %p645 = pneg %p112
      $region46: #{bottleneck_forward.4} parent=39 // pred_check_branch
        %647 = sbr.rel (%p645) target = $region48
      $region47: #{bottleneck_forward.4} parent=39 // pred_region
        %p648 = scmp.lt.s32.totalorder %s16, 1
        %s649 = scalar_select %p648, %s16, 1
        %s650 = scalar_lea.vmem %s3, %s649
      $region48: #{bottleneck_forward.4} parent=39 // pred_fallthru
        _
    $region40: #{bottleneck_forward.4} parent=5 // pred_fallthru
      _
  $region6: #{bottleneck_forward.4} parent=0 // loop_footer
    %s14 = sadd.s32 1, %s10
  $region7: #{bottleneck_forward.4} parent=0 // loop_footer_branch
    %9 = sbr.rel target = $region3
  $region8: #{bottleneck_forward.4} parent=0 // loop_exit
    _

// kernel: bottleneck_forward.7
$region0: #{bottleneck_forward.7}
  #allocation0 [shape = 'u32[]', space=smem, size = 0x4, offset = 0x4, fixed_abs, tag = 'smem constant byte address 0x4 - core index']
  #allocation1 [shape = 'u32[72,128]{1,0:T(1,128)}', space=vmem, size = 0x9000, scoped, tag = 'internal scratch']
  %s0 = inlined_call_operand.vmem [shape: bf16[512,16], index: 0, kind: input, shape index: {}]
  %s1 = inlined_call_operand.vmem [shape: bf16[512,16], index: 1, kind: input, shape index: {}]
  %s2 = inlined_call_operand.vmem [shape: f32[1,16], index: 2, kind: input, shape index: {}]
  %s3 = inlined_call_operand.vmem [shape: f32[1,16], index: 3, kind: input, shape index: {}]
  %s4 = inlined_call_operand.vmem [shape: f32[1,16], index: 4, kind: input, shape index: {}]
  %s5 = inlined_call_operand.vmem [shape: f32[1,16], index: 5, kind: input, shape index: {}]
  %s6 = inlined_call_operand.vmem [shape: f32[512,16], index: 6, kind: output, shape index: {}]
  %s7 = sld [smem:[#allocation0]]
  $region57: #{bottleneck_forward.7} parent=0
    _
  %s9 = ssub.s32 1, %s7
  %s10 = scalar_select 0, %s9, %s7
  loop: start=0, step=1, limit=4
  $region2: #{bottleneck_forward.7} parent=0 // loop_pre_header
    _
  $region3: #{bottleneck_forward.7} parent=0 // loop_header
    %s12 = sphi 0, %s16
    %p13 = scmp.ge.s32.totalorder %s12, 4
    %s22 = sphi 0, %s24
    %s25 = sphi 0, %s22
    %s26 = sphi 0, %s25
    %s42 = sphi 0, %s26
    %s48 = sphi 0, %s50
    %s51 = sphi 0, %s48
    %s52 = sphi 0, %s51
    %s68 = sphi 0, %s52
    %s72 = sphi 0, %s72
    %s74 = sphi 0, %s72
    %s75 = sphi 0, %s74
    %s89 = sphi 0, %s75
    %s93 = sphi 0, %s93
    %s95 = sphi 0, %s93
    %s96 = sphi 0, %s95
    %s110 = sphi 0, %s96
    %s114 = sphi 0, %s114
    %s116 = sphi 0, %s114
    %s117 = sphi 0, %s116
    %s131 = sphi 0, %s117
    %s135 = sphi 0, %s135
    %s137 = sphi 0, %s135
    %s138 = sphi 0, %s137
    %s152 = sphi 0, %s138
    %s158 = sphi 0, %s160
    %s161 = sphi 0, %s158
    %s162 = sphi 0, %s161
    %s178 = sphi 0, %s162
  $region4: #{bottleneck_forward.7} parent=0 // loop_header_branch
    %15 = sbr.rel (%p13) target = $region8
  $region5: #{bottleneck_forward.7} parent=0 // loop_body
    %s17 = ssub.s32 %s12, 1
    %s18 = ssub.s32 %s12, 2
    %s19 = sadd.s32 %s12, 1
    %s20 = ssub.s32 %s12, %s19
    %p21 = scmp.eq.s32.totalorder %s20, 0
    %s23 = sadd.s32 %s22, 1
    %s24 = scalar_select %p21, %s22, %s23
    %p27 = pneg %p21
    %p28 = scmp.eq.s32.totalorder %s12, 1
    %p29 = por %p27, %p28
    %p30 = scmp.ne.s32.totalorder %s22, %s25
    %p31 = scmp.eq.s32.totalorder %s12, 0
    %p32 = por %p30, %p31
    %p33 = scmp.ne.s32.totalorder %s22, %s25
    %p34 = scmp.eq.s32.totalorder %s17, 1
    %p35 = por %p33, %p34
    %p36 = scmp.ne.s32.totalorder %s25, %s26
    %p37 = scmp.eq.s32.totalorder %s17, 0
    %p38 = por %p36, %p37
    %p39 = scmp.ne.s32.totalorder %s25, %s26
    %p40 = scmp.eq.s32.totalorder %s18, 1
    %p41 = por %p39, %p40
    %p43 = scmp.ne.s32.totalorder %s26, %s42
    %p44 = scmp.eq.s32.totalorder %s18, 0
    %p45 = por %p43, %p44
    %s46 = ssub.s32 %s12, %s19
    %p47 = scmp.eq.s32.totalorder %s46, 0
    %s49 = sadd.s32 %s48, 1
    %s50 = scalar_select %p47, %s48, %s49
    %p53 = pneg %p47
    %p54 = scmp.eq.s32.totalorder %s12, 1
    %p55 = por %p53, %p54
    %p56 = scmp.ne.s32.totalorder %s48, %s51
    %p57 = scmp.eq.s32.totalorder %s12, 0
    %p58 = por %p56, %p57
    %p59 = scmp.ne.s32.totalorder %s48, %s51
    %p60 = scmp.eq.s32.totalorder %s17, 1
    %p61 = por %p59, %p60
    %p62 = scmp.ne.s32.totalorder %s51, %s52
    %p63 = scmp.eq.s32.totalorder %s17, 0
    %p64 = por %p62, %p63
    %p65 = scmp.ne.s32.totalorder %s51, %s52
    %p66 = scmp.eq.s32.totalorder %s18, 1
    %p67 = por %p65, %p66
    %p69 = scmp.ne.s32.totalorder %s52, %s68
    %p70 = scmp.eq.s32.totalorder %s18, 0
    %p71 = por %p69, %p70
    %s73 = sadd.s32 %s72, 1
    %p76 = scmp.eq.s32.totalorder %s12, 1
    %p77 = scmp.ne.s32.totalorder %s72, %s74
    %p78 = scmp.eq.s32.totalorder %s12, 0
    %p79 = por %p77, %p78
    %p80 = scmp.ne.s32.totalorder %s72, %s74
    %p81 = scmp.eq.s32.totalorder %s17, 1
    %p82 = por %p80, %p81
    %p83 = scmp.ne.s32.totalorder %s74, %s75
    %p84 = scmp.eq.s32.totalorder %s17, 0
    %p85 = por %p83, %p84
    %p86 = scmp.ne.s32.totalorder %s74, %s75
    %p87 = scmp.eq.s32.totalorder %s18, 1
    %p88 = por %p86, %p87
    %p90 = scmp.ne.s32.totalorder %s75, %s89
    %p91 = scmp.eq.s32.totalorder %s18, 0
    %p92 = por %p90, %p91
    %s94 = sadd.s32 %s93, 1
    %p97 = scmp.eq.s32.totalorder %s12, 1
    %p98 = scmp.ne.s32.totalorder %s93, %s95
    %p99 = scmp.eq.s32.totalorder %s12, 0
    %p100 = por %p98, %p99
    %p101 = scmp.ne.s32.totalorder %s93, %s95
    %p102 = scmp.eq.s32.totalorder %s17, 1
    %p103 = por %p101, %p102
    %p104 = scmp.ne.s32.totalorder %s95, %s96
    %p105 = scmp.eq.s32.totalorder %s17, 0
    %p106 = por %p104, %p105
    %p107 = scmp.ne.s32.totalorder %s95, %s96
    %p108 = scmp.eq.s32.totalorder %s18, 1
    %p109 = por %p107, %p108
    %p111 = scmp.ne.s32.totalorder %s96, %s110
    %p112 = scmp.eq.s32.totalorder %s18, 0
    %p113 = por %p111, %p112
    %s115 = sadd.s32 %s114, 1
    %p118 = scmp.eq.s32.totalorder %s12, 1
    %p119 = scmp.ne.s32.totalorder %s114, %s116
    %p120 = scmp.eq.s32.totalorder %s12, 0
    %p121 = por %p119, %p120
    %p122 = scmp.ne.s32.totalorder %s114, %s116
    %p123 = scmp.eq.s32.totalorder %s17, 1
    %p124 = por %p122, %p123
    %p125 = scmp.ne.s32.totalorder %s116, %s117
    %p126 = scmp.eq.s32.totalorder %s17, 0
    %p127 = por %p125, %p126
    %p128 = scmp.ne.s32.totalorder %s116, %s117
    %p129 = scmp.eq.s32.totalorder %s18, 1
    %p130 = por %p128, %p129
    %p132 = scmp.ne.s32.totalorder %s117, %s131
    %p133 = scmp.eq.s32.totalorder %s18, 0
    %p134 = por %p132, %p133
    %s136 = sadd.s32 %s135, 1
    %p139 = scmp.eq.s32.totalorder %s12, 1
    %p140 = scmp.ne.s32.totalorder %s135, %s137
    %p141 = scmp.eq.s32.totalorder %s12, 0
    %p142 = por %p140, %p141
    %p143 = scmp.ne.s32.totalorder %s135, %s137
    %p144 = scmp.eq.s32.totalorder %s17, 1
    %p145 = por %p143, %p144
    %p146 = scmp.ne.s32.totalorder %s137, %s138
    %p147 = scmp.eq.s32.totalorder %s17, 0
    %p148 = por %p146, %p147
    %p149 = scmp.ne.s32.totalorder %s137, %s138
    %p150 = scmp.eq.s32.totalorder %s18, 1
    %p151 = por %p149, %p150
    %p153 = scmp.ne.s32.totalorder %s138, %s152
    %p154 = scmp.eq.s32.totalorder %s18, 0
    %p155 = por %p153, %p154
    %s156 = ssub.s32 %s12, %s19
    %p157 = scmp.eq.s32.totalorder %s156, 0
    %s159 = sadd.s32 %s158, 1
    %s160 = scalar_select %p157, %s158, %s159
    %p163 = pneg %p157
    %p164 = scmp.eq.s32.totalorder %s12, 1
    %p165 = por %p163, %p164
    %p166 = scmp.ne.s32.totalorder %s158, %s161
    %p167 = scmp.eq.s32.totalorder %s12, 0
    %p168 = por %p166, %p167
    %p169 = scmp.ne.s32.totalorder %s158, %s161
    %p170 = scmp.eq.s32.totalorder %s17, 1
    %p171 = por %p169, %p170
    %p172 = scmp.ne.s32.totalorder %s161, %s162
    %p173 = scmp.eq.s32.totalorder %s17, 0
    %p174 = por %p172, %p173
    %p175 = scmp.ne.s32.totalorder %s161, %s162
    %p176 = scmp.eq.s32.totalorder %s18, 1
    %p177 = por %p175, %p176
    %p179 = scmp.ne.s32.totalorder %s162, %s178
    %p180 = scmp.eq.s32.totalorder %s18, 0
    %p181 = por %p179, %p180
    %p182 = scmp.le.s32.totalorder 1, %s12
    %p183 = scmp.lt.s32.totalorder %s12, 3
    %p184 = pnand %p182, %p183
    %p185 = pneg %p184
    // Predicated region
    $region9: #{bottleneck_forward.7} parent=5 // pred_check
      _
    $region10: #{bottleneck_forward.7} parent=5 // pred_check_branch
      %187 = sbr.rel (%p184) target = $region12
    $region11: #{bottleneck_forward.7} parent=5 // pred_region
      %s188 = ssub.s32 %s12, 1
      // Predicated region
      $region13: #{bottleneck_forward.7} parent=11 // pred_check
        %p189 = pneg %p85
      $region14: #{bottleneck_forward.7} parent=11 // pred_check_branch
        %191 = sbr.rel (%p189) target = $region16
      $region15: #{bottleneck_forward.7} parent=11 // pred_region
        _
      $region16: #{bottleneck_forward.7} parent=11 // pred_fallthru
        _
      // Predicated region
      $region17: #{bottleneck_forward.7} parent=11 // pred_check
        %p192 = pneg %p106
      $region18: #{bottleneck_forward.7} parent=11 // pred_check_branch
        %194 = sbr.rel (%p192) target = $region20
      $region19: #{bottleneck_forward.7} parent=11 // pred_region
        _
      $region20: #{bottleneck_forward.7} parent=11 // pred_fallthru
        _
      // Predicated region
      $region21: #{bottleneck_forward.7} parent=11 // pred_check
        %p195 = pneg %p127
      $region22: #{bottleneck_forward.7} parent=11 // pred_check_branch
        %197 = sbr.rel (%p195) target = $region24
      $region23: #{bottleneck_forward.7} parent=11 // pred_region
        _
      $region24: #{bottleneck_forward.7} parent=11 // pred_fallthru
        _
      // Predicated region
      $region25: #{bottleneck_forward.7} parent=11 // pred_check
        %p198 = pneg %p148
      $region26: #{bottleneck_forward.7} parent=11 // pred_check_branch
        %200 = sbr.rel (%p198) target = $region28
      $region27: #{bottleneck_forward.7} parent=11 // pred_region
        _
      $region28: #{bottleneck_forward.7} parent=11 // pred_fallthru
        _
    $region12: #{bottleneck_forward.7} parent=5 // pred_fallthru
      _
    %p201 = scmp.lt.s32.totalorder %s12, 2
    // Predicated region
    $region29: #{bottleneck_forward.7} parent=5 // pred_check
      %p202 = pneg %p201
    $region30: #{bottleneck_forward.7} parent=5 // pred_check_branch
      %204 = sbr.rel (%p202) target = $region32
    $region31: #{bottleneck_forward.7} parent=5 // pred_region
      // Predicated region
      $region33: #{bottleneck_forward.7} parent=31 // pred_check
        %p205 = pneg %p32
      $region34: #{bottleneck_forward.7} parent=31 // pred_check_branch
        %207 = sbr.rel (%p205) target = $region36
      $region35: #{bottleneck_forward.7} parent=31 // pred_region
        %s208 = smul.u32 32, %s12
        %p209 = scmp.lt.s32.totalorder %s208, 63
        %s210 = scalar_select %p209, %s208, 63
        %s211 = smul.addr %s210, 4
        %s212 = scalar_lea.vmem %s0, %s211
        %s213 = smul.u32 32, %s12
      $region36: #{bottleneck_forward.7} parent=31 // pred_fallthru
        _
      // Predicated region
      $region37: #{bottleneck_forward.7} parent=31 // pred_check
        %p214 = pneg %p58
      $region38: #{bottleneck_forward.7} parent=31 // pred_check_branch
        %216 = sbr.rel (%p214) target = $region40
      $region39: #{bottleneck_forward.7} parent=31 // pred_region
        %s217 = smul.u32 32, %s12
        %p218 = scmp.lt.s32.totalorder %s217, 63
        %s219 = scalar_select %p218, %s217, 63
        %s220 = smul.addr %s219, 4
        %s221 = scalar_lea.vmem %s1, %s220
        %s222 = smul.u32 32, %s12
      $region40: #{bottleneck_forward.7} parent=31 // pred_fallthru
        _
    $region32: #{bottleneck_forward.7} parent=5 // pred_fallthru
      _
    %p223 = scmp.le.s32.totalorder 1, %s12
    %p224 = scmp.lt.s32.totalorder %s12, 3
    %p225 = pnand %p223, %p224
    %p226 = pneg %p225
    // Predicated region
    $region41: #{bottleneck_forward.7} parent=5 // pred_check
      _
    $region42: #{bottleneck_forward.7} parent=5 // pred_check_branch
      %228 = sbr.rel (%p225) target = $region44
    $region43: #{bottleneck_forward.7} parent=5 // pred_region
      %s229 = ssub.s32 %s12, 1
      %s230 = smul.u32 32, %s17
      %p231 = scmp.lt.s32.totalorder %s230, 63
      %s232 = scalar_select %p231, %s230, 63
      %s233 = smul.addr %s232, 4
      %s234 = scalar_lea.vmem %s0, %s233
      %p235 = pneg %p38
      %p236 = pneg %p35
      %s237 = smul.u32 32, %s17
      %p238 = scmp.lt.s32.totalorder %s237, 63
      %s239 = scalar_select %p238, %s237, 63
      %s240 = smul.addr %s239, 4
      %s241 = scalar_lea.vmem %s1, %s240
      %p242 = pneg %p64
      %p243 = pneg %p61
      %p244 = pneg %p85
      %p245 = pneg %p82
      %p246 = pneg %p106
      %p247 = pneg %p103
      %p248 = pneg %p127
      %p249 = pneg %p124
      %p250 = pneg %p148
      %p251 = pneg %p145
      %p252 = pneg %p174
      %p253 = pneg %p171
      %s254 = smul.u32 32, %s17
      %p255 = scmp.lt.s32.totalorder %s254, 63
      %s256 = scalar_select %p255, %s254, 63
      %s257 = smul.addr %s256, 8
      %s258 = scalar_lea.vmem %s6, %s257
      %s259 = smul.u32 32, %s17
      %p260 = scmp.lt.s32.totalorder %s259, 63
      %s261 = scalar_select %p260, %s259, 63
      %s262 = smul.addr %s261, 4
      %s263 = scalar_lea.vmem %s0, %s262
      %s264 = smul.u32 32, %s17
      %s265 = smul.u32 32, %s17
      %p266 = scmp.lt.s32.totalorder %s265, 63
      %s267 = scalar_select %p266, %s265, 63
      %s268 = smul.addr %s267, 4
      %s269 = scalar_lea.vmem %s1, %s268
      %s270 = smul.u32 32, %s17
      %s271 = smul.u32 32, %s17
      %p272 = scmp.lt.s32.totalorder %s271, 63
      %s273 = scalar_select %p272, %s271, 63
      %s274 = smul.addr %s273, 8
      %s275 = scalar_lea.vmem %s6, %s274
      %s276 = smul.u32 32, %s17
      %v277 = vld [vmem:[%s263] sm:$0xf]
      %v278 = vld [vmem:[%s263 + $0x4] sm:$0xf]
      %v279 = vld [vmem:[%s263 + $0x8] sm:$0xf]
      %v280 = vld [vmem:[%s263 + $0xc] sm:$0xf]
      %v281 = vld [vmem:[%s263 + $0x10] sm:$0xf]
      %v282 = vld [vmem:[%s263 + $0x14] sm:$0xf]
      %v283 = vld [vmem:[%s263 + $0x18] sm:$0xf]
      %v284 = vld [vmem:[%s263 + $0x1c] sm:$0xf]
      %v285 = vld [vmem:[%s263 + $0x20] sm:$0xf]
      %v286 = vld [vmem:[%s263 + $0x24] sm:$0xf]
      %v287 = vld [vmem:[%s263 + $0x28] sm:$0xf]
      %v288 = vld [vmem:[%s263 + $0x2c] sm:$0xf]
      %v289 = vld [vmem:[%s263 + $0x30] sm:$0xf]
      %v290 = vld [vmem:[%s263 + $0x34] sm:$0xf]
      %v291 = vld [vmem:[%s263 + $0x38] sm:$0xf]
      %v292 = vld [vmem:[%s263 + $0x3c] sm:$0xf]
      %v293 = vld [vmem:[%s263 + $0x40] sm:$0xf]
      %v294 = vld [vmem:[%s263 + $0x44] sm:$0xf]
      %v295 = vld [vmem:[%s263 + $0x48] sm:$0xf]
      %v296 = vld [vmem:[%s263 + $0x4c] sm:$0xf]
      %v297 = vld [vmem:[%s263 + $0x50] sm:$0xf]
      %v298 = vld [vmem:[%s263 + $0x54] sm:$0xf]
      %v299 = vld [vmem:[%s263 + $0x58] sm:$0xf]
      %v300 = vld [vmem:[%s263 + $0x5c] sm:$0xf]
      %v301 = vld [vmem:[%s263 + $0x60] sm:$0xf]
      %v302 = vld [vmem:[%s263 + $0x64] sm:$0xf]
      %v303 = vld [vmem:[%s263 + $0x68] sm:$0xf]
      %v304 = vld [vmem:[%s263 + $0x6c] sm:$0xf]
      %v305 = vld [vmem:[%s263 + $0x70] sm:$0xf]
      %v306 = vld [vmem:[%s263 + $0x74] sm:$0xf]
      %v307 = vld [vmem:[%s263 + $0x78] sm:$0xf]
      %v308 = vld [vmem:[%s263 + $0x7c] sm:$0xf]
      %v309 = vunpack.c.l.bf16 %v277
      %v310 = vunpack.c.l.bf16 %v278
      %v311 = vunpack.c.l.bf16 %v279
      %v312 = vunpack.c.l.bf16 %v280
      %v313 = vunpack.c.l.bf16 %v281
      %v314 = vunpack.c.l.bf16 %v282
      %v315 = vunpack.c.l.bf16 %v283
      %v316 = vunpack.c.l.bf16 %v284
      %v317 = vunpack.c.l.bf16 %v285
      %v318 = vunpack.c.l.bf16 %v286
      %v319 = vunpack.c.l.bf16 %v287
      %v320 = vunpack.c.l.bf16 %v288
      %v321 = vunpack.c.l.bf16 %v289
      %v322 = vunpack.c.l.bf16 %v290
      %v323 = vunpack.c.l.bf16 %v291
      %v324 = vunpack.c.l.bf16 %v292
      %v325 = vunpack.c.l.bf16 %v293
      %v326 = vunpack.c.l.bf16 %v294
      %v327 = vunpack.c.l.bf16 %v295
      %v328 = vunpack.c.l.bf16 %v296
      %v329 = vunpack.c.l.bf16 %v297
      %v330 = vunpack.c.l.bf16 %v298
      %v331 = vunpack.c.l.bf16 %v299
      %v332 = vunpack.c.l.bf16 %v300
      %v333 = vunpack.c.l.bf16 %v301
      %v334 = vunpack.c.l.bf16 %v302
      %v335 = vunpack.c.l.bf16 %v303
      %v336 = vunpack.c.l.bf16 %v304
      %v337 = vunpack.c.l.bf16 %v305
      %v338 = vunpack.c.l.bf16 %v306
      %v339 = vunpack.c.l.bf16 %v307
      %v340 = vunpack.c.l.bf16 %v308
      %v341 = vld [vmem:[%s2] sm:$0x1]
      %v343 = vperm.slane %v341, 0
      %v345 = vmul.f32 %v309, %v343
      %v346 = vmul.f32 %v310, %v343
      %v347 = vmul.f32 %v311, %v343
      %v348 = vmul.f32 %v312, %v343
      %v349 = vmul.f32 %v313, %v343
      %v350 = vmul.f32 %v314, %v343
      %v351 = vmul.f32 %v315, %v343
      %v352 = vmul.f32 %v316, %v343
      %v353 = vmul.f32 %v317, %v343
      %v354 = vmul.f32 %v318, %v343
      %v355 = vmul.f32 %v319, %v343
      %v356 = vmul.f32 %v320, %v343
      %v357 = vmul.f32 %v321, %v343
      %v358 = vmul.f32 %v322, %v343
      %v359 = vmul.f32 %v323, %v343
      %v360 = vmul.f32 %v324, %v343
      %v361 = vmul.f32 %v325, %v343
      %v362 = vmul.f32 %v326, %v343
      %v363 = vmul.f32 %v327, %v343
      %v364 = vmul.f32 %v328, %v343
      %v365 = vmul.f32 %v329, %v343
      %v366 = vmul.f32 %v330, %v343
      %v367 = vmul.f32 %v331, %v343
      %v368 = vmul.f32 %v332, %v343
      %v369 = vmul.f32 %v333, %v343
      %v370 = vmul.f32 %v334, %v343
      %v371 = vmul.f32 %v335, %v343
      %v372 = vmul.f32 %v336, %v343
      %v373 = vmul.f32 %v337, %v343
      %v374 = vmul.f32 %v338, %v343
      %v375 = vmul.f32 %v339, %v343
      %v376 = vmul.f32 %v340, %v343
      %v377 = vld [vmem:[%s3] sm:$0x1]
      %v379 = vperm.slane %v377, 0
      %v381 = vadd.f32 %v345, %v379
      %v382 = vadd.f32 %v346, %v379
      %v383 = vadd.f32 %v347, %v379
      %v384 = vadd.f32 %v348, %v379
      %v385 = vadd.f32 %v349, %v379
      %v386 = vadd.f32 %v350, %v379
      %v387 = vadd.f32 %v351, %v379
      %v388 = vadd.f32 %v352, %v379
      %v389 = vadd.f32 %v353, %v379
      %v390 = vadd.f32 %v354, %v379
      %v391 = vadd.f32 %v355, %v379
      %v392 = vadd.f32 %v356, %v379
      %v393 = vadd.f32 %v357, %v379
      %v394 = vadd.f32 %v358, %v379
      %v395 = vadd.f32 %v359, %v379
      %v396 = vadd.f32 %v360, %v379
      %v397 = vadd.f32 %v361, %v379
      %v398 = vadd.f32 %v362, %v379
      %v399 = vadd.f32 %v363, %v379
      %v400 = vadd.f32 %v364, %v379
      %v401 = vadd.f32 %v365, %v379
      %v402 = vadd.f32 %v366, %v379
      %v403 = vadd.f32 %v367, %v379
      %v404 = vadd.f32 %v368, %v379
      %v405 = vadd.f32 %v369, %v379
      %v406 = vadd.f32 %v370, %v379
      %v407 = vadd.f32 %v371, %v379
      %v408 = vadd.f32 %v372, %v379
      %v409 = vadd.f32 %v373, %v379
      %v410 = vadd.f32 %v374, %v379
      %v411 = vadd.f32 %v375, %v379
      %v412 = vadd.f32 %v376, %v379
      %v413 = vld [vmem:[%s269] sm:$0xf]
      %v414 = vld [vmem:[%s269 + $0x4] sm:$0xf]
      %v415 = vld [vmem:[%s269 + $0x8] sm:$0xf]
      %v416 = vld [vmem:[%s269 + $0xc] sm:$0xf]
      %v417 = vld [vmem:[%s269 + $0x10] sm:$0xf]
      %v418 = vld [vmem:[%s269 + $0x14] sm:$0xf]
      %v419 = vld [vmem:[%s269 + $0x18] sm:$0xf]
      %v420 = vld [vmem:[%s269 + $0x1c] sm:$0xf]
      %v421 = vld [vmem:[%s269 + $0x20] sm:$0xf]
      %v422 = vld [vmem:[%s269 + $0x24] sm:$0xf]
      %v423 = vld [vmem:[%s269 + $0x28] sm:$0xf]
      %v424 = vld [vmem:[%s269 + $0x2c] sm:$0xf]
      %v425 = vld [vmem:[%s269 + $0x30] sm:$0xf]
      %v426 = vld [vmem:[%s269 + $0x34] sm:$0xf]
      %v427 = vld [vmem:[%s269 + $0x38] sm:$0xf]
      %v428 = vld [vmem:[%s269 + $0x3c] sm:$0xf]
      %v429 = vld [vmem:[%s269 + $0x40] sm:$0xf]
      %v430 = vld [vmem:[%s269 + $0x44] sm:$0xf]
      %v431 = vld [vmem:[%s269 + $0x48] sm:$0xf]
      %v432 = vld [vmem:[%s269 + $0x4c] sm:$0xf]
      %v433 = vld [vmem:[%s269 + $0x50] sm:$0xf]
      %v434 = vld [vmem:[%s269 + $0x54] sm:$0xf]
      %v435 = vld [vmem:[%s269 + $0x58] sm:$0xf]
      %v436 = vld [vmem:[%s269 + $0x5c] sm:$0xf]
      %v437 = vld [vmem:[%s269 + $0x60] sm:$0xf]
      %v438 = vld [vmem:[%s269 + $0x64] sm:$0xf]
      %v439 = vld [vmem:[%s269 + $0x68] sm:$0xf]
      %v440 = vld [vmem:[%s269 + $0x6c] sm:$0xf]
      %v441 = vld [vmem:[%s269 + $0x70] sm:$0xf]
      %v442 = vld [vmem:[%s269 + $0x74] sm:$0xf]
      %v443 = vld [vmem:[%s269 + $0x78] sm:$0xf]
      %v444 = vld [vmem:[%s269 + $0x7c] sm:$0xf]
      %v445 = vunpack.c.l.bf16 %v413
      %v446 = vunpack.c.l.bf16 %v414
      %v447 = vunpack.c.l.bf16 %v415
      %v448 = vunpack.c.l.bf16 %v416
      %v449 = vunpack.c.l.bf16 %v417
      %v450 = vunpack.c.l.bf16 %v418
      %v451 = vunpack.c.l.bf16 %v419
      %v452 = vunpack.c.l.bf16 %v420
      %v453 = vunpack.c.l.bf16 %v421
      %v454 = vunpack.c.l.bf16 %v422
      %v455 = vunpack.c.l.bf16 %v423
      %v456 = vunpack.c.l.bf16 %v424
      %v457 = vunpack.c.l.bf16 %v425
      %v458 = vunpack.c.l.bf16 %v426
      %v459 = vunpack.c.l.bf16 %v427
      %v460 = vunpack.c.l.bf16 %v428
      %v461 = vunpack.c.l.bf16 %v429
      %v462 = vunpack.c.l.bf16 %v430
      %v463 = vunpack.c.l.bf16 %v431
      %v464 = vunpack.c.l.bf16 %v432
      %v465 = vunpack.c.l.bf16 %v433
      %v466 = vunpack.c.l.bf16 %v434
      %v467 = vunpack.c.l.bf16 %v435
      %v468 = vunpack.c.l.bf16 %v436
      %v469 = vunpack.c.l.bf16 %v437
      %v470 = vunpack.c.l.bf16 %v438
      %v471 = vunpack.c.l.bf16 %v439
      %v472 = vunpack.c.l.bf16 %v440
      %v473 = vunpack.c.l.bf16 %v441
      %v474 = vunpack.c.l.bf16 %v442
      %v475 = vunpack.c.l.bf16 %v443
      %v476 = vunpack.c.l.bf16 %v444
      %v477 = vld [vmem:[%s4] sm:$0x1]
      %v479 = vperm.slane %v477, 0
      %v481 = vmul.f32 %v445, %v479
      %v482 = vmul.f32 %v446, %v479
      %v483 = vmul.f32 %v447, %v479
      %v484 = vmul.f32 %v448, %v479
      %v485 = vmul.f32 %v449, %v479
      %v486 = vmul.f32 %v450, %v479
      %v487 = vmul.f32 %v451, %v479
      %v488 = vmul.f32 %v452, %v479
      %v489 = vmul.f32 %v453, %v479
      %v490 = vmul.f32 %v454, %v479
      %v491 = vmul.f32 %v455, %v479
      %v492 = vmul.f32 %v456, %v479
      %v493 = vmul.f32 %v457, %v479
      %v494 = vmul.f32 %v458, %v479
      %v495 = vmul.f32 %v459, %v479
      %v496 = vmul.f32 %v460, %v479
      %v497 = vmul.f32 %v461, %v479
      %v498 = vmul.f32 %v462, %v479
      %v499 = vmul.f32 %v463, %v479
      %v500 = vmul.f32 %v464, %v479
      %v501 = vmul.f32 %v465, %v479
      %v502 = vmul.f32 %v466, %v479
      %v503 = vmul.f32 %v467, %v479
      %v504 = vmul.f32 %v468, %v479
      %v505 = vmul.f32 %v469, %v479
      %v506 = vmul.f32 %v470, %v479
      %v507 = vmul.f32 %v471, %v479
      %v508 = vmul.f32 %v472, %v479
      %v509 = vmul.f32 %v473, %v479
      %v510 = vmul.f32 %v474, %v479
      %v511 = vmul.f32 %v475, %v479
      %v512 = vmul.f32 %v476, %v479
      %v513 = vadd.f32 %v381, %v481
      %v514 = vadd.f32 %v382, %v482
      %v515 = vadd.f32 %v383, %v483
      %v516 = vadd.f32 %v384, %v484
      %v517 = vadd.f32 %v385, %v485
      %v518 = vadd.f32 %v386, %v486
      %v519 = vadd.f32 %v387, %v487
      %v520 = vadd.f32 %v388, %v488
      %v521 = vadd.f32 %v389, %v489
      %v522 = vadd.f32 %v390, %v490
      %v523 = vadd.f32 %v391, %v491
      %v524 = vadd.f32 %v392, %v492
      %v525 = vadd.f32 %v393, %v493
      %v526 = vadd.f32 %v394, %v494
      %v527 = vadd.f32 %v395, %v495
      %v528 = vadd.f32 %v396, %v496
      %v529 = vadd.f32 %v397, %v497
      %v530 = vadd.f32 %v398, %v498
      %v531 = vadd.f32 %v399, %v499
      %v532 = vadd.f32 %v400, %v500
      %v533 = vadd.f32 %v401, %v501
      %v534 = vadd.f32 %v402, %v502
      %v535 = vadd.f32 %v403, %v503
      %v536 = vadd.f32 %v404, %v504
      %v537 = vadd.f32 %v405, %v505
      %v538 = vadd.f32 %v406, %v506
      %v539 = vadd.f32 %v407, %v507
      %v540 = vadd.f32 %v408, %v508
      %v541 = vadd.f32 %v409, %v509
      %v542 = vadd.f32 %v410, %v510
      %v543 = vadd.f32 %v411, %v511
      %v544 = vadd.f32 %v412, %v512
      %v545 = vld [vmem:[%s5] sm:$0x1]
      %v547 = vperm.slane %v545, 0
      %v549 = vadd.f32 %v513, %v547
      %v550 = vadd.f32 %v514, %v547
      %v551 = vadd.f32 %v515, %v547
      %v552 = vadd.f32 %v516, %v547
      %v553 = vadd.f32 %v517, %v547
      %v554 = vadd.f32 %v518, %v547
      %v555 = vadd.f32 %v519, %v547
      %v556 = vadd.f32 %v520, %v547
      %v557 = vadd.f32 %v521, %v547
      %v558 = vadd.f32 %v522, %v547
      %v559 = vadd.f32 %v523, %v547
      %v560 = vadd.f32 %v524, %v547
      %v561 = vadd.f32 %v525, %v547
      %v562 = vadd.f32 %v526, %v547
      %v563 = vadd.f32 %v527, %v547
      %v564 = vadd.f32 %v528, %v547
      %v565 = vadd.f32 %v529, %v547
      %v566 = vadd.f32 %v530, %v547
      %v567 = vadd.f32 %v531, %v547
      %v568 = vadd.f32 %v532, %v547
      %v569 = vadd.f32 %v533, %v547
      %v570 = vadd.f32 %v534, %v547
      %v571 = vadd.f32 %v535, %v547
      %v572 = vadd.f32 %v536, %v547
      %v573 = vadd.f32 %v537, %v547
      %v574 = vadd.f32 %v538, %v547
      %v575 = vadd.f32 %v539, %v547
      %v576 = vadd.f32 %v540, %v547
      %v577 = vadd.f32 %v541, %v547
      %v578 = vadd.f32 %v542, %v547
      %v579 = vadd.f32 %v543, %v547
      %v580 = vadd.f32 %v544, %v547
      %v581 = vmax.f32 %v549, 0.0
      %v582 = vmax.f32 %v550, 0.0
      %v583 = vmax.f32 %v551, 0.0
      %v584 = vmax.f32 %v552, 0.0
      %v585 = vmax.f32 %v553, 0.0
      %v586 = vmax.f32 %v554, 0.0
      %v587 = vmax.f32 %v555, 0.0
      %v588 = vmax.f32 %v556, 0.0
      %v589 = vmax.f32 %v557, 0.0
      %v590 = vmax.f32 %v558, 0.0
      %v591 = vmax.f32 %v559, 0.0
      %v592 = vmax.f32 %v560, 0.0
      %v593 = vmax.f32 %v561, 0.0
      %v594 = vmax.f32 %v562, 0.0
      %v595 = vmax.f32 %v563, 0.0
      %v596 = vmax.f32 %v564, 0.0
      %v597 = vmax.f32 %v565, 0.0
      %v598 = vmax.f32 %v566, 0.0
      %v599 = vmax.f32 %v567, 0.0
      %v600 = vmax.f32 %v568, 0.0
      %v601 = vmax.f32 %v569, 0.0
      %v602 = vmax.f32 %v570, 0.0
      %v603 = vmax.f32 %v571, 0.0
      %v604 = vmax.f32 %v572, 0.0
      %v605 = vmax.f32 %v573, 0.0
      %v606 = vmax.f32 %v574, 0.0
      %v607 = vmax.f32 %v575, 0.0
      %v608 = vmax.f32 %v576, 0.0
      %v609 = vmax.f32 %v577, 0.0
      %v610 = vmax.f32 %v578, 0.0
      %v611 = vmax.f32 %v579, 0.0
      %v612 = vmax.f32 %v580, 0.0
      %vm613 = vcmask 130048
      %614 = vst.msk [vmem:[%s275] sm:$0xff] %vm613, %v581
      %615 = vst.msk [vmem:[%s275 + $0x8] sm:$0xff] %vm613, %v582
      %616 = vst.msk [vmem:[%s275 + $0x10] sm:$0xff] %vm613, %v583
      %617 = vst.msk [vmem:[%s275 + $0x18] sm:$0xff] %vm613, %v584
      %618 = vst.msk [vmem:[%s275 + $0x20] sm:$0xff] %vm613, %v585
      %619 = vst.msk [vmem:[%s275 + $0x28] sm:$0xff] %vm613, %v586
      %620 = vst.msk [vmem:[%s275 + $0x30] sm:$0xff] %vm613, %v587
      %621 = vst.msk [vmem:[%s275 + $0x38] sm:$0xff] %vm613, %v588
      %622 = vst.msk [vmem:[%s275 + $0x40] sm:$0xff] %vm613, %v589
      %623 = vst.msk [vmem:[%s275 + $0x48] sm:$0xff] %vm613, %v590
      %624 = vst.msk [vmem:[%s275 + $0x50] sm:$0xff] %vm613, %v591
      %625 = vst.msk [vmem:[%s275 + $0x58] sm:$0xff] %vm613, %v592
      %626 = vst.msk [vmem:[%s275 + $0x60] sm:$0xff] %vm613, %v593
      %627 = vst.msk [vmem:[%s275 + $0x68] sm:$0xff] %vm613, %v594
      %628 = vst.msk [vmem:[%s275 + $0x70] sm:$0xff] %vm613, %v595
      %629 = vst.msk [vmem:[%s275 + $0x78] sm:$0xff] %vm613, %v596
      %630 = vst.msk [vmem:[%s275 + $0x80] sm:$0xff] %vm613, %v597
      %631 = vst.msk [vmem:[%s275 + $0x88] sm:$0xff] %vm613, %v598
      %632 = vst.msk [vmem:[%s275 + $0x90] sm:$0xff] %vm613, %v599
      %633 = vst.msk [vmem:[%s275 + $0x98] sm:$0xff] %vm613, %v600
      %634 = vst.msk [vmem:[%s275 + $0xa0] sm:$0xff] %vm613, %v601
      %635 = vst.msk [vmem:[%s275 + $0xa8] sm:$0xff] %vm613, %v602
      %636 = vst.msk [vmem:[%s275 + $0xb0] sm:$0xff] %vm613, %v603
      %637 = vst.msk [vmem:[%s275 + $0xb8] sm:$0xff] %vm613, %v604
      %638 = vst.msk [vmem:[%s275 + $0xc0] sm:$0xff] %vm613, %v605
      %639 = vst.msk [vmem:[%s275 + $0xc8] sm:$0xff] %vm613, %v606
      %640 = vst.msk [vmem:[%s275 + $0xd0] sm:$0xff] %vm613, %v607
      %641 = vst.msk [vmem:[%s275 + $0xd8] sm:$0xff] %vm613, %v608
      %642 = vst.msk [vmem:[%s275 + $0xe0] sm:$0xff] %vm613, %v609
      %643 = vst.msk [vmem:[%s275 + $0xe8] sm:$0xff] %vm613, %v610
      %644 = vst.msk [vmem:[%s275 + $0xf0] sm:$0xff] %vm613, %v611
      %645 = vst.msk [vmem:[%s275 + $0xf8] sm:$0xff] %vm613, %v612
      %s646 = smul.u32 32, %s17
      %p647 = scmp.lt.s32.totalorder %s646, 63
      %s648 = scalar_select %p647, %s646, 63
      %s649 = smul.addr %s648, 8
      %s650 = scalar_lea.vmem %s6, %s649
      // Predicated region
      $region45: #{bottleneck_forward.7} parent=43 // pred_check
        %p651 = pneg %p171
      $region46: #{bottleneck_forward.7} parent=43 // pred_check_branch
        %653 = sbr.rel (%p651) target = $region48
      $region47: #{bottleneck_forward.7} parent=43 // pred_region
        %s654 = smul.u32 32, %s17
      $region48: #{bottleneck_forward.7} parent=43 // pred_fallthru
        _
    $region44: #{bottleneck_forward.7} parent=5 // pred_fallthru
      _
    %p655 = scmp.le.s32.totalorder 2, %s12
    // Predicated region
    $region49: #{bottleneck_forward.7} parent=5 // pred_check
      %p656 = pneg %p655
    $region50: #{bottleneck_forward.7} parent=5 // pred_check_branch
      %658 = sbr.rel (%p656) target = $region52
    $region51: #{bottleneck_forward.7} parent=5 // pred_region
      %s659 = ssub.s32 %s12, 2
      // Predicated region
      $region53: #{bottleneck_forward.7} parent=51 // pred_check
        %p660 = pneg %p177
      $region54: #{bottleneck_forward.7} parent=51 // pred_check_branch
        %662 = sbr.rel (%p660) target = $region56
      $region55: #{bottleneck_forward.7} parent=51 // pred_region
        %s663 = smul.u32 32, %s18
        %p664 = scmp.lt.s32.totalorder %s663, 63
        %s665 = scalar_select %p664, %s663, 63
        %s666 = smul.addr %s665, 8
        %s667 = scalar_lea.vmem %s6, %s666
      $region56: #{bottleneck_forward.7} parent=51 // pred_fallthru
        _
    $region52: #{bottleneck_forward.7} parent=5 // pred_fallthru
      _
  $region6: #{bottleneck_forward.7} parent=0 // loop_footer
    %s16 = sadd.s32 1, %s12
  $region7: #{bottleneck_forward.7} parent=0 // loop_footer_branch
    %11 = sbr.rel target = $region3
  $region8: #{bottleneck_forward.7} parent=0 // loop_exit
    _

// kernel: bottleneck_forward.6
$region0: #{bottleneck_forward.6}
  #allocation0 [shape = 'u32[]', space=smem, size = 0x4, offset = 0x4, fixed_abs, tag = 'smem constant byte address 0x4 - core index']
  #allocation1 [shape = 'u32[72,128]{1,0:T(1,128)}', space=vmem, size = 0x9000, scoped, tag = 'internal scratch']
  %s0 = inlined_call_operand.vmem [shape: bf16[512,4], index: 0, kind: input, shape index: {}]
  %s1 = inlined_call_operand.vmem [shape: f32[512,4], index: 1, kind: input, shape index: {}]
  %s2 = inlined_call_operand.vmem [shape: f32[1,4], index: 2, kind: input, shape index: {}]
  %s3 = inlined_call_operand.vmem [shape: f32[1,4], index: 3, kind: input, shape index: {}]
  %s4 = inlined_call_operand.vmem [shape: bf16[4,16], index: 4, kind: input, shape index: {}]
  %s5 = inlined_call_operand.vmem [shape: bf16[4,16], index: 5, kind: input, shape index: {}]
  %s6 = inlined_call_operand.vmem [shape: bf16[512,16], index: 6, kind: output, shape index: {0}]
  %s7 = inlined_call_operand.vmem [shape: bf16[512,16], index: 7, kind: output, shape index: {1}]
  %s8 = inlined_call_operand.vmem [shape: f32[2,1,64], index: 8, kind: output, shape index: {2}]
  %9 = xla_tuple %s6, %s7, %s8
  %s10 = sld [smem:[#allocation0]]
  $region73: #{bottleneck_forward.6} parent=0
    _
  %s12 = ssub.s32 1, %s10
  %s13 = scalar_select 0, %s12, %s10
  loop: start=0, step=1, limit=4
  $region2: #{bottleneck_forward.6} parent=0 // loop_pre_header
    _
  $region3: #{bottleneck_forward.6} parent=0 // loop_header
    %s15 = sphi 0, %s19
    %p16 = scmp.ge.s32.totalorder %s15, 4
    %s25 = sphi 0, %s27
    %s28 = sphi 0, %s25
    %s29 = sphi 0, %s28
    %s45 = sphi 0, %s29
    %s51 = sphi 0, %s53
    %s54 = sphi 0, %s51
    %s55 = sphi 0, %s54
    %s71 = sphi 0, %s55
    %s75 = sphi 0, %s75
    %s77 = sphi 0, %s75
    %s78 = sphi 0, %s77
    %s92 = sphi 0, %s78
    %s96 = sphi 0, %s96
    %s98 = sphi 0, %s96
    %s99 = sphi 0, %s98
    %s113 = sphi 0, %s99
    %s117 = sphi 0, %s117
    %s119 = sphi 0, %s117
    %s120 = sphi 0, %s119
    %s134 = sphi 0, %s120
    %s138 = sphi 0, %s138
    %s140 = sphi 0, %s138
    %s141 = sphi 0, %s140
    %s155 = sphi 0, %s141
    %s161 = sphi 0, %s163
    %s164 = sphi 0, %s161
    %s165 = sphi 0, %s164
    %s181 = sphi 0, %s165
    %s187 = sphi 0, %s189
    %s190 = sphi 0, %s187
    %s191 = sphi 0, %s190
    %s207 = sphi 0, %s191
    %s213 = sphi 0, %s215
    %s216 = sphi 0, %s213
    %s217 = sphi 0, %s216
    %s233 = sphi 0, %s217
  $region4: #{bottleneck_forward.6} parent=0 // loop_header_branch
    %18 = sbr.rel (%p16) target = $region8
  $region5: #{bottleneck_forward.6} parent=0 // loop_body
    %s20 = ssub.s32 %s15, 1
    %s21 = ssub.s32 %s15, 2
    %s22 = sadd.s32 %s15, 1
    %s23 = ssub.s32 %s15, %s22
    %p24 = scmp.eq.s32.totalorder %s23, 0
    %s26 = sadd.s32 %s25, 1
    %s27 = scalar_select %p24, %s25, %s26
    %p30 = pneg %p24
    %p31 = scmp.eq.s32.totalorder %s15, 1
    %p32 = por %p30, %p31
    %p33 = scmp.ne.s32.totalorder %s25, %s28
    %p34 = scmp.eq.s32.totalorder %s15, 0
    %p35 = por %p33, %p34
    %p36 = scmp.ne.s32.totalorder %s25, %s28
    %p37 = scmp.eq.s32.totalorder %s20, 1
    %p38 = por %p36, %p37
    %p39 = scmp.ne.s32.totalorder %s28, %s29
    %p40 = scmp.eq.s32.totalorder %s20, 0
    %p41 = por %p39, %p40
    %p42 = scmp.ne.s32.totalorder %s28, %s29
    %p43 = scmp.eq.s32.totalorder %s21, 1
    %p44 = por %p42, %p43
    %p46 = scmp.ne.s32.totalorder %s29, %s45
    %p47 = scmp.eq.s32.totalorder %s21, 0
    %p48 = por %p46, %p47
    %s49 = ssub.s32 %s15, %s22
    %p50 = scmp.eq.s32.totalorder %s49, 0
    %s52 = sadd.s32 %s51, 1
    %s53 = scalar_select %p50, %s51, %s52
    %p56 = pneg %p50
    %p57 = scmp.eq.s32.totalorder %s15, 1
    %p58 = por %p56, %p57
    %p59 = scmp.ne.s32.totalorder %s51, %s54
    %p60 = scmp.eq.s32.totalorder %s15, 0
    %p61 = por %p59, %p60
    %p62 = scmp.ne.s32.totalorder %s51, %s54
    %p63 = scmp.eq.s32.totalorder %s20, 1
    %p64 = por %p62, %p63
    %p65 = scmp.ne.s32.totalorder %s54, %s55
    %p66 = scmp.eq.s32.totalorder %s20, 0
    %p67 = por %p65, %p66
    %p68 = scmp.ne.s32.totalorder %s54, %s55
    %p69 = scmp.eq.s32.totalorder %s21, 1
    %p70 = por %p68, %p69
    %p72 = scmp.ne.s32.totalorder %s55, %s71
    %p73 = scmp.eq.s32.totalorder %s21, 0
    %p74 = por %p72, %p73
    %s76 = sadd.s32 %s75, 1
    %p79 = scmp.eq.s32.totalorder %s15, 1
    %p80 = scmp.ne.s32.totalorder %s75, %s77
    %p81 = scmp.eq.s32.totalorder %s15, 0
    %p82 = por %p80, %p81
    %p83 = scmp.ne.s32.totalorder %s75, %s77
    %p84 = scmp.eq.s32.totalorder %s20, 1
    %p85 = por %p83, %p84
    %p86 = scmp.ne.s32.totalorder %s77, %s78
    %p87 = scmp.eq.s32.totalorder %s20, 0
    %p88 = por %p86, %p87
    %p89 = scmp.ne.s32.totalorder %s77, %s78
    %p90 = scmp.eq.s32.totalorder %s21, 1
    %p91 = por %p89, %p90
    %p93 = scmp.ne.s32.totalorder %s78, %s92
    %p94 = scmp.eq.s32.totalorder %s21, 0
    %p95 = por %p93, %p94
    %s97 = sadd.s32 %s96, 1
    %p100 = scmp.eq.s32.totalorder %s15, 1
    %p101 = scmp.ne.s32.totalorder %s96, %s98
    %p102 = scmp.eq.s32.totalorder %s15, 0
    %p103 = por %p101, %p102
    %p104 = scmp.ne.s32.totalorder %s96, %s98
    %p105 = scmp.eq.s32.totalorder %s20, 1
    %p106 = por %p104, %p105
    %p107 = scmp.ne.s32.totalorder %s98, %s99
    %p108 = scmp.eq.s32.totalorder %s20, 0
    %p109 = por %p107, %p108
    %p110 = scmp.ne.s32.totalorder %s98, %s99
    %p111 = scmp.eq.s32.totalorder %s21, 1
    %p112 = por %p110, %p111
    %p114 = scmp.ne.s32.totalorder %s99, %s113
    %p115 = scmp.eq.s32.totalorder %s21, 0
    %p116 = por %p114, %p115
    %s118 = sadd.s32 %s117, 1
    %p121 = scmp.eq.s32.totalorder %s15, 1
    %p122 = scmp.ne.s32.totalorder %s117, %s119
    %p123 = scmp.eq.s32.totalorder %s15, 0
    %p124 = por %p122, %p123
    %p125 = scmp.ne.s32.totalorder %s117, %s119
    %p126 = scmp.eq.s32.totalorder %s20, 1
    %p127 = por %p125, %p126
    %p128 = scmp.ne.s32.totalorder %s119, %s120
    %p129 = scmp.eq.s32.totalorder %s20, 0
    %p130 = por %p128, %p129
    %p131 = scmp.ne.s32.totalorder %s119, %s120
    %p132 = scmp.eq.s32.totalorder %s21, 1
    %p133 = por %p131, %p132
    %p135 = scmp.ne.s32.totalorder %s120, %s134
    %p136 = scmp.eq.s32.totalorder %s21, 0
    %p137 = por %p135, %p136
    %s139 = sadd.s32 %s138, 1
    %p142 = scmp.eq.s32.totalorder %s15, 1
    %p143 = scmp.ne.s32.totalorder %s138, %s140
    %p144 = scmp.eq.s32.totalorder %s15, 0
    %p145 = por %p143, %p144
    %p146 = scmp.ne.s32.totalorder %s138, %s140
    %p147 = scmp.eq.s32.totalorder %s20, 1
    %p148 = por %p146, %p147
    %p149 = scmp.ne.s32.totalorder %s140, %s141
    %p150 = scmp.eq.s32.totalorder %s20, 0
    %p151 = por %p149, %p150
    %p152 = scmp.ne.s32.totalorder %s140, %s141
    %p153 = scmp.eq.s32.totalorder %s21, 1
    %p154 = por %p152, %p153
    %p156 = scmp.ne.s32.totalorder %s141, %s155
    %p157 = scmp.eq.s32.totalorder %s21, 0
    %p158 = por %p156, %p157
    %s159 = ssub.s32 %s15, %s22
    %p160 = scmp.eq.s32.totalorder %s159, 0
    %s162 = sadd.s32 %s161, 1
    %s163 = scalar_select %p160, %s161, %s162
    %p166 = pneg %p160
    %p167 = scmp.eq.s32.totalorder %s15, 1
    %p168 = por %p166, %p167
    %p169 = scmp.ne.s32.totalorder %s161, %s164
    %p170 = scmp.eq.s32.totalorder %s15, 0
    %p171 = por %p169, %p170
    %p172 = scmp.ne.s32.totalorder %s161, %s164
    %p173 = scmp.eq.s32.totalorder %s20, 1
    %p174 = por %p172, %p173
    %p175 = scmp.ne.s32.totalorder %s164, %s165
    %p176 = scmp.eq.s32.totalorder %s20, 0
    %p177 = por %p175, %p176
    %p178 = scmp.ne.s32.totalorder %s164, %s165
    %p179 = scmp.eq.s32.totalorder %s21, 1
    %p180 = por %p178, %p179
    %p182 = scmp.ne.s32.totalorder %s165, %s181
    %p183 = scmp.eq.s32.totalorder %s21, 0
    %p184 = por %p182, %p183
    %s185 = ssub.s32 %s15, %s22
    %p186 = scmp.eq.s32.totalorder %s185, 0
    %s188 = sadd.s32 %s187, 1
    %s189 = scalar_select %p186, %s187, %s188
    %p192 = pneg %p186
    %p193 = scmp.eq.s32.totalorder %s15, 1
    %p194 = por %p192, %p193
    %p195 = scmp.ne.s32.totalorder %s187, %s190
    %p196 = scmp.eq.s32.totalorder %s15, 0
    %p197 = por %p195, %p196
    %p198 = scmp.ne.s32.totalorder %s187, %s190
    %p199 = scmp.eq.s32.totalorder %s20, 1
    %p200 = por %p198, %p199
    %p201 = scmp.ne.s32.totalorder %s190, %s191
    %p202 = scmp.eq.s32.totalorder %s20, 0
    %p203 = por %p201, %p202
    %p204 = scmp.ne.s32.totalorder %s190, %s191
    %p205 = scmp.eq.s32.totalorder %s21, 1
    %p206 = por %p204, %p205
    %p208 = scmp.ne.s32.totalorder %s191, %s207
    %p209 = scmp.eq.s32.totalorder %s21, 0
    %p210 = por %p208, %p209
    %s211 = ssub.s32 %s15, %s22
    %p212 = scmp.eq.s32.totalorder %s211, 0
    %s214 = sadd.s32 %s213, 1
    %s215 = scalar_select %p212, %s213, %s214
    %p218 = pneg %p212
    %p219 = scmp.eq.s32.totalorder %s15, 1
    %p220 = por %p218, %p219
    %p221 = scmp.ne.s32.totalorder %s213, %s216
    %p222 = scmp.eq.s32.totalorder %s15, 0
    %p223 = por %p221, %p222
    %p224 = scmp.ne.s32.totalorder %s213, %s216
    %p225 = scmp.eq.s32.totalorder %s20, 1
    %p226 = por %p224, %p225
    %p227 = scmp.ne.s32.totalorder %s216, %s217
    %p228 = scmp.eq.s32.totalorder %s20, 0
    %p229 = por %p227, %p228
    %p230 = scmp.ne.s32.totalorder %s216, %s217
    %p231 = scmp.eq.s32.totalorder %s21, 1
    %p232 = por %p230, %p231
    %p234 = scmp.ne.s32.totalorder %s217, %s233
    %p235 = scmp.eq.s32.totalorder %s21, 0
    %p236 = por %p234, %p235
    %p237 = scmp.le.s32.totalorder 1, %s15
    %p238 = scmp.lt.s32.totalorder %s15, 3
    %p239 = pnand %p237, %p238
    %p240 = pneg %p239
    // Predicated region
    $region9: #{bottleneck_forward.6} parent=5 // pred_check
      _
    $region10: #{bottleneck_forward.6} parent=5 // pred_check_branch
      %242 = sbr.rel (%p239) target = $region12
    $region11: #{bottleneck_forward.6} parent=5 // pred_region
      %s243 = ssub.s32 %s15, 1
      // Predicated region
      $region13: #{bottleneck_forward.6} parent=11 // pred_check
        %p244 = pneg %p88
      $region14: #{bottleneck_forward.6} parent=11 // pred_check_branch
        %246 = sbr.rel (%p244) target = $region16
      $region15: #{bottleneck_forward.6} parent=11 // pred_region
        _
      $region16: #{bottleneck_forward.6} parent=11 // pred_fallthru
        _
      // Predicated region
      $region17: #{bottleneck_forward.6} parent=11 // pred_check
        %p247 = pneg %p109
      $region18: #{bottleneck_forward.6} parent=11 // pred_check_branch
        %249 = sbr.rel (%p247) target = $region20
      $region19: #{bottleneck_forward.6} parent=11 // pred_region
        _
      $region20: #{bottleneck_forward.6} parent=11 // pred_fallthru
        _
      // Predicated region
      $region21: #{bottleneck_forward.6} parent=11 // pred_check
        %p250 = pneg %p130
      $region22: #{bottleneck_forward.6} parent=11 // pred_check_branch
        %252 = sbr.rel (%p250) target = $region24
      $region23: #{bottleneck_forward.6} parent=11 // pred_region
        _
      $region24: #{bottleneck_forward.6} parent=11 // pred_fallthru
        _
      // Predicated region
      $region25: #{bottleneck_forward.6} parent=11 // pred_check
        %p253 = pneg %p151
      $region26: #{bottleneck_forward.6} parent=11 // pred_check_branch
        %255 = sbr.rel (%p253) target = $region28
      $region27: #{bottleneck_forward.6} parent=11 // pred_region
        _
      $region28: #{bottleneck_forward.6} parent=11 // pred_fallthru
        _
    $region12: #{bottleneck_forward.6} parent=5 // pred_fallthru
      _
    %p256 = scmp.lt.s32.totalorder %s15, 2
    // Predicated region
    $region29: #{bottleneck_forward.6} parent=5 // pred_check
      %p257 = pneg %p256
    $region30: #{bottleneck_forward.6} parent=5 // pred_check_branch
      %259 = sbr.rel (%p257) target = $region32
    $region31: #{bottleneck_forward.6} parent=5 // pred_region
      // Predicated region
      $region33: #{bottleneck_forward.6} parent=31 // pred_check
        %p260 = pneg %p35
      $region34: #{bottleneck_forward.6} parent=31 // pred_check_branch
        %262 = sbr.rel (%p260) target = $region36
      $region35: #{bottleneck_forward.6} parent=31 // pred_region
        %s263 = smul.u32 32, %s15
        %p264 = scmp.lt.s32.totalorder %s263, 63
        %s265 = scalar_select %p264, %s263, 63
        %s266 = smul.addr %s265, 4
        %s267 = scalar_lea.vmem %s0, %s266
        %s268 = smul.u32 32, %s15
      $region36: #{bottleneck_forward.6} parent=31 // pred_fallthru
        _
      // Predicated region
      $region37: #{bottleneck_forward.6} parent=31 // pred_check
        %p269 = pneg %p61
      $region38: #{bottleneck_forward.6} parent=31 // pred_check_branch
        %271 = sbr.rel (%p269) target = $region40
      $region39: #{bottleneck_forward.6} parent=31 // pred_region
        %s272 = smul.u32 32, %s15
        %p273 = scmp.lt.s32.totalorder %s272, 63
        %s274 = scalar_select %p273, %s272, 63
        %s275 = smul.addr %s274, 8
        %s276 = scalar_lea.vmem %s1, %s275
        %s277 = smul.u32 32, %s15
      $region40: #{bottleneck_forward.6} parent=31 // pred_fallthru
        _
    $region32: #{bottleneck_forward.6} parent=5 // pred_fallthru
      _
    %p278 = scmp.le.s32.totalorder 1, %s15
    %p279 = scmp.lt.s32.totalorder %s15, 3
    %p280 = pnand %p278, %p279
    %p281 = pneg %p280
    // Predicated region
    $region41: #{bottleneck_forward.6} parent=5 // pred_check
      _
    $region42: #{bottleneck_forward.6} parent=5 // pred_check_branch
      %283 = sbr.rel (%p280) target = $region44
    $region43: #{bottleneck_forward.6} parent=5 // pred_region
      %s284 = ssub.s32 %s15, 1
      %s285 = smul.u32 32, %s20
      %p286 = scmp.lt.s32.totalorder %s285, 63
      %s287 = scalar_select %p286, %s285, 63
      %s288 = smul.addr %s287, 4
      %s289 = scalar_lea.vmem %s0, %s288
      %p290 = pneg %p41
      %p291 = pneg %p38
      %s292 = smul.u32 32, %s20
      %p293 = scmp.lt.s32.totalorder %s292, 63
      %s294 = scalar_select %p293, %s292, 63
      %s295 = smul.addr %s294, 8
      %s296 = scalar_lea.vmem %s1, %s295
      %p297 = pneg %p67
      %p298 = pneg %p64
      %p299 = pneg %p88
      %p300 = pneg %p85
      %p301 = pneg %p109
      %p302 = pneg %p106
      %p303 = pneg %p130
      %p304 = pneg %p127
      %p305 = pneg %p151
      %p306 = pneg %p148
      %p307 = pneg %p177
      %p308 = pneg %p174
      %s309 = smul.u32 32, %s20
      %p310 = scmp.lt.s32.totalorder %s309, 63
      %s311 = scalar_select %p310, %s309, 63
      %s312 = smul.addr %s311, 4
      %s313 = scalar_lea.vmem %s6, %s312
      %p314 = pneg %p203
      %p315 = pneg %p200
      %s316 = smul.u32 32, %s20
      %p317 = scmp.lt.s32.totalorder %s316, 63
      %s318 = scalar_select %p317, %s316, 63
      %s319 = smul.addr %s318, 4
      %s320 = scalar_lea.vmem %s7, %s319
      %p321 = pneg %p229
      %p322 = pneg %p226
      %p323 = scmp.lt.s32.totalorder %s20, 1
      %s324 = scalar_select %p323, %s20, 1
      %s325 = scalar_lea.vmem %s8, %s324
      %s326 = smul.u32 32, %s20
      %p327 = scmp.lt.s32.totalorder %s326, 63
      %s328 = scalar_select %p327, %s326, 63
      %s329 = smul.addr %s328, 4
      %s330 = scalar_lea.vmem %s0, %s329
      %s331 = smul.u32 32, %s20
      %s332 = smul.u32 32, %s20
      %p333 = scmp.lt.s32.totalorder %s332, 63
      %s334 = scalar_select %p333, %s332, 63
      %s335 = smul.addr %s334, 8
      %s336 = scalar_lea.vmem %s1, %s335
      %s337 = smul.u32 32, %s20
      %s338 = smul.u32 32, %s20
      %p339 = scmp.lt.s32.totalorder %s338, 63
      %s340 = scalar_select %p339, %s338, 63
      %s341 = smul.addr %s340, 4
      %s342 = scalar_lea.vmem %s6, %s341
      %s343 = smul.u32 32, %s20
      %s344 = smul.u32 32, %s20
      %p345 = scmp.lt.s32.totalorder %s344, 63
      %s346 = scalar_select %p345, %s344, 63
      %s347 = smul.addr %s346, 4
      %s348 = scalar_lea.vmem %s7, %s347
      %s349 = smul.u32 32, %s20
      %p350 = scmp.lt.s32.totalorder %s20, 1
      %s351 = scalar_select %p350, %s20, 1
      %s352 = scalar_lea.vmem %s8, %s351
      %v354 = vld [vmem:[%s330] sm:$0xf]
      %v355 = vld [vmem:[%s330 + $0x4] sm:$0xf]
      %v356 = vld [vmem:[%s330 + $0x8] sm:$0xf]
      %v357 = vld [vmem:[%s330 + $0xc] sm:$0xf]
      %v358 = vld [vmem:[%s330 + $0x10] sm:$0xf]
      %v359 = vld [vmem:[%s330 + $0x14] sm:$0xf]
      %v360 = vld [vmem:[%s330 + $0x18] sm:$0xf]
      %v361 = vld [vmem:[%s330 + $0x1c] sm:$0xf]
      %v362 = vld [vmem:[%s330 + $0x20] sm:$0xf]
      %v363 = vld [vmem:[%s330 + $0x24] sm:$0xf]
      %v364 = vld [vmem:[%s330 + $0x28] sm:$0xf]
      %v365 = vld [vmem:[%s330 + $0x2c] sm:$0xf]
      %v366 = vld [vmem:[%s330 + $0x30] sm:$0xf]
      %v367 = vld [vmem:[%s330 + $0x34] sm:$0xf]
      %v368 = vld [vmem:[%s330 + $0x38] sm:$0xf]
      %v369 = vld [vmem:[%s330 + $0x3c] sm:$0xf]
      %v370 = vld [vmem:[%s330 + $0x40] sm:$0xf]
      %v371 = vld [vmem:[%s330 + $0x44] sm:$0xf]
      %v372 = vld [vmem:[%s330 + $0x48] sm:$0xf]
      %v373 = vld [vmem:[%s330 + $0x4c] sm:$0xf]
      %v374 = vld [vmem:[%s330 + $0x50] sm:$0xf]
      %v375 = vld [vmem:[%s330 + $0x54] sm:$0xf]
      %v376 = vld [vmem:[%s330 + $0x58] sm:$0xf]
      %v377 = vld [vmem:[%s330 + $0x5c] sm:$0xf]
      %v378 = vld [vmem:[%s330 + $0x60] sm:$0xf]
      %v379 = vld [vmem:[%s330 + $0x64] sm:$0xf]
      %v380 = vld [vmem:[%s330 + $0x68] sm:$0xf]
      %v381 = vld [vmem:[%s330 + $0x6c] sm:$0xf]
      %v382 = vld [vmem:[%s330 + $0x70] sm:$0xf]
      %v383 = vld [vmem:[%s330 + $0x74] sm:$0xf]
      %v384 = vld [vmem:[%s330 + $0x78] sm:$0xf]
      %v385 = vld [vmem:[%s330 + $0x7c] sm:$0xf]
      %v386 = vunpack.c.l.bf16 %v354
      %v387 = vunpack.c.l.bf16 %v355
      %v388 = vunpack.c.l.bf16 %v356
      %v389 = vunpack.c.l.bf16 %v357
      %v390 = vunpack.c.l.bf16 %v358
      %v391 = vunpack.c.l.bf16 %v359
      %v392 = vunpack.c.l.bf16 %v360
      %v393 = vunpack.c.l.bf16 %v361
      %v394 = vunpack.c.l.bf16 %v362
      %v395 = vunpack.c.l.bf16 %v363
      %v396 = vunpack.c.l.bf16 %v364
      %v397 = vunpack.c.l.bf16 %v365
      %v398 = vunpack.c.l.bf16 %v366
      %v399 = vunpack.c.l.bf16 %v367
      %v400 = vunpack.c.l.bf16 %v368
      %v401 = vunpack.c.l.bf16 %v369
      %v402 = vunpack.c.l.bf16 %v370
      %v403 = vunpack.c.l.bf16 %v371
      %v404 = vunpack.c.l.bf16 %v372
      %v405 = vunpack.c.l.bf16 %v373
      %v406 = vunpack.c.l.bf16 %v374
      %v407 = vunpack.c.l.bf16 %v375
      %v408 = vunpack.c.l.bf16 %v376
      %v409 = vunpack.c.l.bf16 %v377
      %v410 = vunpack.c.l.bf16 %v378
      %v411 = vunpack.c.l.bf16 %v379
      %v412 = vunpack.c.l.bf16 %v380
      %v413 = vunpack.c.l.bf16 %v381
      %v414 = vunpack.c.l.bf16 %v382
      %v415 = vunpack.c.l.bf16 %v383
      %v416 = vunpack.c.l.bf16 %v384
      %v417 = vunpack.c.l.bf16 %v385
      %v418 = vld [vmem:[%s2] sm:$0x1]
      %v420 = vperm.slane %v418, 0
      %v422 = vmul.f32 %v386, %v420
      %v423 = vmul.f32 %v387, %v420
      %v424 = vmul.f32 %v388, %v420
      %v425 = vmul.f32 %v389, %v420
      %v426 = vmul.f32 %v390, %v420
      %v427 = vmul.f32 %v391, %v420
      %v428 = vmul.f32 %v392, %v420
      %v429 = vmul.f32 %v393, %v420
      %v430 = vmul.f32 %v394, %v420
      %v431 = vmul.f32 %v395, %v420
      %v432 = vmul.f32 %v396, %v420
      %v433 = vmul.f32 %v397, %v420
      %v434 = vmul.f32 %v398, %v420
      %v435 = vmul.f32 %v399, %v420
      %v436 = vmul.f32 %v400, %v420
      %v437 = vmul.f32 %v401, %v420
      %v438 = vmul.f32 %v402, %v420
      %v439 = vmul.f32 %v403, %v420
      %v440 = vmul.f32 %v404, %v420
      %v441 = vmul.f32 %v405, %v420
      %v442 = vmul.f32 %v406, %v420
      %v443 = vmul.f32 %v407, %v420
      %v444 = vmul.f32 %v408, %v420
      %v445 = vmul.f32 %v409, %v420
      %v446 = vmul.f32 %v410, %v420
      %v447 = vmul.f32 %v411, %v420
      %v448 = vmul.f32 %v412, %v420
      %v449 = vmul.f32 %v413, %v420
      %v450 = vmul.f32 %v414, %v420
      %v451 = vmul.f32 %v415, %v420
      %v452 = vmul.f32 %v416, %v420
      %v453 = vmul.f32 %v417, %v420
      %v454 = vld [vmem:[%s3] sm:$0x1]
      %v456 = vperm.slane %v454, 0
      %v458 = vadd.f32 %v422, %v456
      %v459 = vadd.f32 %v423, %v456
      %v460 = vadd.f32 %v424, %v456
      %v461 = vadd.f32 %v425, %v456
      %v462 = vadd.f32 %v426, %v456
      %v463 = vadd.f32 %v427, %v456
      %v464 = vadd.f32 %v428, %v456
      %v465 = vadd.f32 %v429, %v456
      %v466 = vadd.f32 %v430, %v456
      %v467 = vadd.f32 %v431, %v456
      %v468 = vadd.f32 %v432, %v456
      %v469 = vadd.f32 %v433, %v456
      %v470 = vadd.f32 %v434, %v456
      %v471 = vadd.f32 %v435, %v456
      %v472 = vadd.f32 %v436, %v456
      %v473 = vadd.f32 %v437, %v456
      %v474 = vadd.f32 %v438, %v456
      %v475 = vadd.f32 %v439, %v456
      %v476 = vadd.f32 %v440, %v456
      %v477 = vadd.f32 %v441, %v456
      %v478 = vadd.f32 %v442, %v456
      %v479 = vadd.f32 %v443, %v456
      %v480 = vadd.f32 %v444, %v456
      %v481 = vadd.f32 %v445, %v456
      %v482 = vadd.f32 %v446, %v456
      %v483 = vadd.f32 %v447, %v456
      %v484 = vadd.f32 %v448, %v456
      %v485 = vadd.f32 %v449, %v456
      %v486 = vadd.f32 %v450, %v456
      %v487 = vadd.f32 %v451, %v456
      %v488 = vadd.f32 %v452, %v456
      %v489 = vadd.f32 %v453, %v456
      %v490 = vmax.f32 %v458, 0.0
      %v491 = vmax.f32 %v459, 0.0
      %v492 = vmax.f32 %v460, 0.0
      %v493 = vmax.f32 %v461, 0.0
      %v494 = vmax.f32 %v462, 0.0
      %v495 = vmax.f32 %v463, 0.0
      %v496 = vmax.f32 %v464, 0.0
      %v497 = vmax.f32 %v465, 0.0
      %v498 = vmax.f32 %v466, 0.0
      %v499 = vmax.f32 %v467, 0.0
      %v500 = vmax.f32 %v468, 0.0
      %v501 = vmax.f32 %v469, 0.0
      %v502 = vmax.f32 %v470, 0.0
      %v503 = vmax.f32 %v471, 0.0
      %v504 = vmax.f32 %v472, 0.0
      %v505 = vmax.f32 %v473, 0.0
      %v506 = vmax.f32 %v474, 0.0
      %v507 = vmax.f32 %v475, 0.0
      %v508 = vmax.f32 %v476, 0.0
      %v509 = vmax.f32 %v477, 0.0
      %v510 = vmax.f32 %v478, 0.0
      %v511 = vmax.f32 %v479, 0.0
      %v512 = vmax.f32 %v480, 0.0
      %v513 = vmax.f32 %v481, 0.0
      %v514 = vmax.f32 %v482, 0.0
      %v515 = vmax.f32 %v483, 0.0
      %v516 = vmax.f32 %v484, 0.0
      %v517 = vmax.f32 %v485, 0.0
      %v518 = vmax.f32 %v486, 0.0
      %v519 = vmax.f32 %v487, 0.0
      %v520 = vmax.f32 %v488, 0.0
      %v521 = vmax.f32 %v489, 0.0
      %v522 = vpack.c.bf16 %v491, %v490
      %v523 = vpack.c.bf16 %v493, %v492
      %v524 = vpack.c.bf16 %v495, %v494
      %v525 = vpack.c.bf16 %v497, %v496
      %v526 = vpack.c.bf16 %v499, %v498
      %v527 = vpack.c.bf16 %v501, %v500
      %v528 = vpack.c.bf16 %v503, %v502
      %v529 = vpack.c.bf16 %v505, %v504
      %v530 = vpack.c.bf16 %v507, %v506
      %v531 = vpack.c.bf16 %v509, %v508
      %v532 = vpack.c.bf16 %v511, %v510
      %v533 = vpack.c.bf16 %v513, %v512
      %v534 = vpack.c.bf16 %v515, %v514
      %v535 = vpack.c.bf16 %v517, %v516
      %v536 = vpack.c.bf16 %v519, %v518
      %v537 = vpack.c.bf16 %v521, %v520
      %v538 = vld [vmem:[%s4] sm:$0x3]
      %vm539 = vcmask 31744
      %v541 = vsel %vm539, %v522, 0
      %v544 = vsel %vm539, %v523, 0
      %v547 = vsel %vm539, %v524, 0
      %v550 = vsel %vm539, %v525, 0
      %v553 = vsel %vm539, %v526, 0
      %v556 = vsel %vm539, %v527, 0
      %v559 = vsel %vm539, %v528, 0
      %v562 = vsel %vm539, %v529, 0
      %v565 = vsel %vm539, %v530, 0
      %v568 = vsel %vm539, %v531, 0
      %v571 = vsel %vm539, %v532, 0
      %v574 = vsel %vm539, %v533, 0
      %v577 = vsel %vm539, %v534, 0
      %v580 = vsel %vm539, %v535, 0
      %v583 = vsel %vm539, %v536, 0
      %v586 = vsel %vm539, %v537, 0
      %vm588 = vcmask 1041408
      %v590 = vsel %vm588, %v538, 0
      %592 = vmatpush.bf16.msra.mxu0 0
      %593 = vmatpush.bf16.msra.mxu0 0
      %594 = vmatpush.bf16.msra.mxu0 0
      %595 = vmatpush.bf16.msra.mxu0 0
      %596 = vmatpush.bf16.msra.mxu0 0
      %597 = vmatpush.bf16.msra.mxu0 0
      %598 = vmatpush.bf16.msra.mxu0 0
      %599 = vmatpush.bf16.msra.mxu0 %v590
      %600 = vmatmul.bf16.gmra.mxu0 %v541
      %v601 = vpop.f32.mrf.mxu0
      %v602 = vadd.f32 0.0, %v601
      %v603 = vpop.f32.mrf.mxu0
      %v604 = vadd.f32 0.0, %v603
      %605 = vmatmul.bf16.gmra.mxu0 %v544
      %v606 = vpop.f32.mrf.mxu0
      %v607 = vadd.f32 0.0, %v606
      %v608 = vpop.f32.mrf.mxu0
      %v609 = vadd.f32 0.0, %v608
      %610 = vmatmul.bf16.gmra.mxu0 %v547
      %v611 = vpop.f32.mrf.mxu0
      %v612 = vadd.f32 0.0, %v611
      %v613 = vpop.f32.mrf.mxu0
      %v614 = vadd.f32 0.0, %v613
      %615 = vmatmul.bf16.gmra.mxu0 %v550
      %v616 = vpop.f32.mrf.mxu0
      %v617 = vadd.f32 0.0, %v616
      %v618 = vpop.f32.mrf.mxu0
      %v619 = vadd.f32 0.0, %v618
      %620 = vmatmul.bf16.gmra.mxu0 %v553
      %v621 = vpop.f32.mrf.mxu0
      %v622 = vadd.f32 0.0, %v621
      %v623 = vpop.f32.mrf.mxu0
      %v624 = vadd.f32 0.0, %v623
      %625 = vmatmul.bf16.gmra.mxu0 %v556
      %v626 = vpop.f32.mrf.mxu0
      %v627 = vadd.f32 0.0, %v626
      %v628 = vpop.f32.mrf.mxu0
      %v629 = vadd.f32 0.0, %v628
      %630 = vmatmul.bf16.gmra.mxu0 %v559
      %v631 = vpop.f32.mrf.mxu0
      %v632 = vadd.f32 0.0, %v631
      %v633 = vpop.f32.mrf.mxu0
      %v634 = vadd.f32 0.0, %v633
      %635 = vmatmul.bf16.gmra.mxu0 %v562
      %v636 = vpop.f32.mrf.mxu0
      %v637 = vadd.f32 0.0, %v636
      %v638 = vpop.f32.mrf.mxu0
      %v639 = vadd.f32 0.0, %v638
      %640 = vmatmul.bf16.gmra.mxu0 %v565
      %v641 = vpop.f32.mrf.mxu0
      %v642 = vadd.f32 0.0, %v641
      %v643 = vpop.f32.mrf.mxu0
      %v644 = vadd.f32 0.0, %v643
      %645 = vmatmul.bf16.gmra.mxu0 %v568
      %v646 = vpop.f32.mrf.mxu0
      %v647 = vadd.f32 0.0, %v646
      %v648 = vpop.f32.mrf.mxu0
      %v649 = vadd.f32 0.0, %v648
      %650 = vmatmul.bf16.gmra.mxu0 %v571
      %v651 = vpop.f32.mrf.mxu0
      %v652 = vadd.f32 0.0, %v651
      %v653 = vpop.f32.mrf.mxu0
      %v654 = vadd.f32 0.0, %v653
      %655 = vmatmul.bf16.gmra.mxu0 %v574
      %v656 = vpop.f32.mrf.mxu0
      %v657 = vadd.f32 0.0, %v656
      %v658 = vpop.f32.mrf.mxu0
      %v659 = vadd.f32 0.0, %v658
      %660 = vmatmul.bf16.gmra.mxu0 %v577
      %v661 = vpop.f32.mrf.mxu0
      %v662 = vadd.f32 0.0, %v661
      %v663 = vpop.f32.mrf.mxu0
      %v664 = vadd.f32 0.0, %v663
      %665 = vmatmul.bf16.gmra.mxu0 %v580
      %v666 = vpop.f32.mrf.mxu0
      %v667 = vadd.f32 0.0, %v666
      %v668 = vpop.f32.mrf.mxu0
      %v669 = vadd.f32 0.0, %v668
      %670 = vmatmul.bf16.gmra.mxu0 %v583
      %v671 = vpop.f32.mrf.mxu0
      %v672 = vadd.f32 0.0, %v671
      %v673 = vpop.f32.mrf.mxu0
      %v674 = vadd.f32 0.0, %v673
      %675 = vmatmul.bf16.gmra.mxu0 %v586
      %v676 = vpop.f32.mrf.mxu0
      %v677 = vadd.f32 0.0, %v676
      %v678 = vpop.f32.mrf.mxu0
      %v679 = vadd.f32 0.0, %v678
      %680 = vdwg.mxu0
      %v681 = vld [vmem:[%s336] sm:$0xff]
      %v682 = vld [vmem:[%s336 + $0x8] sm:$0xff]
      %v683 = vld [vmem:[%s336 + $0x10] sm:$0xff]
      %v684 = vld [vmem:[%s336 + $0x18] sm:$0xff]
      %v685 = vld [vmem:[%s336 + $0x20] sm:$0xff]
      %v686 = vld [vmem:[%s336 + $0x28] sm:$0xff]
      %v687 = vld [vmem:[%s336 + $0x30] sm:$0xff]
      %v688 = vld [vmem:[%s336 + $0x38] sm:$0xff]
      %v689 = vld [vmem:[%s336 + $0x40] sm:$0xff]
      %v690 = vld [vmem:[%s336 + $0x48] sm:$0xff]
      %v691 = vld [vmem:[%s336 + $0x50] sm:$0xff]
      %v692 = vld [vmem:[%s336 + $0x58] sm:$0xff]
      %v693 = vld [vmem:[%s336 + $0x60] sm:$0xff]
      %v694 = vld [vmem:[%s336 + $0x68] sm:$0xff]
      %v695 = vld [vmem:[%s336 + $0x70] sm:$0xff]
      %v696 = vld [vmem:[%s336 + $0x78] sm:$0xff]
      %v697 = vld [vmem:[%s336 + $0x80] sm:$0xff]
      %v698 = vld [vmem:[%s336 + $0x88] sm:$0xff]
      %v699 = vld [vmem:[%s336 + $0x90] sm:$0xff]
      %v700 = vld [vmem:[%s336 + $0x98] sm:$0xff]
      %v701 = vld [vmem:[%s336 + $0xa0] sm:$0xff]
      %v702 = vld [vmem:[%s336 + $0xa8] sm:$0xff]
      %v703 = vld [vmem:[%s336 + $0xb0] sm:$0xff]
      %v704 = vld [vmem:[%s336 + $0xb8] sm:$0xff]
      %v705 = vld [vmem:[%s336 + $0xc0] sm:$0xff]
      %v706 = vld [vmem:[%s336 + $0xc8] sm:$0xff]
      %v707 = vld [vmem:[%s336 + $0xd0] sm:$0xff]
      %v708 = vld [vmem:[%s336 + $0xd8] sm:$0xff]
      %v709 = vld [vmem:[%s336 + $0xe0] sm:$0xff]
      %v710 = vld [vmem:[%s336 + $0xe8] sm:$0xff]
      %v711 = vld [vmem:[%s336 + $0xf0] sm:$0xff]
      %v712 = vld [vmem:[%s336 + $0xf8] sm:$0xff]
      %v713 = vpack.c.bf16 %v682, %v681
      %v714 = vpack.c.bf16 %v684, %v683
      %v715 = vpack.c.bf16 %v686, %v685
      %v716 = vpack.c.bf16 %v688, %v687
      %v717 = vpack.c.bf16 %v690, %v689
      %v718 = vpack.c.bf16 %v692, %v691
      %v719 = vpack.c.bf16 %v694, %v693
      %v720 = vpack.c.bf16 %v696, %v695
      %v721 = vpack.c.bf16 %v698, %v697
      %v722 = vpack.c.bf16 %v700, %v699
      %v723 = vpack.c.bf16 %v702, %v701
      %v724 = vpack.c.bf16 %v704, %v703
      %v725 = vpack.c.bf16 %v706, %v705
      %v726 = vpack.c.bf16 %v708, %v707
      %v727 = vpack.c.bf16 %v710, %v709
      %v728 = vpack.c.bf16 %v712, %v711
      %v729 = vld [vmem:[%s5] sm:$0x3]
      %v731 = vsel %vm539, %v713, 0
      %v734 = vsel %vm539, %v714, 0
      %v737 = vsel %vm539, %v715, 0
      %v740 = vsel %vm539, %v716, 0
      %v743 = vsel %vm539, %v717, 0
      %v746 = vsel %vm539, %v718, 0
      %v749 = vsel %vm539, %v719, 0
      %v752 = vsel %vm539, %v720, 0
      %v755 = vsel %vm539, %v721, 0
      %v758 = vsel %vm539, %v722, 0
      %v761 = vsel %vm539, %v723, 0
      %v764 = vsel %vm539, %v724, 0
      %v767 = vsel %vm539, %v725, 0
      %v770 = vsel %vm539, %v726, 0
      %v773 = vsel %vm539, %v727, 0
      %v776 = vsel %vm539, %v728, 0
      %v779 = vsel %vm588, %v729, 0
      %781 = vmatpush.bf16.msra.mxu0 0
      %782 = vmatpush.bf16.msra.mxu0 0
      %783 = vmatpush.bf16.msra.mxu0 0
      %784 = vmatpush.bf16.msra.mxu0 0
      %785 = vmatpush.bf16.msra.mxu0 0
      %786 = vmatpush.bf16.msra.mxu0 0
      %787 = vmatpush.bf16.msra.mxu0 0
      %788 = vmatpush.bf16.msra.mxu0 %v779
      %789 = vmatmul.bf16.gmra.mxu0 %v731
      %v790 = vpop.f32.mrf.mxu0
      %v791 = vadd.f32 0.0, %v790
      %v792 = vpop.f32.mrf.mxu0
      %v793 = vadd.f32 0.0, %v792
      %794 = vmatmul.bf16.gmra.mxu0 %v734
      %v795 = vpop.f32.mrf.mxu0
      %v796 = vadd.f32 0.0, %v795
      %v797 = vpop.f32.mrf.mxu0
      %v798 = vadd.f32 0.0, %v797
      %799 = vmatmul.bf16.gmra.mxu0 %v737
      %v800 = vpop.f32.mrf.mxu0
      %v801 = vadd.f32 0.0, %v800
      %v802 = vpop.f32.mrf.mxu0
      %v803 = vadd.f32 0.0, %v802
      %804 = vmatmul.bf16.gmra.mxu0 %v740
      %v805 = vpop.f32.mrf.mxu0
      %v806 = vadd.f32 0.0, %v805
      %v807 = vpop.f32.mrf.mxu0
      %v808 = vadd.f32 0.0, %v807
      %809 = vmatmul.bf16.gmra.mxu0 %v743
      %v810 = vpop.f32.mrf.mxu0
      %v811 = vadd.f32 0.0, %v810
      %v812 = vpop.f32.mrf.mxu0
      %v813 = vadd.f32 0.0, %v812
      %814 = vmatmul.bf16.gmra.mxu0 %v746
      %v815 = vpop.f32.mrf.mxu0
      %v816 = vadd.f32 0.0, %v815
      %v817 = vpop.f32.mrf.mxu0
      %v818 = vadd.f32 0.0, %v817
      %819 = vmatmul.bf16.gmra.mxu0 %v749
      %v820 = vpop.f32.mrf.mxu0
      %v821 = vadd.f32 0.0, %v820
      %v822 = vpop.f32.mrf.mxu0
      %v823 = vadd.f32 0.0, %v822
      %824 = vmatmul.bf16.gmra.mxu0 %v752
      %v825 = vpop.f32.mrf.mxu0
      %v826 = vadd.f32 0.0, %v825
      %v827 = vpop.f32.mrf.mxu0
      %v828 = vadd.f32 0.0, %v827
      %829 = vmatmul.bf16.gmra.mxu0 %v755
      %v830 = vpop.f32.mrf.mxu0
      %v831 = vadd.f32 0.0, %v830
      %v832 = vpop.f32.mrf.mxu0
      %v833 = vadd.f32 0.0, %v832
      %834 = vmatmul.bf16.gmra.mxu0 %v758
      %v835 = vpop.f32.mrf.mxu0
      %v836 = vadd.f32 0.0, %v835
      %v837 = vpop.f32.mrf.mxu0
      %v838 = vadd.f32 0.0, %v837
      %839 = vmatmul.bf16.gmra.mxu0 %v761
      %v840 = vpop.f32.mrf.mxu0
      %v841 = vadd.f32 0.0, %v840
      %v842 = vpop.f32.mrf.mxu0
      %v843 = vadd.f32 0.0, %v842
      %844 = vmatmul.bf16.gmra.mxu0 %v764
      %v845 = vpop.f32.mrf.mxu0
      %v846 = vadd.f32 0.0, %v845
      %v847 = vpop.f32.mrf.mxu0
      %v848 = vadd.f32 0.0, %v847
      %849 = vmatmul.bf16.gmra.mxu0 %v767
      %v850 = vpop.f32.mrf.mxu0
      %v851 = vadd.f32 0.0, %v850
      %v852 = vpop.f32.mrf.mxu0
      %v853 = vadd.f32 0.0, %v852
      %854 = vmatmul.bf16.gmra.mxu0 %v770
      %v855 = vpop.f32.mrf.mxu0
      %v856 = vadd.f32 0.0, %v855
      %v857 = vpop.f32.mrf.mxu0
      %v858 = vadd.f32 0.0, %v857
      %859 = vmatmul.bf16.gmra.mxu0 %v773
      %v860 = vpop.f32.mrf.mxu0
      %v861 = vadd.f32 0.0, %v860
      %v862 = vpop.f32.mrf.mxu0
      %v863 = vadd.f32 0.0, %v862
      %864 = vmatmul.bf16.gmra.mxu0 %v776
      %v865 = vpop.f32.mrf.mxu0
      %v866 = vadd.f32 0.0, %v865
      %v867 = vpop.f32.mrf.mxu0
      %v868 = vadd.f32 0.0, %v867
      %869 = vdwg.mxu0
      %v870 = vpack.c.bf16 %v602, %v602
      %v871 = vpack.c.bf16 %v604, %v604
      %v872 = vpack.c.bf16 %v607, %v607
      %v873 = vpack.c.bf16 %v609, %v609
      %v874 = vpack.c.bf16 %v612, %v612
      %v875 = vpack.c.bf16 %v614, %v614
      %v876 = vpack.c.bf16 %v617, %v617
      %v877 = vpack.c.bf16 %v619, %v619
      %v878 = vpack.c.bf16 %v622, %v622
      %v879 = vpack.c.bf16 %v624, %v624
      %v880 = vpack.c.bf16 %v627, %v627
      %v881 = vpack.c.bf16 %v629, %v629
      %v882 = vpack.c.bf16 %v632, %v632
      %v883 = vpack.c.bf16 %v634, %v634
      %v884 = vpack.c.bf16 %v637, %v637
      %v885 = vpack.c.bf16 %v639, %v639
      %v886 = vpack.c.bf16 %v642, %v642
      %v887 = vpack.c.bf16 %v644, %v644
      %v888 = vpack.c.bf16 %v647, %v647
      %v889 = vpack.c.bf16 %v649, %v649
      %v890 = vpack.c.bf16 %v652, %v652
      %v891 = vpack.c.bf16 %v654, %v654
      %v892 = vpack.c.bf16 %v657, %v657
      %v893 = vpack.c.bf16 %v659, %v659
      %v894 = vpack.c.bf16 %v662, %v662
      %v895 = vpack.c.bf16 %v664, %v664
      %v896 = vpack.c.bf16 %v667, %v667
      %v897 = vpack.c.bf16 %v669, %v669
      %v898 = vpack.c.bf16 %v672, %v672
      %v899 = vpack.c.bf16 %v674, %v674
      %v900 = vpack.c.bf16 %v677, %v677
      %v901 = vpack.c.bf16 %v679, %v679
      %vm902 = vcmask 125952
      %903 = vst.msk [vmem:[%s342] sm:$0xf] %vm902, %v870
      %904 = vst.msk [vmem:[%s342 + $0x4] sm:$0xf] %vm902, %v871
      %905 = vst.msk [vmem:[%s342 + $0x8] sm:$0xf] %vm902, %v872
      %906 = vst.msk [vmem:[%s342 + $0xc] sm:$0xf] %vm902, %v873
      %907 = vst.msk [vmem:[%s342 + $0x10] sm:$0xf] %vm902, %v874
      %908 = vst.msk [vmem:[%s342 + $0x14] sm:$0xf] %vm902, %v875
      %909 = vst.msk [vmem:[%s342 + $0x18] sm:$0xf] %vm902, %v876
      %910 = vst.msk [vmem:[%s342 + $0x1c] sm:$0xf] %vm902, %v877
      %911 = vst.msk [vmem:[%s342 + $0x20] sm:$0xf] %vm902, %v878
      %912 = vst.msk [vmem:[%s342 + $0x24] sm:$0xf] %vm902, %v879
      %913 = vst.msk [vmem:[%s342 + $0x28] sm:$0xf] %vm902, %v880
      %914 = vst.msk [vmem:[%s342 + $0x2c] sm:$0xf] %vm902, %v881
      %915 = vst.msk [vmem:[%s342 + $0x30] sm:$0xf] %vm902, %v882
      %916 = vst.msk [vmem:[%s342 + $0x34] sm:$0xf] %vm902, %v883
      %917 = vst.msk [vmem:[%s342 + $0x38] sm:$0xf] %vm902, %v884
      %918 = vst.msk [vmem:[%s342 + $0x3c] sm:$0xf] %vm902, %v885
      %919 = vst.msk [vmem:[%s342 + $0x40] sm:$0xf] %vm902, %v886
      %920 = vst.msk [vmem:[%s342 + $0x44] sm:$0xf] %vm902, %v887
      %921 = vst.msk [vmem:[%s342 + $0x48] sm:$0xf] %vm902, %v888
      %922 = vst.msk [vmem:[%s342 + $0x4c] sm:$0xf] %vm902, %v889
      %923 = vst.msk [vmem:[%s342 + $0x50] sm:$0xf] %vm902, %v890
      %924 = vst.msk [vmem:[%s342 + $0x54] sm:$0xf] %vm902, %v891
      %925 = vst.msk [vmem:[%s342 + $0x58] sm:$0xf] %vm902, %v892
      %926 = vst.msk [vmem:[%s342 + $0x5c] sm:$0xf] %vm902, %v893
      %927 = vst.msk [vmem:[%s342 + $0x60] sm:$0xf] %vm902, %v894
      %928 = vst.msk [vmem:[%s342 + $0x64] sm:$0xf] %vm902, %v895
      %929 = vst.msk [vmem:[%s342 + $0x68] sm:$0xf] %vm902, %v896
      %930 = vst.msk [vmem:[%s342 + $0x6c] sm:$0xf] %vm902, %v897
      %931 = vst.msk [vmem:[%s342 + $0x70] sm:$0xf] %vm902, %v898
      %932 = vst.msk [vmem:[%s342 + $0x74] sm:$0xf] %vm902, %v899
      %933 = vst.msk [vmem:[%s342 + $0x78] sm:$0xf] %vm902, %v900
      %934 = vst.msk [vmem:[%s342 + $0x7c] sm:$0xf] %vm902, %v901
      %v935 = vpack.c.bf16 %v791, %v791
      %v936 = vpack.c.bf16 %v793, %v793
      %v937 = vpack.c.bf16 %v796, %v796
      %v938 = vpack.c.bf16 %v798, %v798
      %v939 = vpack.c.bf16 %v801, %v801
      %v940 = vpack.c.bf16 %v803, %v803
      %v941 = vpack.c.bf16 %v806, %v806
      %v942 = vpack.c.bf16 %v808, %v808
      %v943 = vpack.c.bf16 %v811, %v811
      %v944 = vpack.c.bf16 %v813, %v813
      %v945 = vpack.c.bf16 %v816, %v816
      %v946 = vpack.c.bf16 %v818, %v818
      %v947 = vpack.c.bf16 %v821, %v821
      %v948 = vpack.c.bf16 %v823, %v823
      %v949 = vpack.c.bf16 %v826, %v826
      %v950 = vpack.c.bf16 %v828, %v828
      %v951 = vpack.c.bf16 %v831, %v831
      %v952 = vpack.c.bf16 %v833, %v833
      %v953 = vpack.c.bf16 %v836, %v836
      %v954 = vpack.c.bf16 %v838, %v838
      %v955 = vpack.c.bf16 %v841, %v841
      %v956 = vpack.c.bf16 %v843, %v843
      %v957 = vpack.c.bf16 %v846, %v846
      %v958 = vpack.c.bf16 %v848, %v848
      %v959 = vpack.c.bf16 %v851, %v851
      %v960 = vpack.c.bf16 %v853, %v853
      %v961 = vpack.c.bf16 %v856, %v856
      %v962 = vpack.c.bf16 %v858, %v858
      %v963 = vpack.c.bf16 %v861, %v861
      %v964 = vpack.c.bf16 %v863, %v863
      %v965 = vpack.c.bf16 %v866, %v866
      %v966 = vpack.c.bf16 %v868, %v868
      %967 = vst.msk [vmem:[%s348] sm:$0xf] %vm902, %v935
      %968 = vst.msk [vmem:[%s348 + $0x4] sm:$0xf] %vm902, %v936
      %969 = vst.msk [vmem:[%s348 + $0x8] sm:$0xf] %vm902, %v937
      %970 = vst.msk [vmem:[%s348 + $0xc] sm:$0xf] %vm902, %v938
      %971 = vst.msk [vmem:[%s348 + $0x10] sm:$0xf] %vm902, %v939
      %972 = vst.msk [vmem:[%s348 + $0x14] sm:$0xf] %vm902, %v940
      %973 = vst.msk [vmem:[%s348 + $0x18] sm:$0xf] %vm902, %v941
      %974 = vst.msk [vmem:[%s348 + $0x1c] sm:$0xf] %vm902, %v942
      %975 = vst.msk [vmem:[%s348 + $0x20] sm:$0xf] %vm902, %v943
      %976 = vst.msk [vmem:[%s348 + $0x24] sm:$0xf] %vm902, %v944
      %977 = vst.msk [vmem:[%s348 + $0x28] sm:$0xf] %vm902, %v945
      %978 = vst.msk [vmem:[%s348 + $0x2c] sm:$0xf] %vm902, %v946
      %979 = vst.msk [vmem:[%s348 + $0x30] sm:$0xf] %vm902, %v947
      %980 = vst.msk [vmem:[%s348 + $0x34] sm:$0xf] %vm902, %v948
      %981 = vst.msk [vmem:[%s348 + $0x38] sm:$0xf] %vm902, %v949
      %982 = vst.msk [vmem:[%s348 + $0x3c] sm:$0xf] %vm902, %v950
      %983 = vst.msk [vmem:[%s348 + $0x40] sm:$0xf] %vm902, %v951
      %984 = vst.msk [vmem:[%s348 + $0x44] sm:$0xf] %vm902, %v952
      %985 = vst.msk [vmem:[%s348 + $0x48] sm:$0xf] %vm902, %v953
      %986 = vst.msk [vmem:[%s348 + $0x4c] sm:$0xf] %vm902, %v954
      %987 = vst.msk [vmem:[%s348 + $0x50] sm:$0xf] %vm902, %v955
      %988 = vst.msk [vmem:[%s348 + $0x54] sm:$0xf] %vm902, %v956
      %989 = vst.msk [vmem:[%s348 + $0x58] sm:$0xf] %vm902, %v957
      %990 = vst.msk [vmem:[%s348 + $0x5c] sm:$0xf] %vm902, %v958
      %991 = vst.msk [vmem:[%s348 + $0x60] sm:$0xf] %vm902, %v959
      %992 = vst.msk [vmem:[%s348 + $0x64] sm:$0xf] %vm902, %v960
      %993 = vst.msk [vmem:[%s348 + $0x68] sm:$0xf] %vm902, %v961
      %994 = vst.msk [vmem:[%s348 + $0x6c] sm:$0xf] %vm902, %v962
      %995 = vst.msk [vmem:[%s348 + $0x70] sm:$0xf] %vm902, %v963
      %996 = vst.msk [vmem:[%s348 + $0x74] sm:$0xf] %vm902, %v964
      %997 = vst.msk [vmem:[%s348 + $0x78] sm:$0xf] %vm902, %v965
      %998 = vst.msk [vmem:[%s348 + $0x7c] sm:$0xf] %vm902, %v966
      %vm999 = vcmask 130048
      %v1000 = vsel %vm999, %v602, 0.0
      %v1001 = vsel %vm999, %v604, 0.0
      %v1002 = vadd.f32 %v1000, %v1001
      %v1003 = vsel %vm999, %v607, 0.0
      %v1004 = vadd.f32 %v1002, %v1003
      %v1005 = vsel %vm999, %v609, 0.0
      %v1006 = vadd.f32 %v1004, %v1005
      %v1007 = vsel %vm999, %v612, 0.0
      %v1008 = vadd.f32 %v1006, %v1007
      %v1009 = vsel %vm999, %v614, 0.0
      %v1010 = vadd.f32 %v1008, %v1009
      %v1011 = vsel %vm999, %v617, 0.0
      %v1012 = vadd.f32 %v1010, %v1011
      %v1013 = vsel %vm999, %v619, 0.0
      %v1014 = vadd.f32 %v1012, %v1013
      %v1015 = vsel %vm999, %v622, 0.0
      %v1016 = vadd.f32 %v1014, %v1015
      %v1017 = vsel %vm999, %v624, 0.0
      %v1018 = vadd.f32 %v1016, %v1017
      %v1019 = vsel %vm999, %v627, 0.0
      %v1020 = vadd.f32 %v1018, %v1019
      %v1021 = vsel %vm999, %v629, 0.0
      %v1022 = vadd.f32 %v1020, %v1021
      %v1023 = vsel %vm999, %v632, 0.0
      %v1024 = vadd.f32 %v1022, %v1023
      %v1025 = vsel %vm999, %v634, 0.0
      %v1026 = vadd.f32 %v1024, %v1025
      %v1027 = vsel %vm999, %v637, 0.0
      %v1028 = vadd.f32 %v1026, %v1027
      %v1029 = vsel %vm999, %v639, 0.0
      %v1030 = vadd.f32 %v1028, %v1029
      %v1031 = vsel %vm999, %v642, 0.0
      %v1032 = vadd.f32 %v1030, %v1031
      %v1033 = vsel %vm999, %v644, 0.0
      %v1034 = vadd.f32 %v1032, %v1033
      %v1035 = vsel %vm999, %v647, 0.0
      %v1036 = vadd.f32 %v1034, %v1035
      %v1037 = vsel %vm999, %v649, 0.0
      %v1038 = vadd.f32 %v1036, %v1037
      %v1039 = vsel %vm999, %v652, 0.0
      %v1040 = vadd.f32 %v1038, %v1039
      %v1041 = vsel %vm999, %v654, 0.0
      %v1042 = vadd.f32 %v1040, %v1041
      %v1043 = vsel %vm999, %v657, 0.0
      %v1044 = vadd.f32 %v1042, %v1043
      %v1045 = vsel %vm999, %v659, 0.0
      %v1046 = vadd.f32 %v1044, %v1045
      %v1047 = vsel %vm999, %v662, 0.0
      %v1048 = vadd.f32 %v1046, %v1047
      %v1049 = vsel %vm999, %v664, 0.0
      %v1050 = vadd.f32 %v1048, %v1049
      %v1051 = vsel %vm999, %v667, 0.0
      %v1052 = vadd.f32 %v1050, %v1051
      %v1053 = vsel %vm999, %v669, 0.0
      %v1054 = vadd.f32 %v1052, %v1053
      %v1055 = vsel %vm999, %v672, 0.0
      %v1056 = vadd.f32 %v1054, %v1055
      %v1057 = vsel %vm999, %v674, 0.0
      %v1058 = vadd.f32 %v1056, %v1057
      %v1059 = vsel %vm999, %v677, 0.0
      %v1060 = vadd.f32 %v1058, %v1059
      %v1061 = vsel %vm999, %v679, 0.0
      %v1062 = vadd.f32 %v1060, %v1061
      %v1063 = vrot.slane %v1062, 4
      %v1064 = vadd.f32 %v1062, %v1063
      %v1065 = vrot.slane %v1064, 2
      %v1066 = vadd.f32 %v1064, %v1065
      %v1067 = vrot.slane %v1066, 1
      %v1068 = vadd.f32 %v1066, %v1067
      %v1069 = vmul.f32 %v602, %v602
      %v1070 = vmul.f32 %v604, %v604
      %v1071 = vmul.f32 %v607, %v607
      %v1072 = vmul.f32 %v609, %v609
      %v1073 = vmul.f32 %v612, %v612
      %v1074 = vmul.f32 %v614, %v614
      %v1075 = vmul.f32 %v617, %v617
      %v1076 = vmul.f32 %v619, %v619
      %v1077 = vmul.f32 %v622, %v622
      %v1078 = vmul.f32 %v624, %v624
      %v1079 = vmul.f32 %v627, %v627
      %v1080 = vmul.f32 %v629, %v629
      %v1081 = vmul.f32 %v632, %v632
      %v1082 = vmul.f32 %v634, %v634
      %v1083 = vmul.f32 %v637, %v637
      %v1084 = vmul.f32 %v639, %v639
      %v1085 = vmul.f32 %v642, %v642
      %v1086 = vmul.f32 %v644, %v644
      %v1087 = vmul.f32 %v647, %v647
      %v1088 = vmul.f32 %v649, %v649
      %v1089 = vmul.f32 %v652, %v652
      %v1090 = vmul.f32 %v654, %v654
      %v1091 = vmul.f32 %v657, %v657
      %v1092 = vmul.f32 %v659, %v659
      %v1093 = vmul.f32 %v662, %v662
      %v1094 = vmul.f32 %v664, %v664
      %v1095 = vmul.f32 %v667, %v667
      %v1096 = vmul.f32 %v669, %v669
      %v1097 = vmul.f32 %v672, %v672
      %v1098 = vmul.f32 %v674, %v674
      %v1099 = vmul.f32 %v677, %v677
      %v1100 = vmul.f32 %v679, %v679
      %v1101 = vsel %vm999, %v1069, 0.0
      %v1102 = vsel %vm999, %v1070, 0.0
      %v1103 = vadd.f32 %v1101, %v1102
      %v1104 = vsel %vm999, %v1071, 0.0
      %v1105 = vadd.f32 %v1103, %v1104
      %v1106 = vsel %vm999, %v1072, 0.0
      %v1107 = vadd.f32 %v1105, %v1106
      %v1108 = vsel %vm999, %v1073, 0.0
      %v1109 = vadd.f32 %v1107, %v1108
      %v1110 = vsel %vm999, %v1074, 0.0
      %v1111 = vadd.f32 %v1109, %v1110
      %v1112 = vsel %vm999, %v1075, 0.0
      %v1113 = vadd.f32 %v1111, %v1112
      %v1114 = vsel %vm999, %v1076, 0.0
      %v1115 = vadd.f32 %v1113, %v1114
      %v1116 = vsel %vm999, %v1077, 0.0
      %v1117 = vadd.f32 %v1115, %v1116
      %v1118 = vsel %vm999, %v1078, 0.0
      %v1119 = vadd.f32 %v1117, %v1118
      %v1120 = vsel %vm999, %v1079, 0.0
      %v1121 = vadd.f32 %v1119, %v1120
      %v1122 = vsel %vm999, %v1080, 0.0
      %v1123 = vadd.f32 %v1121, %v1122
      %v1124 = vsel %vm999, %v1081, 0.0
      %v1125 = vadd.f32 %v1123, %v1124
      %v1126 = vsel %vm999, %v1082, 0.0
      %v1127 = vadd.f32 %v1125, %v1126
      %v1128 = vsel %vm999, %v1083, 0.0
      %v1129 = vadd.f32 %v1127, %v1128
      %v1130 = vsel %vm999, %v1084, 0.0
      %v1131 = vadd.f32 %v1129, %v1130
      %v1132 = vsel %vm999, %v1085, 0.0
      %v1133 = vadd.f32 %v1131, %v1132
      %v1134 = vsel %vm999, %v1086, 0.0
      %v1135 = vadd.f32 %v1133, %v1134
      %v1136 = vsel %vm999, %v1087, 0.0
      %v1137 = vadd.f32 %v1135, %v1136
      %v1138 = vsel %vm999, %v1088, 0.0
      %v1139 = vadd.f32 %v1137, %v1138
      %v1140 = vsel %vm999, %v1089, 0.0
      %v1141 = vadd.f32 %v1139, %v1140
      %v1142 = vsel %vm999, %v1090, 0.0
      %v1143 = vadd.f32 %v1141, %v1142
      %v1144 = vsel %vm999, %v1091, 0.0
      %v1145 = vadd.f32 %v1143, %v1144
      %v1146 = vsel %vm999, %v1092, 0.0
      %v1147 = vadd.f32 %v1145, %v1146
      %v1148 = vsel %vm999, %v1093, 0.0
      %v1149 = vadd.f32 %v1147, %v1148
      %v1150 = vsel %vm999, %v1094, 0.0
      %v1151 = vadd.f32 %v1149, %v1150
      %v1152 = vsel %vm999, %v1095, 0.0
      %v1153 = vadd.f32 %v1151, %v1152
      %v1154 = vsel %vm999, %v1096, 0.0
      %v1155 = vadd.f32 %v1153, %v1154
      %v1156 = vsel %vm999, %v1097, 0.0
      %v1157 = vadd.f32 %v1155, %v1156
      %v1158 = vsel %vm999, %v1098, 0.0
      %v1159 = vadd.f32 %v1157, %v1158
      %v1160 = vsel %vm999, %v1099, 0.0
      %v1161 = vadd.f32 %v1159, %v1160
      %v1162 = vsel %vm999, %v1100, 0.0
      %v1163 = vadd.f32 %v1161, %v1162
      %v1164 = vrot.slane %v1163, 4
      %v1165 = vadd.f32 %v1163, %v1164
      %v1166 = vrot.slane %v1165, 2
      %v1167 = vadd.f32 %v1165, %v1166
      %v1168 = vrot.slane %v1167, 1
      %v1169 = vadd.f32 %v1167, %v1168
      %v1170 = vsel %vm999, %v791, 0.0
      %v1171 = vsel %vm999, %v793, 0.0
      %v1172 = vadd.f32 %v1170, %v1171
      %v1173 = vsel %vm999, %v796, 0.0
      %v1174 = vadd.f32 %v1172, %v1173
      %v1175 = vsel %vm999, %v798, 0.0
      %v1176 = vadd.f32 %v1174, %v1175
      %v1177 = vsel %vm999, %v801, 0.0
      %v1178 = vadd.f32 %v1176, %v1177
      %v1179 = vsel %vm999, %v803, 0.0
      %v1180 = vadd.f32 %v1178, %v1179
      %v1181 = vsel %vm999, %v806, 0.0
      %v1182 = vadd.f32 %v1180, %v1181
      %v1183 = vsel %vm999, %v808, 0.0
      %v1184 = vadd.f32 %v1182, %v1183
      %v1185 = vsel %vm999, %v811, 0.0
      %v1186 = vadd.f32 %v1184, %v1185
      %v1187 = vsel %vm999, %v813, 0.0
      %v1188 = vadd.f32 %v1186, %v1187
      %v1189 = vsel %vm999, %v816, 0.0
      %v1190 = vadd.f32 %v1188, %v1189
      %v1191 = vsel %vm999, %v818, 0.0
      %v1192 = vadd.f32 %v1190, %v1191
      %v1193 = vsel %vm999, %v821, 0.0
      %v1194 = vadd.f32 %v1192, %v1193
      %v1195 = vsel %vm999, %v823, 0.0
      %v1196 = vadd.f32 %v1194, %v1195
      %v1197 = vsel %vm999, %v826, 0.0
      %v1198 = vadd.f32 %v1196, %v1197
      %v1199 = vsel %vm999, %v828, 0.0
      %v1200 = vadd.f32 %v1198, %v1199
      %v1201 = vsel %vm999, %v831, 0.0
      %v1202 = vadd.f32 %v1200, %v1201
      %v1203 = vsel %vm999, %v833, 0.0
      %v1204 = vadd.f32 %v1202, %v1203
      %v1205 = vsel %vm999, %v836, 0.0
      %v1206 = vadd.f32 %v1204, %v1205
      %v1207 = vsel %vm999, %v838, 0.0
      %v1208 = vadd.f32 %v1206, %v1207
      %v1209 = vsel %vm999, %v841, 0.0
      %v1210 = vadd.f32 %v1208, %v1209
      %v1211 = vsel %vm999, %v843, 0.0
      %v1212 = vadd.f32 %v1210, %v1211
      %v1213 = vsel %vm999, %v846, 0.0
      %v1214 = vadd.f32 %v1212, %v1213
      %v1215 = vsel %vm999, %v848, 0.0
      %v1216 = vadd.f32 %v1214, %v1215
      %v1217 = vsel %vm999, %v851, 0.0
      %v1218 = vadd.f32 %v1216, %v1217
      %v1219 = vsel %vm999, %v853, 0.0
      %v1220 = vadd.f32 %v1218, %v1219
      %v1221 = vsel %vm999, %v856, 0.0
      %v1222 = vadd.f32 %v1220, %v1221
      %v1223 = vsel %vm999, %v858, 0.0
      %v1224 = vadd.f32 %v1222, %v1223
      %v1225 = vsel %vm999, %v861, 0.0
      %v1226 = vadd.f32 %v1224, %v1225
      %v1227 = vsel %vm999, %v863, 0.0
      %v1228 = vadd.f32 %v1226, %v1227
      %v1229 = vsel %vm999, %v866, 0.0
      %v1230 = vadd.f32 %v1228, %v1229
      %v1231 = vsel %vm999, %v868, 0.0
      %v1232 = vadd.f32 %v1230, %v1231
      %v1233 = vrot.slane %v1232, 4
      %v1234 = vadd.f32 %v1232, %v1233
      %v1235 = vrot.slane %v1234, 2
      %v1236 = vadd.f32 %v1234, %v1235
      %v1237 = vrot.slane %v1236, 1
      %v1238 = vadd.f32 %v1236, %v1237
      %v1239 = vmul.f32 %v791, %v791
      %v1240 = vmul.f32 %v793, %v793
      %v1241 = vmul.f32 %v796, %v796
      %v1242 = vmul.f32 %v798, %v798
      %v1243 = vmul.f32 %v801, %v801
      %v1244 = vmul.f32 %v803, %v803
      %v1245 = vmul.f32 %v806, %v806
      %v1246 = vmul.f32 %v808, %v808
      %v1247 = vmul.f32 %v811, %v811
      %v1248 = vmul.f32 %v813, %v813
      %v1249 = vmul.f32 %v816, %v816
      %v1250 = vmul.f32 %v818, %v818
      %v1251 = vmul.f32 %v821, %v821
      %v1252 = vmul.f32 %v823, %v823
      %v1253 = vmul.f32 %v826, %v826
      %v1254 = vmul.f32 %v828, %v828
      %v1255 = vmul.f32 %v831, %v831
      %v1256 = vmul.f32 %v833, %v833
      %v1257 = vmul.f32 %v836, %v836
      %v1258 = vmul.f32 %v838, %v838
      %v1259 = vmul.f32 %v841, %v841
      %v1260 = vmul.f32 %v843, %v843
      %v1261 = vmul.f32 %v846, %v846
      %v1262 = vmul.f32 %v848, %v848
      %v1263 = vmul.f32 %v851, %v851
      %v1264 = vmul.f32 %v853, %v853
      %v1265 = vmul.f32 %v856, %v856
      %v1266 = vmul.f32 %v858, %v858
      %v1267 = vmul.f32 %v861, %v861
      %v1268 = vmul.f32 %v863, %v863
      %v1269 = vmul.f32 %v866, %v866
      %v1270 = vmul.f32 %v868, %v868
      %v1271 = vsel %vm999, %v1239, 0.0
      %v1272 = vsel %vm999, %v1240, 0.0
      %v1273 = vadd.f32 %v1271, %v1272
      %v1274 = vsel %vm999, %v1241, 0.0
      %v1275 = vadd.f32 %v1273, %v1274
      %v1276 = vsel %vm999, %v1242, 0.0
      %v1277 = vadd.f32 %v1275, %v1276
      %v1278 = vsel %vm999, %v1243, 0.0
      %v1279 = vadd.f32 %v1277, %v1278
      %v1280 = vsel %vm999, %v1244, 0.0
      %v1281 = vadd.f32 %v1279, %v1280
      %v1282 = vsel %vm999, %v1245, 0.0
      %v1283 = vadd.f32 %v1281, %v1282
      %v1284 = vsel %vm999, %v1246, 0.0
      %v1285 = vadd.f32 %v1283, %v1284
      %v1286 = vsel %vm999, %v1247, 0.0
      %v1287 = vadd.f32 %v1285, %v1286
      %v1288 = vsel %vm999, %v1248, 0.0
      %v1289 = vadd.f32 %v1287, %v1288
      %v1290 = vsel %vm999, %v1249, 0.0
      %v1291 = vadd.f32 %v1289, %v1290
      %v1292 = vsel %vm999, %v1250, 0.0
      %v1293 = vadd.f32 %v1291, %v1292
      %v1294 = vsel %vm999, %v1251, 0.0
      %v1295 = vadd.f32 %v1293, %v1294
      %v1296 = vsel %vm999, %v1252, 0.0
      %v1297 = vadd.f32 %v1295, %v1296
      %v1298 = vsel %vm999, %v1253, 0.0
      %v1299 = vadd.f32 %v1297, %v1298
      %v1300 = vsel %vm999, %v1254, 0.0
      %v1301 = vadd.f32 %v1299, %v1300
      %v1302 = vsel %vm999, %v1255, 0.0
      %v1303 = vadd.f32 %v1301, %v1302
      %v1304 = vsel %vm999, %v1256, 0.0
      %v1305 = vadd.f32 %v1303, %v1304
      %v1306 = vsel %vm999, %v1257, 0.0
      %v1307 = vadd.f32 %v1305, %v1306
      %v1308 = vsel %vm999, %v1258, 0.0
      %v1309 = vadd.f32 %v1307, %v1308
      %v1310 = vsel %vm999, %v1259, 0.0
      %v1311 = vadd.f32 %v1309, %v1310
      %v1312 = vsel %vm999, %v1260, 0.0
      %v1313 = vadd.f32 %v1311, %v1312
      %v1314 = vsel %vm999, %v1261, 0.0
      %v1315 = vadd.f32 %v1313, %v1314
      %v1316 = vsel %vm999, %v1262, 0.0
      %v1317 = vadd.f32 %v1315, %v1316
      %v1318 = vsel %vm999, %v1263, 0.0
      %v1319 = vadd.f32 %v1317, %v1318
      %v1320 = vsel %vm999, %v1264, 0.0
      %v1321 = vadd.f32 %v1319, %v1320
      %v1322 = vsel %vm999, %v1265, 0.0
      %v1323 = vadd.f32 %v1321, %v1322
      %v1324 = vsel %vm999, %v1266, 0.0
      %v1325 = vadd.f32 %v1323, %v1324
      %v1326 = vsel %vm999, %v1267, 0.0
      %v1327 = vadd.f32 %v1325, %v1326
      %v1328 = vsel %vm999, %v1268, 0.0
      %v1329 = vadd.f32 %v1327, %v1328
      %v1330 = vsel %vm999, %v1269, 0.0
      %v1331 = vadd.f32 %v1329, %v1330
      %v1332 = vsel %vm999, %v1270, 0.0
      %v1333 = vadd.f32 %v1331, %v1332
      %v1334 = vrot.slane %v1333, 4
      %v1335 = vadd.f32 %v1333, %v1334
      %v1336 = vrot.slane %v1335, 2
      %v1337 = vadd.f32 %v1335, %v1336
      %v1338 = vrot.slane %v1337, 1
      %v1339 = vadd.f32 %v1337, %v1338
      %1341 = vrot.lane.b32.xlu0 %v1169, 16
      %v1342 = vpop.permute.xlu0 %1341
      %1345 = vrot.lane.b32.xlu0 %v1238, 32
      %v1346 = vpop.permute.xlu0 %1345
      %1349 = vrot.lane.b32.xlu0 %v1339, 48
      %v1350 = vpop.permute.xlu0 %1349
      %v1352 = vsel %vm999, %v1068, %v1342
      %vm1353 = vcmask 261120
      %v1354 = vsel %vm1353, %v1352, %v1346
      %vm1355 = vcmask 392192
      %v1356 = vsel %vm1355, %v1354, %v1350
      %vm1357 = vcmask 516096
      %1358 = vst.msk [vmem:[%s352] sm:$0x1] %vm1357, %v1356
      %s1359 = smul.u32 32, %s20
      %p1360 = scmp.lt.s32.totalorder %s1359, 63
      %s1361 = scalar_select %p1360, %s1359, 63
      %s1362 = smul.addr %s1361, 4
      %s1363 = scalar_lea.vmem %s6, %s1362
      %s1364 = smul.u32 32, %s20
      %p1365 = scmp.lt.s32.totalorder %s1364, 63
      %s1366 = scalar_select %p1365, %s1364, 63
      %s1367 = smul.addr %s1366, 4
      %s1368 = scalar_lea.vmem %s7, %s1367
      %p1369 = scmp.lt.s32.totalorder %s20, 1
      %s1370 = scalar_select %p1369, %s20, 1
      %s1371 = scalar_lea.vmem %s8, %s1370
      // Predicated region
      $region45: #{bottleneck_forward.6} parent=43 // pred_check
        %p1372 = pneg %p174
      $region46: #{bottleneck_forward.6} parent=43 // pred_check_branch
        %1374 = sbr.rel (%p1372) target = $region48
      $region47: #{bottleneck_forward.6} parent=43 // pred_region
        %s1375 = smul.u32 32, %s20
      $region48: #{bottleneck_forward.6} parent=43 // pred_fallthru
        _
      // Predicated region
      $region49: #{bottleneck_forward.6} parent=43 // pred_check
        %p1376 = pneg %p200
      $region50: #{bottleneck_forward.6} parent=43 // pred_check_branch
        %1378 = sbr.rel (%p1376) target = $region52
      $region51: #{bottleneck_forward.6} parent=43 // pred_region
        %s1379 = smul.u32 32, %s20
      $region52: #{bottleneck_forward.6} parent=43 // pred_fallthru
        _
      // Predicated region
      $region53: #{bottleneck_forward.6} parent=43 // pred_check
        %p1380 = pneg %p226
      $region54: #{bottleneck_forward.6} parent=43 // pred_check_branch
        %1382 = sbr.rel (%p1380) target = $region56
      $region55: #{bottleneck_forward.6} parent=43 // pred_region
        _
      $region56: #{bottleneck_forward.6} parent=43 // pred_fallthru
        _
    $region44: #{bottleneck_forward.6} parent=5 // pred_fallthru
      _
    %p1383 = scmp.le.s32.totalorder 2, %s15
    // Predicated region
    $region57: #{bottleneck_forward.6} parent=5 // pred_check
      %p1384 = pneg %p1383
    $region58: #{bottleneck_forward.6} parent=5 // pred_check_branch
      %1386 = sbr.rel (%p1384) target = $region60
    $region59: #{bottleneck_forward.6} parent=5 // pred_region
      %s1387 = ssub.s32 %s15, 2
      // Predicated region
      $region61: #{bottleneck_forward.6} parent=59 // pred_check
        %p1388 = pneg %p180
      $region62: #{bottleneck_forward.6} parent=59 // pred_check_branch
        %1390 = sbr.rel (%p1388) target = $region64
      $region63: #{bottleneck_forward.6} parent=59 // pred_region
        %s1391 = smul.u32 32, %s21
        %p1392 = scmp.lt.s32.totalorder %s1391, 63
        %s1393 = scalar_select %p1392, %s1391, 63
        %s1394 = smul.addr %s1393, 4
        %s1395 = scalar_lea.vmem %s6, %s1394
      $region64: #{bottleneck_forward.6} parent=59 // pred_fallthru
        _
      // Predicated region
      $region65: #{bottleneck_forward.6} parent=59 // pred_check
        %p1396 = pneg %p206
      $region66: #{bottleneck_forward.6} parent=59 // pred_check_branch
        %1398 = sbr.rel (%p1396) target = $region68
      $region67: #{bottleneck_forward.6} parent=59 // pred_region
        %s1399 = smul.u32 32, %s21
        %p1400 = scmp.lt.s32.totalorder %s1399, 63
        %s1401 = scalar_select %p1400, %s1399, 63
        %s1402 = smul.addr %s1401, 4
        %s1403 = scalar_lea.vmem %s7, %s1402
      $region68: #{bottleneck_forward.6} parent=59 // pred_fallthru
        _
      // Predicated region
      $region69: #{bottleneck_forward.6} parent=59 // pred_check
        %p1404 = pneg %p232
      $region70: #{bottleneck_forward.6} parent=59 // pred_check_branch
        %1406 = sbr.rel (%p1404) target = $region72
      $region71: #{bottleneck_forward.6} parent=59 // pred_region
        %p1407 = scmp.lt.s32.totalorder %s21, 1
        %s1408 = scalar_select %p1407, %s21, 1
        %s1409 = scalar_lea.vmem %s8, %s1408
      $region72: #{bottleneck_forward.6} parent=59 // pred_fallthru
        _
    $region60: #{bottleneck_forward.6} parent=5 // pred_fallthru
      _
  $region6: #{bottleneck_forward.6} parent=0 // loop_footer
    %s19 = sadd.s32 1, %s15
  $region7: #{bottleneck_forward.6} parent=0 // loop_footer_branch
    %14 = sbr.rel target = $region3
  $region8: #{bottleneck_forward.6} parent=0 // loop_exit
    _

// kernel: bottleneck_forward.5
$region0: #{bottleneck_forward.5}
  #allocation0 [shape = 'u32[]', space=smem, size = 0x4, offset = 0x4, fixed_abs, tag = 'smem constant byte address 0x4 - core index']
  #allocation1 [shape = 'u32[72,128]{1,0:T(1,128)}', space=vmem, size = 0x9000, scoped, tag = 'internal scratch']
  #allocation2 [shape = 'bf16[18,48,4]{2,1,0:T(8,128)(2,1)}', space=vmem, size = 0x36000, scoped, tag = 'scratch operand']
  %s0 = inlined_call_operand.vmem [shape: bf16[2,16,16,4], index: 0, kind: input, shape index: {}]
  %s1 = inlined_call_operand.vmem [shape: f32[1,4], index: 1, kind: input, shape index: {}]
  %s2 = inlined_call_operand.vmem [shape: f32[1,4], index: 2, kind: input, shape index: {}]
  %s3 = inlined_call_operand.vmem [shape: bf16[36,4], index: 3, kind: input, shape index: {}]
  %s4 = inlined_call_operand.vmem [shape: bf16[2,256,4], index: 4, kind: output, shape index: {0}]
  %s5 = inlined_call_operand.vmem [shape: f32[2,1,8], index: 5, kind: output, shape index: {1}]
  %6 = xla_tuple %s4, %s5
  %s7 = sld [smem:[#allocation0]]
  $region57: #{bottleneck_forward.5} parent=0
    _
  %s9 = ssub.s32 1, %s7
  %s10 = scalar_select 0, %s9, %s7
  loop: start=0, step=1, limit=4
  $region2: #{bottleneck_forward.5} parent=0 // loop_pre_header
    _
  $region3: #{bottleneck_forward.5} parent=0 // loop_header
    %s12 = sphi 0, %s16
    %p13 = scmp.ge.s32.totalorder %s12, 4
    %s22 = sphi 0, %s24
    %s25 = sphi 0, %s22
    %s26 = sphi 0, %s25
    %s42 = sphi 0, %s26
    %s46 = sphi 0, %s46
    %s48 = sphi 0, %s46
    %s49 = sphi 0, %s48
    %s63 = sphi 0, %s49
    %s67 = sphi 0, %s67
    %s69 = sphi 0, %s67
    %s70 = sphi 0, %s69
    %s84 = sphi 0, %s70
    %s88 = sphi 0, %s88
    %s90 = sphi 0, %s88
    %s91 = sphi 0, %s90
    %s105 = sphi 0, %s91
    %s111 = sphi 0, %s113
    %s114 = sphi 0, %s111
    %s115 = sphi 0, %s114
    %s131 = sphi 0, %s115
    %s137 = sphi 0, %s139
    %s140 = sphi 0, %s137
    %s141 = sphi 0, %s140
    %s157 = sphi 0, %s141
  $region4: #{bottleneck_forward.5} parent=0 // loop_header_branch
    %15 = sbr.rel (%p13) target = $region8
  $region5: #{bottleneck_forward.5} parent=0 // loop_body
    %s17 = ssub.s32 %s12, 1
    %s18 = ssub.s32 %s12, 2
    %s19 = sadd.s32 %s12, 1
    %s20 = ssub.s32 %s12, %s19
    %p21 = scmp.eq.s32.totalorder %s20, 0
    %s23 = sadd.s32 %s22, 1
    %s24 = scalar_select %p21, %s22, %s23
    %p27 = pneg %p21
    %p28 = scmp.eq.s32.totalorder %s12, 1
    %p29 = por %p27, %p28
    %p30 = scmp.ne.s32.totalorder %s22, %s25
    %p31 = scmp.eq.s32.totalorder %s12, 0
    %p32 = por %p30, %p31
    %p33 = scmp.ne.s32.totalorder %s22, %s25
    %p34 = scmp.eq.s32.totalorder %s17, 1
    %p35 = por %p33, %p34
    %p36 = scmp.ne.s32.totalorder %s25, %s26
    %p37 = scmp.eq.s32.totalorder %s17, 0
    %p38 = por %p36, %p37
    %p39 = scmp.ne.s32.totalorder %s25, %s26
    %p40 = scmp.eq.s32.totalorder %s18, 1
    %p41 = por %p39, %p40
    %p43 = scmp.ne.s32.totalorder %s26, %s42
    %p44 = scmp.eq.s32.totalorder %s18, 0
    %p45 = por %p43, %p44
    %s47 = sadd.s32 %s46, 1
    %p50 = scmp.eq.s32.totalorder %s12, 1
    %p51 = scmp.ne.s32.totalorder %s46, %s48
    %p52 = scmp.eq.s32.totalorder %s12, 0
    %p53 = por %p51, %p52
    %p54 = scmp.ne.s32.totalorder %s46, %s48
    %p55 = scmp.eq.s32.totalorder %s17, 1
    %p56 = por %p54, %p55
    %p57 = scmp.ne.s32.totalorder %s48, %s49
    %p58 = scmp.eq.s32.totalorder %s17, 0
    %p59 = por %p57, %p58
    %p60 = scmp.ne.s32.totalorder %s48, %s49
    %p61 = scmp.eq.s32.totalorder %s18, 1
    %p62 = por %p60, %p61
    %p64 = scmp.ne.s32.totalorder %s49, %s63
    %p65 = scmp.eq.s32.totalorder %s18, 0
    %p66 = por %p64, %p65
    %s68 = sadd.s32 %s67, 1
    %p71 = scmp.eq.s32.totalorder %s12, 1
    %p72 = scmp.ne.s32.totalorder %s67, %s69
    %p73 = scmp.eq.s32.totalorder %s12, 0
    %p74 = por %p72, %p73
    %p75 = scmp.ne.s32.totalorder %s67, %s69
    %p76 = scmp.eq.s32.totalorder %s17, 1
    %p77 = por %p75, %p76
    %p78 = scmp.ne.s32.totalorder %s69, %s70
    %p79 = scmp.eq.s32.totalorder %s17, 0
    %p80 = por %p78, %p79
    %p81 = scmp.ne.s32.totalorder %s69, %s70
    %p82 = scmp.eq.s32.totalorder %s18, 1
    %p83 = por %p81, %p82
    %p85 = scmp.ne.s32.totalorder %s70, %s84
    %p86 = scmp.eq.s32.totalorder %s18, 0
    %p87 = por %p85, %p86
    %s89 = sadd.s32 %s88, 1
    %p92 = scmp.eq.s32.totalorder %s12, 1
    %p93 = scmp.ne.s32.totalorder %s88, %s90
    %p94 = scmp.eq.s32.totalorder %s12, 0
    %p95 = por %p93, %p94
    %p96 = scmp.ne.s32.totalorder %s88, %s90
    %p97 = scmp.eq.s32.totalorder %s17, 1
    %p98 = por %p96, %p97
    %p99 = scmp.ne.s32.totalorder %s90, %s91
    %p100 = scmp.eq.s32.totalorder %s17, 0
    %p101 = por %p99, %p100
    %p102 = scmp.ne.s32.totalorder %s90, %s91
    %p103 = scmp.eq.s32.totalorder %s18, 1
    %p104 = por %p102, %p103
    %p106 = scmp.ne.s32.totalorder %s91, %s105
    %p107 = scmp.eq.s32.totalorder %s18, 0
    %p108 = por %p106, %p107
    %s109 = ssub.s32 %s12, %s19
    %p110 = scmp.eq.s32.totalorder %s109, 0
    %s112 = sadd.s32 %s111, 1
    %s113 = scalar_select %p110, %s111, %s112
    %p116 = pneg %p110
    %p117 = scmp.eq.s32.totalorder %s12, 1
    %p118 = por %p116, %p117
    %p119 = scmp.ne.s32.totalorder %s111, %s114
    %p120 = scmp.eq.s32.totalorder %s12, 0
    %p121 = por %p119, %p120
    %p122 = scmp.ne.s32.totalorder %s111, %s114
    %p123 = scmp.eq.s32.totalorder %s17, 1
    %p124 = por %p122, %p123
    %p125 = scmp.ne.s32.totalorder %s114, %s115
    %p126 = scmp.eq.s32.totalorder %s17, 0
    %p127 = por %p125, %p126
    %p128 = scmp.ne.s32.totalorder %s114, %s115
    %p129 = scmp.eq.s32.totalorder %s18, 1
    %p130 = por %p128, %p129
    %p132 = scmp.ne.s32.totalorder %s115, %s131
    %p133 = scmp.eq.s32.totalorder %s18, 0
    %p134 = por %p132, %p133
    %s135 = ssub.s32 %s12, %s19
    %p136 = scmp.eq.s32.totalorder %s135, 0
    %s138 = sadd.s32 %s137, 1
    %s139 = scalar_select %p136, %s137, %s138
    %p142 = pneg %p136
    %p143 = scmp.eq.s32.totalorder %s12, 1
    %p144 = por %p142, %p143
    %p145 = scmp.ne.s32.totalorder %s137, %s140
    %p146 = scmp.eq.s32.totalorder %s12, 0
    %p147 = por %p145, %p146
    %p148 = scmp.ne.s32.totalorder %s137, %s140
    %p149 = scmp.eq.s32.totalorder %s17, 1
    %p150 = por %p148, %p149
    %p151 = scmp.ne.s32.totalorder %s140, %s141
    %p152 = scmp.eq.s32.totalorder %s17, 0
    %p153 = por %p151, %p152
    %p154 = scmp.ne.s32.totalorder %s140, %s141
    %p155 = scmp.eq.s32.totalorder %s18, 1
    %p156 = por %p154, %p155
    %p158 = scmp.ne.s32.totalorder %s141, %s157
    %p159 = scmp.eq.s32.totalorder %s18, 0
    %p160 = por %p158, %p159
    %p161 = scmp.le.s32.totalorder 1, %s12
    %p162 = scmp.lt.s32.totalorder %s12, 3
    %p163 = pnand %p161, %p162
    %p164 = pneg %p163
    // Predicated region
    $region9: #{bottleneck_forward.5} parent=5 // pred_check
      _
    $region10: #{bottleneck_forward.5} parent=5 // pred_check_branch
      %166 = sbr.rel (%p163) target = $region12
    $region11: #{bottleneck_forward.5} parent=5 // pred_region
      %s167 = ssub.s32 %s12, 1
      // Predicated region
      $region13: #{bottleneck_forward.5} parent=11 // pred_check
        %p168 = pneg %p59
      $region14: #{bottleneck_forward.5} parent=11 // pred_check_branch
        %170 = sbr.rel (%p168) target = $region16
      $region15: #{bottleneck_forward.5} parent=11 // pred_region
        _
      $region16: #{bottleneck_forward.5} parent=11 // pred_fallthru
        _
      // Predicated region
      $region17: #{bottleneck_forward.5} parent=11 // pred_check
        %p171 = pneg %p80
      $region18: #{bottleneck_forward.5} parent=11 // pred_check_branch
        %173 = sbr.rel (%p171) target = $region20
      $region19: #{bottleneck_forward.5} parent=11 // pred_region
        _
      $region20: #{bottleneck_forward.5} parent=11 // pred_fallthru
        _
      // Predicated region
      $region21: #{bottleneck_forward.5} parent=11 // pred_check
        %p174 = pneg %p101
      $region22: #{bottleneck_forward.5} parent=11 // pred_check_branch
        %176 = sbr.rel (%p174) target = $region24
      $region23: #{bottleneck_forward.5} parent=11 // pred_region
        _
      $region24: #{bottleneck_forward.5} parent=11 // pred_fallthru
        _
    $region12: #{bottleneck_forward.5} parent=5 // pred_fallthru
      _
    %p177 = scmp.lt.s32.totalorder %s12, 2
    // Predicated region
    $region25: #{bottleneck_forward.5} parent=5 // pred_check
      %p178 = pneg %p177
    $region26: #{bottleneck_forward.5} parent=5 // pred_check_branch
      %180 = sbr.rel (%p178) target = $region28
    $region27: #{bottleneck_forward.5} parent=5 // pred_region
      // Predicated region
      $region29: #{bottleneck_forward.5} parent=27 // pred_check
        %p181 = pneg %p32
      $region30: #{bottleneck_forward.5} parent=27 // pred_check_branch
        %183 = sbr.rel (%p181) target = $region32
      $region31: #{bottleneck_forward.5} parent=27 // pred_region
        %p184 = scmp.lt.s32.totalorder %s12, 1
        %s185 = scalar_select %p184, %s12, 1
        %s186 = smul.addr %s185, 32
        %s187 = smul.addr %s186, 4
        %s188 = scalar_lea.vmem %s0, %s187
      $region32: #{bottleneck_forward.5} parent=27 // pred_fallthru
        _
    $region28: #{bottleneck_forward.5} parent=5 // pred_fallthru
      _
    %p189 = scmp.le.s32.totalorder 1, %s12
    %p190 = scmp.lt.s32.totalorder %s12, 3
    %p191 = pnand %p189, %p190
    %p192 = pneg %p191
    // Predicated region
    $region33: #{bottleneck_forward.5} parent=5 // pred_check
      _
    $region34: #{bottleneck_forward.5} parent=5 // pred_check_branch
      %194 = sbr.rel (%p191) target = $region36
    $region35: #{bottleneck_forward.5} parent=5 // pred_region
      %s195 = ssub.s32 %s12, 1
      %p196 = scmp.lt.s32.totalorder %s17, 1
      %s197 = scalar_select %p196, %s17, 1
      %s198 = smul.addr %s197, 32
      %s199 = smul.addr %s198, 4
      %s200 = scalar_lea.vmem %s0, %s199
      %p201 = pneg %p38
      %p202 = pneg %p35
      %p203 = pneg %p59
      %p204 = pneg %p56
      %p205 = pneg %p80
      %p206 = pneg %p77
      %p207 = pneg %p101
      %p208 = pneg %p98
      %p209 = pneg %p127
      %p210 = pneg %p124
      %p211 = scmp.lt.s32.totalorder %s17, 1
      %s212 = scalar_select %p211, %s17, 1
      %s213 = smul.addr %s212, 32
      %s214 = smul.addr %s213, 4
      %s215 = scalar_lea.vmem %s4, %s214
      %p216 = pneg %p153
      %p217 = pneg %p150
      %p218 = scmp.lt.s32.totalorder %s17, 1
      %s219 = scalar_select %p218, %s17, 1
      %s220 = scalar_lea.vmem %s5, %s219
      %p221 = scmp.lt.s32.totalorder %s17, 1
      %s222 = scalar_select %p221, %s17, 1
      %s223 = smul.addr %s222, 32
      %s224 = smul.addr %s223, 4
      %s225 = scalar_lea.vmem %s0, %s224
      %p226 = scmp.lt.s32.totalorder %s17, 1
      %s227 = scalar_select %p226, %s17, 1
      %s228 = smul.addr %s227, 32
      %s229 = smul.addr %s228, 4
      %s230 = scalar_lea.vmem %s4, %s229
      %p231 = scmp.lt.s32.totalorder %s17, 1
      %s232 = scalar_select %p231, %s17, 1
      %s233 = scalar_lea.vmem %s5, %s232
      %v235 = vld [vmem:[%s225] sm:$0xf]
      %v236 = vld [vmem:[%s225 + $0x4] sm:$0xf]
      %v237 = vld [vmem:[%s225 + $0x8] sm:$0xf]
      %v238 = vld [vmem:[%s225 + $0xc] sm:$0xf]
      %v239 = vld [vmem:[%s225 + $0x10] sm:$0xf]
      %v240 = vld [vmem:[%s225 + $0x14] sm:$0xf]
      %v241 = vld [vmem:[%s225 + $0x18] sm:$0xf]
      %v242 = vld [vmem:[%s225 + $0x1c] sm:$0xf]
      %v243 = vld [vmem:[%s225 + $0x20] sm:$0xf]
      %v244 = vld [vmem:[%s225 + $0x24] sm:$0xf]
      %v245 = vld [vmem:[%s225 + $0x28] sm:$0xf]
      %v246 = vld [vmem:[%s225 + $0x2c] sm:$0xf]
      %v247 = vld [vmem:[%s225 + $0x30] sm:$0xf]
      %v248 = vld [vmem:[%s225 + $0x34] sm:$0xf]
      %v249 = vld [vmem:[%s225 + $0x38] sm:$0xf]
      %v250 = vld [vmem:[%s225 + $0x3c] sm:$0xf]
      %v251 = vld [vmem:[%s225 + $0x40] sm:$0xf]
      %v252 = vld [vmem:[%s225 + $0x44] sm:$0xf]
      %v253 = vld [vmem:[%s225 + $0x48] sm:$0xf]
      %v254 = vld [vmem:[%s225 + $0x4c] sm:$0xf]
      %v255 = vld [vmem:[%s225 + $0x50] sm:$0xf]
      %v256 = vld [vmem:[%s225 + $0x54] sm:$0xf]
      %v257 = vld [vmem:[%s225 + $0x58] sm:$0xf]
      %v258 = vld [vmem:[%s225 + $0x5c] sm:$0xf]
      %v259 = vld [vmem:[%s225 + $0x60] sm:$0xf]
      %v260 = vld [vmem:[%s225 + $0x64] sm:$0xf]
      %v261 = vld [vmem:[%s225 + $0x68] sm:$0xf]
      %v262 = vld [vmem:[%s225 + $0x6c] sm:$0xf]
      %v263 = vld [vmem:[%s225 + $0x70] sm:$0xf]
      %v264 = vld [vmem:[%s225 + $0x74] sm:$0xf]
      %v265 = vld [vmem:[%s225 + $0x78] sm:$0xf]
      %v266 = vld [vmem:[%s225 + $0x7c] sm:$0xf]
      %v267 = vunpack.c.l.bf16 %v235
      %v268 = vunpack.c.l.bf16 %v236
      %v269 = vunpack.c.l.bf16 %v237
      %v270 = vunpack.c.l.bf16 %v238
      %v271 = vunpack.c.l.bf16 %v239
      %v272 = vunpack.c.l.bf16 %v240
      %v273 = vunpack.c.l.bf16 %v241
      %v274 = vunpack.c.l.bf16 %v242
      %v275 = vunpack.c.l.bf16 %v243
      %v276 = vunpack.c.l.bf16 %v244
      %v277 = vunpack.c.l.bf16 %v245
      %v278 = vunpack.c.l.bf16 %v246
      %v279 = vunpack.c.l.bf16 %v247
      %v280 = vunpack.c.l.bf16 %v248
      %v281 = vunpack.c.l.bf16 %v249
      %v282 = vunpack.c.l.bf16 %v250
      %v283 = vunpack.c.l.bf16 %v251
      %v284 = vunpack.c.l.bf16 %v252
      %v285 = vunpack.c.l.bf16 %v253
      %v286 = vunpack.c.l.bf16 %v254
      %v287 = vunpack.c.l.bf16 %v255
      %v288 = vunpack.c.l.bf16 %v256
      %v289 = vunpack.c.l.bf16 %v257
      %v290 = vunpack.c.l.bf16 %v258
      %v291 = vunpack.c.l.bf16 %v259
      %v292 = vunpack.c.l.bf16 %v260
      %v293 = vunpack.c.l.bf16 %v261
      %v294 = vunpack.c.l.bf16 %v262
      %v295 = vunpack.c.l.bf16 %v263
      %v296 = vunpack.c.l.bf16 %v264
      %v297 = vunpack.c.l.bf16 %v265
      %v298 = vunpack.c.l.bf16 %v266
      %v299 = vld [vmem:[%s1] sm:$0x1]
      %v301 = vperm.slane %v299, 0
      %v303 = vmul.f32 %v267, %v301
      %v304 = vmul.f32 %v268, %v301
      %v305 = vmul.f32 %v269, %v301
      %v306 = vmul.f32 %v270, %v301
      %v307 = vmul.f32 %v271, %v301
      %v308 = vmul.f32 %v272, %v301
      %v309 = vmul.f32 %v273, %v301
      %v310 = vmul.f32 %v274, %v301
      %v311 = vmul.f32 %v275, %v301
      %v312 = vmul.f32 %v276, %v301
      %v313 = vmul.f32 %v277, %v301
      %v314 = vmul.f32 %v278, %v301
      %v315 = vmul.f32 %v279, %v301
      %v316 = vmul.f32 %v280, %v301
      %v317 = vmul.f32 %v281, %v301
      %v318 = vmul.f32 %v282, %v301
      %v319 = vmul.f32 %v283, %v301
      %v320 = vmul.f32 %v284, %v301
      %v321 = vmul.f32 %v285, %v301
      %v322 = vmul.f32 %v286, %v301
      %v323 = vmul.f32 %v287, %v301
      %v324 = vmul.f32 %v288, %v301
      %v325 = vmul.f32 %v289, %v301
      %v326 = vmul.f32 %v290, %v301
      %v327 = vmul.f32 %v291, %v301
      %v328 = vmul.f32 %v292, %v301
      %v329 = vmul.f32 %v293, %v301
      %v330 = vmul.f32 %v294, %v301
      %v331 = vmul.f32 %v295, %v301
      %v332 = vmul.f32 %v296, %v301
      %v333 = vmul.f32 %v297, %v301
      %v334 = vmul.f32 %v298, %v301
      %v335 = vld [vmem:[%s2] sm:$0x1]
      %v337 = vperm.slane %v335, 0
      %v339 = vadd.f32 %v303, %v337
      %v340 = vadd.f32 %v304, %v337
      %v341 = vadd.f32 %v305, %v337
      %v342 = vadd.f32 %v306, %v337
      %v343 = vadd.f32 %v307, %v337
      %v344 = vadd.f32 %v308, %v337
      %v345 = vadd.f32 %v309, %v337
      %v346 = vadd.f32 %v310, %v337
      %v347 = vadd.f32 %v311, %v337
      %v348 = vadd.f32 %v312, %v337
      %v349 = vadd.f32 %v313, %v337
      %v350 = vadd.f32 %v314, %v337
      %v351 = vadd.f32 %v315, %v337
      %v352 = vadd.f32 %v316, %v337
      %v353 = vadd.f32 %v317, %v337
      %v354 = vadd.f32 %v318, %v337
      %v355 = vadd.f32 %v319, %v337
      %v356 = vadd.f32 %v320, %v337
      %v357 = vadd.f32 %v321, %v337
      %v358 = vadd.f32 %v322, %v337
      %v359 = vadd.f32 %v323, %v337
      %v360 = vadd.f32 %v324, %v337
      %v361 = vadd.f32 %v325, %v337
      %v362 = vadd.f32 %v326, %v337
      %v363 = vadd.f32 %v327, %v337
      %v364 = vadd.f32 %v328, %v337
      %v365 = vadd.f32 %v329, %v337
      %v366 = vadd.f32 %v330, %v337
      %v367 = vadd.f32 %v331, %v337
      %v368 = vadd.f32 %v332, %v337
      %v369 = vadd.f32 %v333, %v337
      %v370 = vadd.f32 %v334, %v337
      %v371 = vmax.f32 %v339, 0.0
      %v372 = vmax.f32 %v340, 0.0
      %v373 = vmax.f32 %v341, 0.0
      %v374 = vmax.f32 %v342, 0.0
      %v375 = vmax.f32 %v343, 0.0
      %v376 = vmax.f32 %v344, 0.0
      %v377 = vmax.f32 %v345, 0.0
      %v378 = vmax.f32 %v346, 0.0
      %v379 = vmax.f32 %v347, 0.0
      %v380 = vmax.f32 %v348, 0.0
      %v381 = vmax.f32 %v349, 0.0
      %v382 = vmax.f32 %v350, 0.0
      %v383 = vmax.f32 %v351, 0.0
      %v384 = vmax.f32 %v352, 0.0
      %v385 = vmax.f32 %v353, 0.0
      %v386 = vmax.f32 %v354, 0.0
      %v387 = vmax.f32 %v355, 0.0
      %v388 = vmax.f32 %v356, 0.0
      %v389 = vmax.f32 %v357, 0.0
      %v390 = vmax.f32 %v358, 0.0
      %v391 = vmax.f32 %v359, 0.0
      %v392 = vmax.f32 %v360, 0.0
      %v393 = vmax.f32 %v361, 0.0
      %v394 = vmax.f32 %v362, 0.0
      %v395 = vmax.f32 %v363, 0.0
      %v396 = vmax.f32 %v364, 0.0
      %v397 = vmax.f32 %v365, 0.0
      %v398 = vmax.f32 %v366, 0.0
      %v399 = vmax.f32 %v367, 0.0
      %v400 = vmax.f32 %v368, 0.0
      %v401 = vmax.f32 %v369, 0.0
      %v402 = vmax.f32 %v370, 0.0
      %v403 = vpack.c.bf16 %v371, %v371
      %v404 = vpack.c.bf16 %v372, %v372
      %v405 = vpack.c.bf16 %v373, %v373
      %v406 = vpack.c.bf16 %v374, %v374
      %v407 = vpack.c.bf16 %v375, %v375
      %v408 = vpack.c.bf16 %v376, %v376
      %v409 = vpack.c.bf16 %v377, %v377
      %v410 = vpack.c.bf16 %v378, %v378
      %v411 = vpack.c.bf16 %v379, %v379
      %v412 = vpack.c.bf16 %v380, %v380
      %v413 = vpack.c.bf16 %v381, %v381
      %v414 = vpack.c.bf16 %v382, %v382
      %v415 = vpack.c.bf16 %v383, %v383
      %v416 = vpack.c.bf16 %v384, %v384
      %v417 = vpack.c.bf16 %v385, %v385
      %v418 = vpack.c.bf16 %v386, %v386
      %v419 = vpack.c.bf16 %v387, %v387
      %v420 = vpack.c.bf16 %v388, %v388
      %v421 = vpack.c.bf16 %v389, %v389
      %v422 = vpack.c.bf16 %v390, %v390
      %v423 = vpack.c.bf16 %v391, %v391
      %v424 = vpack.c.bf16 %v392, %v392
      %v425 = vpack.c.bf16 %v393, %v393
      %v426 = vpack.c.bf16 %v394, %v394
      %v427 = vpack.c.bf16 %v395, %v395
      %v428 = vpack.c.bf16 %v396, %v396
      %v429 = vpack.c.bf16 %v397, %v397
      %v430 = vpack.c.bf16 %v398, %v398
      %v431 = vpack.c.bf16 %v399, %v399
      %v432 = vpack.c.bf16 %v400, %v400
      %v433 = vpack.c.bf16 %v401, %v401
      %v434 = vpack.c.bf16 %v402, %v402
      %vm435 = vcmask 27651
      %436 = vst.msk [vmem:[#allocation2 + $0x4] sm:$0x8] %vm435, 0
      %vm437 = vcmask 27648
      %438 = vst.msk [vmem:[#allocation2 + $0x8] sm:$0xf] %vm437, 0
      %439 = vst.msk [vmem:[#allocation2 + $0xc] sm:$0xf] %vm437, 0
      %vm440 = vcmask 24576
      %441 = vst.msk [vmem:[#allocation2 + $0x10] sm:$0x1] %vm440, 0
      %s442 = scalar_lea.vmem [#allocation2], 408
      %443 = vst.msk [vmem:[%s442 + $0x4] sm:$0x8] %vm435, 0
      %444 = vst.msk [vmem:[%s442 + $0x8] sm:$0xf] %vm437, 0
      %445 = vst.msk [vmem:[%s442 + $0xc] sm:$0xf] %vm437, 0
      %446 = vst.msk [vmem:[%s442 + $0x10] sm:$0x1] %vm440, 0
      %s447 = scalar_lea.vmem [#allocation2], 24
      %448 = vst.msk [vmem:[%s447 + $0x4] sm:$0x8] %vm435, 0
      %449 = vst.msk [vmem:[%s447 + $0x1c] sm:$0x8] %vm435, 0
      %450 = vst.msk [vmem:[%s447 + $0x34] sm:$0x8] %vm435, 0
      %451 = vst.msk [vmem:[%s447 + $0x4c] sm:$0x8] %vm435, 0
      %452 = vst.msk [vmem:[%s447 + $0x64] sm:$0x8] %vm435, 0
      %453 = vst.msk [vmem:[%s447 + $0x7c] sm:$0x8] %vm435, 0
      %454 = vst.msk [vmem:[%s447 + $0x94] sm:$0x8] %vm435, 0
      %455 = vst.msk [vmem:[%s447 + $0xac] sm:$0x8] %vm435, 0
      %456 = vst.msk [vmem:[%s447 + $0xc4] sm:$0x8] %vm435, 0
      %457 = vst.msk [vmem:[%s447 + $0xdc] sm:$0x8] %vm435, 0
      %458 = vst.msk [vmem:[%s447 + $0xf4] sm:$0x8] %vm435, 0
      %459 = vst.msk [vmem:[%s447 + $0x10c] sm:$0x8] %vm435, 0
      %460 = vst.msk [vmem:[%s447 + $0x124] sm:$0x8] %vm435, 0
      %461 = vst.msk [vmem:[%s447 + $0x13c] sm:$0x8] %vm435, 0
      %462 = vst.msk [vmem:[%s447 + $0x154] sm:$0x8] %vm435, 0
      %463 = vst.msk [vmem:[%s447 + $0x16c] sm:$0x8] %vm435, 0
      %464 = vst.msk [vmem:[%s447 + $0x10] sm:$0x1] %vm440, 0
      %465 = vst.msk [vmem:[%s447 + $0x28] sm:$0x1] %vm440, 0
      %466 = vst.msk [vmem:[%s447 + $0x40] sm:$0x1] %vm440, 0
      %467 = vst.msk [vmem:[%s447 + $0x58] sm:$0x1] %vm440, 0
      %468 = vst.msk [vmem:[%s447 + $0x70] sm:$0x1] %vm440, 0
      %469 = vst.msk [vmem:[%s447 + $0x88] sm:$0x1] %vm440, 0
      %470 = vst.msk [vmem:[%s447 + $0xa0] sm:$0x1] %vm440, 0
      %471 = vst.msk [vmem:[%s447 + $0xb8] sm:$0x1] %vm440, 0
      %472 = vst.msk [vmem:[%s447 + $0xd0] sm:$0x1] %vm440, 0
      %473 = vst.msk [vmem:[%s447 + $0xe8] sm:$0x1] %vm440, 0
      %474 = vst.msk [vmem:[%s447 + $0x100] sm:$0x1] %vm440, 0
      %475 = vst.msk [vmem:[%s447 + $0x118] sm:$0x1] %vm440, 0
      %476 = vst.msk [vmem:[%s447 + $0x130] sm:$0x1] %vm440, 0
      %477 = vst.msk [vmem:[%s447 + $0x148] sm:$0x1] %vm440, 0
      %478 = vst.msk [vmem:[%s447 + $0x160] sm:$0x1] %vm440, 0
      %479 = vst.msk [vmem:[%s447 + $0x178] sm:$0x1] %vm440, 0
      %480 = vst.msk [vmem:[%s447 + $0x8] sm:$0xf] %vm437, %v403
      %481 = vst.msk [vmem:[%s447 + $0xc] sm:$0xf] %vm437, %v404
      %482 = vst.msk [vmem:[%s447 + $0x20] sm:$0xf] %vm437, %v405
      %483 = vst.msk [vmem:[%s447 + $0x24] sm:$0xf] %vm437, %v406
      %484 = vst.msk [vmem:[%s447 + $0x38] sm:$0xf] %vm437, %v407
      %485 = vst.msk [vmem:[%s447 + $0x3c] sm:$0xf] %vm437, %v408
      %486 = vst.msk [vmem:[%s447 + $0x50] sm:$0xf] %vm437, %v409
      %487 = vst.msk [vmem:[%s447 + $0x54] sm:$0xf] %vm437, %v410
      %488 = vst.msk [vmem:[%s447 + $0x68] sm:$0xf] %vm437, %v411
      %489 = vst.msk [vmem:[%s447 + $0x6c] sm:$0xf] %vm437, %v412
      %490 = vst.msk [vmem:[%s447 + $0x80] sm:$0xf] %vm437, %v413
      %491 = vst.msk [vmem:[%s447 + $0x84] sm:$0xf] %vm437, %v414
      %492 = vst.msk [vmem:[%s447 + $0x98] sm:$0xf] %vm437, %v415
      %493 = vst.msk [vmem:[%s447 + $0x9c] sm:$0xf] %vm437, %v416
      %494 = vst.msk [vmem:[%s447 + $0xb0] sm:$0xf] %vm437, %v417
      %495 = vst.msk [vmem:[%s447 + $0xb4] sm:$0xf] %vm437, %v418
      %496 = vst.msk [vmem:[%s447 + $0xc8] sm:$0xf] %vm437, %v419
      %497 = vst.msk [vmem:[%s447 + $0xcc] sm:$0xf] %vm437, %v420
      %498 = vst.msk [vmem:[%s447 + $0xe0] sm:$0xf] %vm437, %v421
      %499 = vst.msk [vmem:[%s447 + $0xe4] sm:$0xf] %vm437, %v422
      %500 = vst.msk [vmem:[%s447 + $0xf8] sm:$0xf] %vm437, %v423
      %501 = vst.msk [vmem:[%s447 + $0xfc] sm:$0xf] %vm437, %v424
      %502 = vst.msk [vmem:[%s447 + $0x110] sm:$0xf] %vm437, %v425
      %503 = vst.msk [vmem:[%s447 + $0x114] sm:$0xf] %vm437, %v426
      %504 = vst.msk [vmem:[%s447 + $0x128] sm:$0xf] %vm437, %v427
      %505 = vst.msk [vmem:[%s447 + $0x12c] sm:$0xf] %vm437, %v428
      %506 = vst.msk [vmem:[%s447 + $0x140] sm:$0xf] %vm437, %v429
      %507 = vst.msk [vmem:[%s447 + $0x144] sm:$0xf] %vm437, %v430
      %508 = vst.msk [vmem:[%s447 + $0x158] sm:$0xf] %vm437, %v431
      %509 = vst.msk [vmem:[%s447 + $0x15c] sm:$0xf] %vm437, %v432
      %510 = vst.msk [vmem:[%s447 + $0x170] sm:$0xf] %vm437, %v433
      %511 = vst.msk [vmem:[%s447 + $0x174] sm:$0xf] %vm437, %v434
      %v512 = vld [vmem:[%s3] sm:$0xf]
      %v513 = vld [vmem:[%s3 + $0x4] sm:$0xf]
      %v514 = vld [vmem:[%s3 + $0x8] sm:$0xf]
      %v515 = vld [vmem:[%s3 + $0xc] sm:$0xf]
      %v516 = vld [vmem:[%s3 + $0x10] sm:$0x3]
      %v517 = vld [vmem:[#allocation2 + $0x4] sm:$0x8]
      %v518 = vld [vmem:[#allocation2 + $0x8] sm:$0xf]
      %v519 = vld [vmem:[#allocation2 + $0xc] sm:$0xf]
      %v520 = vld [vmem:[#allocation2 + $0x1c] sm:$0x8]
      %v521 = vld [vmem:[#allocation2 + $0x20] sm:$0xf]
      %v522 = vld [vmem:[#allocation2 + $0x24] sm:$0xf]
      %v523 = vld [vmem:[#allocation2 + $0x34] sm:$0x8]
      %v524 = vld [vmem:[#allocation2 + $0x38] sm:$0xf]
      %v525 = vld [vmem:[#allocation2 + $0x3c] sm:$0xf]
      %v526 = vld [vmem:[#allocation2 + $0x4c] sm:$0x8]
      %v527 = vld [vmem:[#allocation2 + $0x50] sm:$0xf]
      %v528 = vld [vmem:[#allocation2 + $0x54] sm:$0xf]
      %v529 = vld [vmem:[#allocation2 + $0x64] sm:$0x8]
      %v530 = vld [vmem:[#allocation2 + $0x68] sm:$0xf]
      %v531 = vld [vmem:[#allocation2 + $0x6c] sm:$0xf]
      %v532 = vld [vmem:[#allocation2 + $0x7c] sm:$0x8]
      %v533 = vld [vmem:[#allocation2 + $0x80] sm:$0xf]
      %v534 = vld [vmem:[#allocation2 + $0x84] sm:$0xf]
      %v535 = vld [vmem:[#allocation2 + $0x94] sm:$0x8]
      %v536 = vld [vmem:[#allocation2 + $0x98] sm:$0xf]
      %v537 = vld [vmem:[#allocation2 + $0x9c] sm:$0xf]
      %v538 = vld [vmem:[#allocation2 + $0xac] sm:$0x8]
      %v539 = vld [vmem:[#allocation2 + $0xb0] sm:$0xf]
      %v540 = vld [vmem:[#allocation2 + $0xb4] sm:$0xf]
      %v541 = vld [vmem:[#allocation2 + $0xc4] sm:$0x8]
      %v542 = vld [vmem:[#allocation2 + $0xc8] sm:$0xf]
      %v543 = vld [vmem:[#allocation2 + $0xcc] sm:$0xf]
      %v544 = vld [vmem:[#allocation2 + $0xdc] sm:$0x8]
      %v545 = vld [vmem:[#allocation2 + $0xe0] sm:$0xf]
      %v546 = vld [vmem:[#allocation2 + $0xe4] sm:$0xf]
      %v547 = vld [vmem:[#allocation2 + $0xf4] sm:$0x8]
      %v548 = vld [vmem:[#allocation2 + $0xf8] sm:$0xf]
      %v549 = vld [vmem:[#allocation2 + $0xfc] sm:$0xf]
      %v550 = vld [vmem:[#allocation2 + $0x10c] sm:$0x8]
      %v551 = vld [vmem:[#allocation2 + $0x110] sm:$0xf]
      %v552 = vld [vmem:[#allocation2 + $0x114] sm:$0xf]
      %v553 = vld [vmem:[#allocation2 + $0x124] sm:$0x8]
      %v554 = vld [vmem:[#allocation2 + $0x128] sm:$0xf]
      %v555 = vld [vmem:[#allocation2 + $0x12c] sm:$0xf]
      %v556 = vld [vmem:[#allocation2 + $0x13c] sm:$0x8]
      %v557 = vld [vmem:[#allocation2 + $0x140] sm:$0xf]
      %v558 = vld [vmem:[#allocation2 + $0x144] sm:$0xf]
      %v559 = vld [vmem:[#allocation2 + $0x154] sm:$0x8]
      %v560 = vld [vmem:[#allocation2 + $0x158] sm:$0xf]
      %v561 = vld [vmem:[#allocation2 + $0x15c] sm:$0xf]
      %v562 = vld [vmem:[#allocation2 + $0x16c] sm:$0x8]
      %v563 = vld [vmem:[#allocation2 + $0x170] sm:$0xf]
      %v564 = vld [vmem:[#allocation2 + $0x174] sm:$0xf]
      %v565 = vld [vmem:[#allocation2 + $0x10] sm:$0x1]
      %v566 = vld [vmem:[#allocation2 + $0x28] sm:$0x1]
      %v567 = vld [vmem:[#allocation2 + $0x40] sm:$0x1]
      %v568 = vld [vmem:[#allocation2 + $0x58] sm:$0x1]
      %v569 = vld [vmem:[#allocation2 + $0x70] sm:$0x1]
      %v570 = vld [vmem:[#allocation2 + $0x88] sm:$0x1]
      %v571 = vld [vmem:[#allocation2 + $0xa0] sm:$0x1]
      %v572 = vld [vmem:[#allocation2 + $0xb8] sm:$0x1]
      %v573 = vld [vmem:[#allocation2 + $0xd0] sm:$0x1]
      %v574 = vld [vmem:[#allocation2 + $0xe8] sm:$0x1]
      %v575 = vld [vmem:[#allocation2 + $0x100] sm:$0x1]
      %v576 = vld [vmem:[#allocation2 + $0x118] sm:$0x1]
      %v577 = vld [vmem:[#allocation2 + $0x130] sm:$0x1]
      %v578 = vld [vmem:[#allocation2 + $0x148] sm:$0x1]
      %v579 = vld [vmem:[#allocation2 + $0x160] sm:$0x1]
      %v580 = vld [vmem:[#allocation2 + $0x178] sm:$0x1]
      %v629 = vunpack.c.l.b16 %v517
      %v630 = vunpack.c.l.b16 %v518
      %v631 = vunpack.c.l.b16 %v519
      %v632 = vunpack.c.l.b16 %v520
      %v633 = vunpack.c.l.b16 %v521
      %v634 = vunpack.c.l.b16 %v522
      %v635 = vunpack.c.l.b16 %v523
      %v636 = vunpack.c.l.b16 %v524
      %v637 = vunpack.c.l.b16 %v525
      %v638 = vunpack.c.l.b16 %v526
      %v639 = vunpack.c.l.b16 %v527
      %v640 = vunpack.c.l.b16 %v528
      %v641 = vunpack.c.l.b16 %v529
      %v642 = vunpack.c.l.b16 %v530
      %v643 = vunpack.c.l.b16 %v531
      %v644 = vunpack.c.l.b16 %v532
      %v645 = vunpack.c.l.b16 %v533
      %v646 = vunpack.c.l.b16 %v534
      %v647 = vunpack.c.l.b16 %v535
      %v648 = vunpack.c.l.b16 %v536
      %v649 = vunpack.c.l.b16 %v537
      %v650 = vunpack.c.l.b16 %v538
      %v651 = vunpack.c.l.b16 %v539
      %v652 = vunpack.c.l.b16 %v540
      %v653 = vunpack.c.l.b16 %v541
      %v654 = vunpack.c.l.b16 %v542
      %v655 = vunpack.c.l.b16 %v543
      %v656 = vunpack.c.l.b16 %v544
      %v657 = vunpack.c.l.b16 %v545
      %v658 = vunpack.c.l.b16 %v546
      %v659 = vunpack.c.l.b16 %v547
      %v660 = vunpack.c.l.b16 %v548
      %v661 = vunpack.c.l.b16 %v549
      %v662 = vunpack.c.l.b16 %v550
      %v663 = vunpack.c.l.b16 %v551
      %v664 = vunpack.c.l.b16 %v552
      %v665 = vunpack.c.l.b16 %v553
      %v666 = vunpack.c.l.b16 %v554
      %v667 = vunpack.c.l.b16 %v555
      %v668 = vunpack.c.l.b16 %v556
      %v669 = vunpack.c.l.b16 %v557
      %v670 = vunpack.c.l.b16 %v558
      %v671 = vunpack.c.l.b16 %v559
      %v672 = vunpack.c.l.b16 %v560
      %v673 = vunpack.c.l.b16 %v561
      %v674 = vunpack.c.l.b16 %v562
      %v675 = vunpack.c.l.b16 %v563
      %v676 = vunpack.c.l.b16 %v564
      %v677 = vpack.c.b16 %v630, %v629
      %v678 = vpack.c.b16 %v631, %v631
      %v679 = vpack.c.b16 %v633, %v632
      %v680 = vpack.c.b16 %v634, %v634
      %v681 = vpack.c.b16 %v636, %v635
      %v682 = vpack.c.b16 %v637, %v637
      %v683 = vpack.c.b16 %v639, %v638
      %v684 = vpack.c.b16 %v640, %v640
      %v685 = vpack.c.b16 %v642, %v641
      %v686 = vpack.c.b16 %v643, %v643
      %v687 = vpack.c.b16 %v645, %v644
      %v688 = vpack.c.b16 %v646, %v646
      %v689 = vpack.c.b16 %v648, %v647
      %v690 = vpack.c.b16 %v649, %v649
      %v691 = vpack.c.b16 %v651, %v650
      %v692 = vpack.c.b16 %v652, %v652
      %v693 = vpack.c.b16 %v654, %v653
      %v694 = vpack.c.b16 %v655, %v655
      %v695 = vpack.c.b16 %v657, %v656
      %v696 = vpack.c.b16 %v658, %v658
      %v697 = vpack.c.b16 %v660, %v659
      %v698 = vpack.c.b16 %v661, %v661
      %v699 = vpack.c.b16 %v663, %v662
      %v700 = vpack.c.b16 %v664, %v664
      %v701 = vpack.c.b16 %v666, %v665
      %v702 = vpack.c.b16 %v667, %v667
      %v703 = vpack.c.b16 %v669, %v668
      %v704 = vpack.c.b16 %v670, %v670
      %v705 = vpack.c.b16 %v672, %v671
      %v706 = vpack.c.b16 %v673, %v673
      %v707 = vpack.c.b16 %v675, %v674
      %v708 = vpack.c.b16 %v676, %v676
      %v709 = vpack.c.b16 %v631, %v630
      %v710 = vpack.c.b16 %v634, %v633
      %v711 = vpack.c.b16 %v637, %v636
      %v712 = vpack.c.b16 %v640, %v639
      %v713 = vpack.c.b16 %v643, %v642
      %v714 = vpack.c.b16 %v646, %v645
      %v715 = vpack.c.b16 %v649, %v648
      %v716 = vpack.c.b16 %v652, %v651
      %v717 = vpack.c.b16 %v655, %v654
      %v718 = vpack.c.b16 %v658, %v657
      %v719 = vpack.c.b16 %v661, %v660
      %v720 = vpack.c.b16 %v664, %v663
      %v721 = vpack.c.b16 %v667, %v666
      %v722 = vpack.c.b16 %v670, %v669
      %v723 = vpack.c.b16 %v673, %v672
      %v724 = vpack.c.b16 %v676, %v675
      %v726 = vshrl.u32 %v709, 16
      %v728 = vrot.slane %v726, 4
      %v729 = vshll.u32 %v709, 16
      %v731 = vrot.slane %v729, 5
      %v732 = vor.u32 %v728, %v731
      %v734 = vshrl.u32 %v710, 16
      %v736 = vrot.slane %v734, 4
      %v737 = vshll.u32 %v710, 16
      %v739 = vrot.slane %v737, 5
      %v740 = vor.u32 %v736, %v739
      %v742 = vshrl.u32 %v711, 16
      %v744 = vrot.slane %v742, 4
      %v745 = vshll.u32 %v711, 16
      %v747 = vrot.slane %v745, 5
      %v748 = vor.u32 %v744, %v747
      %v750 = vshrl.u32 %v712, 16
      %v752 = vrot.slane %v750, 4
      %v753 = vshll.u32 %v712, 16
      %v755 = vrot.slane %v753, 5
      %v756 = vor.u32 %v752, %v755
      %v758 = vshrl.u32 %v713, 16
      %v760 = vrot.slane %v758, 4
      %v761 = vshll.u32 %v713, 16
      %v763 = vrot.slane %v761, 5
      %v764 = vor.u32 %v760, %v763
      %v766 = vshrl.u32 %v714, 16
      %v768 = vrot.slane %v766, 4
      %v769 = vshll.u32 %v714, 16
      %v771 = vrot.slane %v769, 5
      %v772 = vor.u32 %v768, %v771
      %v774 = vshrl.u32 %v715, 16
      %v776 = vrot.slane %v774, 4
      %v777 = vshll.u32 %v715, 16
      %v779 = vrot.slane %v777, 5
      %v780 = vor.u32 %v776, %v779
      %v782 = vshrl.u32 %v716, 16
      %v784 = vrot.slane %v782, 4
      %v785 = vshll.u32 %v716, 16
      %v787 = vrot.slane %v785, 5
      %v788 = vor.u32 %v784, %v787
      %v790 = vshrl.u32 %v717, 16
      %v792 = vrot.slane %v790, 4
      %v793 = vshll.u32 %v717, 16
      %v795 = vrot.slane %v793, 5
      %v796 = vor.u32 %v792, %v795
      %v798 = vshrl.u32 %v718, 16
      %v800 = vrot.slane %v798, 4
      %v801 = vshll.u32 %v718, 16
      %v803 = vrot.slane %v801, 5
      %v804 = vor.u32 %v800, %v803
      %v806 = vshrl.u32 %v719, 16
      %v808 = vrot.slane %v806, 4
      %v809 = vshll.u32 %v719, 16
      %v811 = vrot.slane %v809, 5
      %v812 = vor.u32 %v808, %v811
      %v814 = vshrl.u32 %v720, 16
      %v816 = vrot.slane %v814, 4
      %v817 = vshll.u32 %v720, 16
      %v819 = vrot.slane %v817, 5
      %v820 = vor.u32 %v816, %v819
      %v822 = vshrl.u32 %v721, 16
      %v824 = vrot.slane %v822, 4
      %v825 = vshll.u32 %v721, 16
      %v827 = vrot.slane %v825, 5
      %v828 = vor.u32 %v824, %v827
      %v830 = vshrl.u32 %v722, 16
      %v832 = vrot.slane %v830, 4
      %v833 = vshll.u32 %v722, 16
      %v835 = vrot.slane %v833, 5
      %v836 = vor.u32 %v832, %v835
      %v838 = vshrl.u32 %v723, 16
      %v840 = vrot.slane %v838, 4
      %v841 = vshll.u32 %v723, 16
      %v843 = vrot.slane %v841, 5
      %v844 = vor.u32 %v840, %v843
      %v846 = vshrl.u32 %v724, 16
      %v848 = vrot.slane %v846, 4
      %v849 = vshll.u32 %v724, 16
      %v851 = vrot.slane %v849, 5
      %v852 = vor.u32 %v848, %v851
      %853 = vrot.lane.b32.xlu0 %v732, 4
      %v854 = vpop.permute.xlu0 %853
      %855 = vrot.lane.b32.xlu0 %v740, 4
      %v856 = vpop.permute.xlu0 %855
      %857 = vrot.lane.b32.xlu0 %v748, 4
      %v858 = vpop.permute.xlu0 %857
      %859 = vrot.lane.b32.xlu0 %v756, 4
      %v860 = vpop.permute.xlu0 %859
      %861 = vrot.lane.b32.xlu0 %v764, 4
      %v862 = vpop.permute.xlu0 %861
      %863 = vrot.lane.b32.xlu0 %v772, 4
      %v864 = vpop.permute.xlu0 %863
      %865 = vrot.lane.b32.xlu0 %v780, 4
      %v866 = vpop.permute.xlu0 %865
      %867 = vrot.lane.b32.xlu0 %v788, 4
      %v868 = vpop.permute.xlu0 %867
      %869 = vrot.lane.b32.xlu0 %v796, 4
      %v870 = vpop.permute.xlu0 %869
      %871 = vrot.lane.b32.xlu0 %v804, 4
      %v872 = vpop.permute.xlu0 %871
      %873 = vrot.lane.b32.xlu0 %v812, 4
      %v874 = vpop.permute.xlu0 %873
      %875 = vrot.lane.b32.xlu0 %v820, 4
      %v876 = vpop.permute.xlu0 %875
      %877 = vrot.lane.b32.xlu0 %v828, 4
      %v878 = vpop.permute.xlu0 %877
      %879 = vrot.lane.b32.xlu0 %v836, 4
      %v880 = vpop.permute.xlu0 %879
      %881 = vrot.lane.b32.xlu0 %v844, 4
      %v882 = vpop.permute.xlu0 %881
      %883 = vrot.lane.b32.xlu0 %v852, 4
      %v884 = vpop.permute.xlu0 %883
      %v901 = vunpack.c.l.b16 %v565
      %v902 = vunpack.c.l.b16 %v566
      %v903 = vunpack.c.l.b16 %v567
      %v904 = vunpack.c.l.b16 %v568
      %v905 = vunpack.c.l.b16 %v569
      %v906 = vunpack.c.l.b16 %v570
      %v907 = vunpack.c.l.b16 %v571
      %v908 = vunpack.c.l.b16 %v572
      %v909 = vunpack.c.l.b16 %v573
      %v910 = vunpack.c.l.b16 %v574
      %v911 = vunpack.c.l.b16 %v575
      %v912 = vunpack.c.l.b16 %v576
      %v913 = vunpack.c.l.b16 %v577
      %v914 = vunpack.c.l.b16 %v578
      %v915 = vunpack.c.l.b16 %v579
      %v916 = vunpack.c.l.b16 %v580
      %v917 = vpack.c.b16 %v901, %v901
      %v918 = vpack.c.b16 %v902, %v902
      %v919 = vpack.c.b16 %v903, %v903
      %v920 = vpack.c.b16 %v904, %v904
      %v921 = vpack.c.b16 %v905, %v905
      %v922 = vpack.c.b16 %v906, %v906
      %v923 = vpack.c.b16 %v907, %v907
      %v924 = vpack.c.b16 %v908, %v908
      %v925 = vpack.c.b16 %v909, %v909
      %v926 = vpack.c.b16 %v910, %v910
      %v927 = vpack.c.b16 %v911, %v911
      %v928 = vpack.c.b16 %v912, %v912
      %v929 = vpack.c.b16 %v913, %v913
      %v930 = vpack.c.b16 %v914, %v914
      %v931 = vpack.c.b16 %v915, %v915
      %v932 = vpack.c.b16 %v916, %v916
      %vm933 = vcmask 1042432
      %v934 = vrot.slane %v709, 5
      %v935 = vrot.slane %v917, 5
      %v936 = vsel %vm933, %v934, %v935
      %v937 = vrot.slane %v710, 5
      %v938 = vrot.slane %v918, 5
      %v939 = vsel %vm933, %v937, %v938
      %v940 = vrot.slane %v711, 5
      %v941 = vrot.slane %v919, 5
      %v942 = vsel %vm933, %v940, %v941
      %v943 = vrot.slane %v712, 5
      %v944 = vrot.slane %v920, 5
      %v945 = vsel %vm933, %v943, %v944
      %v946 = vrot.slane %v713, 5
      %v947 = vrot.slane %v921, 5
      %v948 = vsel %vm933, %v946, %v947
      %v949 = vrot.slane %v714, 5
      %v950 = vrot.slane %v922, 5
      %v951 = vsel %vm933, %v949, %v950
      %v952 = vrot.slane %v715, 5
      %v953 = vrot.slane %v923, 5
      %v954 = vsel %vm933, %v952, %v953
      %v955 = vrot.slane %v716, 5
      %v956 = vrot.slane %v924, 5
      %v957 = vsel %vm933, %v955, %v956
      %v958 = vrot.slane %v717, 5
      %v959 = vrot.slane %v925, 5
      %v960 = vsel %vm933, %v958, %v959
      %v961 = vrot.slane %v718, 5
      %v962 = vrot.slane %v926, 5
      %v963 = vsel %vm933, %v961, %v962
      %v964 = vrot.slane %v719, 5
      %v965 = vrot.slane %v927, 5
      %v966 = vsel %vm933, %v964, %v965
      %v967 = vrot.slane %v720, 5
      %v968 = vrot.slane %v928, 5
      %v969 = vsel %vm933, %v967, %v968
      %v970 = vrot.slane %v721, 5
      %v971 = vrot.slane %v929, 5
      %v972 = vsel %vm933, %v970, %v971
      %v973 = vrot.slane %v722, 5
      %v974 = vrot.slane %v930, 5
      %v975 = vsel %vm933, %v973, %v974
      %v976 = vrot.slane %v723, 5
      %v977 = vrot.slane %v931, 5
      %v978 = vsel %vm933, %v976, %v977
      %v979 = vrot.slane %v724, 5
      %v980 = vrot.slane %v932, 5
      %v981 = vsel %vm933, %v979, %v980
      %982 = vrot.lane.b32.xlu0 %v934, 8
      %v983 = vpop.permute.xlu0 %982
      %984 = vrot.lane.b32.xlu0 %v936, 8
      %v985 = vpop.permute.xlu0 %984
      %986 = vrot.lane.b32.xlu0 %v937, 8
      %v987 = vpop.permute.xlu0 %986
      %988 = vrot.lane.b32.xlu0 %v939, 8
      %v989 = vpop.permute.xlu0 %988
      %990 = vrot.lane.b32.xlu0 %v940, 8
      %v991 = vpop.permute.xlu0 %990
      %992 = vrot.lane.b32.xlu0 %v942, 8
      %v993 = vpop.permute.xlu0 %992
      %994 = vrot.lane.b32.xlu0 %v943, 8
      %v995 = vpop.permute.xlu0 %994
      %996 = vrot.lane.b32.xlu0 %v945, 8
      %v997 = vpop.permute.xlu0 %996
      %998 = vrot.lane.b32.xlu0 %v946, 8
      %v999 = vpop.permute.xlu0 %998
      %1000 = vrot.lane.b32.xlu0 %v948, 8
      %v1001 = vpop.permute.xlu0 %1000
      %1002 = vrot.lane.b32.xlu0 %v949, 8
      %v1003 = vpop.permute.xlu0 %1002
      %1004 = vrot.lane.b32.xlu0 %v951, 8
      %v1005 = vpop.permute.xlu0 %1004
      %1006 = vrot.lane.b32.xlu0 %v952, 8
      %v1007 = vpop.permute.xlu0 %1006
      %1008 = vrot.lane.b32.xlu0 %v954, 8
      %v1009 = vpop.permute.xlu0 %1008
      %1010 = vrot.lane.b32.xlu0 %v955, 8
      %v1011 = vpop.permute.xlu0 %1010
      %1012 = vrot.lane.b32.xlu0 %v957, 8
      %v1013 = vpop.permute.xlu0 %1012
      %1014 = vrot.lane.b32.xlu0 %v958, 8
      %v1015 = vpop.permute.xlu0 %1014
      %1016 = vrot.lane.b32.xlu0 %v960, 8
      %v1017 = vpop.permute.xlu0 %1016
      %1018 = vrot.lane.b32.xlu0 %v961, 8
      %v1019 = vpop.permute.xlu0 %1018
      %1020 = vrot.lane.b32.xlu0 %v963, 8
      %v1021 = vpop.permute.xlu0 %1020
      %1022 = vrot.lane.b32.xlu0 %v964, 8
      %v1023 = vpop.permute.xlu0 %1022
      %1024 = vrot.lane.b32.xlu0 %v966, 8
      %v1025 = vpop.permute.xlu0 %1024
      %1026 = vrot.lane.b32.xlu0 %v967, 8
      %v1027 = vpop.permute.xlu0 %1026
      %1028 = vrot.lane.b32.xlu0 %v969, 8
      %v1029 = vpop.permute.xlu0 %1028
      %1030 = vrot.lane.b32.xlu0 %v970, 8
      %v1031 = vpop.permute.xlu0 %1030
      %1032 = vrot.lane.b32.xlu0 %v972, 8
      %v1033 = vpop.permute.xlu0 %1032
      %1034 = vrot.lane.b32.xlu0 %v973, 8
      %v1035 = vpop.permute.xlu0 %1034
      %1036 = vrot.lane.b32.xlu0 %v975, 8
      %v1037 = vpop.permute.xlu0 %1036
      %1038 = vrot.lane.b32.xlu0 %v976, 8
      %v1039 = vpop.permute.xlu0 %1038
      %1040 = vrot.lane.b32.xlu0 %v978, 8
      %v1041 = vpop.permute.xlu0 %1040
      %1042 = vrot.lane.b32.xlu0 %v979, 8
      %v1043 = vpop.permute.xlu0 %1042
      %1044 = vrot.lane.b32.xlu0 %v981, 8
      %v1045 = vpop.permute.xlu0 %1044
      %vm1046 = vcmask 31744
      %v1049 = vsel %vm1046, %v677, %v854
      %v1051 = vsel %vm1046, %v678, %v854
      %v1054 = vsel %vm1046, %v679, %v856
      %v1056 = vsel %vm1046, %v680, %v856
      %v1059 = vsel %vm1046, %v681, %v858
      %v1061 = vsel %vm1046, %v682, %v858
      %v1064 = vsel %vm1046, %v683, %v860
      %v1066 = vsel %vm1046, %v684, %v860
      %v1069 = vsel %vm1046, %v685, %v862
      %v1071 = vsel %vm1046, %v686, %v862
      %v1074 = vsel %vm1046, %v687, %v864
      %v1076 = vsel %vm1046, %v688, %v864
      %v1079 = vsel %vm1046, %v689, %v866
      %v1081 = vsel %vm1046, %v690, %v866
      %v1084 = vsel %vm1046, %v691, %v868
      %v1086 = vsel %vm1046, %v692, %v868
      %v1089 = vsel %vm1046, %v693, %v870
      %v1091 = vsel %vm1046, %v694, %v870
      %v1094 = vsel %vm1046, %v695, %v872
      %v1096 = vsel %vm1046, %v696, %v872
      %v1099 = vsel %vm1046, %v697, %v874
      %v1101 = vsel %vm1046, %v698, %v874
      %v1104 = vsel %vm1046, %v699, %v876
      %v1106 = vsel %vm1046, %v700, %v876
      %v1109 = vsel %vm1046, %v701, %v878
      %v1111 = vsel %vm1046, %v702, %v878
      %v1114 = vsel %vm1046, %v703, %v880
      %v1116 = vsel %vm1046, %v704, %v880
      %v1119 = vsel %vm1046, %v705, %v882
      %v1121 = vsel %vm1046, %v706, %v882
      %v1124 = vsel %vm1046, %v707, %v884
      %v1126 = vsel %vm1046, %v708, %v884
      %vm1127 = vcmask 64512
      %v1129 = vsel %vm1127, %v1049, %v983
      %v1131 = vsel %vm1127, %v1051, %v985
      %v1133 = vsel %vm1127, %v1054, %v987
      %v1135 = vsel %vm1127, %v1056, %v989
      %v1137 = vsel %vm1127, %v1059, %v991
      %v1139 = vsel %vm1127, %v1061, %v993
      %v1141 = vsel %vm1127, %v1064, %v995
      %v1143 = vsel %vm1127, %v1066, %v997
      %v1145 = vsel %vm1127, %v1069, %v999
      %v1147 = vsel %vm1127, %v1071, %v1001
      %v1149 = vsel %vm1127, %v1074, %v1003
      %v1151 = vsel %vm1127, %v1076, %v1005
      %v1153 = vsel %vm1127, %v1079, %v1007
      %v1155 = vsel %vm1127, %v1081, %v1009
      %v1157 = vsel %vm1127, %v1084, %v1011
      %v1159 = vsel %vm1127, %v1086, %v1013
      %v1161 = vsel %vm1127, %v1089, %v1015
      %v1163 = vsel %vm1127, %v1091, %v1017
      %v1165 = vsel %vm1127, %v1094, %v1019
      %v1167 = vsel %vm1127, %v1096, %v1021
      %v1169 = vsel %vm1127, %v1099, %v1023
      %v1171 = vsel %vm1127, %v1101, %v1025
      %v1173 = vsel %vm1127, %v1104, %v1027
      %v1175 = vsel %vm1127, %v1106, %v1029
      %v1177 = vsel %vm1127, %v1109, %v1031
      %v1179 = vsel %vm1127, %v1111, %v1033
      %v1181 = vsel %vm1127, %v1114, %v1035
      %v1183 = vsel %vm1127, %v1116, %v1037
      %v1185 = vsel %vm1127, %v1119, %v1039
      %v1187 = vsel %vm1127, %v1121, %v1041
      %v1189 = vsel %vm1127, %v1124, %v1043
      %v1191 = vsel %vm1127, %v1126, %v1045
      %vm1192 = vsmask.f32 4352
      %v1193 = vshrl.u32 %v1129, 16
      %v1195 = vrot.slane %v1193, 3
      %v1196 = vshll.u32 %v1129, 16
      %v1198 = vrot.slane %v1196, 4
      %v1199 = vor.u32 %v1195, %v1198
      %v1200 = vshrl.u32 %v1131, 16
      %v1202 = vrot.slane %v1200, 3
      %v1203 = vshll.u32 %v1131, 16
      %v1205 = vrot.slane %v1203, 4
      %v1206 = vor.u32 %v1202, %v1205
      %v1207 = vsel %vm1192, %v1199, %v1206
      %v1208 = vshrl.u32 %v1133, 16
      %v1210 = vrot.slane %v1208, 3
      %v1211 = vshll.u32 %v1133, 16
      %v1213 = vrot.slane %v1211, 4
      %v1214 = vor.u32 %v1210, %v1213
      %v1215 = vshrl.u32 %v1135, 16
      %v1217 = vrot.slane %v1215, 3
      %v1218 = vshll.u32 %v1135, 16
      %v1220 = vrot.slane %v1218, 4
      %v1221 = vor.u32 %v1217, %v1220
      %v1222 = vsel %vm1192, %v1214, %v1221
      %v1223 = vshrl.u32 %v1137, 16
      %v1225 = vrot.slane %v1223, 3
      %v1226 = vshll.u32 %v1137, 16
      %v1228 = vrot.slane %v1226, 4
      %v1229 = vor.u32 %v1225, %v1228
      %v1230 = vshrl.u32 %v1139, 16
      %v1232 = vrot.slane %v1230, 3
      %v1233 = vshll.u32 %v1139, 16
      %v1235 = vrot.slane %v1233, 4
      %v1236 = vor.u32 %v1232, %v1235
      %v1237 = vsel %vm1192, %v1229, %v1236
      %v1238 = vshrl.u32 %v1141, 16
      %v1240 = vrot.slane %v1238, 3
      %v1241 = vshll.u32 %v1141, 16
      %v1243 = vrot.slane %v1241, 4
      %v1244 = vor.u32 %v1240, %v1243
      %v1245 = vshrl.u32 %v1143, 16
      %v1247 = vrot.slane %v1245, 3
      %v1248 = vshll.u32 %v1143, 16
      %v1250 = vrot.slane %v1248, 4
      %v1251 = vor.u32 %v1247, %v1250
      %v1252 = vsel %vm1192, %v1244, %v1251
      %v1253 = vshrl.u32 %v1145, 16
      %v1255 = vrot.slane %v1253, 3
      %v1256 = vshll.u32 %v1145, 16
      %v1258 = vrot.slane %v1256, 4
      %v1259 = vor.u32 %v1255, %v1258
      %v1260 = vshrl.u32 %v1147, 16
      %v1262 = vrot.slane %v1260, 3
      %v1263 = vshll.u32 %v1147, 16
      %v1265 = vrot.slane %v1263, 4
      %v1266 = vor.u32 %v1262, %v1265
      %v1267 = vsel %vm1192, %v1259, %v1266
      %v1268 = vshrl.u32 %v1149, 16
      %v1270 = vrot.slane %v1268, 3
      %v1271 = vshll.u32 %v1149, 16
      %v1273 = vrot.slane %v1271, 4
      %v1274 = vor.u32 %v1270, %v1273
      %v1275 = vshrl.u32 %v1151, 16
      %v1277 = vrot.slane %v1275, 3
      %v1278 = vshll.u32 %v1151, 16
      %v1280 = vrot.slane %v1278, 4
      %v1281 = vor.u32 %v1277, %v1280
      %v1282 = vsel %vm1192, %v1274, %v1281
      %v1283 = vshrl.u32 %v1153, 16
      %v1285 = vrot.slane %v1283, 3
      %v1286 = vshll.u32 %v1153, 16
      %v1288 = vrot.slane %v1286, 4
      %v1289 = vor.u32 %v1285, %v1288
      %v1290 = vshrl.u32 %v1155, 16
      %v1292 = vrot.slane %v1290, 3
      %v1293 = vshll.u32 %v1155, 16
      %v1295 = vrot.slane %v1293, 4
      %v1296 = vor.u32 %v1292, %v1295
      %v1297 = vsel %vm1192, %v1289, %v1296
      %v1298 = vshrl.u32 %v1157, 16
      %v1300 = vrot.slane %v1298, 3
      %v1301 = vshll.u32 %v1157, 16
      %v1303 = vrot.slane %v1301, 4
      %v1304 = vor.u32 %v1300, %v1303
      %v1305 = vshrl.u32 %v1159, 16
      %v1307 = vrot.slane %v1305, 3
      %v1308 = vshll.u32 %v1159, 16
      %v1310 = vrot.slane %v1308, 4
      %v1311 = vor.u32 %v1307, %v1310
      %v1312 = vsel %vm1192, %v1304, %v1311
      %v1313 = vshrl.u32 %v1161, 16
      %v1315 = vrot.slane %v1313, 3
      %v1316 = vshll.u32 %v1161, 16
      %v1318 = vrot.slane %v1316, 4
      %v1319 = vor.u32 %v1315, %v1318
      %v1320 = vshrl.u32 %v1163, 16
      %v1322 = vrot.slane %v1320, 3
      %v1323 = vshll.u32 %v1163, 16
      %v1325 = vrot.slane %v1323, 4
      %v1326 = vor.u32 %v1322, %v1325
      %v1327 = vsel %vm1192, %v1319, %v1326
      %v1328 = vshrl.u32 %v1165, 16
      %v1330 = vrot.slane %v1328, 3
      %v1331 = vshll.u32 %v1165, 16
      %v1333 = vrot.slane %v1331, 4
      %v1334 = vor.u32 %v1330, %v1333
      %v1335 = vshrl.u32 %v1167, 16
      %v1337 = vrot.slane %v1335, 3
      %v1338 = vshll.u32 %v1167, 16
      %v1340 = vrot.slane %v1338, 4
      %v1341 = vor.u32 %v1337, %v1340
      %v1342 = vsel %vm1192, %v1334, %v1341
      %v1343 = vshrl.u32 %v1169, 16
      %v1345 = vrot.slane %v1343, 3
      %v1346 = vshll.u32 %v1169, 16
      %v1348 = vrot.slane %v1346, 4
      %v1349 = vor.u32 %v1345, %v1348
      %v1350 = vshrl.u32 %v1171, 16
      %v1352 = vrot.slane %v1350, 3
      %v1353 = vshll.u32 %v1171, 16
      %v1355 = vrot.slane %v1353, 4
      %v1356 = vor.u32 %v1352, %v1355
      %v1357 = vsel %vm1192, %v1349, %v1356
      %v1358 = vshrl.u32 %v1173, 16
      %v1360 = vrot.slane %v1358, 3
      %v1361 = vshll.u32 %v1173, 16
      %v1363 = vrot.slane %v1361, 4
      %v1364 = vor.u32 %v1360, %v1363
      %v1365 = vshrl.u32 %v1175, 16
      %v1367 = vrot.slane %v1365, 3
      %v1368 = vshll.u32 %v1175, 16
      %v1370 = vrot.slane %v1368, 4
      %v1371 = vor.u32 %v1367, %v1370
      %v1372 = vsel %vm1192, %v1364, %v1371
      %v1373 = vshrl.u32 %v1177, 16
      %v1375 = vrot.slane %v1373, 3
      %v1376 = vshll.u32 %v1177, 16
      %v1378 = vrot.slane %v1376, 4
      %v1379 = vor.u32 %v1375, %v1378
      %v1380 = vshrl.u32 %v1179, 16
      %v1382 = vrot.slane %v1380, 3
      %v1383 = vshll.u32 %v1179, 16
      %v1385 = vrot.slane %v1383, 4
      %v1386 = vor.u32 %v1382, %v1385
      %v1387 = vsel %vm1192, %v1379, %v1386
      %v1388 = vshrl.u32 %v1181, 16
      %v1390 = vrot.slane %v1388, 3
      %v1391 = vshll.u32 %v1181, 16
      %v1393 = vrot.slane %v1391, 4
      %v1394 = vor.u32 %v1390, %v1393
      %v1395 = vshrl.u32 %v1183, 16
      %v1397 = vrot.slane %v1395, 3
      %v1398 = vshll.u32 %v1183, 16
      %v1400 = vrot.slane %v1398, 4
      %v1401 = vor.u32 %v1397, %v1400
      %v1402 = vsel %vm1192, %v1394, %v1401
      %v1403 = vshrl.u32 %v1185, 16
      %v1405 = vrot.slane %v1403, 3
      %v1406 = vshll.u32 %v1185, 16
      %v1408 = vrot.slane %v1406, 4
      %v1409 = vor.u32 %v1405, %v1408
      %v1410 = vshrl.u32 %v1187, 16
      %v1412 = vrot.slane %v1410, 3
      %v1413 = vshll.u32 %v1187, 16
      %v1415 = vrot.slane %v1413, 4
      %v1416 = vor.u32 %v1412, %v1415
      %v1417 = vsel %vm1192, %v1409, %v1416
      %v1418 = vshrl.u32 %v1189, 16
      %v1420 = vrot.slane %v1418, 3
      %v1421 = vshll.u32 %v1189, 16
      %v1423 = vrot.slane %v1421, 4
      %v1424 = vor.u32 %v1420, %v1423
      %v1425 = vshrl.u32 %v1191, 16
      %v1427 = vrot.slane %v1425, 3
      %v1428 = vshll.u32 %v1191, 16
      %v1430 = vrot.slane %v1428, 4
      %v1431 = vor.u32 %v1427, %v1430
      %v1432 = vsel %vm1192, %v1424, %v1431
      %v1433 = vld [vmem:[%s447 + $0x4] sm:$0x8]
      %v1434 = vld [vmem:[%s447 + $0x8] sm:$0xf]
      %v1435 = vld [vmem:[%s447 + $0xc] sm:$0xf]
      %v1436 = vld [vmem:[%s447 + $0x1c] sm:$0x8]
      %v1437 = vld [vmem:[%s447 + $0x20] sm:$0xf]
      %v1438 = vld [vmem:[%s447 + $0x24] sm:$0xf]
      %v1439 = vld [vmem:[%s447 + $0x34] sm:$0x8]
      %v1440 = vld [vmem:[%s447 + $0x38] sm:$0xf]
      %v1441 = vld [vmem:[%s447 + $0x3c] sm:$0xf]
      %v1442 = vld [vmem:[%s447 + $0x4c] sm:$0x8]
      %v1443 = vld [vmem:[%s447 + $0x50] sm:$0xf]
      %v1444 = vld [vmem:[%s447 + $0x54] sm:$0xf]
      %v1445 = vld [vmem:[%s447 + $0x64] sm:$0x8]
      %v1446 = vld [vmem:[%s447 + $0x68] sm:$0xf]
      %v1447 = vld [vmem:[%s447 + $0x6c] sm:$0xf]
      %v1448 = vld [vmem:[%s447 + $0x7c] sm:$0x8]
      %v1449 = vld [vmem:[%s447 + $0x80] sm:$0xf]
      %v1450 = vld [vmem:[%s447 + $0x84] sm:$0xf]
      %v1451 = vld [vmem:[%s447 + $0x94] sm:$0x8]
      %v1452 = vld [vmem:[%s447 + $0x98] sm:$0xf]
      %v1453 = vld [vmem:[%s447 + $0x9c] sm:$0xf]
      %v1454 = vld [vmem:[%s447 + $0xac] sm:$0x8]
      %v1455 = vld [vmem:[%s447 + $0xb0] sm:$0xf]
      %v1456 = vld [vmem:[%s447 + $0xb4] sm:$0xf]
      %v1457 = vld [vmem:[%s447 + $0xc4] sm:$0x8]
      %v1458 = vld [vmem:[%s447 + $0xc8] sm:$0xf]
      %v1459 = vld [vmem:[%s447 + $0xcc] sm:$0xf]
      %v1460 = vld [vmem:[%s447 + $0xdc] sm:$0x8]
      %v1461 = vld [vmem:[%s447 + $0xe0] sm:$0xf]
      %v1462 = vld [vmem:[%s447 + $0xe4] sm:$0xf]
      %v1463 = vld [vmem:[%s447 + $0xf4] sm:$0x8]
      %v1464 = vld [vmem:[%s447 + $0xf8] sm:$0xf]
      %v1465 = vld [vmem:[%s447 + $0xfc] sm:$0xf]
      %v1466 = vld [vmem:[%s447 + $0x10c] sm:$0x8]
      %v1467 = vld [vmem:[%s447 + $0x110] sm:$0xf]
      %v1468 = vld [vmem:[%s447 + $0x114] sm:$0xf]
      %v1469 = vld [vmem:[%s447 + $0x124] sm:$0x8]
      %v1470 = vld [vmem:[%s447 + $0x128] sm:$0xf]
      %v1471 = vld [vmem:[%s447 + $0x12c] sm:$0xf]
      %v1472 = vld [vmem:[%s447 + $0x13c] sm:$0x8]
      %v1473 = vld [vmem:[%s447 + $0x140] sm:$0xf]
      %v1474 = vld [vmem:[%s447 + $0x144] sm:$0xf]
      %v1475 = vld [vmem:[%s447 + $0x154] sm:$0x8]
      %v1476 = vld [vmem:[%s447 + $0x158] sm:$0xf]
      %v1477 = vld [vmem:[%s447 + $0x15c] sm:$0xf]
      %v1478 = vld [vmem:[%s447 + $0x16c] sm:$0x8]
      %v1479 = vld [vmem:[%s447 + $0x170] sm:$0xf]
      %v1480 = vld [vmem:[%s447 + $0x174] sm:$0xf]
      %v1481 = vld [vmem:[%s447 + $0x10] sm:$0x1]
      %v1482 = vld [vmem:[%s447 + $0x28] sm:$0x1]
      %v1483 = vld [vmem:[%s447 + $0x40] sm:$0x1]
      %v1484 = vld [vmem:[%s447 + $0x58] sm:$0x1]
      %v1485 = vld [vmem:[%s447 + $0x70] sm:$0x1]
      %v1486 = vld [vmem:[%s447 + $0x88] sm:$0x1]
      %v1487 = vld [vmem:[%s447 + $0xa0] sm:$0x1]
      %v1488 = vld [vmem:[%s447 + $0xb8] sm:$0x1]
      %v1489 = vld [vmem:[%s447 + $0xd0] sm:$0x1]
      %v1490 = vld [vmem:[%s447 + $0xe8] sm:$0x1]
      %v1491 = vld [vmem:[%s447 + $0x100] sm:$0x1]
      %v1492 = vld [vmem:[%s447 + $0x118] sm:$0x1]
      %v1493 = vld [vmem:[%s447 + $0x130] sm:$0x1]
      %v1494 = vld [vmem:[%s447 + $0x148] sm:$0x1]
      %v1495 = vld [vmem:[%s447 + $0x160] sm:$0x1]
      %v1496 = vld [vmem:[%s447 + $0x178] sm:$0x1]
      %v1545 = vunpack.c.l.b16 %v1433
      %v1546 = vunpack.c.l.b16 %v1434
      %v1547 = vunpack.c.l.b16 %v1435
      %v1548 = vunpack.c.l.b16 %v1436
      %v1549 = vunpack.c.l.b16 %v1437
      %v1550 = vunpack.c.l.b16 %v1438
      %v1551 = vunpack.c.l.b16 %v1439
      %v1552 = vunpack.c.l.b16 %v1440
      %v1553 = vunpack.c.l.b16 %v1441
      %v1554 = vunpack.c.l.b16 %v1442
      %v1555 = vunpack.c.l.b16 %v1443
      %v1556 = vunpack.c.l.b16 %v1444
      %v1557 = vunpack.c.l.b16 %v1445
      %v1558 = vunpack.c.l.b16 %v1446
      %v1559 = vunpack.c.l.b16 %v1447
      %v1560 = vunpack.c.l.b16 %v1448
      %v1561 = vunpack.c.l.b16 %v1449
      %v1562 = vunpack.c.l.b16 %v1450
      %v1563 = vunpack.c.l.b16 %v1451
      %v1564 = vunpack.c.l.b16 %v1452
      %v1565 = vunpack.c.l.b16 %v1453
      %v1566 = vunpack.c.l.b16 %v1454
      %v1567 = vunpack.c.l.b16 %v1455
      %v1568 = vunpack.c.l.b16 %v1456
      %v1569 = vunpack.c.l.b16 %v1457
      %v1570 = vunpack.c.l.b16 %v1458
      %v1571 = vunpack.c.l.b16 %v1459
      %v1572 = vunpack.c.l.b16 %v1460
      %v1573 = vunpack.c.l.b16 %v1461
      %v1574 = vunpack.c.l.b16 %v1462
      %v1575 = vunpack.c.l.b16 %v1463
      %v1576 = vunpack.c.l.b16 %v1464
      %v1577 = vunpack.c.l.b16 %v1465
      %v1578 = vunpack.c.l.b16 %v1466
      %v1579 = vunpack.c.l.b16 %v1467
      %v1580 = vunpack.c.l.b16 %v1468
      %v1581 = vunpack.c.l.b16 %v1469
      %v1582 = vunpack.c.l.b16 %v1470
      %v1583 = vunpack.c.l.b16 %v1471
      %v1584 = vunpack.c.l.b16 %v1472
      %v1585 = vunpack.c.l.b16 %v1473
      %v1586 = vunpack.c.l.b16 %v1474
      %v1587 = vunpack.c.l.b16 %v1475
      %v1588 = vunpack.c.l.b16 %v1476
      %v1589 = vunpack.c.l.b16 %v1477
      %v1590 = vunpack.c.l.b16 %v1478
      %v1591 = vunpack.c.l.b16 %v1479
      %v1592 = vunpack.c.l.b16 %v1480
      %v1593 = vpack.c.b16 %v1546, %v1545
      %v1594 = vpack.c.b16 %v1547, %v1547
      %v1595 = vpack.c.b16 %v1549, %v1548
      %v1596 = vpack.c.b16 %v1550, %v1550
      %v1597 = vpack.c.b16 %v1552, %v1551
      %v1598 = vpack.c.b16 %v1553, %v1553
      %v1599 = vpack.c.b16 %v1555, %v1554
      %v1600 = vpack.c.b16 %v1556, %v1556
      %v1601 = vpack.c.b16 %v1558, %v1557
      %v1602 = vpack.c.b16 %v1559, %v1559
      %v1603 = vpack.c.b16 %v1561, %v1560
      %v1604 = vpack.c.b16 %v1562, %v1562
      %v1605 = vpack.c.b16 %v1564, %v1563
      %v1606 = vpack.c.b16 %v1565, %v1565
      %v1607 = vpack.c.b16 %v1567, %v1566
      %v1608 = vpack.c.b16 %v1568, %v1568
      %v1609 = vpack.c.b16 %v1570, %v1569
      %v1610 = vpack.c.b16 %v1571, %v1571
      %v1611 = vpack.c.b16 %v1573, %v1572
      %v1612 = vpack.c.b16 %v1574, %v1574
      %v1613 = vpack.c.b16 %v1576, %v1575
      %v1614 = vpack.c.b16 %v1577, %v1577
      %v1615 = vpack.c.b16 %v1579, %v1578
      %v1616 = vpack.c.b16 %v1580, %v1580
      %v1617 = vpack.c.b16 %v1582, %v1581
      %v1618 = vpack.c.b16 %v1583, %v1583
      %v1619 = vpack.c.b16 %v1585, %v1584
      %v1620 = vpack.c.b16 %v1586, %v1586
      %v1621 = vpack.c.b16 %v1588, %v1587
      %v1622 = vpack.c.b16 %v1589, %v1589
      %v1623 = vpack.c.b16 %v1591, %v1590
      %v1624 = vpack.c.b16 %v1592, %v1592
      %v1625 = vpack.c.b16 %v1547, %v1546
      %v1626 = vpack.c.b16 %v1550, %v1549
      %v1627 = vpack.c.b16 %v1553, %v1552
      %v1628 = vpack.c.b16 %v1556, %v1555
      %v1629 = vpack.c.b16 %v1559, %v1558
      %v1630 = vpack.c.b16 %v1562, %v1561
      %v1631 = vpack.c.b16 %v1565, %v1564
      %v1632 = vpack.c.b16 %v1568, %v1567
      %v1633 = vpack.c.b16 %v1571, %v1570
      %v1634 = vpack.c.b16 %v1574, %v1573
      %v1635 = vpack.c.b16 %v1577, %v1576
      %v1636 = vpack.c.b16 %v1580, %v1579
      %v1637 = vpack.c.b16 %v1583, %v1582
      %v1638 = vpack.c.b16 %v1586, %v1585
      %v1639 = vpack.c.b16 %v1589, %v1588
      %v1640 = vpack.c.b16 %v1592, %v1591
      %v1642 = vshrl.u32 %v1625, 16
      %v1644 = vrot.slane %v1642, 4
      %v1645 = vshll.u32 %v1625, 16
      %v1647 = vrot.slane %v1645, 5
      %v1648 = vor.u32 %v1644, %v1647
      %v1650 = vshrl.u32 %v1626, 16
      %v1652 = vrot.slane %v1650, 4
      %v1653 = vshll.u32 %v1626, 16
      %v1655 = vrot.slane %v1653, 5
      %v1656 = vor.u32 %v1652, %v1655
      %v1658 = vshrl.u32 %v1627, 16
      %v1660 = vrot.slane %v1658, 4
      %v1661 = vshll.u32 %v1627, 16
      %v1663 = vrot.slane %v1661, 5
      %v1664 = vor.u32 %v1660, %v1663
      %v1666 = vshrl.u32 %v1628, 16
      %v1668 = vrot.slane %v1666, 4
      %v1669 = vshll.u32 %v1628, 16
      %v1671 = vrot.slane %v1669, 5
      %v1672 = vor.u32 %v1668, %v1671
      %v1674 = vshrl.u32 %v1629, 16
      %v1676 = vrot.slane %v1674, 4
      %v1677 = vshll.u32 %v1629, 16
      %v1679 = vrot.slane %v1677, 5
      %v1680 = vor.u32 %v1676, %v1679
      %v1682 = vshrl.u32 %v1630, 16
      %v1684 = vrot.slane %v1682, 4
      %v1685 = vshll.u32 %v1630, 16
      %v1687 = vrot.slane %v1685, 5
      %v1688 = vor.u32 %v1684, %v1687
      %v1690 = vshrl.u32 %v1631, 16
      %v1692 = vrot.slane %v1690, 4
      %v1693 = vshll.u32 %v1631, 16
      %v1695 = vrot.slane %v1693, 5
      %v1696 = vor.u32 %v1692, %v1695
      %v1698 = vshrl.u32 %v1632, 16
      %v1700 = vrot.slane %v1698, 4
      %v1701 = vshll.u32 %v1632, 16
      %v1703 = vrot.slane %v1701, 5
      %v1704 = vor.u32 %v1700, %v1703
      %v1706 = vshrl.u32 %v1633, 16
      %v1708 = vrot.slane %v1706, 4
      %v1709 = vshll.u32 %v1633, 16
      %v1711 = vrot.slane %v1709, 5
      %v1712 = vor.u32 %v1708, %v1711
      %v1714 = vshrl.u32 %v1634, 16
      %v1716 = vrot.slane %v1714, 4
      %v1717 = vshll.u32 %v1634, 16
      %v1719 = vrot.slane %v1717, 5
      %v1720 = vor.u32 %v1716, %v1719
      %v1722 = vshrl.u32 %v1635, 16
      %v1724 = vrot.slane %v1722, 4
      %v1725 = vshll.u32 %v1635, 16
      %v1727 = vrot.slane %v1725, 5
      %v1728 = vor.u32 %v1724, %v1727
      %v1730 = vshrl.u32 %v1636, 16
      %v1732 = vrot.slane %v1730, 4
      %v1733 = vshll.u32 %v1636, 16
      %v1735 = vrot.slane %v1733, 5
      %v1736 = vor.u32 %v1732, %v1735
      %v1738 = vshrl.u32 %v1637, 16
      %v1740 = vrot.slane %v1738, 4
      %v1741 = vshll.u32 %v1637, 16
      %v1743 = vrot.slane %v1741, 5
      %v1744 = vor.u32 %v1740, %v1743
      %v1746 = vshrl.u32 %v1638, 16
      %v1748 = vrot.slane %v1746, 4
      %v1749 = vshll.u32 %v1638, 16
      %v1751 = vrot.slane %v1749, 5
      %v1752 = vor.u32 %v1748, %v1751
      %v1754 = vshrl.u32 %v1639, 16
      %v1756 = vrot.slane %v1754, 4
      %v1757 = vshll.u32 %v1639, 16
      %v1759 = vrot.slane %v1757, 5
      %v1760 = vor.u32 %v1756, %v1759
      %v1762 = vshrl.u32 %v1640, 16
      %v1764 = vrot.slane %v1762, 4
      %v1765 = vshll.u32 %v1640, 16
      %v1767 = vrot.slane %v1765, 5
      %v1768 = vor.u32 %v1764, %v1767
      %1769 = vrot.lane.b32.xlu0 %v1648, 4
      %v1770 = vpop.permute.xlu0 %1769
      %1771 = vrot.lane.b32.xlu0 %v1656, 4
      %v1772 = vpop.permute.xlu0 %1771
      %1773 = vrot.lane.b32.xlu0 %v1664, 4
      %v1774 = vpop.permute.xlu0 %1773
      %1775 = vrot.lane.b32.xlu0 %v1672, 4
      %v1776 = vpop.permute.xlu0 %1775
      %1777 = vrot.lane.b32.xlu0 %v1680, 4
      %v1778 = vpop.permute.xlu0 %1777
      %1779 = vrot.lane.b32.xlu0 %v1688, 4
      %v1780 = vpop.permute.xlu0 %1779
      %1781 = vrot.lane.b32.xlu0 %v1696, 4
      %v1782 = vpop.permute.xlu0 %1781
      %1783 = vrot.lane.b32.xlu0 %v1704, 4
      %v1784 = vpop.permute.xlu0 %1783
      %1785 = vrot.lane.b32.xlu0 %v1712, 4
      %v1786 = vpop.permute.xlu0 %1785
      %1787 = vrot.lane.b32.xlu0 %v1720, 4
      %v1788 = vpop.permute.xlu0 %1787
      %1789 = vrot.lane.b32.xlu0 %v1728, 4
      %v1790 = vpop.permute.xlu0 %1789
      %1791 = vrot.lane.b32.xlu0 %v1736, 4
      %v1792 = vpop.permute.xlu0 %1791
      %1793 = vrot.lane.b32.xlu0 %v1744, 4
      %v1794 = vpop.permute.xlu0 %1793
      %1795 = vrot.lane.b32.xlu0 %v1752, 4
      %v1796 = vpop.permute.xlu0 %1795
      %1797 = vrot.lane.b32.xlu0 %v1760, 4
      %v1798 = vpop.permute.xlu0 %1797
      %1799 = vrot.lane.b32.xlu0 %v1768, 4
      %v1800 = vpop.permute.xlu0 %1799
      %v1817 = vunpack.c.l.b16 %v1481
      %v1818 = vunpack.c.l.b16 %v1482
      %v1819 = vunpack.c.l.b16 %v1483
      %v1820 = vunpack.c.l.b16 %v1484
      %v1821 = vunpack.c.l.b16 %v1485
      %v1822 = vunpack.c.l.b16 %v1486
      %v1823 = vunpack.c.l.b16 %v1487
      %v1824 = vunpack.c.l.b16 %v1488
      %v1825 = vunpack.c.l.b16 %v1489
      %v1826 = vunpack.c.l.b16 %v1490
      %v1827 = vunpack.c.l.b16 %v1491
      %v1828 = vunpack.c.l.b16 %v1492
      %v1829 = vunpack.c.l.b16 %v1493
      %v1830 = vunpack.c.l.b16 %v1494
      %v1831 = vunpack.c.l.b16 %v1495
      %v1832 = vunpack.c.l.b16 %v1496
      %v1833 = vpack.c.b16 %v1817, %v1817
      %v1834 = vpack.c.b16 %v1818, %v1818
      %v1835 = vpack.c.b16 %v1819, %v1819
      %v1836 = vpack.c.b16 %v1820, %v1820
      %v1837 = vpack.c.b16 %v1821, %v1821
      %v1838 = vpack.c.b16 %v1822, %v1822
      %v1839 = vpack.c.b16 %v1823, %v1823
      %v1840 = vpack.c.b16 %v1824, %v1824
      %v1841 = vpack.c.b16 %v1825, %v1825
      %v1842 = vpack.c.b16 %v1826, %v1826
      %v1843 = vpack.c.b16 %v1827, %v1827
      %v1844 = vpack.c.b16 %v1828, %v1828
      %v1845 = vpack.c.b16 %v1829, %v1829
      %v1846 = vpack.c.b16 %v1830, %v1830
      %v1847 = vpack.c.b16 %v1831, %v1831
      %v1848 = vpack.c.b16 %v1832, %v1832
      %v1849 = vrot.slane %v1625, 5
      %v1850 = vrot.slane %v1833, 5
      %v1851 = vsel %vm933, %v1849, %v1850
      %v1852 = vrot.slane %v1626, 5
      %v1853 = vrot.slane %v1834, 5
      %v1854 = vsel %vm933, %v1852, %v1853
      %v1855 = vrot.slane %v1627, 5
      %v1856 = vrot.slane %v1835, 5
      %v1857 = vsel %vm933, %v1855, %v1856
      %v1858 = vrot.slane %v1628, 5
      %v1859 = vrot.slane %v1836, 5
      %v1860 = vsel %vm933, %v1858, %v1859
      %v1861 = vrot.slane %v1629, 5
      %v1862 = vrot.slane %v1837, 5
      %v1863 = vsel %vm933, %v1861, %v1862
      %v1864 = vrot.slane %v1630, 5
      %v1865 = vrot.slane %v1838, 5
      %v1866 = vsel %vm933, %v1864, %v1865
      %v1867 = vrot.slane %v1631, 5
      %v1868 = vrot.slane %v1839, 5
      %v1869 = vsel %vm933, %v1867, %v1868
      %v1870 = vrot.slane %v1632, 5
      %v1871 = vrot.slane %v1840, 5
      %v1872 = vsel %vm933, %v1870, %v1871
      %v1873 = vrot.slane %v1633, 5
      %v1874 = vrot.slane %v1841, 5
      %v1875 = vsel %vm933, %v1873, %v1874
      %v1876 = vrot.slane %v1634, 5
      %v1877 = vrot.slane %v1842, 5
      %v1878 = vsel %vm933, %v1876, %v1877
      %v1879 = vrot.slane %v1635, 5
      %v1880 = vrot.slane %v1843, 5
      %v1881 = vsel %vm933, %v1879, %v1880
      %v1882 = vrot.slane %v1636, 5
      %v1883 = vrot.slane %v1844, 5
      %v1884 = vsel %vm933, %v1882, %v1883
      %v1885 = vrot.slane %v1637, 5
      %v1886 = vrot.slane %v1845, 5
      %v1887 = vsel %vm933, %v1885, %v1886
      %v1888 = vrot.slane %v1638, 5
      %v1889 = vrot.slane %v1846, 5
      %v1890 = vsel %vm933, %v1888, %v1889
      %v1891 = vrot.slane %v1639, 5
      %v1892 = vrot.slane %v1847, 5
      %v1893 = vsel %vm933, %v1891, %v1892
      %v1894 = vrot.slane %v1640, 5
      %v1895 = vrot.slane %v1848, 5
      %v1896 = vsel %vm933, %v1894, %v1895
      %1897 = vrot.lane.b32.xlu0 %v1849, 8
      %v1898 = vpop.permute.xlu0 %1897
      %1899 = vrot.lane.b32.xlu0 %v1851, 8
      %v1900 = vpop.permute.xlu0 %1899
      %1901 = vrot.lane.b32.xlu0 %v1852, 8
      %v1902 = vpop.permute.xlu0 %1901
      %1903 = vrot.lane.b32.xlu0 %v1854, 8
      %v1904 = vpop.permute.xlu0 %1903
      %1905 = vrot.lane.b32.xlu0 %v1855, 8
      %v1906 = vpop.permute.xlu0 %1905
      %1907 = vrot.lane.b32.xlu0 %v1857, 8
      %v1908 = vpop.permute.xlu0 %1907
      %1909 = vrot.lane.b32.xlu0 %v1858, 8
      %v1910 = vpop.permute.xlu0 %1909
      %1911 = vrot.lane.b32.xlu0 %v1860, 8
      %v1912 = vpop.permute.xlu0 %1911
      %1913 = vrot.lane.b32.xlu0 %v1861, 8
      %v1914 = vpop.permute.xlu0 %1913
      %1915 = vrot.lane.b32.xlu0 %v1863, 8
      %v1916 = vpop.permute.xlu0 %1915
      %1917 = vrot.lane.b32.xlu0 %v1864, 8
      %v1918 = vpop.permute.xlu0 %1917
      %1919 = vrot.lane.b32.xlu0 %v1866, 8
      %v1920 = vpop.permute.xlu0 %1919
      %1921 = vrot.lane.b32.xlu0 %v1867, 8
      %v1922 = vpop.permute.xlu0 %1921
      %1923 = vrot.lane.b32.xlu0 %v1869, 8
      %v1924 = vpop.permute.xlu0 %1923
      %1925 = vrot.lane.b32.xlu0 %v1870, 8
      %v1926 = vpop.permute.xlu0 %1925
      %1927 = vrot.lane.b32.xlu0 %v1872, 8
      %v1928 = vpop.permute.xlu0 %1927
      %1929 = vrot.lane.b32.xlu0 %v1873, 8
      %v1930 = vpop.permute.xlu0 %1929
      %1931 = vrot.lane.b32.xlu0 %v1875, 8
      %v1932 = vpop.permute.xlu0 %1931
      %1933 = vrot.lane.b32.xlu0 %v1876, 8
      %v1934 = vpop.permute.xlu0 %1933
      %1935 = vrot.lane.b32.xlu0 %v1878, 8
      %v1936 = vpop.permute.xlu0 %1935
      %1937 = vrot.lane.b32.xlu0 %v1879, 8
      %v1938 = vpop.permute.xlu0 %1937
      %1939 = vrot.lane.b32.xlu0 %v1881, 8
      %v1940 = vpop.permute.xlu0 %1939
      %1941 = vrot.lane.b32.xlu0 %v1882, 8
      %v1942 = vpop.permute.xlu0 %1941
      %1943 = vrot.lane.b32.xlu0 %v1884, 8
      %v1944 = vpop.permute.xlu0 %1943
      %1945 = vrot.lane.b32.xlu0 %v1885, 8
      %v1946 = vpop.permute.xlu0 %1945
      %1947 = vrot.lane.b32.xlu0 %v1887, 8
      %v1948 = vpop.permute.xlu0 %1947
      %1949 = vrot.lane.b32.xlu0 %v1888, 8
      %v1950 = vpop.permute.xlu0 %1949
      %1951 = vrot.lane.b32.xlu0 %v1890, 8
      %v1952 = vpop.permute.xlu0 %1951
      %1953 = vrot.lane.b32.xlu0 %v1891, 8
      %v1954 = vpop.permute.xlu0 %1953
      %1955 = vrot.lane.b32.xlu0 %v1893, 8
      %v1956 = vpop.permute.xlu0 %1955
      %1957 = vrot.lane.b32.xlu0 %v1894, 8
      %v1958 = vpop.permute.xlu0 %1957
      %1959 = vrot.lane.b32.xlu0 %v1896, 8
      %v1960 = vpop.permute.xlu0 %1959
      %v1963 = vsel %vm1046, %v1593, %v1770
      %v1965 = vsel %vm1046, %v1594, %v1770
      %v1968 = vsel %vm1046, %v1595, %v1772
      %v1970 = vsel %vm1046, %v1596, %v1772
      %v1973 = vsel %vm1046, %v1597, %v1774
      %v1975 = vsel %vm1046, %v1598, %v1774
      %v1978 = vsel %vm1046, %v1599, %v1776
      %v1980 = vsel %vm1046, %v1600, %v1776
      %v1983 = vsel %vm1046, %v1601, %v1778
      %v1985 = vsel %vm1046, %v1602, %v1778
      %v1988 = vsel %vm1046, %v1603, %v1780
      %v1990 = vsel %vm1046, %v1604, %v1780
      %v1993 = vsel %vm1046, %v1605, %v1782
      %v1995 = vsel %vm1046, %v1606, %v1782
      %v1998 = vsel %vm1046, %v1607, %v1784
      %v2000 = vsel %vm1046, %v1608, %v1784
      %v2003 = vsel %vm1046, %v1609, %v1786
      %v2005 = vsel %vm1046, %v1610, %v1786
      %v2008 = vsel %vm1046, %v1611, %v1788
      %v2010 = vsel %vm1046, %v1612, %v1788
      %v2013 = vsel %vm1046, %v1613, %v1790
      %v2015 = vsel %vm1046, %v1614, %v1790
      %v2018 = vsel %vm1046, %v1615, %v1792
      %v2020 = vsel %vm1046, %v1616, %v1792
      %v2023 = vsel %vm1046, %v1617, %v1794
      %v2025 = vsel %vm1046, %v1618, %v1794
      %v2028 = vsel %vm1046, %v1619, %v1796
      %v2030 = vsel %vm1046, %v1620, %v1796
      %v2033 = vsel %vm1046, %v1621, %v1798
      %v2035 = vsel %vm1046, %v1622, %v1798
      %v2038 = vsel %vm1046, %v1623, %v1800
      %v2040 = vsel %vm1046, %v1624, %v1800
      %v2042 = vsel %vm1127, %v1963, %v1898
      %v2044 = vsel %vm1127, %v1965, %v1900
      %v2046 = vsel %vm1127, %v1968, %v1902
      %v2048 = vsel %vm1127, %v1970, %v1904
      %v2050 = vsel %vm1127, %v1973, %v1906
      %v2052 = vsel %vm1127, %v1975, %v1908
      %v2054 = vsel %vm1127, %v1978, %v1910
      %v2056 = vsel %vm1127, %v1980, %v1912
      %v2058 = vsel %vm1127, %v1983, %v1914
      %v2060 = vsel %vm1127, %v1985, %v1916
      %v2062 = vsel %vm1127, %v1988, %v1918
      %v2064 = vsel %vm1127, %v1990, %v1920
      %v2066 = vsel %vm1127, %v1993, %v1922
      %v2068 = vsel %vm1127, %v1995, %v1924
      %v2070 = vsel %vm1127, %v1998, %v1926
      %v2072 = vsel %vm1127, %v2000, %v1928
      %v2074 = vsel %vm1127, %v2003, %v1930
      %v2076 = vsel %vm1127, %v2005, %v1932
      %v2078 = vsel %vm1127, %v2008, %v1934
      %v2080 = vsel %vm1127, %v2010, %v1936
      %v2082 = vsel %vm1127, %v2013, %v1938
      %v2084 = vsel %vm1127, %v2015, %v1940
      %v2086 = vsel %vm1127, %v2018, %v1942
      %v2088 = vsel %vm1127, %v2020, %v1944
      %v2090 = vsel %vm1127, %v2023, %v1946
      %v2092 = vsel %vm1127, %v2025, %v1948
      %v2094 = vsel %vm1127, %v2028, %v1950
      %v2096 = vsel %vm1127, %v2030, %v1952
      %v2098 = vsel %vm1127, %v2033, %v1954
      %v2100 = vsel %vm1127, %v2035, %v1956
      %v2102 = vsel %vm1127, %v2038, %v1958
      %v2104 = vsel %vm1127, %v2040, %v1960
      %v2105 = vshrl.u32 %v2042, 16
      %v2107 = vrot.slane %v2105, 3
      %v2108 = vshll.u32 %v2042, 16
      %v2110 = vrot.slane %v2108, 4
      %v2111 = vor.u32 %v2107, %v2110
      %v2112 = vshrl.u32 %v2044, 16
      %v2114 = vrot.slane %v2112, 3
      %v2115 = vshll.u32 %v2044, 16
      %v2117 = vrot.slane %v2115, 4
      %v2118 = vor.u32 %v2114, %v2117
      %v2119 = vsel %vm1192, %v2111, %v2118
      %v2120 = vshrl.u32 %v2046, 16
      %v2122 = vrot.slane %v2120, 3
      %v2123 = vshll.u32 %v2046, 16
      %v2125 = vrot.slane %v2123, 4
      %v2126 = vor.u32 %v2122, %v2125
      %v2127 = vshrl.u32 %v2048, 16
      %v2129 = vrot.slane %v2127, 3
      %v2130 = vshll.u32 %v2048, 16
      %v2132 = vrot.slane %v2130, 4
      %v2133 = vor.u32 %v2129, %v2132
      %v2134 = vsel %vm1192, %v2126, %v2133
      %v2135 = vshrl.u32 %v2050, 16
      %v2137 = vrot.slane %v2135, 3
      %v2138 = vshll.u32 %v2050, 16
      %v2140 = vrot.slane %v2138, 4
      %v2141 = vor.u32 %v2137, %v2140
      %v2142 = vshrl.u32 %v2052, 16
      %v2144 = vrot.slane %v2142, 3
      %v2145 = vshll.u32 %v2052, 16
      %v2147 = vrot.slane %v2145, 4
      %v2148 = vor.u32 %v2144, %v2147
      %v2149 = vsel %vm1192, %v2141, %v2148
      %v2150 = vshrl.u32 %v2054, 16
      %v2152 = vrot.slane %v2150, 3
      %v2153 = vshll.u32 %v2054, 16
      %v2155 = vrot.slane %v2153, 4
      %v2156 = vor.u32 %v2152, %v2155
      %v2157 = vshrl.u32 %v2056, 16
      %v2159 = vrot.slane %v2157, 3
      %v2160 = vshll.u32 %v2056, 16
      %v2162 = vrot.slane %v2160, 4
      %v2163 = vor.u32 %v2159, %v2162
      %v2164 = vsel %vm1192, %v2156, %v2163
      %v2165 = vshrl.u32 %v2058, 16
      %v2167 = vrot.slane %v2165, 3
      %v2168 = vshll.u32 %v2058, 16
      %v2170 = vrot.slane %v2168, 4
      %v2171 = vor.u32 %v2167, %v2170
      %v2172 = vshrl.u32 %v2060, 16
      %v2174 = vrot.slane %v2172, 3
      %v2175 = vshll.u32 %v2060, 16
      %v2177 = vrot.slane %v2175, 4
      %v2178 = vor.u32 %v2174, %v2177
      %v2179 = vsel %vm1192, %v2171, %v2178
      %v2180 = vshrl.u32 %v2062, 16
      %v2182 = vrot.slane %v2180, 3
      %v2183 = vshll.u32 %v2062, 16
      %v2185 = vrot.slane %v2183, 4
      %v2186 = vor.u32 %v2182, %v2185
      %v2187 = vshrl.u32 %v2064, 16
      %v2189 = vrot.slane %v2187, 3
      %v2190 = vshll.u32 %v2064, 16
      %v2192 = vrot.slane %v2190, 4
      %v2193 = vor.u32 %v2189, %v2192
      %v2194 = vsel %vm1192, %v2186, %v2193
      %v2195 = vshrl.u32 %v2066, 16
      %v2197 = vrot.slane %v2195, 3
      %v2198 = vshll.u32 %v2066, 16
      %v2200 = vrot.slane %v2198, 4
      %v2201 = vor.u32 %v2197, %v2200
      %v2202 = vshrl.u32 %v2068, 16
      %v2204 = vrot.slane %v2202, 3
      %v2205 = vshll.u32 %v2068, 16
      %v2207 = vrot.slane %v2205, 4
      %v2208 = vor.u32 %v2204, %v2207
      %v2209 = vsel %vm1192, %v2201, %v2208
      %v2210 = vshrl.u32 %v2070, 16
      %v2212 = vrot.slane %v2210, 3
      %v2213 = vshll.u32 %v2070, 16
      %v2215 = vrot.slane %v2213, 4
      %v2216 = vor.u32 %v2212, %v2215
      %v2217 = vshrl.u32 %v2072, 16
      %v2219 = vrot.slane %v2217, 3
      %v2220 = vshll.u32 %v2072, 16
      %v2222 = vrot.slane %v2220, 4
      %v2223 = vor.u32 %v2219, %v2222
      %v2224 = vsel %vm1192, %v2216, %v2223
      %v2225 = vshrl.u32 %v2074, 16
      %v2227 = vrot.slane %v2225, 3
      %v2228 = vshll.u32 %v2074, 16
      %v2230 = vrot.slane %v2228, 4
      %v2231 = vor.u32 %v2227, %v2230
      %v2232 = vshrl.u32 %v2076, 16
      %v2234 = vrot.slane %v2232, 3
      %v2235 = vshll.u32 %v2076, 16
      %v2237 = vrot.slane %v2235, 4
      %v2238 = vor.u32 %v2234, %v2237
      %v2239 = vsel %vm1192, %v2231, %v2238
      %v2240 = vshrl.u32 %v2078, 16
      %v2242 = vrot.slane %v2240, 3
      %v2243 = vshll.u32 %v2078, 16
      %v2245 = vrot.slane %v2243, 4
      %v2246 = vor.u32 %v2242, %v2245
      %v2247 = vshrl.u32 %v2080, 16
      %v2249 = vrot.slane %v2247, 3
      %v2250 = vshll.u32 %v2080, 16
      %v2252 = vrot.slane %v2250, 4
      %v2253 = vor.u32 %v2249, %v2252
      %v2254 = vsel %vm1192, %v2246, %v2253
      %v2255 = vshrl.u32 %v2082, 16
      %v2257 = vrot.slane %v2255, 3
      %v2258 = vshll.u32 %v2082, 16
      %v2260 = vrot.slane %v2258, 4
      %v2261 = vor.u32 %v2257, %v2260
      %v2262 = vshrl.u32 %v2084, 16
      %v2264 = vrot.slane %v2262, 3
      %v2265 = vshll.u32 %v2084, 16
      %v2267 = vrot.slane %v2265, 4
      %v2268 = vor.u32 %v2264, %v2267
      %v2269 = vsel %vm1192, %v2261, %v2268
      %v2270 = vshrl.u32 %v2086, 16
      %v2272 = vrot.slane %v2270, 3
      %v2273 = vshll.u32 %v2086, 16
      %v2275 = vrot.slane %v2273, 4
      %v2276 = vor.u32 %v2272, %v2275
      %v2277 = vshrl.u32 %v2088, 16
      %v2279 = vrot.slane %v2277, 3
      %v2280 = vshll.u32 %v2088, 16
      %v2282 = vrot.slane %v2280, 4
      %v2283 = vor.u32 %v2279, %v2282
      %v2284 = vsel %vm1192, %v2276, %v2283
      %v2285 = vshrl.u32 %v2090, 16
      %v2287 = vrot.slane %v2285, 3
      %v2288 = vshll.u32 %v2090, 16
      %v2290 = vrot.slane %v2288, 4
      %v2291 = vor.u32 %v2287, %v2290
      %v2292 = vshrl.u32 %v2092, 16
      %v2294 = vrot.slane %v2292, 3
      %v2295 = vshll.u32 %v2092, 16
      %v2297 = vrot.slane %v2295, 4
      %v2298 = vor.u32 %v2294, %v2297
      %v2299 = vsel %vm1192, %v2291, %v2298
      %v2300 = vshrl.u32 %v2094, 16
      %v2302 = vrot.slane %v2300, 3
      %v2303 = vshll.u32 %v2094, 16
      %v2305 = vrot.slane %v2303, 4
      %v2306 = vor.u32 %v2302, %v2305
      %v2307 = vshrl.u32 %v2096, 16
      %v2309 = vrot.slane %v2307, 3
      %v2310 = vshll.u32 %v2096, 16
      %v2312 = vrot.slane %v2310, 4
      %v2313 = vor.u32 %v2309, %v2312
      %v2314 = vsel %vm1192, %v2306, %v2313
      %v2315 = vshrl.u32 %v2098, 16
      %v2317 = vrot.slane %v2315, 3
      %v2318 = vshll.u32 %v2098, 16
      %v2320 = vrot.slane %v2318, 4
      %v2321 = vor.u32 %v2317, %v2320
      %v2322 = vshrl.u32 %v2100, 16
      %v2324 = vrot.slane %v2322, 3
      %v2325 = vshll.u32 %v2100, 16
      %v2327 = vrot.slane %v2325, 4
      %v2328 = vor.u32 %v2324, %v2327
      %v2329 = vsel %vm1192, %v2321, %v2328
      %v2330 = vshrl.u32 %v2102, 16
      %v2332 = vrot.slane %v2330, 3
      %v2333 = vshll.u32 %v2102, 16
      %v2335 = vrot.slane %v2333, 4
      %v2336 = vor.u32 %v2332, %v2335
      %v2337 = vshrl.u32 %v2104, 16
      %v2339 = vrot.slane %v2337, 3
      %v2340 = vshll.u32 %v2104, 16
      %v2342 = vrot.slane %v2340, 4
      %v2343 = vor.u32 %v2339, %v2342
      %v2344 = vsel %vm1192, %v2336, %v2343
      %v2347 = vunpack.c.l.b16 %v513
      %v2348 = vunpack.c.l.b16 %v514
      %v2349 = vpack.c.b16 %v2348, %v2347
      %v2350 = vrot.slane %v2349, 2
      %vm2351 = vcmask 97280
      %v2353 = vsel %vm2351, %v2119, 0
      %v2356 = vsel %vm2351, %v2134, 0
      %v2359 = vsel %vm2351, %v2149, 0
      %v2362 = vsel %vm2351, %v2164, 0
      %v2365 = vsel %vm2351, %v2179, 0
      %v2368 = vsel %vm2351, %v2194, 0
      %v2371 = vsel %vm2351, %v2209, 0
      %v2374 = vsel %vm2351, %v2224, 0
      %v2377 = vsel %vm2351, %v2239, 0
      %v2380 = vsel %vm2351, %v2254, 0
      %v2383 = vsel %vm2351, %v2269, 0
      %v2386 = vsel %vm2351, %v2284, 0
      %v2389 = vsel %vm2351, %v2299, 0
      %v2392 = vsel %vm2351, %v2314, 0
      %v2395 = vsel %vm2351, %v2329, 0
      %v2398 = vsel %vm2351, %v2344, 0
      %vm2400 = vcmask 1045504
      %v2402 = vsel %vm2400, %v2350, 0
      %2404 = vmatpush.bf16.msra.mxu0 0
      %2405 = vmatpush.bf16.msra.mxu0 0
      %2406 = vmatpush.bf16.msra.mxu0 0
      %2407 = vmatpush.bf16.msra.mxu0 0
      %2408 = vmatpush.bf16.msra.mxu0 0
      %2409 = vmatpush.bf16.msra.mxu0 0
      %2410 = vmatpush.bf16.msra.mxu0 0
      %2411 = vmatpush.bf16.msra.mxu0 %v2402
      %2412 = vmatmul.bf16.gmra.mxu0 %v2353
      %v2413 = vpop.f32.mrf.mxu0
      %v2414 = vadd.f32 0.0, %v2413
      %v2415 = vpop.f32.mrf.mxu0
      %v2416 = vadd.f32 0.0, %v2415
      %2417 = vmatmul.bf16.gmra.mxu0 %v2356
      %v2418 = vpop.f32.mrf.mxu0
      %v2419 = vadd.f32 0.0, %v2418
      %v2420 = vpop.f32.mrf.mxu0
      %v2421 = vadd.f32 0.0, %v2420
      %2422 = vmatmul.bf16.gmra.mxu0 %v2359
      %v2423 = vpop.f32.mrf.mxu0
      %v2424 = vadd.f32 0.0, %v2423
      %v2425 = vpop.f32.mrf.mxu0
      %v2426 = vadd.f32 0.0, %v2425
      %2427 = vmatmul.bf16.gmra.mxu0 %v2362
      %v2428 = vpop.f32.mrf.mxu0
      %v2429 = vadd.f32 0.0, %v2428
      %v2430 = vpop.f32.mrf.mxu0
      %v2431 = vadd.f32 0.0, %v2430
      %2432 = vmatmul.bf16.gmra.mxu0 %v2365
      %v2433 = vpop.f32.mrf.mxu0
      %v2434 = vadd.f32 0.0, %v2433
      %v2435 = vpop.f32.mrf.mxu0
      %v2436 = vadd.f32 0.0, %v2435
      %2437 = vmatmul.bf16.gmra.mxu0 %v2368
      %v2438 = vpop.f32.mrf.mxu0
      %v2439 = vadd.f32 0.0, %v2438
      %v2440 = vpop.f32.mrf.mxu0
      %v2441 = vadd.f32 0.0, %v2440
      %2442 = vmatmul.bf16.gmra.mxu0 %v2371
      %v2443 = vpop.f32.mrf.mxu0
      %v2444 = vadd.f32 0.0, %v2443
      %v2445 = vpop.f32.mrf.mxu0
      %v2446 = vadd.f32 0.0, %v2445
      %2447 = vmatmul.bf16.gmra.mxu0 %v2374
      %v2448 = vpop.f32.mrf.mxu0
      %v2449 = vadd.f32 0.0, %v2448
      %v2450 = vpop.f32.mrf.mxu0
      %v2451 = vadd.f32 0.0, %v2450
      %2452 = vmatmul.bf16.gmra.mxu0 %v2377
      %v2453 = vpop.f32.mrf.mxu0
      %v2454 = vadd.f32 0.0, %v2453
      %v2455 = vpop.f32.mrf.mxu0
      %v2456 = vadd.f32 0.0, %v2455
      %2457 = vmatmul.bf16.gmra.mxu0 %v2380
      %v2458 = vpop.f32.mrf.mxu0
      %v2459 = vadd.f32 0.0, %v2458
      %v2460 = vpop.f32.mrf.mxu0
      %v2461 = vadd.f32 0.0, %v2460
      %2462 = vmatmul.bf16.gmra.mxu0 %v2383
      %v2463 = vpop.f32.mrf.mxu0
      %v2464 = vadd.f32 0.0, %v2463
      %v2465 = vpop.f32.mrf.mxu0
      %v2466 = vadd.f32 0.0, %v2465
      %2467 = vmatmul.bf16.gmra.mxu0 %v2386
      %v2468 = vpop.f32.mrf.mxu0
      %v2469 = vadd.f32 0.0, %v2468
      %v2470 = vpop.f32.mrf.mxu0
      %v2471 = vadd.f32 0.0, %v2470
      %2472 = vmatmul.bf16.gmra.mxu0 %v2389
      %v2473 = vpop.f32.mrf.mxu0
      %v2474 = vadd.f32 0.0, %v2473
      %v2475 = vpop.f32.mrf.mxu0
      %v2476 = vadd.f32 0.0, %v2475
      %2477 = vmatmul.bf16.gmra.mxu0 %v2392
      %v2478 = vpop.f32.mrf.mxu0
      %v2479 = vadd.f32 0.0, %v2478
      %v2480 = vpop.f32.mrf.mxu0
      %v2481 = vadd.f32 0.0, %v2480
      %2482 = vmatmul.bf16.gmra.mxu0 %v2395
      %v2483 = vpop.f32.mrf.mxu0
      %v2484 = vadd.f32 0.0, %v2483
      %v2485 = vpop.f32.mrf.mxu0
      %v2486 = vadd.f32 0.0, %v2485
      %2487 = vmatmul.bf16.gmra.mxu0 %v2398
      %v2488 = vpop.f32.mrf.mxu0
      %v2489 = vadd.f32 0.0, %v2488
      %v2490 = vpop.f32.mrf.mxu0
      %v2491 = vadd.f32 0.0, %v2490
      %2492 = vdwg.mxu0
      %v2494 = vunpack.c.l.b16 %v512
      %v2495 = vpack.c.b16 %v2347, %v2494
      %v2497 = vsel %vm2351, %v1207, 0
      %v2500 = vsel %vm2351, %v1222, 0
      %v2503 = vsel %vm2351, %v1237, 0
      %v2506 = vsel %vm2351, %v1252, 0
      %v2509 = vsel %vm2351, %v1267, 0
      %v2512 = vsel %vm2351, %v1282, 0
      %v2515 = vsel %vm2351, %v1297, 0
      %v2518 = vsel %vm2351, %v1312, 0
      %v2521 = vsel %vm2351, %v1327, 0
      %v2524 = vsel %vm2351, %v1342, 0
      %v2527 = vsel %vm2351, %v1357, 0
      %v2530 = vsel %vm2351, %v1372, 0
      %v2533 = vsel %vm2351, %v1387, 0
      %v2536 = vsel %vm2351, %v1402, 0
      %v2539 = vsel %vm2351, %v1417, 0
      %v2542 = vsel %vm2351, %v1432, 0
      %v2545 = vsel %vm2400, %v2495, 0
      %2547 = vmatpush.bf16.msra.mxu0 0
      %2548 = vmatpush.bf16.msra.mxu0 0
      %2549 = vmatpush.bf16.msra.mxu0 0
      %2550 = vmatpush.bf16.msra.mxu0 0
      %2551 = vmatpush.bf16.msra.mxu0 0
      %2552 = vmatpush.bf16.msra.mxu0 0
      %2553 = vmatpush.bf16.msra.mxu0 0
      %2554 = vmatpush.bf16.msra.mxu0 %v2545
      %2555 = vmatmul.bf16.gmra.mxu0 %v2497
      %v2556 = vpop.f32.mrf.mxu0
      %v2557 = vadd.f32 %v2414, %v2556
      %v2558 = vpop.f32.mrf.mxu0
      %v2559 = vadd.f32 %v2416, %v2558
      %2560 = vmatmul.bf16.gmra.mxu0 %v2500
      %v2561 = vpop.f32.mrf.mxu0
      %v2562 = vadd.f32 %v2419, %v2561
      %v2563 = vpop.f32.mrf.mxu0
      %v2564 = vadd.f32 %v2421, %v2563
      %2565 = vmatmul.bf16.gmra.mxu0 %v2503
      %v2566 = vpop.f32.mrf.mxu0
      %v2567 = vadd.f32 %v2424, %v2566
      %v2568 = vpop.f32.mrf.mxu0
      %v2569 = vadd.f32 %v2426, %v2568
      %2570 = vmatmul.bf16.gmra.mxu0 %v2506
      %v2571 = vpop.f32.mrf.mxu0
      %v2572 = vadd.f32 %v2429, %v2571
      %v2573 = vpop.f32.mrf.mxu0
      %v2574 = vadd.f32 %v2431, %v2573
      %2575 = vmatmul.bf16.gmra.mxu0 %v2509
      %v2576 = vpop.f32.mrf.mxu0
      %v2577 = vadd.f32 %v2434, %v2576
      %v2578 = vpop.f32.mrf.mxu0
      %v2579 = vadd.f32 %v2436, %v2578
      %2580 = vmatmul.bf16.gmra.mxu0 %v2512
      %v2581 = vpop.f32.mrf.mxu0
      %v2582 = vadd.f32 %v2439, %v2581
      %v2583 = vpop.f32.mrf.mxu0
      %v2584 = vadd.f32 %v2441, %v2583
      %2585 = vmatmul.bf16.gmra.mxu0 %v2515
      %v2586 = vpop.f32.mrf.mxu0
      %v2587 = vadd.f32 %v2444, %v2586
      %v2588 = vpop.f32.mrf.mxu0
      %v2589 = vadd.f32 %v2446, %v2588
      %2590 = vmatmul.bf16.gmra.mxu0 %v2518
      %v2591 = vpop.f32.mrf.mxu0
      %v2592 = vadd.f32 %v2449, %v2591
      %v2593 = vpop.f32.mrf.mxu0
      %v2594 = vadd.f32 %v2451, %v2593
      %2595 = vmatmul.bf16.gmra.mxu0 %v2521
      %v2596 = vpop.f32.mrf.mxu0
      %v2597 = vadd.f32 %v2454, %v2596
      %v2598 = vpop.f32.mrf.mxu0
      %v2599 = vadd.f32 %v2456, %v2598
      %2600 = vmatmul.bf16.gmra.mxu0 %v2524
      %v2601 = vpop.f32.mrf.mxu0
      %v2602 = vadd.f32 %v2459, %v2601
      %v2603 = vpop.f32.mrf.mxu0
      %v2604 = vadd.f32 %v2461, %v2603
      %2605 = vmatmul.bf16.gmra.mxu0 %v2527
      %v2606 = vpop.f32.mrf.mxu0
      %v2607 = vadd.f32 %v2464, %v2606
      %v2608 = vpop.f32.mrf.mxu0
      %v2609 = vadd.f32 %v2466, %v2608
      %2610 = vmatmul.bf16.gmra.mxu0 %v2530
      %v2611 = vpop.f32.mrf.mxu0
      %v2612 = vadd.f32 %v2469, %v2611
      %v2613 = vpop.f32.mrf.mxu0
      %v2614 = vadd.f32 %v2471, %v2613
      %2615 = vmatmul.bf16.gmra.mxu0 %v2533
      %v2616 = vpop.f32.mrf.mxu0
      %v2617 = vadd.f32 %v2474, %v2616
      %v2618 = vpop.f32.mrf.mxu0
      %v2619 = vadd.f32 %v2476, %v2618
      %2620 = vmatmul.bf16.gmra.mxu0 %v2536
      %v2621 = vpop.f32.mrf.mxu0
      %v2622 = vadd.f32 %v2479, %v2621
      %v2623 = vpop.f32.mrf.mxu0
      %v2624 = vadd.f32 %v2481, %v2623
      %2625 = vmatmul.bf16.gmra.mxu0 %v2539
      %v2626 = vpop.f32.mrf.mxu0
      %v2627 = vadd.f32 %v2484, %v2626
      %v2628 = vpop.f32.mrf.mxu0
      %v2629 = vadd.f32 %v2486, %v2628
      %2630 = vmatmul.bf16.gmra.mxu0 %v2542
      %v2631 = vpop.f32.mrf.mxu0
      %v2632 = vadd.f32 %v2489, %v2631
      %v2633 = vpop.f32.mrf.mxu0
      %v2634 = vadd.f32 %v2491, %v2633
      %2635 = vdwg.mxu0
      %s2636 = scalar_lea.vmem [#allocation2], 48
      %v2637 = vld [vmem:[%s2636 + $0x4] sm:$0x8]
      %v2638 = vld [vmem:[%s2636 + $0x8] sm:$0xf]
      %v2639 = vld [vmem:[%s2636 + $0xc] sm:$0xf]
      %v2640 = vld [vmem:[%s2636 + $0x1c] sm:$0x8]
      %v2641 = vld [vmem:[%s2636 + $0x20] sm:$0xf]
      %v2642 = vld [vmem:[%s2636 + $0x24] sm:$0xf]
      %v2643 = vld [vmem:[%s2636 + $0x34] sm:$0x8]
      %v2644 = vld [vmem:[%s2636 + $0x38] sm:$0xf]
      %v2645 = vld [vmem:[%s2636 + $0x3c] sm:$0xf]
      %v2646 = vld [vmem:[%s2636 + $0x4c] sm:$0x8]
      %v2647 = vld [vmem:[%s2636 + $0x50] sm:$0xf]
      %v2648 = vld [vmem:[%s2636 + $0x54] sm:$0xf]
      %v2649 = vld [vmem:[%s2636 + $0x64] sm:$0x8]
      %v2650 = vld [vmem:[%s2636 + $0x68] sm:$0xf]
      %v2651 = vld [vmem:[%s2636 + $0x6c] sm:$0xf]
      %v2652 = vld [vmem:[%s2636 + $0x7c] sm:$0x8]
      %v2653 = vld [vmem:[%s2636 + $0x80] sm:$0xf]
      %v2654 = vld [vmem:[%s2636 + $0x84] sm:$0xf]
      %v2655 = vld [vmem:[%s2636 + $0x94] sm:$0x8]
      %v2656 = vld [vmem:[%s2636 + $0x98] sm:$0xf]
      %v2657 = vld [vmem:[%s2636 + $0x9c] sm:$0xf]
      %v2658 = vld [vmem:[%s2636 + $0xac] sm:$0x8]
      %v2659 = vld [vmem:[%s2636 + $0xb0] sm:$0xf]
      %v2660 = vld [vmem:[%s2636 + $0xb4] sm:$0xf]
      %v2661 = vld [vmem:[%s2636 + $0xc4] sm:$0x8]
      %v2662 = vld [vmem:[%s2636 + $0xc8] sm:$0xf]
      %v2663 = vld [vmem:[%s2636 + $0xcc] sm:$0xf]
      %v2664 = vld [vmem:[%s2636 + $0xdc] sm:$0x8]
      %v2665 = vld [vmem:[%s2636 + $0xe0] sm:$0xf]
      %v2666 = vld [vmem:[%s2636 + $0xe4] sm:$0xf]
      %v2667 = vld [vmem:[%s2636 + $0xf4] sm:$0x8]
      %v2668 = vld [vmem:[%s2636 + $0xf8] sm:$0xf]
      %v2669 = vld [vmem:[%s2636 + $0xfc] sm:$0xf]
      %v2670 = vld [vmem:[%s2636 + $0x10c] sm:$0x8]
      %v2671 = vld [vmem:[%s2636 + $0x110] sm:$0xf]
      %v2672 = vld [vmem:[%s2636 + $0x114] sm:$0xf]
      %v2673 = vld [vmem:[%s2636 + $0x124] sm:$0x8]
      %v2674 = vld [vmem:[%s2636 + $0x128] sm:$0xf]
      %v2675 = vld [vmem:[%s2636 + $0x12c] sm:$0xf]
      %v2676 = vld [vmem:[%s2636 + $0x13c] sm:$0x8]
      %v2677 = vld [vmem:[%s2636 + $0x140] sm:$0xf]
      %v2678 = vld [vmem:[%s2636 + $0x144] sm:$0xf]
      %v2679 = vld [vmem:[%s2636 + $0x154] sm:$0x8]
      %v2680 = vld [vmem:[%s2636 + $0x158] sm:$0xf]
      %v2681 = vld [vmem:[%s2636 + $0x15c] sm:$0xf]
      %v2682 = vld [vmem:[%s2636 + $0x16c] sm:$0x8]
      %v2683 = vld [vmem:[%s2636 + $0x170] sm:$0xf]
      %v2684 = vld [vmem:[%s2636 + $0x174] sm:$0xf]
      %v2685 = vld [vmem:[%s2636 + $0x10] sm:$0x1]
      %v2686 = vld [vmem:[%s2636 + $0x28] sm:$0x1]
      %v2687 = vld [vmem:[%s2636 + $0x40] sm:$0x1]
      %v2688 = vld [vmem:[%s2636 + $0x58] sm:$0x1]
      %v2689 = vld [vmem:[%s2636 + $0x70] sm:$0x1]
      %v2690 = vld [vmem:[%s2636 + $0x88] sm:$0x1]
      %v2691 = vld [vmem:[%s2636 + $0xa0] sm:$0x1]
      %v2692 = vld [vmem:[%s2636 + $0xb8] sm:$0x1]
      %v2693 = vld [vmem:[%s2636 + $0xd0] sm:$0x1]
      %v2694 = vld [vmem:[%s2636 + $0xe8] sm:$0x1]
      %v2695 = vld [vmem:[%s2636 + $0x100] sm:$0x1]
      %v2696 = vld [vmem:[%s2636 + $0x118] sm:$0x1]
      %v2697 = vld [vmem:[%s2636 + $0x130] sm:$0x1]
      %v2698 = vld [vmem:[%s2636 + $0x148] sm:$0x1]
      %v2699 = vld [vmem:[%s2636 + $0x160] sm:$0x1]
      %v2700 = vld [vmem:[%s2636 + $0x178] sm:$0x1]
      %v2749 = vunpack.c.l.b16 %v2637
      %v2750 = vunpack.c.l.b16 %v2638
      %v2751 = vunpack.c.l.b16 %v2639
      %v2752 = vunpack.c.l.b16 %v2640
      %v2753 = vunpack.c.l.b16 %v2641
      %v2754 = vunpack.c.l.b16 %v2642
      %v2755 = vunpack.c.l.b16 %v2643
      %v2756 = vunpack.c.l.b16 %v2644
      %v2757 = vunpack.c.l.b16 %v2645
      %v2758 = vunpack.c.l.b16 %v2646
      %v2759 = vunpack.c.l.b16 %v2647
      %v2760 = vunpack.c.l.b16 %v2648
      %v2761 = vunpack.c.l.b16 %v2649
      %v2762 = vunpack.c.l.b16 %v2650
      %v2763 = vunpack.c.l.b16 %v2651
      %v2764 = vunpack.c.l.b16 %v2652
      %v2765 = vunpack.c.l.b16 %v2653
      %v2766 = vunpack.c.l.b16 %v2654
      %v2767 = vunpack.c.l.b16 %v2655
      %v2768 = vunpack.c.l.b16 %v2656
      %v2769 = vunpack.c.l.b16 %v2657
      %v2770 = vunpack.c.l.b16 %v2658
      %v2771 = vunpack.c.l.b16 %v2659
      %v2772 = vunpack.c.l.b16 %v2660
      %v2773 = vunpack.c.l.b16 %v2661
      %v2774 = vunpack.c.l.b16 %v2662
      %v2775 = vunpack.c.l.b16 %v2663
      %v2776 = vunpack.c.l.b16 %v2664
      %v2777 = vunpack.c.l.b16 %v2665
      %v2778 = vunpack.c.l.b16 %v2666
      %v2779 = vunpack.c.l.b16 %v2667
      %v2780 = vunpack.c.l.b16 %v2668
      %v2781 = vunpack.c.l.b16 %v2669
      %v2782 = vunpack.c.l.b16 %v2670
      %v2783 = vunpack.c.l.b16 %v2671
      %v2784 = vunpack.c.l.b16 %v2672
      %v2785 = vunpack.c.l.b16 %v2673
      %v2786 = vunpack.c.l.b16 %v2674
      %v2787 = vunpack.c.l.b16 %v2675
      %v2788 = vunpack.c.l.b16 %v2676
      %v2789 = vunpack.c.l.b16 %v2677
      %v2790 = vunpack.c.l.b16 %v2678
      %v2791 = vunpack.c.l.b16 %v2679
      %v2792 = vunpack.c.l.b16 %v2680
      %v2793 = vunpack.c.l.b16 %v2681
      %v2794 = vunpack.c.l.b16 %v2682
      %v2795 = vunpack.c.l.b16 %v2683
      %v2796 = vunpack.c.l.b16 %v2684
      %v2797 = vpack.c.b16 %v2750, %v2749
      %v2798 = vpack.c.b16 %v2751, %v2751
      %v2799 = vpack.c.b16 %v2753, %v2752
      %v2800 = vpack.c.b16 %v2754, %v2754
      %v2801 = vpack.c.b16 %v2756, %v2755
      %v2802 = vpack.c.b16 %v2757, %v2757
      %v2803 = vpack.c.b16 %v2759, %v2758
      %v2804 = vpack.c.b16 %v2760, %v2760
      %v2805 = vpack.c.b16 %v2762, %v2761
      %v2806 = vpack.c.b16 %v2763, %v2763
      %v2807 = vpack.c.b16 %v2765, %v2764
      %v2808 = vpack.c.b16 %v2766, %v2766
      %v2809 = vpack.c.b16 %v2768, %v2767
      %v2810 = vpack.c.b16 %v2769, %v2769
      %v2811 = vpack.c.b16 %v2771, %v2770
      %v2812 = vpack.c.b16 %v2772, %v2772
      %v2813 = vpack.c.b16 %v2774, %v2773
      %v2814 = vpack.c.b16 %v2775, %v2775
      %v2815 = vpack.c.b16 %v2777, %v2776
      %v2816 = vpack.c.b16 %v2778, %v2778
      %v2817 = vpack.c.b16 %v2780, %v2779
      %v2818 = vpack.c.b16 %v2781, %v2781
      %v2819 = vpack.c.b16 %v2783, %v2782
      %v2820 = vpack.c.b16 %v2784, %v2784
      %v2821 = vpack.c.b16 %v2786, %v2785
      %v2822 = vpack.c.b16 %v2787, %v2787
      %v2823 = vpack.c.b16 %v2789, %v2788
      %v2824 = vpack.c.b16 %v2790, %v2790
      %v2825 = vpack.c.b16 %v2792, %v2791
      %v2826 = vpack.c.b16 %v2793, %v2793
      %v2827 = vpack.c.b16 %v2795, %v2794
      %v2828 = vpack.c.b16 %v2796, %v2796
      %v2829 = vpack.c.b16 %v2751, %v2750
      %v2830 = vpack.c.b16 %v2754, %v2753
      %v2831 = vpack.c.b16 %v2757, %v2756
      %v2832 = vpack.c.b16 %v2760, %v2759
      %v2833 = vpack.c.b16 %v2763, %v2762
      %v2834 = vpack.c.b16 %v2766, %v2765
      %v2835 = vpack.c.b16 %v2769, %v2768
      %v2836 = vpack.c.b16 %v2772, %v2771
      %v2837 = vpack.c.b16 %v2775, %v2774
      %v2838 = vpack.c.b16 %v2778, %v2777
      %v2839 = vpack.c.b16 %v2781, %v2780
      %v2840 = vpack.c.b16 %v2784, %v2783
      %v2841 = vpack.c.b16 %v2787, %v2786
      %v2842 = vpack.c.b16 %v2790, %v2789
      %v2843 = vpack.c.b16 %v2793, %v2792
      %v2844 = vpack.c.b16 %v2796, %v2795
      %v2846 = vshrl.u32 %v2829, 16
      %v2848 = vrot.slane %v2846, 4
      %v2849 = vshll.u32 %v2829, 16
      %v2851 = vrot.slane %v2849, 5
      %v2852 = vor.u32 %v2848, %v2851
      %v2854 = vshrl.u32 %v2830, 16
      %v2856 = vrot.slane %v2854, 4
      %v2857 = vshll.u32 %v2830, 16
      %v2859 = vrot.slane %v2857, 5
      %v2860 = vor.u32 %v2856, %v2859
      %v2862 = vshrl.u32 %v2831, 16
      %v2864 = vrot.slane %v2862, 4
      %v2865 = vshll.u32 %v2831, 16
      %v2867 = vrot.slane %v2865, 5
      %v2868 = vor.u32 %v2864, %v2867
      %v2870 = vshrl.u32 %v2832, 16
      %v2872 = vrot.slane %v2870, 4
      %v2873 = vshll.u32 %v2832, 16
      %v2875 = vrot.slane %v2873, 5
      %v2876 = vor.u32 %v2872, %v2875
      %v2878 = vshrl.u32 %v2833, 16
      %v2880 = vrot.slane %v2878, 4
      %v2881 = vshll.u32 %v2833, 16
      %v2883 = vrot.slane %v2881, 5
      %v2884 = vor.u32 %v2880, %v2883
      %v2886 = vshrl.u32 %v2834, 16
      %v2888 = vrot.slane %v2886, 4
      %v2889 = vshll.u32 %v2834, 16
      %v2891 = vrot.slane %v2889, 5
      %v2892 = vor.u32 %v2888, %v2891
      %v2894 = vshrl.u32 %v2835, 16
      %v2896 = vrot.slane %v2894, 4
      %v2897 = vshll.u32 %v2835, 16
      %v2899 = vrot.slane %v2897, 5
      %v2900 = vor.u32 %v2896, %v2899
      %v2902 = vshrl.u32 %v2836, 16
      %v2904 = vrot.slane %v2902, 4
      %v2905 = vshll.u32 %v2836, 16
      %v2907 = vrot.slane %v2905, 5
      %v2908 = vor.u32 %v2904, %v2907
      %v2910 = vshrl.u32 %v2837, 16
      %v2912 = vrot.slane %v2910, 4
      %v2913 = vshll.u32 %v2837, 16
      %v2915 = vrot.slane %v2913, 5
      %v2916 = vor.u32 %v2912, %v2915
      %v2918 = vshrl.u32 %v2838, 16
      %v2920 = vrot.slane %v2918, 4
      %v2921 = vshll.u32 %v2838, 16
      %v2923 = vrot.slane %v2921, 5
      %v2924 = vor.u32 %v2920, %v2923
      %v2926 = vshrl.u32 %v2839, 16
      %v2928 = vrot.slane %v2926, 4
      %v2929 = vshll.u32 %v2839, 16
      %v2931 = vrot.slane %v2929, 5
      %v2932 = vor.u32 %v2928, %v2931
      %v2934 = vshrl.u32 %v2840, 16
      %v2936 = vrot.slane %v2934, 4
      %v2937 = vshll.u32 %v2840, 16
      %v2939 = vrot.slane %v2937, 5
      %v2940 = vor.u32 %v2936, %v2939
      %v2942 = vshrl.u32 %v2841, 16
      %v2944 = vrot.slane %v2942, 4
      %v2945 = vshll.u32 %v2841, 16
      %v2947 = vrot.slane %v2945, 5
      %v2948 = vor.u32 %v2944, %v2947
      %v2950 = vshrl.u32 %v2842, 16
      %v2952 = vrot.slane %v2950, 4
      %v2953 = vshll.u32 %v2842, 16
      %v2955 = vrot.slane %v2953, 5
      %v2956 = vor.u32 %v2952, %v2955
      %v2958 = vshrl.u32 %v2843, 16
      %v2960 = vrot.slane %v2958, 4
      %v2961 = vshll.u32 %v2843, 16
      %v2963 = vrot.slane %v2961, 5
      %v2964 = vor.u32 %v2960, %v2963
      %v2966 = vshrl.u32 %v2844, 16
      %v2968 = vrot.slane %v2966, 4
      %v2969 = vshll.u32 %v2844, 16
      %v2971 = vrot.slane %v2969, 5
      %v2972 = vor.u32 %v2968, %v2971
      %2973 = vrot.lane.b32.xlu0 %v2852, 4
      %v2974 = vpop.permute.xlu0 %2973
      %2975 = vrot.lane.b32.xlu0 %v2860, 4
      %v2976 = vpop.permute.xlu0 %2975
      %2977 = vrot.lane.b32.xlu0 %v2868, 4
      %v2978 = vpop.permute.xlu0 %2977
      %2979 = vrot.lane.b32.xlu0 %v2876, 4
      %v2980 = vpop.permute.xlu0 %2979
      %2981 = vrot.lane.b32.xlu0 %v2884, 4
      %v2982 = vpop.permute.xlu0 %2981
      %2983 = vrot.lane.b32.xlu0 %v2892, 4
      %v2984 = vpop.permute.xlu0 %2983
      %2985 = vrot.lane.b32.xlu0 %v2900, 4
      %v2986 = vpop.permute.xlu0 %2985
      %2987 = vrot.lane.b32.xlu0 %v2908, 4
      %v2988 = vpop.permute.xlu0 %2987
      %2989 = vrot.lane.b32.xlu0 %v2916, 4
      %v2990 = vpop.permute.xlu0 %2989
      %2991 = vrot.lane.b32.xlu0 %v2924, 4
      %v2992 = vpop.permute.xlu0 %2991
      %2993 = vrot.lane.b32.xlu0 %v2932, 4
      %v2994 = vpop.permute.xlu0 %2993
      %2995 = vrot.lane.b32.xlu0 %v2940, 4
      %v2996 = vpop.permute.xlu0 %2995
      %2997 = vrot.lane.b32.xlu0 %v2948, 4
      %v2998 = vpop.permute.xlu0 %2997
      %2999 = vrot.lane.b32.xlu0 %v2956, 4
      %v3000 = vpop.permute.xlu0 %2999
      %3001 = vrot.lane.b32.xlu0 %v2964, 4
      %v3002 = vpop.permute.xlu0 %3001
      %3003 = vrot.lane.b32.xlu0 %v2972, 4
      %v3004 = vpop.permute.xlu0 %3003
      %v3021 = vunpack.c.l.b16 %v2685
      %v3022 = vunpack.c.l.b16 %v2686
      %v3023 = vunpack.c.l.b16 %v2687
      %v3024 = vunpack.c.l.b16 %v2688
      %v3025 = vunpack.c.l.b16 %v2689
      %v3026 = vunpack.c.l.b16 %v2690
      %v3027 = vunpack.c.l.b16 %v2691
      %v3028 = vunpack.c.l.b16 %v2692
      %v3029 = vunpack.c.l.b16 %v2693
      %v3030 = vunpack.c.l.b16 %v2694
      %v3031 = vunpack.c.l.b16 %v2695
      %v3032 = vunpack.c.l.b16 %v2696
      %v3033 = vunpack.c.l.b16 %v2697
      %v3034 = vunpack.c.l.b16 %v2698
      %v3035 = vunpack.c.l.b16 %v2699
      %v3036 = vunpack.c.l.b16 %v2700
      %v3037 = vpack.c.b16 %v3021, %v3021
      %v3038 = vpack.c.b16 %v3022, %v3022
      %v3039 = vpack.c.b16 %v3023, %v3023
      %v3040 = vpack.c.b16 %v3024, %v3024
      %v3041 = vpack.c.b16 %v3025, %v3025
      %v3042 = vpack.c.b16 %v3026, %v3026
      %v3043 = vpack.c.b16 %v3027, %v3027
      %v3044 = vpack.c.b16 %v3028, %v3028
      %v3045 = vpack.c.b16 %v3029, %v3029
      %v3046 = vpack.c.b16 %v3030, %v3030
      %v3047 = vpack.c.b16 %v3031, %v3031
      %v3048 = vpack.c.b16 %v3032, %v3032
      %v3049 = vpack.c.b16 %v3033, %v3033
      %v3050 = vpack.c.b16 %v3034, %v3034
      %v3051 = vpack.c.b16 %v3035, %v3035
      %v3052 = vpack.c.b16 %v3036, %v3036
      %v3053 = vrot.slane %v2829, 5
      %v3054 = vrot.slane %v3037, 5
      %v3055 = vsel %vm933, %v3053, %v3054
      %v3056 = vrot.slane %v2830, 5
      %v3057 = vrot.slane %v3038, 5
      %v3058 = vsel %vm933, %v3056, %v3057
      %v3059 = vrot.slane %v2831, 5
      %v3060 = vrot.slane %v3039, 5
      %v3061 = vsel %vm933, %v3059, %v3060
      %v3062 = vrot.slane %v2832, 5
      %v3063 = vrot.slane %v3040, 5
      %v3064 = vsel %vm933, %v3062, %v3063
      %v3065 = vrot.slane %v2833, 5
      %v3066 = vrot.slane %v3041, 5
      %v3067 = vsel %vm933, %v3065, %v3066
      %v3068 = vrot.slane %v2834, 5
      %v3069 = vrot.slane %v3042, 5
      %v3070 = vsel %vm933, %v3068, %v3069
      %v3071 = vrot.slane %v2835, 5
      %v3072 = vrot.slane %v3043, 5
      %v3073 = vsel %vm933, %v3071, %v3072
      %v3074 = vrot.slane %v2836, 5
      %v3075 = vrot.slane %v3044, 5
      %v3076 = vsel %vm933, %v3074, %v3075
      %v3077 = vrot.slane %v2837, 5
      %v3078 = vrot.slane %v3045, 5
      %v3079 = vsel %vm933, %v3077, %v3078
      %v3080 = vrot.slane %v2838, 5
      %v3081 = vrot.slane %v3046, 5
      %v3082 = vsel %vm933, %v3080, %v3081
      %v3083 = vrot.slane %v2839, 5
      %v3084 = vrot.slane %v3047, 5
      %v3085 = vsel %vm933, %v3083, %v3084
      %v3086 = vrot.slane %v2840, 5
      %v3087 = vrot.slane %v3048, 5
      %v3088 = vsel %vm933, %v3086, %v3087
      %v3089 = vrot.slane %v2841, 5
      %v3090 = vrot.slane %v3049, 5
      %v3091 = vsel %vm933, %v3089, %v3090
      %v3092 = vrot.slane %v2842, 5
      %v3093 = vrot.slane %v3050, 5
      %v3094 = vsel %vm933, %v3092, %v3093
      %v3095 = vrot.slane %v2843, 5
      %v3096 = vrot.slane %v3051, 5
      %v3097 = vsel %vm933, %v3095, %v3096
      %v3098 = vrot.slane %v2844, 5
      %v3099 = vrot.slane %v3052, 5
      %v3100 = vsel %vm933, %v3098, %v3099
      %3101 = vrot.lane.b32.xlu0 %v3053, 8
      %v3102 = vpop.permute.xlu0 %3101
      %3103 = vrot.lane.b32.xlu0 %v3055, 8
      %v3104 = vpop.permute.xlu0 %3103
      %3105 = vrot.lane.b32.xlu0 %v3056, 8
      %v3106 = vpop.permute.xlu0 %3105
      %3107 = vrot.lane.b32.xlu0 %v3058, 8
      %v3108 = vpop.permute.xlu0 %3107
      %3109 = vrot.lane.b32.xlu0 %v3059, 8
      %v3110 = vpop.permute.xlu0 %3109
      %3111 = vrot.lane.b32.xlu0 %v3061, 8
      %v3112 = vpop.permute.xlu0 %3111
      %3113 = vrot.lane.b32.xlu0 %v3062, 8
      %v3114 = vpop.permute.xlu0 %3113
      %3115 = vrot.lane.b32.xlu0 %v3064, 8
      %v3116 = vpop.permute.xlu0 %3115
      %3117 = vrot.lane.b32.xlu0 %v3065, 8
      %v3118 = vpop.permute.xlu0 %3117
      %3119 = vrot.lane.b32.xlu0 %v3067, 8
      %v3120 = vpop.permute.xlu0 %3119
      %3121 = vrot.lane.b32.xlu0 %v3068, 8
      %v3122 = vpop.permute.xlu0 %3121
      %3123 = vrot.lane.b32.xlu0 %v3070, 8
      %v3124 = vpop.permute.xlu0 %3123
      %3125 = vrot.lane.b32.xlu0 %v3071, 8
      %v3126 = vpop.permute.xlu0 %3125
      %3127 = vrot.lane.b32.xlu0 %v3073, 8
      %v3128 = vpop.permute.xlu0 %3127
      %3129 = vrot.lane.b32.xlu0 %v3074, 8
      %v3130 = vpop.permute.xlu0 %3129
      %3131 = vrot.lane.b32.xlu0 %v3076, 8
      %v3132 = vpop.permute.xlu0 %3131
      %3133 = vrot.lane.b32.xlu0 %v3077, 8
      %v3134 = vpop.permute.xlu0 %3133
      %3135 = vrot.lane.b32.xlu0 %v3079, 8
      %v3136 = vpop.permute.xlu0 %3135
      %3137 = vrot.lane.b32.xlu0 %v3080, 8
      %v3138 = vpop.permute.xlu0 %3137
      %3139 = vrot.lane.b32.xlu0 %v3082, 8
      %v3140 = vpop.permute.xlu0 %3139
      %3141 = vrot.lane.b32.xlu0 %v3083, 8
      %v3142 = vpop.permute.xlu0 %3141
      %3143 = vrot.lane.b32.xlu0 %v3085, 8
      %v3144 = vpop.permute.xlu0 %3143
      %3145 = vrot.lane.b32.xlu0 %v3086, 8
      %v3146 = vpop.permute.xlu0 %3145
      %3147 = vrot.lane.b32.xlu0 %v3088, 8
      %v3148 = vpop.permute.xlu0 %3147
      %3149 = vrot.lane.b32.xlu0 %v3089, 8
      %v3150 = vpop.permute.xlu0 %3149
      %3151 = vrot.lane.b32.xlu0 %v3091, 8
      %v3152 = vpop.permute.xlu0 %3151
      %3153 = vrot.lane.b32.xlu0 %v3092, 8
      %v3154 = vpop.permute.xlu0 %3153
      %3155 = vrot.lane.b32.xlu0 %v3094, 8
      %v3156 = vpop.permute.xlu0 %3155
      %3157 = vrot.lane.b32.xlu0 %v3095, 8
      %v3158 = vpop.permute.xlu0 %3157
      %3159 = vrot.lane.b32.xlu0 %v3097, 8
      %v3160 = vpop.permute.xlu0 %3159
      %3161 = vrot.lane.b32.xlu0 %v3098, 8
      %v3162 = vpop.permute.xlu0 %3161
      %3163 = vrot.lane.b32.xlu0 %v3100, 8
      %v3164 = vpop.permute.xlu0 %3163
      %v3167 = vsel %vm1046, %v2797, %v2974
      %v3169 = vsel %vm1046, %v2798, %v2974
      %v3172 = vsel %vm1046, %v2799, %v2976
      %v3174 = vsel %vm1046, %v2800, %v2976
      %v3177 = vsel %vm1046, %v2801, %v2978
      %v3179 = vsel %vm1046, %v2802, %v2978
      %v3182 = vsel %vm1046, %v2803, %v2980
      %v3184 = vsel %vm1046, %v2804, %v2980
      %v3187 = vsel %vm1046, %v2805, %v2982
      %v3189 = vsel %vm1046, %v2806, %v2982
      %v3192 = vsel %vm1046, %v2807, %v2984
      %v3194 = vsel %vm1046, %v2808, %v2984
      %v3197 = vsel %vm1046, %v2809, %v2986
      %v3199 = vsel %vm1046, %v2810, %v2986
      %v3202 = vsel %vm1046, %v2811, %v2988
      %v3204 = vsel %vm1046, %v2812, %v2988
      %v3207 = vsel %vm1046, %v2813, %v2990
      %v3209 = vsel %vm1046, %v2814, %v2990
      %v3212 = vsel %vm1046, %v2815, %v2992
      %v3214 = vsel %vm1046, %v2816, %v2992
      %v3217 = vsel %vm1046, %v2817, %v2994
      %v3219 = vsel %vm1046, %v2818, %v2994
      %v3222 = vsel %vm1046, %v2819, %v2996
      %v3224 = vsel %vm1046, %v2820, %v2996
      %v3227 = vsel %vm1046, %v2821, %v2998
      %v3229 = vsel %vm1046, %v2822, %v2998
      %v3232 = vsel %vm1046, %v2823, %v3000
      %v3234 = vsel %vm1046, %v2824, %v3000
      %v3237 = vsel %vm1046, %v2825, %v3002
      %v3239 = vsel %vm1046, %v2826, %v3002
      %v3242 = vsel %vm1046, %v2827, %v3004
      %v3244 = vsel %vm1046, %v2828, %v3004
      %v3246 = vsel %vm1127, %v3167, %v3102
      %v3248 = vsel %vm1127, %v3169, %v3104
      %v3250 = vsel %vm1127, %v3172, %v3106
      %v3252 = vsel %vm1127, %v3174, %v3108
      %v3254 = vsel %vm1127, %v3177, %v3110
      %v3256 = vsel %vm1127, %v3179, %v3112
      %v3258 = vsel %vm1127, %v3182, %v3114
      %v3260 = vsel %vm1127, %v3184, %v3116
      %v3262 = vsel %vm1127, %v3187, %v3118
      %v3264 = vsel %vm1127, %v3189, %v3120
      %v3266 = vsel %vm1127, %v3192, %v3122
      %v3268 = vsel %vm1127, %v3194, %v3124
      %v3270 = vsel %vm1127, %v3197, %v3126
      %v3272 = vsel %vm1127, %v3199, %v3128
      %v3274 = vsel %vm1127, %v3202, %v3130
      %v3276 = vsel %vm1127, %v3204, %v3132
      %v3278 = vsel %vm1127, %v3207, %v3134
      %v3280 = vsel %vm1127, %v3209, %v3136
      %v3282 = vsel %vm1127, %v3212, %v3138
      %v3284 = vsel %vm1127, %v3214, %v3140
      %v3286 = vsel %vm1127, %v3217, %v3142
      %v3288 = vsel %vm1127, %v3219, %v3144
      %v3290 = vsel %vm1127, %v3222, %v3146
      %v3292 = vsel %vm1127, %v3224, %v3148
      %v3294 = vsel %vm1127, %v3227, %v3150
      %v3296 = vsel %vm1127, %v3229, %v3152
      %v3298 = vsel %vm1127, %v3232, %v3154
      %v3300 = vsel %vm1127, %v3234, %v3156
      %v3302 = vsel %vm1127, %v3237, %v3158
      %v3304 = vsel %vm1127, %v3239, %v3160
      %v3306 = vsel %vm1127, %v3242, %v3162
      %v3308 = vsel %vm1127, %v3244, %v3164
      %v3309 = vshrl.u32 %v3246, 16
      %v3311 = vrot.slane %v3309, 3
      %v3312 = vshll.u32 %v3246, 16
      %v3314 = vrot.slane %v3312, 4
      %v3315 = vor.u32 %v3311, %v3314
      %v3316 = vshrl.u32 %v3248, 16
      %v3318 = vrot.slane %v3316, 3
      %v3319 = vshll.u32 %v3248, 16
      %v3321 = vrot.slane %v3319, 4
      %v3322 = vor.u32 %v3318, %v3321
      %v3323 = vsel %vm1192, %v3315, %v3322
      %v3324 = vshrl.u32 %v3250, 16
      %v3326 = vrot.slane %v3324, 3
      %v3327 = vshll.u32 %v3250, 16
      %v3329 = vrot.slane %v3327, 4
      %v3330 = vor.u32 %v3326, %v3329
      %v3331 = vshrl.u32 %v3252, 16
      %v3333 = vrot.slane %v3331, 3
      %v3334 = vshll.u32 %v3252, 16
      %v3336 = vrot.slane %v3334, 4
      %v3337 = vor.u32 %v3333, %v3336
      %v3338 = vsel %vm1192, %v3330, %v3337
      %v3339 = vshrl.u32 %v3254, 16
      %v3341 = vrot.slane %v3339, 3
      %v3342 = vshll.u32 %v3254, 16
      %v3344 = vrot.slane %v3342, 4
      %v3345 = vor.u32 %v3341, %v3344
      %v3346 = vshrl.u32 %v3256, 16
      %v3348 = vrot.slane %v3346, 3
      %v3349 = vshll.u32 %v3256, 16
      %v3351 = vrot.slane %v3349, 4
      %v3352 = vor.u32 %v3348, %v3351
      %v3353 = vsel %vm1192, %v3345, %v3352
      %v3354 = vshrl.u32 %v3258, 16
      %v3356 = vrot.slane %v3354, 3
      %v3357 = vshll.u32 %v3258, 16
      %v3359 = vrot.slane %v3357, 4
      %v3360 = vor.u32 %v3356, %v3359
      %v3361 = vshrl.u32 %v3260, 16
      %v3363 = vrot.slane %v3361, 3
      %v3364 = vshll.u32 %v3260, 16
      %v3366 = vrot.slane %v3364, 4
      %v3367 = vor.u32 %v3363, %v3366
      %v3368 = vsel %vm1192, %v3360, %v3367
      %v3369 = vshrl.u32 %v3262, 16
      %v3371 = vrot.slane %v3369, 3
      %v3372 = vshll.u32 %v3262, 16
      %v3374 = vrot.slane %v3372, 4
      %v3375 = vor.u32 %v3371, %v3374
      %v3376 = vshrl.u32 %v3264, 16
      %v3378 = vrot.slane %v3376, 3
      %v3379 = vshll.u32 %v3264, 16
      %v3381 = vrot.slane %v3379, 4
      %v3382 = vor.u32 %v3378, %v3381
      %v3383 = vsel %vm1192, %v3375, %v3382
      %v3384 = vshrl.u32 %v3266, 16
      %v3386 = vrot.slane %v3384, 3
      %v3387 = vshll.u32 %v3266, 16
      %v3389 = vrot.slane %v3387, 4
      %v3390 = vor.u32 %v3386, %v3389
      %v3391 = vshrl.u32 %v3268, 16
      %v3393 = vrot.slane %v3391, 3
      %v3394 = vshll.u32 %v3268, 16
      %v3396 = vrot.slane %v3394, 4
      %v3397 = vor.u32 %v3393, %v3396
      %v3398 = vsel %vm1192, %v3390, %v3397
      %v3399 = vshrl.u32 %v3270, 16
      %v3401 = vrot.slane %v3399, 3
      %v3402 = vshll.u32 %v3270, 16
      %v3404 = vrot.slane %v3402, 4
      %v3405 = vor.u32 %v3401, %v3404
      %v3406 = vshrl.u32 %v3272, 16
      %v3408 = vrot.slane %v3406, 3
      %v3409 = vshll.u32 %v3272, 16
      %v3411 = vrot.slane %v3409, 4
      %v3412 = vor.u32 %v3408, %v3411
      %v3413 = vsel %vm1192, %v3405, %v3412
      %v3414 = vshrl.u32 %v3274, 16
      %v3416 = vrot.slane %v3414, 3
      %v3417 = vshll.u32 %v3274, 16
      %v3419 = vrot.slane %v3417, 4
      %v3420 = vor.u32 %v3416, %v3419
      %v3421 = vshrl.u32 %v3276, 16
      %v3423 = vrot.slane %v3421, 3
      %v3424 = vshll.u32 %v3276, 16
      %v3426 = vrot.slane %v3424, 4
      %v3427 = vor.u32 %v3423, %v3426
      %v3428 = vsel %vm1192, %v3420, %v3427
      %v3429 = vshrl.u32 %v3278, 16
      %v3431 = vrot.slane %v3429, 3
      %v3432 = vshll.u32 %v3278, 16
      %v3434 = vrot.slane %v3432, 4
      %v3435 = vor.u32 %v3431, %v3434
      %v3436 = vshrl.u32 %v3280, 16
      %v3438 = vrot.slane %v3436, 3
      %v3439 = vshll.u32 %v3280, 16
      %v3441 = vrot.slane %v3439, 4
      %v3442 = vor.u32 %v3438, %v3441
      %v3443 = vsel %vm1192, %v3435, %v3442
      %v3444 = vshrl.u32 %v3282, 16
      %v3446 = vrot.slane %v3444, 3
      %v3447 = vshll.u32 %v3282, 16
      %v3449 = vrot.slane %v3447, 4
      %v3450 = vor.u32 %v3446, %v3449
      %v3451 = vshrl.u32 %v3284, 16
      %v3453 = vrot.slane %v3451, 3
      %v3454 = vshll.u32 %v3284, 16
      %v3456 = vrot.slane %v3454, 4
      %v3457 = vor.u32 %v3453, %v3456
      %v3458 = vsel %vm1192, %v3450, %v3457
      %v3459 = vshrl.u32 %v3286, 16
      %v3461 = vrot.slane %v3459, 3
      %v3462 = vshll.u32 %v3286, 16
      %v3464 = vrot.slane %v3462, 4
      %v3465 = vor.u32 %v3461, %v3464
      %v3466 = vshrl.u32 %v3288, 16
      %v3468 = vrot.slane %v3466, 3
      %v3469 = vshll.u32 %v3288, 16
      %v3471 = vrot.slane %v3469, 4
      %v3472 = vor.u32 %v3468, %v3471
      %v3473 = vsel %vm1192, %v3465, %v3472
      %v3474 = vshrl.u32 %v3290, 16
      %v3476 = vrot.slane %v3474, 3
      %v3477 = vshll.u32 %v3290, 16
      %v3479 = vrot.slane %v3477, 4
      %v3480 = vor.u32 %v3476, %v3479
      %v3481 = vshrl.u32 %v3292, 16
      %v3483 = vrot.slane %v3481, 3
      %v3484 = vshll.u32 %v3292, 16
      %v3486 = vrot.slane %v3484, 4
      %v3487 = vor.u32 %v3483, %v3486
      %v3488 = vsel %vm1192, %v3480, %v3487
      %v3489 = vshrl.u32 %v3294, 16
      %v3491 = vrot.slane %v3489, 3
      %v3492 = vshll.u32 %v3294, 16
      %v3494 = vrot.slane %v3492, 4
      %v3495 = vor.u32 %v3491, %v3494
      %v3496 = vshrl.u32 %v3296, 16
      %v3498 = vrot.slane %v3496, 3
      %v3499 = vshll.u32 %v3296, 16
      %v3501 = vrot.slane %v3499, 4
      %v3502 = vor.u32 %v3498, %v3501
      %v3503 = vsel %vm1192, %v3495, %v3502
      %v3504 = vshrl.u32 %v3298, 16
      %v3506 = vrot.slane %v3504, 3
      %v3507 = vshll.u32 %v3298, 16
      %v3509 = vrot.slane %v3507, 4
      %v3510 = vor.u32 %v3506, %v3509
      %v3511 = vshrl.u32 %v3300, 16
      %v3513 = vrot.slane %v3511, 3
      %v3514 = vshll.u32 %v3300, 16
      %v3516 = vrot.slane %v3514, 4
      %v3517 = vor.u32 %v3513, %v3516
      %v3518 = vsel %vm1192, %v3510, %v3517
      %v3519 = vshrl.u32 %v3302, 16
      %v3521 = vrot.slane %v3519, 3
      %v3522 = vshll.u32 %v3302, 16
      %v3524 = vrot.slane %v3522, 4
      %v3525 = vor.u32 %v3521, %v3524
      %v3526 = vshrl.u32 %v3304, 16
      %v3528 = vrot.slane %v3526, 3
      %v3529 = vshll.u32 %v3304, 16
      %v3531 = vrot.slane %v3529, 4
      %v3532 = vor.u32 %v3528, %v3531
      %v3533 = vsel %vm1192, %v3525, %v3532
      %v3534 = vshrl.u32 %v3306, 16
      %v3536 = vrot.slane %v3534, 3
      %v3537 = vshll.u32 %v3306, 16
      %v3539 = vrot.slane %v3537, 4
      %v3540 = vor.u32 %v3536, %v3539
      %v3541 = vshrl.u32 %v3308, 16
      %v3543 = vrot.slane %v3541, 3
      %v3544 = vshll.u32 %v3308, 16
      %v3546 = vrot.slane %v3544, 4
      %v3547 = vor.u32 %v3543, %v3546
      %v3548 = vsel %vm1192, %v3540, %v3547
      %v3551 = vunpack.c.l.b16 %v515
      %v3552 = vunpack.c.l.b16 %v516
      %v3553 = vpack.c.b16 %v3552, %v3551
      %v3555 = vsel %vm2351, %v3323, 0
      %v3558 = vsel %vm2351, %v3338, 0
      %v3561 = vsel %vm2351, %v3353, 0
      %v3564 = vsel %vm2351, %v3368, 0
      %v3567 = vsel %vm2351, %v3383, 0
      %v3570 = vsel %vm2351, %v3398, 0
      %v3573 = vsel %vm2351, %v3413, 0
      %v3576 = vsel %vm2351, %v3428, 0
      %v3579 = vsel %vm2351, %v3443, 0
      %v3582 = vsel %vm2351, %v3458, 0
      %v3585 = vsel %vm2351, %v3473, 0
      %v3588 = vsel %vm2351, %v3488, 0
      %v3591 = vsel %vm2351, %v3503, 0
      %v3594 = vsel %vm2351, %v3518, 0
      %v3597 = vsel %vm2351, %v3533, 0
      %v3600 = vsel %vm2351, %v3548, 0
      %v3603 = vsel %vm2400, %v3553, 0
      %3605 = vmatpush.bf16.msra.mxu0 0
      %3606 = vmatpush.bf16.msra.mxu0 0
      %3607 = vmatpush.bf16.msra.mxu0 0
      %3608 = vmatpush.bf16.msra.mxu0 0
      %3609 = vmatpush.bf16.msra.mxu0 0
      %3610 = vmatpush.bf16.msra.mxu0 0
      %3611 = vmatpush.bf16.msra.mxu0 0
      %3612 = vmatpush.bf16.msra.mxu0 %v3603
      %3613 = vmatmul.bf16.gmra.mxu0 %v3555
      %v3614 = vpop.f32.mrf.mxu0
      %v3615 = vadd.f32 0.0, %v3614
      %v3616 = vpop.f32.mrf.mxu0
      %v3617 = vadd.f32 0.0, %v3616
      %3618 = vmatmul.bf16.gmra.mxu0 %v3558
      %v3619 = vpop.f32.mrf.mxu0
      %v3620 = vadd.f32 0.0, %v3619
      %v3621 = vpop.f32.mrf.mxu0
      %v3622 = vadd.f32 0.0, %v3621
      %3623 = vmatmul.bf16.gmra.mxu0 %v3561
      %v3624 = vpop.f32.mrf.mxu0
      %v3625 = vadd.f32 0.0, %v3624
      %v3626 = vpop.f32.mrf.mxu0
      %v3627 = vadd.f32 0.0, %v3626
      %3628 = vmatmul.bf16.gmra.mxu0 %v3564
      %v3629 = vpop.f32.mrf.mxu0
      %v3630 = vadd.f32 0.0, %v3629
      %v3631 = vpop.f32.mrf.mxu0
      %v3632 = vadd.f32 0.0, %v3631
      %3633 = vmatmul.bf16.gmra.mxu0 %v3567
      %v3634 = vpop.f32.mrf.mxu0
      %v3635 = vadd.f32 0.0, %v3634
      %v3636 = vpop.f32.mrf.mxu0
      %v3637 = vadd.f32 0.0, %v3636
      %3638 = vmatmul.bf16.gmra.mxu0 %v3570
      %v3639 = vpop.f32.mrf.mxu0
      %v3640 = vadd.f32 0.0, %v3639
      %v3641 = vpop.f32.mrf.mxu0
      %v3642 = vadd.f32 0.0, %v3641
      %3643 = vmatmul.bf16.gmra.mxu0 %v3573
      %v3644 = vpop.f32.mrf.mxu0
      %v3645 = vadd.f32 0.0, %v3644
      %v3646 = vpop.f32.mrf.mxu0
      %v3647 = vadd.f32 0.0, %v3646
      %3648 = vmatmul.bf16.gmra.mxu0 %v3576
      %v3649 = vpop.f32.mrf.mxu0
      %v3650 = vadd.f32 0.0, %v3649
      %v3651 = vpop.f32.mrf.mxu0
      %v3652 = vadd.f32 0.0, %v3651
      %3653 = vmatmul.bf16.gmra.mxu0 %v3579
      %v3654 = vpop.f32.mrf.mxu0
      %v3655 = vadd.f32 0.0, %v3654
      %v3656 = vpop.f32.mrf.mxu0
      %v3657 = vadd.f32 0.0, %v3656
      %3658 = vmatmul.bf16.gmra.mxu0 %v3582
      %v3659 = vpop.f32.mrf.mxu0
      %v3660 = vadd.f32 0.0, %v3659
      %v3661 = vpop.f32.mrf.mxu0
      %v3662 = vadd.f32 0.0, %v3661
      %3663 = vmatmul.bf16.gmra.mxu0 %v3585
      %v3664 = vpop.f32.mrf.mxu0
      %v3665 = vadd.f32 0.0, %v3664
      %v3666 = vpop.f32.mrf.mxu0
      %v3667 = vadd.f32 0.0, %v3666
      %3668 = vmatmul.bf16.gmra.mxu0 %v3588
      %v3669 = vpop.f32.mrf.mxu0
      %v3670 = vadd.f32 0.0, %v3669
      %v3671 = vpop.f32.mrf.mxu0
      %v3672 = vadd.f32 0.0, %v3671
      %3673 = vmatmul.bf16.gmra.mxu0 %v3591
      %v3674 = vpop.f32.mrf.mxu0
      %v3675 = vadd.f32 0.0, %v3674
      %v3676 = vpop.f32.mrf.mxu0
      %v3677 = vadd.f32 0.0, %v3676
      %3678 = vmatmul.bf16.gmra.mxu0 %v3594
      %v3679 = vpop.f32.mrf.mxu0
      %v3680 = vadd.f32 0.0, %v3679
      %v3681 = vpop.f32.mrf.mxu0
      %v3682 = vadd.f32 0.0, %v3681
      %3683 = vmatmul.bf16.gmra.mxu0 %v3597
      %v3684 = vpop.f32.mrf.mxu0
      %v3685 = vadd.f32 0.0, %v3684
      %v3686 = vpop.f32.mrf.mxu0
      %v3687 = vadd.f32 0.0, %v3686
      %3688 = vmatmul.bf16.gmra.mxu0 %v3600
      %v3689 = vpop.f32.mrf.mxu0
      %v3690 = vadd.f32 0.0, %v3689
      %v3691 = vpop.f32.mrf.mxu0
      %v3692 = vadd.f32 0.0, %v3691
      %3693 = vdwg.mxu0
      %v3694 = vadd.f32 %v2557, %v3615
      %v3695 = vadd.f32 %v2559, %v3617
      %v3696 = vadd.f32 %v2562, %v3620
      %v3697 = vadd.f32 %v2564, %v3622
      %v3698 = vadd.f32 %v2567, %v3625
      %v3699 = vadd.f32 %v2569, %v3627
      %v3700 = vadd.f32 %v2572, %v3630
      %v3701 = vadd.f32 %v2574, %v3632
      %v3702 = vadd.f32 %v2577, %v3635
      %v3703 = vadd.f32 %v2579, %v3637
      %v3704 = vadd.f32 %v2582, %v3640
      %v3705 = vadd.f32 %v2584, %v3642
      %v3706 = vadd.f32 %v2587, %v3645
      %v3707 = vadd.f32 %v2589, %v3647
      %v3708 = vadd.f32 %v2592, %v3650
      %v3709 = vadd.f32 %v2594, %v3652
      %v3710 = vadd.f32 %v2597, %v3655
      %v3711 = vadd.f32 %v2599, %v3657
      %v3712 = vadd.f32 %v2602, %v3660
      %v3713 = vadd.f32 %v2604, %v3662
      %v3714 = vadd.f32 %v2607, %v3665
      %v3715 = vadd.f32 %v2609, %v3667
      %v3716 = vadd.f32 %v2612, %v3670
      %v3717 = vadd.f32 %v2614, %v3672
      %v3718 = vadd.f32 %v2617, %v3675
      %v3719 = vadd.f32 %v2619, %v3677
      %v3720 = vadd.f32 %v2622, %v3680
      %v3721 = vadd.f32 %v2624, %v3682
      %v3722 = vadd.f32 %v2627, %v3685
      %v3723 = vadd.f32 %v2629, %v3687
      %v3724 = vadd.f32 %v2632, %v3690
      %v3725 = vadd.f32 %v2634, %v3692
      %v3726 = vpack.c.bf16 %v3694, %v3694
      %v3727 = vpack.c.bf16 %v3695, %v3695
      %v3728 = vpack.c.bf16 %v3696, %v3696
      %v3729 = vpack.c.bf16 %v3697, %v3697
      %v3730 = vpack.c.bf16 %v3698, %v3698
      %v3731 = vpack.c.bf16 %v3699, %v3699
      %v3732 = vpack.c.bf16 %v3700, %v3700
      %v3733 = vpack.c.bf16 %v3701, %v3701
      %v3734 = vpack.c.bf16 %v3702, %v3702
      %v3735 = vpack.c.bf16 %v3703, %v3703
      %v3736 = vpack.c.bf16 %v3704, %v3704
      %v3737 = vpack.c.bf16 %v3705, %v3705
      %v3738 = vpack.c.bf16 %v3706, %v3706
      %v3739 = vpack.c.bf16 %v3707, %v3707
      %v3740 = vpack.c.bf16 %v3708, %v3708
      %v3741 = vpack.c.bf16 %v3709, %v3709
      %v3742 = vpack.c.bf16 %v3710, %v3710
      %v3743 = vpack.c.bf16 %v3711, %v3711
      %v3744 = vpack.c.bf16 %v3712, %v3712
      %v3745 = vpack.c.bf16 %v3713, %v3713
      %v3746 = vpack.c.bf16 %v3714, %v3714
      %v3747 = vpack.c.bf16 %v3715, %v3715
      %v3748 = vpack.c.bf16 %v3716, %v3716
      %v3749 = vpack.c.bf16 %v3717, %v3717
      %v3750 = vpack.c.bf16 %v3718, %v3718
      %v3751 = vpack.c.bf16 %v3719, %v3719
      %v3752 = vpack.c.bf16 %v3720, %v3720
      %v3753 = vpack.c.bf16 %v3721, %v3721
      %v3754 = vpack.c.bf16 %v3722, %v3722
      %v3755 = vpack.c.bf16 %v3723, %v3723
      %v3756 = vpack.c.bf16 %v3724, %v3724
      %v3757 = vpack.c.bf16 %v3725, %v3725
      %3758 = vst.msk [vmem:[%s230] sm:$0xf] %vm437, %v3726
      %3759 = vst.msk [vmem:[%s230 + $0x4] sm:$0xf] %vm437, %v3727
      %3760 = vst.msk [vmem:[%s230 + $0x8] sm:$0xf] %vm437, %v3728
      %3761 = vst.msk [vmem:[%s230 + $0xc] sm:$0xf] %vm437, %v3729
      %3762 = vst.msk [vmem:[%s230 + $0x10] sm:$0xf] %vm437, %v3730
      %3763 = vst.msk [vmem:[%s230 + $0x14] sm:$0xf] %vm437, %v3731
      %3764 = vst.msk [vmem:[%s230 + $0x18] sm:$0xf] %vm437, %v3732
      %3765 = vst.msk [vmem:[%s230 + $0x1c] sm:$0xf] %vm437, %v3733
      %3766 = vst.msk [vmem:[%s230 + $0x20] sm:$0xf] %vm437, %v3734
      %3767 = vst.msk [vmem:[%s230 + $0x24] sm:$0xf] %vm437, %v3735
      %3768 = vst.msk [vmem:[%s230 + $0x28] sm:$0xf] %vm437, %v3736
      %3769 = vst.msk [vmem:[%s230 + $0x2c] sm:$0xf] %vm437, %v3737
      %3770 = vst.msk [vmem:[%s230 + $0x30] sm:$0xf] %vm437, %v3738
      %3771 = vst.msk [vmem:[%s230 + $0x34] sm:$0xf] %vm437, %v3739
      %3772 = vst.msk [vmem:[%s230 + $0x38] sm:$0xf] %vm437, %v3740
      %3773 = vst.msk [vmem:[%s230 + $0x3c] sm:$0xf] %vm437, %v3741
      %3774 = vst.msk [vmem:[%s230 + $0x40] sm:$0xf] %vm437, %v3742
      %3775 = vst.msk [vmem:[%s230 + $0x44] sm:$0xf] %vm437, %v3743
      %3776 = vst.msk [vmem:[%s230 + $0x48] sm:$0xf] %vm437, %v3744
      %3777 = vst.msk [vmem:[%s230 + $0x4c] sm:$0xf] %vm437, %v3745
      %3778 = vst.msk [vmem:[%s230 + $0x50] sm:$0xf] %vm437, %v3746
      %3779 = vst.msk [vmem:[%s230 + $0x54] sm:$0xf] %vm437, %v3747
      %3780 = vst.msk [vmem:[%s230 + $0x58] sm:$0xf] %vm437, %v3748
      %3781 = vst.msk [vmem:[%s230 + $0x5c] sm:$0xf] %vm437, %v3749
      %3782 = vst.msk [vmem:[%s230 + $0x60] sm:$0xf] %vm437, %v3750
      %3783 = vst.msk [vmem:[%s230 + $0x64] sm:$0xf] %vm437, %v3751
      %3784 = vst.msk [vmem:[%s230 + $0x68] sm:$0xf] %vm437, %v3752
      %3785 = vst.msk [vmem:[%s230 + $0x6c] sm:$0xf] %vm437, %v3753
      %3786 = vst.msk [vmem:[%s230 + $0x70] sm:$0xf] %vm437, %v3754
      %3787 = vst.msk [vmem:[%s230 + $0x74] sm:$0xf] %vm437, %v3755
      %3788 = vst.msk [vmem:[%s230 + $0x78] sm:$0xf] %vm437, %v3756
      %3789 = vst.msk [vmem:[%s230 + $0x7c] sm:$0xf] %vm437, %v3757
      %v3790 = vsel %vm1046, %v3694, 0.0
      %v3791 = vsel %vm1046, %v3695, 0.0
      %v3792 = vadd.f32 %v3790, %v3791
      %v3793 = vsel %vm1046, %v3696, 0.0
      %v3794 = vadd.f32 %v3792, %v3793
      %v3795 = vsel %vm1046, %v3697, 0.0
      %v3796 = vadd.f32 %v3794, %v3795
      %v3797 = vsel %vm1046, %v3698, 0.0
      %v3798 = vadd.f32 %v3796, %v3797
      %v3799 = vsel %vm1046, %v3699, 0.0
      %v3800 = vadd.f32 %v3798, %v3799
      %v3801 = vsel %vm1046, %v3700, 0.0
      %v3802 = vadd.f32 %v3800, %v3801
      %v3803 = vsel %vm1046, %v3701, 0.0
      %v3804 = vadd.f32 %v3802, %v3803
      %v3805 = vsel %vm1046, %v3702, 0.0
      %v3806 = vadd.f32 %v3804, %v3805
      %v3807 = vsel %vm1046, %v3703, 0.0
      %v3808 = vadd.f32 %v3806, %v3807
      %v3809 = vsel %vm1046, %v3704, 0.0
      %v3810 = vadd.f32 %v3808, %v3809
      %v3811 = vsel %vm1046, %v3705, 0.0
      %v3812 = vadd.f32 %v3810, %v3811
      %v3813 = vsel %vm1046, %v3706, 0.0
      %v3814 = vadd.f32 %v3812, %v3813
      %v3815 = vsel %vm1046, %v3707, 0.0
      %v3816 = vadd.f32 %v3814, %v3815
      %v3817 = vsel %vm1046, %v3708, 0.0
      %v3818 = vadd.f32 %v3816, %v3817
      %v3819 = vsel %vm1046, %v3709, 0.0
      %v3820 = vadd.f32 %v3818, %v3819
      %v3821 = vsel %vm1046, %v3710, 0.0
      %v3822 = vadd.f32 %v3820, %v3821
      %v3823 = vsel %vm1046, %v3711, 0.0
      %v3824 = vadd.f32 %v3822, %v3823
      %v3825 = vsel %vm1046, %v3712, 0.0
      %v3826 = vadd.f32 %v3824, %v3825
      %v3827 = vsel %vm1046, %v3713, 0.0
      %v3828 = vadd.f32 %v3826, %v3827
      %v3829 = vsel %vm1046, %v3714, 0.0
      %v3830 = vadd.f32 %v3828, %v3829
      %v3831 = vsel %vm1046, %v3715, 0.0
      %v3832 = vadd.f32 %v3830, %v3831
      %v3833 = vsel %vm1046, %v3716, 0.0
      %v3834 = vadd.f32 %v3832, %v3833
      %v3835 = vsel %vm1046, %v3717, 0.0
      %v3836 = vadd.f32 %v3834, %v3835
      %v3837 = vsel %vm1046, %v3718, 0.0
      %v3838 = vadd.f32 %v3836, %v3837
      %v3839 = vsel %vm1046, %v3719, 0.0
      %v3840 = vadd.f32 %v3838, %v3839
      %v3841 = vsel %vm1046, %v3720, 0.0
      %v3842 = vadd.f32 %v3840, %v3841
      %v3843 = vsel %vm1046, %v3721, 0.0
      %v3844 = vadd.f32 %v3842, %v3843
      %v3845 = vsel %vm1046, %v3722, 0.0
      %v3846 = vadd.f32 %v3844, %v3845
      %v3847 = vsel %vm1046, %v3723, 0.0
      %v3848 = vadd.f32 %v3846, %v3847
      %v3849 = vsel %vm1046, %v3724, 0.0
      %v3850 = vadd.f32 %v3848, %v3849
      %v3851 = vsel %vm1046, %v3725, 0.0
      %v3852 = vadd.f32 %v3850, %v3851
      %v3853 = vrot.slane %v3852, 4
      %v3854 = vadd.f32 %v3852, %v3853
      %v3855 = vrot.slane %v3854, 2
      %v3856 = vadd.f32 %v3854, %v3855
      %v3857 = vrot.slane %v3856, 1
      %v3858 = vadd.f32 %v3856, %v3857
      %v3859 = vmul.f32 %v3694, %v3694
      %v3860 = vmul.f32 %v3695, %v3695
      %v3861 = vmul.f32 %v3696, %v3696
      %v3862 = vmul.f32 %v3697, %v3697
      %v3863 = vmul.f32 %v3698, %v3698
      %v3864 = vmul.f32 %v3699, %v3699
      %v3865 = vmul.f32 %v3700, %v3700
      %v3866 = vmul.f32 %v3701, %v3701
      %v3867 = vmul.f32 %v3702, %v3702
      %v3868 = vmul.f32 %v3703, %v3703
      %v3869 = vmul.f32 %v3704, %v3704
      %v3870 = vmul.f32 %v3705, %v3705
      %v3871 = vmul.f32 %v3706, %v3706
      %v3872 = vmul.f32 %v3707, %v3707
      %v3873 = vmul.f32 %v3708, %v3708
      %v3874 = vmul.f32 %v3709, %v3709
      %v3875 = vmul.f32 %v3710, %v3710
      %v3876 = vmul.f32 %v3711, %v3711
      %v3877 = vmul.f32 %v3712, %v3712
      %v3878 = vmul.f32 %v3713, %v3713
      %v3879 = vmul.f32 %v3714, %v3714
      %v3880 = vmul.f32 %v3715, %v3715
      %v3881 = vmul.f32 %v3716, %v3716
      %v3882 = vmul.f32 %v3717, %v3717
      %v3883 = vmul.f32 %v3718, %v3718
      %v3884 = vmul.f32 %v3719, %v3719
      %v3885 = vmul.f32 %v3720, %v3720
      %v3886 = vmul.f32 %v3721, %v3721
      %v3887 = vmul.f32 %v3722, %v3722
      %v3888 = vmul.f32 %v3723, %v3723
      %v3889 = vmul.f32 %v3724, %v3724
      %v3890 = vmul.f32 %v3725, %v3725
      %v3891 = vsel %vm1046, %v3859, 0.0
      %v3892 = vsel %vm1046, %v3860, 0.0
      %v3893 = vadd.f32 %v3891, %v3892
      %v3894 = vsel %vm1046, %v3861, 0.0
      %v3895 = vadd.f32 %v3893, %v3894
      %v3896 = vsel %vm1046, %v3862, 0.0
      %v3897 = vadd.f32 %v3895, %v3896
      %v3898 = vsel %vm1046, %v3863, 0.0
      %v3899 = vadd.f32 %v3897, %v3898
      %v3900 = vsel %vm1046, %v3864, 0.0
      %v3901 = vadd.f32 %v3899, %v3900
      %v3902 = vsel %vm1046, %v3865, 0.0
      %v3903 = vadd.f32 %v3901, %v3902
      %v3904 = vsel %vm1046, %v3866, 0.0
      %v3905 = vadd.f32 %v3903, %v3904
      %v3906 = vsel %vm1046, %v3867, 0.0
      %v3907 = vadd.f32 %v3905, %v3906
      %v3908 = vsel %vm1046, %v3868, 0.0
      %v3909 = vadd.f32 %v3907, %v3908
      %v3910 = vsel %vm1046, %v3869, 0.0
      %v3911 = vadd.f32 %v3909, %v3910
      %v3912 = vsel %vm1046, %v3870, 0.0
      %v3913 = vadd.f32 %v3911, %v3912
      %v3914 = vsel %vm1046, %v3871, 0.0
      %v3915 = vadd.f32 %v3913, %v3914
      %v3916 = vsel %vm1046, %v3872, 0.0
      %v3917 = vadd.f32 %v3915, %v3916
      %v3918 = vsel %vm1046, %v3873, 0.0
      %v3919 = vadd.f32 %v3917, %v3918
      %v3920 = vsel %vm1046, %v3874, 0.0
      %v3921 = vadd.f32 %v3919, %v3920
      %v3922 = vsel %vm1046, %v3875, 0.0
      %v3923 = vadd.f32 %v3921, %v3922
      %v3924 = vsel %vm1046, %v3876, 0.0
      %v3925 = vadd.f32 %v3923, %v3924
      %v3926 = vsel %vm1046, %v3877, 0.0
      %v3927 = vadd.f32 %v3925, %v3926
      %v3928 = vsel %vm1046, %v3878, 0.0
      %v3929 = vadd.f32 %v3927, %v3928
      %v3930 = vsel %vm1046, %v3879, 0.0
      %v3931 = vadd.f32 %v3929, %v3930
      %v3932 = vsel %vm1046, %v3880, 0.0
      %v3933 = vadd.f32 %v3931, %v3932
      %v3934 = vsel %vm1046, %v3881, 0.0
      %v3935 = vadd.f32 %v3933, %v3934
      %v3936 = vsel %vm1046, %v3882, 0.0
      %v3937 = vadd.f32 %v3935, %v3936
      %v3938 = vsel %vm1046, %v3883, 0.0
      %v3939 = vadd.f32 %v3937, %v3938
      %v3940 = vsel %vm1046, %v3884, 0.0
      %v3941 = vadd.f32 %v3939, %v3940
      %v3942 = vsel %vm1046, %v3885, 0.0
      %v3943 = vadd.f32 %v3941, %v3942
      %v3944 = vsel %vm1046, %v3886, 0.0
      %v3945 = vadd.f32 %v3943, %v3944
      %v3946 = vsel %vm1046, %v3887, 0.0
      %v3947 = vadd.f32 %v3945, %v3946
      %v3948 = vsel %vm1046, %v3888, 0.0
      %v3949 = vadd.f32 %v3947, %v3948
      %v3950 = vsel %vm1046, %v3889, 0.0
      %v3951 = vadd.f32 %v3949, %v3950
      %v3952 = vsel %vm1046, %v3890, 0.0
      %v3953 = vadd.f32 %v3951, %v3952
      %v3954 = vrot.slane %v3953, 4
      %v3955 = vadd.f32 %v3953, %v3954
      %v3956 = vrot.slane %v3955, 2
      %v3957 = vadd.f32 %v3955, %v3956
      %v3958 = vrot.slane %v3957, 1
      %v3959 = vadd.f32 %v3957, %v3958
      %3961 = vrot.lane.b32.xlu0 %v3959, 4
      %v3962 = vpop.permute.xlu0 %3961
      %v3964 = vsel %vm1046, %v3858, %v3962
      %vm3965 = vcmask 57344
      %3966 = vst.msk [vmem:[%s233] sm:$0x1] %vm3965, %v3964
      %p3967 = scmp.lt.s32.totalorder %s17, 1
      %s3968 = scalar_select %p3967, %s17, 1
      %s3969 = smul.addr %s3968, 32
      %s3970 = smul.addr %s3969, 4
      %s3971 = scalar_lea.vmem %s4, %s3970
      %p3972 = scmp.lt.s32.totalorder %s17, 1
      %s3973 = scalar_select %p3972, %s17, 1
      %s3974 = scalar_lea.vmem %s5, %s3973
      // Predicated region
      $region37: #{bottleneck_forward.5} parent=35 // pred_check
        %p3975 = pneg %p124
      $region38: #{bottleneck_forward.5} parent=35 // pred_check_branch
        %3977 = sbr.rel (%p3975) target = $region40
      $region39: #{bottleneck_forward.5} parent=35 // pred_region
        _
      $region40: #{bottleneck_forward.5} parent=35 // pred_fallthru
        _
      // Predicated region
      $region41: #{bottleneck_forward.5} parent=35 // pred_check
        %p3978 = pneg %p150
      $region42: #{bottleneck_forward.5} parent=35 // pred_check_branch
        %3980 = sbr.rel (%p3978) target = $region44
      $region43: #{bottleneck_forward.5} parent=35 // pred_region
        _
      $region44: #{bottleneck_forward.5} parent=35 // pred_fallthru
        _
    $region36: #{bottleneck_forward.5} parent=5 // pred_fallthru
      _
    %p3981 = scmp.le.s32.totalorder 2, %s12
    // Predicated region
    $region45: #{bottleneck_forward.5} parent=5 // pred_check
      %p3982 = pneg %p3981
    $region46: #{bottleneck_forward.5} parent=5 // pred_check_branch
      %3984 = sbr.rel (%p3982) target = $region48
    $region47: #{bottleneck_forward.5} parent=5 // pred_region
      %s3985 = ssub.s32 %s12, 2
      // Predicated region
      $region49: #{bottleneck_forward.5} parent=47 // pred_check
        %p3986 = pneg %p130
      $region50: #{bottleneck_forward.5} parent=47 // pred_check_branch
        %3988 = sbr.rel (%p3986) target = $region52
      $region51: #{bottleneck_forward.5} parent=47 // pred_region
        %p3989 = scmp.lt.s32.totalorder %s18, 1
        %s3990 = scalar_select %p3989, %s18, 1
        %s3991 = smul.addr %s3990, 32
        %s3992 = smul.addr %s3991, 4
        %s3993 = scalar_lea.vmem %s4, %s3992
      $region52: #{bottleneck_forward.5} parent=47 // pred_fallthru
        _
      // Predicated region
      $region53: #{bottleneck_forward.5} parent=47 // pred_check
        %p3994 = pneg %p156
      $region54: #{bottleneck_forward.5} parent=47 // pred_check_branch
        %3996 = sbr.rel (%p3994) target = $region56
      $region55: #{bottleneck_forward.5} parent=47 // pred_region
        %p3997 = scmp.lt.s32.totalorder %s18, 1
        %s3998 = scalar_select %p3997, %s18, 1
        %s3999 = scalar_lea.vmem %s5, %s3998
      $region56: #{bottleneck_forward.5} parent=47 // pred_fallthru
        _
    $region48: #{bottleneck_forward.5} parent=5 // pred_fallthru
      _
  $region6: #{bottleneck_forward.5} parent=0 // loop_footer
    %s16 = sadd.s32 1, %s12
  $region7: #{bottleneck_forward.5} parent=0 // loop_footer_branch
    %11 = sbr.rel target = $region3
  $region8: #{bottleneck_forward.5} parent=0 // loop_exit
    _

</llo_original>
